<compile_context>
chip_gen: v6e
topology: v6e:2x2x1
jax: 0.10.0
libtpu: 0.0.40
codegen_flags: <defaults>
</compile_context>

<pallas_src>
import functools

import jax
import jax.numpy as jnp
from jax.experimental import pallas as pl
from jax.experimental.pallas import tpu as pltpu

CP = 128  # lane width (all packing stays inside one 128-lane group per matmul)


def _taps(k):
    """(oy, ox) offsets for a k x k 'same' conv, in (dy, dx) row-major order."""
    r = k // 2
    return [(dy - r, dx - r) for dy in range(k) for dx in range(k)]


# ----------------------------- Pallas kernel -------------------------------- #
def inception_kernel(x_ref, wa_ref, ba_ref, wb2_ref, wb3_ref, wb4_ref, bb_ref, o_ref,
                     *, H, W, c1, c2_0, c3_0):
    f32 = jnp.float32
    bf16 = jnp.bfloat16
    M = x_ref.shape[0]             # rows in this block (= whole images * H*W)
    y1_off = 9 * c2_0              # lane offset of the b1 (no-ReLU) result inside group 0

    x2d = x_ref[...]               # (M, CP) f32: pixels, channels zero-padded to 128 lanes

    # image-local row / col index of each flattened pixel (bit ops for power-of-two dims)
    p_idx = jax.lax.broadcasted_iota(jnp.int32, (M, 1), 0)
    if W & (W - 1) == 0:
        j_idx = p_idx & (W - 1)
        row = p_idx >> (W.bit_length() - 1)
    else:
        j_idx = p_idx % W
        row = p_idx // W
    if H & (H - 1) == 0:
        i_idx = row & (H - 1)
    else:
        i_idx = row % H
    lane = jax.lax.broadcasted_iota(jnp.int32, (1, CP), 1)
    laneA = jax.lax.broadcasted_iota(jnp.int32, (1, 2 * CP), 1)

    def shifted(v, delta):
        """Value at flattened pixel p + delta (circular; wrap is masked off by callers).
        pltpu.roll follows jnp.roll semantics: result[i] = v[i - shift]."""
        shift = (-delta) % M
        if shift == 0:
            return v
        return pltpu.roll(v, shift=shift, axis=0)

    # ---- stage A: all three first-level 1x1 convs (+folded BN) in ONE packed bf16 matmul --
    # group 0 (lanes 0..127): i2 = relu(x@w2a+b2a) replicated at lanes [4t,4t+4) for the 9
    #                         3x3 taps, plus y1 = x@w1+b1 (no ReLU) at lanes [y1_off, +c1)
    # group 1 (lanes 128..255): i3 = relu(x@w3a+b3a) replicated at lanes [4t,4t+4), t<25
    yA = jnp.dot(x2d.astype(bf16), wa_ref[...], preferred_element_type=f32) + ba_ref[...]
    keep = (laneA >= y1_off) & (laneA < y1_off + c1)           # b1 lanes: no ReLU
    A = jnp.where(keep, yA, jnp.maximum(yA, 0.0))
    A2 = A[:, :CP]
    A3 = A[:, CP:]

    # spatial validity masks, hoisted once and shared by im2col (both branches) and maxpool
    rowok = {oy: (i_idx + oy >= 0) & (i_idx + oy < H) for oy in range(-2, 3)}
    colok = {ox: (j_idx + ox >= 0) & (j_idx + ox < W) for ox in range(-2, 3)}
    spatial_ok = {(oy, ox): rowok[oy] & colok[ox]
                  for oy in range(-2, 3) for ox in range(-2, 3)}

    def im2col(src, taps, cstride, carry_lanes=None):
        cols = jnp.zeros((M, CP), f32)
        for t, (oy, ox) in enumerate(taps):
            lsel = (lane >= t * cstride) & (lane < (t + 1) * cstride)
            if carry_lanes is not None and oy == 0 and ox == 0:
                lo, hi = carry_lanes
                lsel = lsel | ((lane >= lo) & (lane < hi))      # carry y1 through unshifted
            mask = spatial_ok[(oy, ox)] & lsel
            # each tap owns a disjoint lane group -> select into accumulator (no adds)
            cols = jnp.where(mask, shifted(src, oy * W + ox), cols)
        return cols

    cols2 = im2col(A2, _taps(3), c2_0, carry_lanes=(y1_off, y1_off + c1))
    cols3 = im2col(A3, _taps(5), c3_0)

    # ---- branch 4: 3x3 maxpool (stride 1, -inf padding) via separable sublane rolls -------
    neg = jnp.finfo(f32).min
    hmax = jnp.maximum(
        x2d,
        jnp.maximum(jnp.where(colok[-1], shifted(x2d, -1), neg),
                    jnp.where(colok[1], shifted(x2d, 1), neg)))
    mp2d = jnp.maximum(
        hmax,
        jnp.maximum(jnp.where(rowok[-1], shifted(hmax, -W), neg),
                    jnp.where(rowok[1], shifted(hmax, W), neg)))

    # ---- stage B: 3x3 conv (b2) + 5x5 conv (b3) + 1x1 conv (b4) + b1 carry (bf16 MXU) -----
    out = jnp.dot(cols2.astype(bf16), wb2_ref[...], preferred_element_type=f32)
    out = out + jnp.dot(cols3.astype(bf16), wb3_ref[...], preferred_element_type=f32)
    out = out + jnp.dot(mp2d.astype(bf16), wb4_ref[...], preferred_element_type=f32)
    out = out + bb_ref[...]
    # ReLU on the b2/b3/b4 lane segments; b1 lanes ([0, c1)) stay linear. Single lane-dense
    # 128-wide store of all four branches.
    o_ref[...] = jnp.where(lane < c1, out, jnp.maximum(out, 0.0))


# ----------------------------- weight packing -------------------------------- #
def _fold_conv_bn(w, b, bn, eps=1e-5):
    """Fold inference-mode BatchNorm into conv weight / bias."""
    gamma, beta, mean, var = bn
    scale = gamma / jnp.sqrt(var + eps)          # (cout,)
    w_eff = w * scale                            # broadcasts over the last (cout) axis
    b_eff = (b - mean) * scale + beta
    return w_eff, b_eff


def _pack_weights(p, cin, c1, c2, c3, c4):
    f32 = jnp.float32
    bf16 = jnp.bfloat16
    c2_0, c2_1 = c2
    c3_0, c3_1 = c3

    w1f, b1f = _fold_conv_bn(p['b1_w'], p['b1_b'], p['b1_bn'])
    w2af, b2af = _fold_conv_bn(p['b2a_w'], p['b2a_b'], p['b2a_bn'])
    w2bf, b2bf = _fold_conv_bn(p['b2b_w'], p['b2b_b'], p['b2b_bn'])
    w3af, b3af = _fold_conv_bn(p['b3a_w'], p['b3a_b'], p['b3a_bn'])
    w3bf, b3bf = _fold_conv_bn(p['b3b_w'], p['b3b_b'], p['b3b_bn'])
    w4f, b4f = _fold_conv_bn(p['b4_w'], p['b4_b'], p['b4_bn'])

    y1_off = 9 * c2_0
    o_b1, o_b2, o_b3, o_b4 = 0, c1, c1 + c2_1, c1 + c2_1 + c3_1

    assert cin <= CP, "input channels must fit in 128 lanes"
    assert y1_off + c1 <= CP, "9*c2[0] + c1 must fit in 128 lanes"
    assert 25 * c3_0 <= CP, "25*c3[0] must fit in 128 lanes"
    assert o_b4 + c4 <= CP, "total output channels must fit in 128 lanes"

    # Stage A weight: (CP, 2*CP). Group 0 = [i2 x9 taps | y1], group 1 = [i3 x25 taps].
    WA = jnp.zeros((CP, 2 * CP), f32)
    bA = jnp.zeros((2 * CP,), f32)
    for t in range(9):
        WA = WA.at[:cin, t * c2_0:(t + 1) * c2_0].set(w2af)
        bA = bA.at[t * c2_0:(t + 1) * c2_0].set(b2af)
    WA = WA.at[:cin, y1_off:y1_off + c1].set(w1f)
    bA = bA.at[y1_off:y1_off + c1].set(b1f)
    for t in range(25):
        base = CP + t * c3_0
        WA = WA.at[:cin, base:base + c3_0].set(w3af)
        bA = bA.at[base:base + c3_0].set(b3af)

    # Stage B weights: im2col taps -> packed output lanes, plus identity carry for b1.
    WB2 = jnp.zeros((CP, CP), f32)
    for t, (oy, ox) in enumerate(_taps(3)):
        WB2 = WB2.at[t * c2_0:(t + 1) * c2_0, o_b2:o_b2 + c2_1].set(w2bf[oy + 1, ox + 1])
    WB2 = WB2.at[y1_off:y1_off + c1, o_b1:o_b1 + c1].set(jnp.eye(c1, dtype=f32))

    WB3 = jnp.zeros((CP, CP), f32)
    for t, (oy, ox) in enumerate(_taps(5)):
        WB3 = WB3.at[t * c3_0:(t + 1) * c3_0, o_b3:o_b3 + c3_1].set(w3bf[oy + 2, ox + 2])

    WB4 = jnp.zeros((CP, CP), f32)
    WB4 = WB4.at[:cin, o_b4:o_b4 + c4].set(w4f)

    bB = jnp.zeros((CP,), f32)
    bB = bB.at[o_b2:o_b2 + c2_1].set(b2bf)
    bB = bB.at[o_b3:o_b3 + c3_1].set(b3bf)
    bB = bB.at[o_b4:o_b4 + c4].set(b4f)

    # bf16 weights for the MXU; biases stay f32 (added post-matmul on the VPU).
    return (WA.astype(bf16), bA.reshape(1, 2 * CP),
            WB2.astype(bf16), WB3.astype(bf16), WB4.astype(bf16), bB.reshape(1, CP))


# ----------------------------- wrapper (glue) -------------------------------- #
def inception_forward(x_nchw, p, c1, c2, c3, c4, *, target_rows=4096):
    N, cin, H, W = x_nchw.shape
    HW = H * W
    f32 = jnp.float32
    assert HW % 8 == 0, "H*W must be a multiple of 8 for the flattened layout"

    # TODO(synk): if this block becomes HBM-bound (v5e, large H*W, tiny cin), DMA x as
    #             (N*HW, cin) and pad to 128 lanes in VMEM instead of padding in HBM.
    x = jnp.transpose(x_nchw, (0, 2, 3, 1)).astype(f32)          # NCHW -> NHWC
    x = jnp.pad(x, ((0, 0), (0, 0), (0, 0), (0, CP - cin)))      # channels -> 128 lanes
    x = x.reshape(N * HW, CP)                                    # flatten all pixels

    WA, bA, WB2, WB3, WB4, bB = _pack_weights(p, cin, c1, c2, c3, c4)

    # Rows per grid step: whole images, large enough to amortize per-step overhead, but
    # keep >=2 grid steps when N>=2 so both v7x TensorCores get work.
    imgs_per_block = max(1, min(N, target_rows // HW))
    if N >= 2:
        imgs_per_block = max(1, min(imgs_per_block, N // 2))
    while N % imgs_per_block:
        imgs_per_block -= 1
    M_TILE = imgs_per_block * HW
    grid = (N // imgs_per_block,)

    kernel = functools.partial(inception_kernel, H=H, W=W, c1=c1, c2_0=c2[0], c3_0=c3[0])

    full = lambda n: (0, 0)
    out = pl.pallas_call(
        kernel,
        out_shape=jax.ShapeDtypeStruct((N * HW, CP), f32),
        grid=grid,                                               # row blocks (whole images)
        in_specs=[
            pl.BlockSpec((M_TILE, CP), lambda n: (n, 0)),        # x  (row-tile block)
            pl.BlockSpec((CP, 2 * CP), full),                    # WA  (bf16)
            pl.BlockSpec((1, 2 * CP), full),                     # bA  (f32)
            pl.BlockSpec((CP, CP), full),                        # WB2 (bf16)
            pl.BlockSpec((CP, CP), full),                        # WB3 (bf16)
            pl.BlockSpec((CP, CP), full),                        # WB4 (bf16)
            pl.BlockSpec((1, CP), full),                         # bB  (f32)
        ],
        out_specs=pl.BlockSpec((M_TILE, CP), lambda n: (n, 0)),
        compiler_params=pltpu.CompilerParams(
            dimension_semantics=("parallel",),                   # row blocks -> megacore/2TC
            vmem_limit_bytes=48 * 1024 * 1024,                   # fits v7x's 64 MiB VMEM
        ),
    )(x, WA, bA, WB2, WB3, WB4, bB)

    c_total = c1 + c2[1] + c3[1] + c4
    out = out.reshape(N, H, W, CP)[..., :c_total]                # single slice of packed lanes
    return jnp.transpose(out, (0, 3, 1, 2))                      # NHWC -> NCHW


# ------------------------- pure-JAX reference (check) ------------------------ #
def _conv_nhwc(x, w, b, padding):
    y = jax.lax.conv_general_dilated(
        x, w, window_strides=(1, 1), padding=padding,
        dimension_numbers=('NHWC', 'HWIO', 'NHWC'))
    return y + b


def _bn(x, bn, eps=1e-5):
    gamma, beta, mean, var = bn
    return (x - mean) / jnp.sqrt(var + eps) * gamma + beta


def ref_forward(x_nchw, p, c1, c2, c3, c4):
    x = jnp.transpose(x_nchw, (0, 2, 3, 1)).astype(jnp.float32)
    relu = lambda a: jnp.maximum(a, 0.0)
    b1o = _bn(_conv_nhwc(x, p['b1_w'][None, None], p['b1_b'], 'SAME'), p['b1_bn'])
    t2 = relu(_bn(_conv_nhwc(x, p['b2a_w'][None, None], p['b2a_b'], 'SAME'), p['b2a_bn']))
    b2o = relu(_bn(_conv_nhwc(t2, p['b2b_w'], p['b2b_b'], 'SAME'), p['b2b_bn']))
    t3 = relu(_bn(_conv_nhwc(x, p['b3a_w'][None, None], p['b3a_b'], 'SAME'), p['b3a_bn']))
    b3o = relu(_bn(_conv_nhwc(t3, p['b3b_w'], p['b3b_b'], 'SAME'), p['b3b_bn']))
    mp = jax.lax.reduce_window(x, -jnp.inf, jax.lax.max, (1, 3, 3, 1), (1, 1, 1, 1),
                               padding=((0, 0), (1, 1), (1, 1), (0, 0)))
    b4o = relu(_bn(_conv_nhwc(mp, p['b4_w'][None, None], p['b4_b'], 'SAME'), p['b4_bn']))
    out = jnp.concatenate([b1o, b2o, b3o, b4o], axis=-1)
    return jnp.transpose(out, (0, 3, 1, 2))


# ------------------------------- parameters ---------------------------------- #
def make_params(key, cin, c1, c2, c3, c4):
    specs = [('b1', 1, cin, c1), ('b2a', 1, cin, c2[0]), ('b2b', 3, c2[0], c2[1]),
             ('b3a', 1, cin, c3[0]), ('b3b', 5, c3[0], c3[1]), ('b4', 1, cin, c4)]
    p = {}
    for k, (name, ksz, ci, co) in zip(jax.random.split(key, len(specs)), specs):
        kw, kb, kg, kbt, km, kv = jax.random.split(k, 6)
        if ksz == 1:
            w = 0.2 * jax.random.normal(kw, (ci, co), jnp.float32)
        else:
            w = 0.2 * jax.random.normal(kw, (ksz, ksz, ci, co), jnp.float32)
        p[name + '_w'] = w
        p[name + '_b'] = 0.1 * jax.random.normal(kb, (co,), jnp.float32)
        p[name + '_bn'] = (
            1.0 + 0.1 * jax.random.normal(kg, (co,), jnp.float32),   # gamma
            0.1 * jax.random.normal(kbt, (co,), jnp.float32),        # beta
            0.1 * jax.random.normal(km, (co,), jnp.float32),         # running mean
            0.5 + jax.random.uniform(kv, (co,), jnp.float32),        # running var
        )
    return p


if __name__ == "__main__":
    key = jax.random.PRNGKey(0)
    kx, kp = jax.random.split(key)

    N, Cin, H, W = 2, 4, 16, 16
    c1, c2, c3, c4 = 4, (4, 8), (4, 8), 4

    x = jax.random.normal(kx, (N, Cin, H, W), jnp.float32)
    params = make_params(kp, Cin, c1, c2, c3, c4)

    out = inception_forward(x, params, c1, c2, c3, c4)
    out = jax.block_until_ready(out)

    assert out.shape == (N, c1 + c2[1] + c3[1] + c4, H, W), out.shape
    assert bool(jnp.all(jnp.isfinite(out)))

    ref = jax.block_until_ready(ref_forward(x, params, c1, c2, c3, c4))
    max_err = float(jnp.max(jnp.abs(out - ref)))
    assert max_err < 5e-2, f"max abs err {max_err}"

    print("KERNEL_OK")
</pallas_src>

<mosaic_0001>
module attributes {stable_mosaic.version = 11 : i64} {
  func.func @inception_kernel(%arg0: i32, %arg1: memref<256x128xf32, #tpu.memory_space<vmem>>, %arg2: memref<128x256xbf16, #tpu.memory_space<vmem>>, %arg3: memref<1x256xf32, #tpu.memory_space<vmem>>, %arg4: memref<128x128xbf16, #tpu.memory_space<vmem>>, %arg5: memref<128x128xbf16, #tpu.memory_space<vmem>>, %arg6: memref<128x128xbf16, #tpu.memory_space<vmem>>, %arg7: memref<1x128xf32, #tpu.memory_space<vmem>>, %arg8: memref<256x128xf32, #tpu.memory_space<vmem>>) attributes {dimension_semantics = [#tpu.dimension_semantics<parallel>], iteration_bounds = array<i64: 2>, scalar_prefetch = 0 : i64, scratch_operands = 0 : i64, tpu.core_type = #tpu.core_type<tc>, window_params = [{transform_indices = @transform_0, window_bounds = array<i64: 256, 128>}, {pipeline_mode = #tpu.pipeline_mode<synchronous>, transform_indices = @transform_1, window_bounds = array<i64: 128, 256>}, {pipeline_mode = #tpu.pipeline_mode<synchronous>, transform_indices = @transform_2, window_bounds = array<i64: 1, 256>}, {pipeline_mode = #tpu.pipeline_mode<synchronous>, transform_indices = @transform_3, window_bounds = array<i64: 128, 128>}, {pipeline_mode = #tpu.pipeline_mode<synchronous>, transform_indices = @transform_4, window_bounds = array<i64: 128, 128>}, {pipeline_mode = #tpu.pipeline_mode<synchronous>, transform_indices = @transform_5, window_bounds = array<i64: 128, 128>}, {pipeline_mode = #tpu.pipeline_mode<synchronous>, transform_indices = @transform_6, window_bounds = array<i64: 1, 128>}, {transform_indices = @transform_7, window_bounds = array<i64: 256, 128>}]} {
    %c0 = arith.constant 0 : index
    %c0_0 = arith.constant 0 : index
    %0 = vector.load %arg1[%c0, %c0_0] : memref<256x128xf32, #tpu.memory_space<vmem>>, vector<256x128xf32>
    %1 = tpu.iota {dimensions = array<i32: 0>} : vector<256x1xi32>
    %c15_i32 = arith.constant 15 : i32
    %2 = vector.broadcast %c15_i32 : i32 to vector<256x1xi32>
    %3 = arith.andi %1, %2 : vector<256x1xi32>
    %c4_i32 = arith.constant 4 : i32
    %4 = vector.broadcast %c4_i32 : i32 to vector<256x1xi32>
    %5 = arith.shrsi %1, %4 : vector<256x1xi32>
    %c15_i32_1 = arith.constant 15 : i32
    %6 = vector.broadcast %c15_i32_1 : i32 to vector<256x1xi32>
    %7 = arith.andi %5, %6 : vector<256x1xi32>
    %8 = tpu.iota {dimensions = array<i32: 1>} : vector<1x128xi32>
    %9 = tpu.iota {dimensions = array<i32: 1>} : vector<1x256xi32>
    %10 = arith.truncf %0 : vector<256x128xf32> to vector<256x128xbf16>
    %c0_2 = arith.constant 0 : index
    %c0_3 = arith.constant 0 : index
    %11 = vector.load %arg2[%c0_2, %c0_3] : memref<128x256xbf16, #tpu.memory_space<vmem>>, vector<128x256xbf16>
    %cst = arith.constant dense<0.000000e+00> : vector<256x256xf32>
    %12 = tpu.matmul %10, %11, %cst {dimension_numbers = #tpu.dot_dimension_numbers<[1], [0], [0], [1], [0, 0, 1, 1], [], []>} : vector<256x128xbf16>, vector<128x256xbf16>, vector<256x256xf32> -> vector<256x256xf32>
    %c0_4 = arith.constant 0 : index
    %c0_5 = arith.constant 0 : index
    %13 = vector.load %arg3[%c0_4, %c0_5] : memref<1x256xf32, #tpu.memory_space<vmem>>, vector<1x256xf32>
    %14 = vector.broadcast %13 : vector<1x256xf32> to vector<256x256xf32>
    %15 = arith.addf %12, %14 : vector<256x256xf32>
    %c36_i32 = arith.constant 36 : i32
    %16 = vector.broadcast %c36_i32 : i32 to vector<1x256xi32>
    %17 = arith.cmpi sge, %9, %16 : vector<1x256xi32>
    %c40_i32 = arith.constant 40 : i32
    %18 = vector.broadcast %c40_i32 : i32 to vector<1x256xi32>
    %19 = arith.cmpi slt, %9, %18 : vector<1x256xi32>
    %20 = arith.andi %17, %19 : vector<1x256xi1>
    %cst_6 = arith.constant 0.000000e+00 : f32
    %21 = vector.broadcast %cst_6 : f32 to vector<256x256xf32>
    %22 = arith.maximumf %15, %21 : vector<256x256xf32>
    %23 = vector.shape_cast %20 : vector<1x256xi1> to vector<1x256xi1>
    %24 = vector.broadcast %23 : vector<1x256xi1> to vector<256x256xi1>
    %25 = arith.select %24, %15, %22 : vector<256x256xi1>, vector<256x256xf32>
    %26 = vector.extract_strided_slice %25 {offsets = [0, 0], sizes = [256, 128], strides = [1, 1]} : vector<256x256xf32> to vector<256x128xf32>
    %27 = vector.extract_strided_slice %25 {offsets = [0, 128], sizes = [256, 128], strides = [1, 1]} : vector<256x256xf32> to vector<256x128xf32>
    %c-2_i32 = arith.constant -2 : i32
    %28 = vector.broadcast %c-2_i32 : i32 to vector<256x1xi32>
    %29 = arith.addi %7, %28 : vector<256x1xi32>
    %c0_i32 = arith.constant 0 : i32
    %30 = vector.broadcast %c0_i32 : i32 to vector<256x1xi32>
    %31 = arith.cmpi sge, %29, %30 : vector<256x1xi32>
    %c-2_i32_7 = arith.constant -2 : i32
    %32 = vector.broadcast %c-2_i32_7 : i32 to vector<256x1xi32>
    %33 = arith.addi %7, %32 : vector<256x1xi32>
    %c16_i32 = arith.constant 16 : i32
    %34 = vector.broadcast %c16_i32 : i32 to vector<256x1xi32>
    %35 = arith.cmpi slt, %33, %34 : vector<256x1xi32>
    %36 = arith.andi %31, %35 : vector<256x1xi1>
    %c-1_i32 = arith.constant -1 : i32
    %37 = vector.broadcast %c-1_i32 : i32 to vector<256x1xi32>
    %38 = arith.addi %7, %37 : vector<256x1xi32>
    %c0_i32_8 = arith.constant 0 : i32
    %39 = vector.broadcast %c0_i32_8 : i32 to vector<256x1xi32>
    %40 = arith.cmpi sge, %38, %39 : vector<256x1xi32>
    %c-1_i32_9 = arith.constant -1 : i32
    %41 = vector.broadcast %c-1_i32_9 : i32 to vector<256x1xi32>
    %42 = arith.addi %7, %41 : vector<256x1xi32>
    %c16_i32_10 = arith.constant 16 : i32
    %43 = vector.broadcast %c16_i32_10 : i32 to vector<256x1xi32>
    %44 = arith.cmpi slt, %42, %43 : vector<256x1xi32>
    %45 = arith.andi %40, %44 : vector<256x1xi1>
    %c0_i32_11 = arith.constant 0 : i32
    %46 = vector.broadcast %c0_i32_11 : i32 to vector<256x1xi32>
    %47 = arith.addi %7, %46 : vector<256x1xi32>
    %c0_i32_12 = arith.constant 0 : i32
    %48 = vector.broadcast %c0_i32_12 : i32 to vector<256x1xi32>
    %49 = arith.cmpi sge, %47, %48 : vector<256x1xi32>
    %c0_i32_13 = arith.constant 0 : i32
    %50 = vector.broadcast %c0_i32_13 : i32 to vector<256x1xi32>
    %51 = arith.addi %7, %50 : vector<256x1xi32>
    %c16_i32_14 = arith.constant 16 : i32
    %52 = vector.broadcast %c16_i32_14 : i32 to vector<256x1xi32>
    %53 = arith.cmpi slt, %51, %52 : vector<256x1xi32>
    %54 = arith.andi %49, %53 : vector<256x1xi1>
    %c1_i32 = arith.constant 1 : i32
    %55 = vector.broadcast %c1_i32 : i32 to vector<256x1xi32>
    %56 = arith.addi %7, %55 : vector<256x1xi32>
    %c0_i32_15 = arith.constant 0 : i32
    %57 = vector.broadcast %c0_i32_15 : i32 to vector<256x1xi32>
    %58 = arith.cmpi sge, %56, %57 : vector<256x1xi32>
    %c1_i32_16 = arith.constant 1 : i32
    %59 = vector.broadcast %c1_i32_16 : i32 to vector<256x1xi32>
    %60 = arith.addi %7, %59 : vector<256x1xi32>
    %c16_i32_17 = arith.constant 16 : i32
    %61 = vector.broadcast %c16_i32_17 : i32 to vector<256x1xi32>
    %62 = arith.cmpi slt, %60, %61 : vector<256x1xi32>
    %63 = arith.andi %58, %62 : vector<256x1xi1>
    %c2_i32 = arith.constant 2 : i32
    %64 = vector.broadcast %c2_i32 : i32 to vector<256x1xi32>
    %65 = arith.addi %7, %64 : vector<256x1xi32>
    %c0_i32_18 = arith.constant 0 : i32
    %66 = vector.broadcast %c0_i32_18 : i32 to vector<256x1xi32>
    %67 = arith.cmpi sge, %65, %66 : vector<256x1xi32>
    %c2_i32_19 = arith.constant 2 : i32
    %68 = vector.broadcast %c2_i32_19 : i32 to vector<256x1xi32>
    %69 = arith.addi %7, %68 : vector<256x1xi32>
    %c16_i32_20 = arith.constant 16 : i32
    %70 = vector.broadcast %c16_i32_20 : i32 to vector<256x1xi32>
    %71 = arith.cmpi slt, %69, %70 : vector<256x1xi32>
    %72 = arith.andi %67, %71 : vector<256x1xi1>
    %c-2_i32_21 = arith.constant -2 : i32
    %73 = vector.broadcast %c-2_i32_21 : i32 to vector<256x1xi32>
    %74 = arith.addi %3, %73 : vector<256x1xi32>
    %c0_i32_22 = arith.constant 0 : i32
    %75 = vector.broadcast %c0_i32_22 : i32 to vector<256x1xi32>
    %76 = arith.cmpi sge, %74, %75 : vector<256x1xi32>
    %c-2_i32_23 = arith.constant -2 : i32
    %77 = vector.broadcast %c-2_i32_23 : i32 to vector<256x1xi32>
    %78 = arith.addi %3, %77 : vector<256x1xi32>
    %c16_i32_24 = arith.constant 16 : i32
    %79 = vector.broadcast %c16_i32_24 : i32 to vector<256x1xi32>
    %80 = arith.cmpi slt, %78, %79 : vector<256x1xi32>
    %81 = arith.andi %76, %80 : vector<256x1xi1>
    %c-1_i32_25 = arith.constant -1 : i32
    %82 = vector.broadcast %c-1_i32_25 : i32 to vector<256x1xi32>
    %83 = arith.addi %3, %82 : vector<256x1xi32>
    %c0_i32_26 = arith.constant 0 : i32
    %84 = vector.broadcast %c0_i32_26 : i32 to vector<256x1xi32>
    %85 = arith.cmpi sge, %83, %84 : vector<256x1xi32>
    %c-1_i32_27 = arith.constant -1 : i32
    %86 = vector.broadcast %c-1_i32_27 : i32 to vector<256x1xi32>
    %87 = arith.addi %3, %86 : vector<256x1xi32>
    %c16_i32_28 = arith.constant 16 : i32
    %88 = vector.broadcast %c16_i32_28 : i32 to vector<256x1xi32>
    %89 = arith.cmpi slt, %87, %88 : vector<256x1xi32>
    %90 = arith.andi %85, %89 : vector<256x1xi1>
    %c0_i32_29 = arith.constant 0 : i32
    %91 = vector.broadcast %c0_i32_29 : i32 to vector<256x1xi32>
    %92 = arith.addi %3, %91 : vector<256x1xi32>
    %c0_i32_30 = arith.constant 0 : i32
    %93 = vector.broadcast %c0_i32_30 : i32 to vector<256x1xi32>
    %94 = arith.cmpi sge, %92, %93 : vector<256x1xi32>
    %c0_i32_31 = arith.constant 0 : i32
    %95 = vector.broadcast %c0_i32_31 : i32 to vector<256x1xi32>
    %96 = arith.addi %3, %95 : vector<256x1xi32>
    %c16_i32_32 = arith.constant 16 : i32
    %97 = vector.broadcast %c16_i32_32 : i32 to vector<256x1xi32>
    %98 = arith.cmpi slt, %96, %97 : vector<256x1xi32>
    %99 = arith.andi %94, %98 : vector<256x1xi1>
    %c1_i32_33 = arith.constant 1 : i32
    %100 = vector.broadcast %c1_i32_33 : i32 to vector<256x1xi32>
    %101 = arith.addi %3, %100 : vector<256x1xi32>
    %c0_i32_34 = arith.constant 0 : i32
    %102 = vector.broadcast %c0_i32_34 : i32 to vector<256x1xi32>
    %103 = arith.cmpi sge, %101, %102 : vector<256x1xi32>
    %c1_i32_35 = arith.constant 1 : i32
    %104 = vector.broadcast %c1_i32_35 : i32 to vector<256x1xi32>
    %105 = arith.addi %3, %104 : vector<256x1xi32>
    %c16_i32_36 = arith.constant 16 : i32
    %106 = vector.broadcast %c16_i32_36 : i32 to vector<256x1xi32>
    %107 = arith.cmpi slt, %105, %106 : vector<256x1xi32>
    %108 = arith.andi %103, %107 : vector<256x1xi1>
    %c2_i32_37 = arith.constant 2 : i32
    %109 = vector.broadcast %c2_i32_37 : i32 to vector<256x1xi32>
    %110 = arith.addi %3, %109 : vector<256x1xi32>
    %c0_i32_38 = arith.constant 0 : i32
    %111 = vector.broadcast %c0_i32_38 : i32 to vector<256x1xi32>
    %112 = arith.cmpi sge, %110, %111 : vector<256x1xi32>
    %c2_i32_39 = arith.constant 2 : i32
    %113 = vector.broadcast %c2_i32_39 : i32 to vector<256x1xi32>
    %114 = arith.addi %3, %113 : vector<256x1xi32>
    %c16_i32_40 = arith.constant 16 : i32
    %115 = vector.broadcast %c16_i32_40 : i32 to vector<256x1xi32>
    %116 = arith.cmpi slt, %114, %115 : vector<256x1xi32>
    %117 = arith.andi %112, %116 : vector<256x1xi1>
    %118 = arith.andi %36, %81 : vector<256x1xi1>
    %119 = arith.andi %36, %90 : vector<256x1xi1>
    %120 = arith.andi %36, %99 : vector<256x1xi1>
    %121 = arith.andi %36, %108 : vector<256x1xi1>
    %122 = arith.andi %36, %117 : vector<256x1xi1>
    %123 = arith.andi %45, %81 : vector<256x1xi1>
    %124 = arith.andi %45, %90 : vector<256x1xi1>
    %125 = arith.andi %45, %99 : vector<256x1xi1>
    %126 = arith.andi %45, %108 : vector<256x1xi1>
    %127 = arith.andi %45, %117 : vector<256x1xi1>
    %128 = arith.andi %54, %81 : vector<256x1xi1>
    %129 = arith.andi %54, %90 : vector<256x1xi1>
    %130 = arith.andi %54, %99 : vector<256x1xi1>
    %131 = arith.andi %54, %108 : vector<256x1xi1>
    %132 = arith.andi %54, %117 : vector<256x1xi1>
    %133 = arith.andi %63, %81 : vector<256x1xi1>
    %134 = arith.andi %63, %90 : vector<256x1xi1>
    %135 = arith.andi %63, %99 : vector<256x1xi1>
    %136 = arith.andi %63, %108 : vector<256x1xi1>
    %137 = arith.andi %63, %117 : vector<256x1xi1>
    %138 = arith.andi %72, %81 : vector<256x1xi1>
    %139 = arith.andi %72, %90 : vector<256x1xi1>
    %140 = arith.andi %72, %99 : vector<256x1xi1>
    %141 = arith.andi %72, %108 : vector<256x1xi1>
    %142 = arith.andi %72, %117 : vector<256x1xi1>
    %cst_41 = arith.constant 0.000000e+00 : f32
    %143 = vector.broadcast %cst_41 : f32 to vector<256x128xf32>
    %c0_i32_42 = arith.constant 0 : i32
    %144 = vector.broadcast %c0_i32_42 : i32 to vector<1x128xi32>
    %145 = arith.cmpi sge, %8, %144 : vector<1x128xi32>
    %c4_i32_43 = arith.constant 4 : i32
    %146 = vector.broadcast %c4_i32_43 : i32 to vector<1x128xi32>
    %147 = arith.cmpi slt, %8, %146 : vector<1x128xi32>
    %148 = arith.andi %145, %147 : vector<1x128xi1>
    %149 = vector.broadcast %124 : vector<256x1xi1> to vector<256x128xi1>
    %150 = vector.broadcast %148 : vector<1x128xi1> to vector<256x128xi1>
    %151 = arith.andi %149, %150 : vector<256x128xi1>
    %c17_i32 = arith.constant 17 : i32
    %152 = tpu.dynamic_rotate %26 by %c17_i32 dim 0 : vector<256x128xf32>, i32 -> vector<256x128xf32>
    %153 = arith.select %151, %152, %143 : vector<256x128xi1>, vector<256x128xf32>
    %c4_i32_44 = arith.constant 4 : i32
    %154 = vector.broadcast %c4_i32_44 : i32 to vector<1x128xi32>
    %155 = arith.cmpi sge, %8, %154 : vector<1x128xi32>
    %c8_i32 = arith.constant 8 : i32
    %156 = vector.broadcast %c8_i32 : i32 to vector<1x128xi32>
    %157 = arith.cmpi slt, %8, %156 : vector<1x128xi32>
    %158 = arith.andi %155, %157 : vector<1x128xi1>
    %159 = vector.broadcast %125 : vector<256x1xi1> to vector<256x128xi1>
    %160 = vector.broadcast %158 : vector<1x128xi1> to vector<256x128xi1>
    %161 = arith.andi %159, %160 : vector<256x128xi1>
    %c16_i32_45 = arith.constant 16 : i32
    %162 = tpu.dynamic_rotate %26 by %c16_i32_45 dim 0 : vector<256x128xf32>, i32 -> vector<256x128xf32>
    %163 = arith.select %161, %162, %153 : vector<256x128xi1>, vector<256x128xf32>
    %c8_i32_46 = arith.constant 8 : i32
    %164 = vector.broadcast %c8_i32_46 : i32 to vector<1x128xi32>
    %165 = arith.cmpi sge, %8, %164 : vector<1x128xi32>
    %c12_i32 = arith.constant 12 : i32
    %166 = vector.broadcast %c12_i32 : i32 to vector<1x128xi32>
    %167 = arith.cmpi slt, %8, %166 : vector<1x128xi32>
    %168 = arith.andi %165, %167 : vector<1x128xi1>
    %169 = vector.broadcast %126 : vector<256x1xi1> to vector<256x128xi1>
    %170 = vector.broadcast %168 : vector<1x128xi1> to vector<256x128xi1>
    %171 = arith.andi %169, %170 : vector<256x128xi1>
    %c15_i32_47 = arith.constant 15 : i32
    %172 = tpu.dynamic_rotate %26 by %c15_i32_47 dim 0 : vector<256x128xf32>, i32 -> vector<256x128xf32>
    %173 = arith.select %171, %172, %163 : vector<256x128xi1>, vector<256x128xf32>
    %c12_i32_48 = arith.constant 12 : i32
    %174 = vector.broadcast %c12_i32_48 : i32 to vector<1x128xi32>
    %175 = arith.cmpi sge, %8, %174 : vector<1x128xi32>
    %c16_i32_49 = arith.constant 16 : i32
    %176 = vector.broadcast %c16_i32_49 : i32 to vector<1x128xi32>
    %177 = arith.cmpi slt, %8, %176 : vector<1x128xi32>
    %178 = arith.andi %175, %177 : vector<1x128xi1>
    %179 = vector.broadcast %129 : vector<256x1xi1> to vector<256x128xi1>
    %180 = vector.broadcast %178 : vector<1x128xi1> to vector<256x128xi1>
    %181 = arith.andi %179, %180 : vector<256x128xi1>
    %c1_i32_50 = arith.constant 1 : i32
    %182 = tpu.dynamic_rotate %26 by %c1_i32_50 dim 0 : vector<256x128xf32>, i32 -> vector<256x128xf32>
    %183 = arith.select %181, %182, %173 : vector<256x128xi1>, vector<256x128xf32>
    %c16_i32_51 = arith.constant 16 : i32
    %184 = vector.broadcast %c16_i32_51 : i32 to vector<1x128xi32>
    %185 = arith.cmpi sge, %8, %184 : vector<1x128xi32>
    %c20_i32 = arith.constant 20 : i32
    %186 = vector.broadcast %c20_i32 : i32 to vector<1x128xi32>
    %187 = arith.cmpi slt, %8, %186 : vector<1x128xi32>
    %188 = arith.andi %185, %187 : vector<1x128xi1>
    %c36_i32_52 = arith.constant 36 : i32
    %189 = vector.broadcast %c36_i32_52 : i32 to vector<1x128xi32>
    %190 = arith.cmpi sge, %8, %189 : vector<1x128xi32>
    %c40_i32_53 = arith.constant 40 : i32
    %191 = vector.broadcast %c40_i32_53 : i32 to vector<1x128xi32>
    %192 = arith.cmpi slt, %8, %191 : vector<1x128xi32>
    %193 = arith.andi %190, %192 : vector<1x128xi1>
    %194 = arith.ori %188, %193 : vector<1x128xi1>
    %195 = vector.broadcast %130 : vector<256x1xi1> to vector<256x128xi1>
    %196 = vector.broadcast %194 : vector<1x128xi1> to vector<256x128xi1>
    %197 = arith.andi %195, %196 : vector<256x128xi1>
    %198 = arith.select %197, %26, %183 : vector<256x128xi1>, vector<256x128xf32>
    %c20_i32_54 = arith.constant 20 : i32
    %199 = vector.broadcast %c20_i32_54 : i32 to vector<1x128xi32>
    %200 = arith.cmpi sge, %8, %199 : vector<1x128xi32>
    %c24_i32 = arith.constant 24 : i32
    %201 = vector.broadcast %c24_i32 : i32 to vector<1x128xi32>
    %202 = arith.cmpi slt, %8, %201 : vector<1x128xi32>
    %203 = arith.andi %200, %202 : vector<1x128xi1>
    %204 = vector.broadcast %131 : vector<256x1xi1> to vector<256x128xi1>
    %205 = vector.broadcast %203 : vector<1x128xi1> to vector<256x128xi1>
    %206 = arith.andi %204, %205 : vector<256x128xi1>
    %c255_i32 = arith.constant 255 : i32
    %207 = tpu.dynamic_rotate %26 by %c255_i32 dim 0 : vector<256x128xf32>, i32 -> vector<256x128xf32>
    %208 = arith.select %206, %207, %198 : vector<256x128xi1>, vector<256x128xf32>
    %c24_i32_55 = arith.constant 24 : i32
    %209 = vector.broadcast %c24_i32_55 : i32 to vector<1x128xi32>
    %210 = arith.cmpi sge, %8, %209 : vector<1x128xi32>
    %c28_i32 = arith.constant 28 : i32
    %211 = vector.broadcast %c28_i32 : i32 to vector<1x128xi32>
    %212 = arith.cmpi slt, %8, %211 : vector<1x128xi32>
    %213 = arith.andi %210, %212 : vector<1x128xi1>
    %214 = vector.broadcast %134 : vector<256x1xi1> to vector<256x128xi1>
    %215 = vector.broadcast %213 : vector<1x128xi1> to vector<256x128xi1>
    %216 = arith.andi %214, %215 : vector<256x128xi1>
    %c241_i32 = arith.constant 241 : i32
    %217 = tpu.dynamic_rotate %26 by %c241_i32 dim 0 : vector<256x128xf32>, i32 -> vector<256x128xf32>
    %218 = arith.select %216, %217, %208 : vector<256x128xi1>, vector<256x128xf32>
    %c28_i32_56 = arith.constant 28 : i32
    %219 = vector.broadcast %c28_i32_56 : i32 to vector<1x128xi32>
    %220 = arith.cmpi sge, %8, %219 : vector<1x128xi32>
    %c32_i32 = arith.constant 32 : i32
    %221 = vector.broadcast %c32_i32 : i32 to vector<1x128xi32>
    %222 = arith.cmpi slt, %8, %221 : vector<1x128xi32>
    %223 = arith.andi %220, %222 : vector<1x128xi1>
    %224 = vector.broadcast %135 : vector<256x1xi1> to vector<256x128xi1>
    %225 = vector.broadcast %223 : vector<1x128xi1> to vector<256x128xi1>
    %226 = arith.andi %224, %225 : vector<256x128xi1>
    %c240_i32 = arith.constant 240 : i32
    %227 = tpu.dynamic_rotate %26 by %c240_i32 dim 0 : vector<256x128xf32>, i32 -> vector<256x128xf32>
    %228 = arith.select %226, %227, %218 : vector<256x128xi1>, vector<256x128xf32>
    %c32_i32_57 = arith.constant 32 : i32
    %229 = vector.broadcast %c32_i32_57 : i32 to vector<1x128xi32>
    %230 = arith.cmpi sge, %8, %229 : vector<1x128xi32>
    %c36_i32_58 = arith.constant 36 : i32
    %231 = vector.broadcast %c36_i32_58 : i32 to vector<1x128xi32>
    %232 = arith.cmpi slt, %8, %231 : vector<1x128xi32>
    %233 = arith.andi %230, %232 : vector<1x128xi1>
    %234 = vector.broadcast %136 : vector<256x1xi1> to vector<256x128xi1>
    %235 = vector.broadcast %233 : vector<1x128xi1> to vector<256x128xi1>
    %236 = arith.andi %234, %235 : vector<256x128xi1>
    %c239_i32 = arith.constant 239 : i32
    %237 = tpu.dynamic_rotate %26 by %c239_i32 dim 0 : vector<256x128xf32>, i32 -> vector<256x128xf32>
    %238 = arith.select %236, %237, %228 : vector<256x128xi1>, vector<256x128xf32>
    %cst_59 = arith.constant 0.000000e+00 : f32
    %239 = vector.broadcast %cst_59 : f32 to vector<256x128xf32>
    %c0_i32_60 = arith.constant 0 : i32
    %240 = vector.broadcast %c0_i32_60 : i32 to vector<1x128xi32>
    %241 = arith.cmpi sge, %8, %240 : vector<1x128xi32>
    %c4_i32_61 = arith.constant 4 : i32
    %242 = vector.broadcast %c4_i32_61 : i32 to vector<1x128xi32>
    %243 = arith.cmpi slt, %8, %242 : vector<1x128xi32>
    %244 = arith.andi %241, %243 : vector<1x128xi1>
    %245 = vector.broadcast %118 : vector<256x1xi1> to vector<256x128xi1>
    %246 = vector.broadcast %244 : vector<1x128xi1> to vector<256x128xi1>
    %247 = arith.andi %245, %246 : vector<256x128xi1>
    %c34_i32 = arith.constant 34 : i32
    %248 = tpu.dynamic_rotate %27 by %c34_i32 dim 0 : vector<256x128xf32>, i32 -> vector<256x128xf32>
    %249 = arith.select %247, %248, %239 : vector<256x128xi1>, vector<256x128xf32>
    %c4_i32_62 = arith.constant 4 : i32
    %250 = vector.broadcast %c4_i32_62 : i32 to vector<1x128xi32>
    %251 = arith.cmpi sge, %8, %250 : vector<1x128xi32>
    %c8_i32_63 = arith.constant 8 : i32
    %252 = vector.broadcast %c8_i32_63 : i32 to vector<1x128xi32>
    %253 = arith.cmpi slt, %8, %252 : vector<1x128xi32>
    %254 = arith.andi %251, %253 : vector<1x128xi1>
    %255 = vector.broadcast %119 : vector<256x1xi1> to vector<256x128xi1>
    %256 = vector.broadcast %254 : vector<1x128xi1> to vector<256x128xi1>
    %257 = arith.andi %255, %256 : vector<256x128xi1>
    %c33_i32 = arith.constant 33 : i32
    %258 = tpu.dynamic_rotate %27 by %c33_i32 dim 0 : vector<256x128xf32>, i32 -> vector<256x128xf32>
    %259 = arith.select %257, %258, %249 : vector<256x128xi1>, vector<256x128xf32>
    %c8_i32_64 = arith.constant 8 : i32
    %260 = vector.broadcast %c8_i32_64 : i32 to vector<1x128xi32>
    %261 = arith.cmpi sge, %8, %260 : vector<1x128xi32>
    %c12_i32_65 = arith.constant 12 : i32
    %262 = vector.broadcast %c12_i32_65 : i32 to vector<1x128xi32>
    %263 = arith.cmpi slt, %8, %262 : vector<1x128xi32>
    %264 = arith.andi %261, %263 : vector<1x128xi1>
    %265 = vector.broadcast %120 : vector<256x1xi1> to vector<256x128xi1>
    %266 = vector.broadcast %264 : vector<1x128xi1> to vector<256x128xi1>
    %267 = arith.andi %265, %266 : vector<256x128xi1>
    %c32_i32_66 = arith.constant 32 : i32
    %268 = tpu.dynamic_rotate %27 by %c32_i32_66 dim 0 : vector<256x128xf32>, i32 -> vector<256x128xf32>
    %269 = arith.select %267, %268, %259 : vector<256x128xi1>, vector<256x128xf32>
    %c12_i32_67 = arith.constant 12 : i32
    %270 = vector.broadcast %c12_i32_67 : i32 to vector<1x128xi32>
    %271 = arith.cmpi sge, %8, %270 : vector<1x128xi32>
    %c16_i32_68 = arith.constant 16 : i32
    %272 = vector.broadcast %c16_i32_68 : i32 to vector<1x128xi32>
    %273 = arith.cmpi slt, %8, %272 : vector<1x128xi32>
    %274 = arith.andi %271, %273 : vector<1x128xi1>
    %275 = vector.broadcast %121 : vector<256x1xi1> to vector<256x128xi1>
    %276 = vector.broadcast %274 : vector<1x128xi1> to vector<256x128xi1>
    %277 = arith.andi %275, %276 : vector<256x128xi1>
    %c31_i32 = arith.constant 31 : i32
    %278 = tpu.dynamic_rotate %27 by %c31_i32 dim 0 : vector<256x128xf32>, i32 -> vector<256x128xf32>
    %279 = arith.select %277, %278, %269 : vector<256x128xi1>, vector<256x128xf32>
    %c16_i32_69 = arith.constant 16 : i32
    %280 = vector.broadcast %c16_i32_69 : i32 to vector<1x128xi32>
    %281 = arith.cmpi sge, %8, %280 : vector<1x128xi32>
    %c20_i32_70 = arith.constant 20 : i32
    %282 = vector.broadcast %c20_i32_70 : i32 to vector<1x128xi32>
    %283 = arith.cmpi slt, %8, %282 : vector<1x128xi32>
    %284 = arith.andi %281, %283 : vector<1x128xi1>
    %285 = vector.broadcast %122 : vector<256x1xi1> to vector<256x128xi1>
    %286 = vector.broadcast %284 : vector<1x128xi1> to vector<256x128xi1>
    %287 = arith.andi %285, %286 : vector<256x128xi1>
    %c30_i32 = arith.constant 30 : i32
    %288 = tpu.dynamic_rotate %27 by %c30_i32 dim 0 : vector<256x128xf32>, i32 -> vector<256x128xf32>
    %289 = arith.select %287, %288, %279 : vector<256x128xi1>, vector<256x128xf32>
    %c20_i32_71 = arith.constant 20 : i32
    %290 = vector.broadcast %c20_i32_71 : i32 to vector<1x128xi32>
    %291 = arith.cmpi sge, %8, %290 : vector<1x128xi32>
    %c24_i32_72 = arith.constant 24 : i32
    %292 = vector.broadcast %c24_i32_72 : i32 to vector<1x128xi32>
    %293 = arith.cmpi slt, %8, %292 : vector<1x128xi32>
    %294 = arith.andi %291, %293 : vector<1x128xi1>
    %295 = vector.broadcast %123 : vector<256x1xi1> to vector<256x128xi1>
    %296 = vector.broadcast %294 : vector<1x128xi1> to vector<256x128xi1>
    %297 = arith.andi %295, %296 : vector<256x128xi1>
    %c18_i32 = arith.constant 18 : i32
    %298 = tpu.dynamic_rotate %27 by %c18_i32 dim 0 : vector<256x128xf32>, i32 -> vector<256x128xf32>
    %299 = arith.select %297, %298, %289 : vector<256x128xi1>, vector<256x128xf32>
    %c24_i32_73 = arith.constant 24 : i32
    %300 = vector.broadcast %c24_i32_73 : i32 to vector<1x128xi32>
    %301 = arith.cmpi sge, %8, %300 : vector<1x128xi32>
    %c28_i32_74 = arith.constant 28 : i32
    %302 = vector.broadcast %c28_i32_74 : i32 to vector<1x128xi32>
    %303 = arith.cmpi slt, %8, %302 : vector<1x128xi32>
    %304 = arith.andi %301, %303 : vector<1x128xi1>
    %305 = vector.broadcast %124 : vector<256x1xi1> to vector<256x128xi1>
    %306 = vector.broadcast %304 : vector<1x128xi1> to vector<256x128xi1>
    %307 = arith.andi %305, %306 : vector<256x128xi1>
    %c17_i32_75 = arith.constant 17 : i32
    %308 = tpu.dynamic_rotate %27 by %c17_i32_75 dim 0 : vector<256x128xf32>, i32 -> vector<256x128xf32>
    %309 = arith.select %307, %308, %299 : vector<256x128xi1>, vector<256x128xf32>
    %c28_i32_76 = arith.constant 28 : i32
    %310 = vector.broadcast %c28_i32_76 : i32 to vector<1x128xi32>
    %311 = arith.cmpi sge, %8, %310 : vector<1x128xi32>
    %c32_i32_77 = arith.constant 32 : i32
    %312 = vector.broadcast %c32_i32_77 : i32 to vector<1x128xi32>
    %313 = arith.cmpi slt, %8, %312 : vector<1x128xi32>
    %314 = arith.andi %311, %313 : vector<1x128xi1>
    %315 = vector.broadcast %125 : vector<256x1xi1> to vector<256x128xi1>
    %316 = vector.broadcast %314 : vector<1x128xi1> to vector<256x128xi1>
    %317 = arith.andi %315, %316 : vector<256x128xi1>
    %c16_i32_78 = arith.constant 16 : i32
    %318 = tpu.dynamic_rotate %27 by %c16_i32_78 dim 0 : vector<256x128xf32>, i32 -> vector<256x128xf32>
    %319 = arith.select %317, %318, %309 : vector<256x128xi1>, vector<256x128xf32>
    %c32_i32_79 = arith.constant 32 : i32
    %320 = vector.broadcast %c32_i32_79 : i32 to vector<1x128xi32>
    %321 = arith.cmpi sge, %8, %320 : vector<1x128xi32>
    %c36_i32_80 = arith.constant 36 : i32
    %322 = vector.broadcast %c36_i32_80 : i32 to vector<1x128xi32>
    %323 = arith.cmpi slt, %8, %322 : vector<1x128xi32>
    %324 = arith.andi %321, %323 : vector<1x128xi1>
    %325 = vector.broadcast %126 : vector<256x1xi1> to vector<256x128xi1>
    %326 = vector.broadcast %324 : vector<1x128xi1> to vector<256x128xi1>
    %327 = arith.andi %325, %326 : vector<256x128xi1>
    %c15_i32_81 = arith.constant 15 : i32
    %328 = tpu.dynamic_rotate %27 by %c15_i32_81 dim 0 : vector<256x128xf32>, i32 -> vector<256x128xf32>
    %329 = arith.select %327, %328, %319 : vector<256x128xi1>, vector<256x128xf32>
    %c36_i32_82 = arith.constant 36 : i32
    %330 = vector.broadcast %c36_i32_82 : i32 to vector<1x128xi32>
    %331 = arith.cmpi sge, %8, %330 : vector<1x128xi32>
    %c40_i32_83 = arith.constant 40 : i32
    %332 = vector.broadcast %c40_i32_83 : i32 to vector<1x128xi32>
    %333 = arith.cmpi slt, %8, %332 : vector<1x128xi32>
    %334 = arith.andi %331, %333 : vector<1x128xi1>
    %335 = vector.broadcast %127 : vector<256x1xi1> to vector<256x128xi1>
    %336 = vector.broadcast %334 : vector<1x128xi1> to vector<256x128xi1>
    %337 = arith.andi %335, %336 : vector<256x128xi1>
    %c14_i32 = arith.constant 14 : i32
    %338 = tpu.dynamic_rotate %27 by %c14_i32 dim 0 : vector<256x128xf32>, i32 -> vector<256x128xf32>
    %339 = arith.select %337, %338, %329 : vector<256x128xi1>, vector<256x128xf32>
    %c40_i32_84 = arith.constant 40 : i32
    %340 = vector.broadcast %c40_i32_84 : i32 to vector<1x128xi32>
    %341 = arith.cmpi sge, %8, %340 : vector<1x128xi32>
    %c44_i32 = arith.constant 44 : i32
    %342 = vector.broadcast %c44_i32 : i32 to vector<1x128xi32>
    %343 = arith.cmpi slt, %8, %342 : vector<1x128xi32>
    %344 = arith.andi %341, %343 : vector<1x128xi1>
    %345 = vector.broadcast %128 : vector<256x1xi1> to vector<256x128xi1>
    %346 = vector.broadcast %344 : vector<1x128xi1> to vector<256x128xi1>
    %347 = arith.andi %345, %346 : vector<256x128xi1>
    %c2_i32_85 = arith.constant 2 : i32
    %348 = tpu.dynamic_rotate %27 by %c2_i32_85 dim 0 : vector<256x128xf32>, i32 -> vector<256x128xf32>
    %349 = arith.select %347, %348, %339 : vector<256x128xi1>, vector<256x128xf32>
    %c44_i32_86 = arith.constant 44 : i32
    %350 = vector.broadcast %c44_i32_86 : i32 to vector<1x128xi32>
    %351 = arith.cmpi sge, %8, %350 : vector<1x128xi32>
    %c48_i32 = arith.constant 48 : i32
    %352 = vector.broadcast %c48_i32 : i32 to vector<1x128xi32>
    %353 = arith.cmpi slt, %8, %352 : vector<1x128xi32>
    %354 = arith.andi %351, %353 : vector<1x128xi1>
    %355 = vector.broadcast %129 : vector<256x1xi1> to vector<256x128xi1>
    %356 = vector.broadcast %354 : vector<1x128xi1> to vector<256x128xi1>
    %357 = arith.andi %355, %356 : vector<256x128xi1>
    %c1_i32_87 = arith.constant 1 : i32
    %358 = tpu.dynamic_rotate %27 by %c1_i32_87 dim 0 : vector<256x128xf32>, i32 -> vector<256x128xf32>
    %359 = arith.select %357, %358, %349 : vector<256x128xi1>, vector<256x128xf32>
    %c48_i32_88 = arith.constant 48 : i32
    %360 = vector.broadcast %c48_i32_88 : i32 to vector<1x128xi32>
    %361 = arith.cmpi sge, %8, %360 : vector<1x128xi32>
    %c52_i32 = arith.constant 52 : i32
    %362 = vector.broadcast %c52_i32 : i32 to vector<1x128xi32>
    %363 = arith.cmpi slt, %8, %362 : vector<1x128xi32>
    %364 = arith.andi %361, %363 : vector<1x128xi1>
    %365 = vector.broadcast %130 : vector<256x1xi1> to vector<256x128xi1>
    %366 = vector.broadcast %364 : vector<1x128xi1> to vector<256x128xi1>
    %367 = arith.andi %365, %366 : vector<256x128xi1>
    %368 = arith.select %367, %27, %359 : vector<256x128xi1>, vector<256x128xf32>
    %c52_i32_89 = arith.constant 52 : i32
    %369 = vector.broadcast %c52_i32_89 : i32 to vector<1x128xi32>
    %370 = arith.cmpi sge, %8, %369 : vector<1x128xi32>
    %c56_i32 = arith.constant 56 : i32
    %371 = vector.broadcast %c56_i32 : i32 to vector<1x128xi32>
    %372 = arith.cmpi slt, %8, %371 : vector<1x128xi32>
    %373 = arith.andi %370, %372 : vector<1x128xi1>
    %374 = vector.broadcast %131 : vector<256x1xi1> to vector<256x128xi1>
    %375 = vector.broadcast %373 : vector<1x128xi1> to vector<256x128xi1>
    %376 = arith.andi %374, %375 : vector<256x128xi1>
    %c255_i32_90 = arith.constant 255 : i32
    %377 = tpu.dynamic_rotate %27 by %c255_i32_90 dim 0 : vector<256x128xf32>, i32 -> vector<256x128xf32>
    %378 = arith.select %376, %377, %368 : vector<256x128xi1>, vector<256x128xf32>
    %c56_i32_91 = arith.constant 56 : i32
    %379 = vector.broadcast %c56_i32_91 : i32 to vector<1x128xi32>
    %380 = arith.cmpi sge, %8, %379 : vector<1x128xi32>
    %c60_i32 = arith.constant 60 : i32
    %381 = vector.broadcast %c60_i32 : i32 to vector<1x128xi32>
    %382 = arith.cmpi slt, %8, %381 : vector<1x128xi32>
    %383 = arith.andi %380, %382 : vector<1x128xi1>
    %384 = vector.broadcast %132 : vector<256x1xi1> to vector<256x128xi1>
    %385 = vector.broadcast %383 : vector<1x128xi1> to vector<256x128xi1>
    %386 = arith.andi %384, %385 : vector<256x128xi1>
    %c254_i32 = arith.constant 254 : i32
    %387 = tpu.dynamic_rotate %27 by %c254_i32 dim 0 : vector<256x128xf32>, i32 -> vector<256x128xf32>
    %388 = arith.select %386, %387, %378 : vector<256x128xi1>, vector<256x128xf32>
    %c60_i32_92 = arith.constant 60 : i32
    %389 = vector.broadcast %c60_i32_92 : i32 to vector<1x128xi32>
    %390 = arith.cmpi sge, %8, %389 : vector<1x128xi32>
    %c64_i32 = arith.constant 64 : i32
    %391 = vector.broadcast %c64_i32 : i32 to vector<1x128xi32>
    %392 = arith.cmpi slt, %8, %391 : vector<1x128xi32>
    %393 = arith.andi %390, %392 : vector<1x128xi1>
    %394 = vector.broadcast %133 : vector<256x1xi1> to vector<256x128xi1>
    %395 = vector.broadcast %393 : vector<1x128xi1> to vector<256x128xi1>
    %396 = arith.andi %394, %395 : vector<256x128xi1>
    %c242_i32 = arith.constant 242 : i32
    %397 = tpu.dynamic_rotate %27 by %c242_i32 dim 0 : vector<256x128xf32>, i32 -> vector<256x128xf32>
    %398 = arith.select %396, %397, %388 : vector<256x128xi1>, vector<256x128xf32>
    %c64_i32_93 = arith.constant 64 : i32
    %399 = vector.broadcast %c64_i32_93 : i32 to vector<1x128xi32>
    %400 = arith.cmpi sge, %8, %399 : vector<1x128xi32>
    %c68_i32 = arith.constant 68 : i32
    %401 = vector.broadcast %c68_i32 : i32 to vector<1x128xi32>
    %402 = arith.cmpi slt, %8, %401 : vector<1x128xi32>
    %403 = arith.andi %400, %402 : vector<1x128xi1>
    %404 = vector.broadcast %134 : vector<256x1xi1> to vector<256x128xi1>
    %405 = vector.broadcast %403 : vector<1x128xi1> to vector<256x128xi1>
    %406 = arith.andi %404, %405 : vector<256x128xi1>
    %c241_i32_94 = arith.constant 241 : i32
    %407 = tpu.dynamic_rotate %27 by %c241_i32_94 dim 0 : vector<256x128xf32>, i32 -> vector<256x128xf32>
    %408 = arith.select %406, %407, %398 : vector<256x128xi1>, vector<256x128xf32>
    %c68_i32_95 = arith.constant 68 : i32
    %409 = vector.broadcast %c68_i32_95 : i32 to vector<1x128xi32>
    %410 = arith.cmpi sge, %8, %409 : vector<1x128xi32>
    %c72_i32 = arith.constant 72 : i32
    %411 = vector.broadcast %c72_i32 : i32 to vector<1x128xi32>
    %412 = arith.cmpi slt, %8, %411 : vector<1x128xi32>
    %413 = arith.andi %410, %412 : vector<1x128xi1>
    %414 = vector.broadcast %135 : vector<256x1xi1> to vector<256x128xi1>
    %415 = vector.broadcast %413 : vector<1x128xi1> to vector<256x128xi1>
    %416 = arith.andi %414, %415 : vector<256x128xi1>
    %c240_i32_96 = arith.constant 240 : i32
    %417 = tpu.dynamic_rotate %27 by %c240_i32_96 dim 0 : vector<256x128xf32>, i32 -> vector<256x128xf32>
    %418 = arith.select %416, %417, %408 : vector<256x128xi1>, vector<256x128xf32>
    %c72_i32_97 = arith.constant 72 : i32
    %419 = vector.broadcast %c72_i32_97 : i32 to vector<1x128xi32>
    %420 = arith.cmpi sge, %8, %419 : vector<1x128xi32>
    %c76_i32 = arith.constant 76 : i32
    %421 = vector.broadcast %c76_i32 : i32 to vector<1x128xi32>
    %422 = arith.cmpi slt, %8, %421 : vector<1x128xi32>
    %423 = arith.andi %420, %422 : vector<1x128xi1>
    %424 = vector.broadcast %136 : vector<256x1xi1> to vector<256x128xi1>
    %425 = vector.broadcast %423 : vector<1x128xi1> to vector<256x128xi1>
    %426 = arith.andi %424, %425 : vector<256x128xi1>
    %c239_i32_98 = arith.constant 239 : i32
    %427 = tpu.dynamic_rotate %27 by %c239_i32_98 dim 0 : vector<256x128xf32>, i32 -> vector<256x128xf32>
    %428 = arith.select %426, %427, %418 : vector<256x128xi1>, vector<256x128xf32>
    %c76_i32_99 = arith.constant 76 : i32
    %429 = vector.broadcast %c76_i32_99 : i32 to vector<1x128xi32>
    %430 = arith.cmpi sge, %8, %429 : vector<1x128xi32>
    %c80_i32 = arith.constant 80 : i32
    %431 = vector.broadcast %c80_i32 : i32 to vector<1x128xi32>
    %432 = arith.cmpi slt, %8, %431 : vector<1x128xi32>
    %433 = arith.andi %430, %432 : vector<1x128xi1>
    %434 = vector.broadcast %137 : vector<256x1xi1> to vector<256x128xi1>
    %435 = vector.broadcast %433 : vector<1x128xi1> to vector<256x128xi1>
    %436 = arith.andi %434, %435 : vector<256x128xi1>
    %c238_i32 = arith.constant 238 : i32
    %437 = tpu.dynamic_rotate %27 by %c238_i32 dim 0 : vector<256x128xf32>, i32 -> vector<256x128xf32>
    %438 = arith.select %436, %437, %428 : vector<256x128xi1>, vector<256x128xf32>
    %c80_i32_100 = arith.constant 80 : i32
    %439 = vector.broadcast %c80_i32_100 : i32 to vector<1x128xi32>
    %440 = arith.cmpi sge, %8, %439 : vector<1x128xi32>
    %c84_i32 = arith.constant 84 : i32
    %441 = vector.broadcast %c84_i32 : i32 to vector<1x128xi32>
    %442 = arith.cmpi slt, %8, %441 : vector<1x128xi32>
    %443 = arith.andi %440, %442 : vector<1x128xi1>
    %444 = vector.broadcast %138 : vector<256x1xi1> to vector<256x128xi1>
    %445 = vector.broadcast %443 : vector<1x128xi1> to vector<256x128xi1>
    %446 = arith.andi %444, %445 : vector<256x128xi1>
    %c226_i32 = arith.constant 226 : i32
    %447 = tpu.dynamic_rotate %27 by %c226_i32 dim 0 : vector<256x128xf32>, i32 -> vector<256x128xf32>
    %448 = arith.select %446, %447, %438 : vector<256x128xi1>, vector<256x128xf32>
    %c84_i32_101 = arith.constant 84 : i32
    %449 = vector.broadcast %c84_i32_101 : i32 to vector<1x128xi32>
    %450 = arith.cmpi sge, %8, %449 : vector<1x128xi32>
    %c88_i32 = arith.constant 88 : i32
    %451 = vector.broadcast %c88_i32 : i32 to vector<1x128xi32>
    %452 = arith.cmpi slt, %8, %451 : vector<1x128xi32>
    %453 = arith.andi %450, %452 : vector<1x128xi1>
    %454 = vector.broadcast %139 : vector<256x1xi1> to vector<256x128xi1>
    %455 = vector.broadcast %453 : vector<1x128xi1> to vector<256x128xi1>
    %456 = arith.andi %454, %455 : vector<256x128xi1>
    %c225_i32 = arith.constant 225 : i32
    %457 = tpu.dynamic_rotate %27 by %c225_i32 dim 0 : vector<256x128xf32>, i32 -> vector<256x128xf32>
    %458 = arith.select %456, %457, %448 : vector<256x128xi1>, vector<256x128xf32>
    %c88_i32_102 = arith.constant 88 : i32
    %459 = vector.broadcast %c88_i32_102 : i32 to vector<1x128xi32>
    %460 = arith.cmpi sge, %8, %459 : vector<1x128xi32>
    %c92_i32 = arith.constant 92 : i32
    %461 = vector.broadcast %c92_i32 : i32 to vector<1x128xi32>
    %462 = arith.cmpi slt, %8, %461 : vector<1x128xi32>
    %463 = arith.andi %460, %462 : vector<1x128xi1>
    %464 = vector.broadcast %140 : vector<256x1xi1> to vector<256x128xi1>
    %465 = vector.broadcast %463 : vector<1x128xi1> to vector<256x128xi1>
    %466 = arith.andi %464, %465 : vector<256x128xi1>
    %c224_i32 = arith.constant 224 : i32
    %467 = tpu.dynamic_rotate %27 by %c224_i32 dim 0 : vector<256x128xf32>, i32 -> vector<256x128xf32>
    %468 = arith.select %466, %467, %458 : vector<256x128xi1>, vector<256x128xf32>
    %c92_i32_103 = arith.constant 92 : i32
    %469 = vector.broadcast %c92_i32_103 : i32 to vector<1x128xi32>
    %470 = arith.cmpi sge, %8, %469 : vector<1x128xi32>
    %c96_i32 = arith.constant 96 : i32
    %471 = vector.broadcast %c96_i32 : i32 to vector<1x128xi32>
    %472 = arith.cmpi slt, %8, %471 : vector<1x128xi32>
    %473 = arith.andi %470, %472 : vector<1x128xi1>
    %474 = vector.broadcast %141 : vector<256x1xi1> to vector<256x128xi1>
    %475 = vector.broadcast %473 : vector<1x128xi1> to vector<256x128xi1>
    %476 = arith.andi %474, %475 : vector<256x128xi1>
    %c223_i32 = arith.constant 223 : i32
    %477 = tpu.dynamic_rotate %27 by %c223_i32 dim 0 : vector<256x128xf32>, i32 -> vector<256x128xf32>
    %478 = arith.select %476, %477, %468 : vector<256x128xi1>, vector<256x128xf32>
    %c96_i32_104 = arith.constant 96 : i32
    %479 = vector.broadcast %c96_i32_104 : i32 to vector<1x128xi32>
    %480 = arith.cmpi sge, %8, %479 : vector<1x128xi32>
    %c100_i32 = arith.constant 100 : i32
    %481 = vector.broadcast %c100_i32 : i32 to vector<1x128xi32>
    %482 = arith.cmpi slt, %8, %481 : vector<1x128xi32>
    %483 = arith.andi %480, %482 : vector<1x128xi1>
    %484 = vector.broadcast %142 : vector<256x1xi1> to vector<256x128xi1>
    %485 = vector.broadcast %483 : vector<1x128xi1> to vector<256x128xi1>
    %486 = arith.andi %484, %485 : vector<256x128xi1>
    %c222_i32 = arith.constant 222 : i32
    %487 = tpu.dynamic_rotate %27 by %c222_i32 dim 0 : vector<256x128xf32>, i32 -> vector<256x128xf32>
    %488 = arith.select %486, %487, %478 : vector<256x128xi1>, vector<256x128xf32>
    %c1_i32_105 = arith.constant 1 : i32
    %489 = tpu.dynamic_rotate %0 by %c1_i32_105 dim 0 : vector<256x128xf32>, i32 -> vector<256x128xf32>
    %cst_106 = arith.constant -3.40282347E+38 : f32
    %490 = vector.shape_cast %90 : vector<256x1xi1> to vector<256x1xi1>
    %491 = vector.broadcast %490 : vector<256x1xi1> to vector<256x128xi1>
    %492 = vector.broadcast %cst_106 : f32 to vector<256x128xf32>
    %493 = arith.select %491, %489, %492 : vector<256x128xi1>, vector<256x128xf32>
    %c255_i32_107 = arith.constant 255 : i32
    %494 = tpu.dynamic_rotate %0 by %c255_i32_107 dim 0 : vector<256x128xf32>, i32 -> vector<256x128xf32>
    %cst_108 = arith.constant -3.40282347E+38 : f32
    %495 = vector.shape_cast %108 : vector<256x1xi1> to vector<256x1xi1>
    %496 = vector.broadcast %495 : vector<256x1xi1> to vector<256x128xi1>
    %497 = vector.broadcast %cst_108 : f32 to vector<256x128xf32>
    %498 = arith.select %496, %494, %497 : vector<256x128xi1>, vector<256x128xf32>
    %499 = arith.maximumf %493, %498 : vector<256x128xf32>
    %500 = arith.maximumf %0, %499 : vector<256x128xf32>
    %c16_i32_109 = arith.constant 16 : i32
    %501 = tpu.dynamic_rotate %500 by %c16_i32_109 dim 0 : vector<256x128xf32>, i32 -> vector<256x128xf32>
    %cst_110 = arith.constant -3.40282347E+38 : f32
    %502 = vector.shape_cast %45 : vector<256x1xi1> to vector<256x1xi1>
    %503 = vector.broadcast %502 : vector<256x1xi1> to vector<256x128xi1>
    %504 = vector.broadcast %cst_110 : f32 to vector<256x128xf32>
    %505 = arith.select %503, %501, %504 : vector<256x128xi1>, vector<256x128xf32>
    %c240_i32_111 = arith.constant 240 : i32
    %506 = tpu.dynamic_rotate %500 by %c240_i32_111 dim 0 : vector<256x128xf32>, i32 -> vector<256x128xf32>
    %cst_112 = arith.constant -3.40282347E+38 : f32
    %507 = vector.shape_cast %63 : vector<256x1xi1> to vector<256x1xi1>
    %508 = vector.broadcast %507 : vector<256x1xi1> to vector<256x128xi1>
    %509 = vector.broadcast %cst_112 : f32 to vector<256x128xf32>
    %510 = arith.select %508, %506, %509 : vector<256x128xi1>, vector<256x128xf32>
    %511 = arith.maximumf %505, %510 : vector<256x128xf32>
    %512 = arith.maximumf %500, %511 : vector<256x128xf32>
    %513 = arith.truncf %238 : vector<256x128xf32> to vector<256x128xbf16>
    %c0_113 = arith.constant 0 : index
    %c0_114 = arith.constant 0 : index
    %514 = vector.load %arg4[%c0_113, %c0_114] : memref<128x128xbf16, #tpu.memory_space<vmem>>, vector<128x128xbf16>
    %cst_115 = arith.constant dense<0.000000e+00> : vector<256x128xf32>
    %515 = tpu.matmul %513, %514, %cst_115 {dimension_numbers = #tpu.dot_dimension_numbers<[1], [0], [0], [1], [0, 0, 1, 1], [], []>} : vector<256x128xbf16>, vector<128x128xbf16>, vector<256x128xf32> -> vector<256x128xf32>
    %516 = arith.truncf %488 : vector<256x128xf32> to vector<256x128xbf16>
    %c0_116 = arith.constant 0 : index
    %c0_117 = arith.constant 0 : index
    %517 = vector.load %arg5[%c0_116, %c0_117] : memref<128x128xbf16, #tpu.memory_space<vmem>>, vector<128x128xbf16>
    %cst_118 = arith.constant dense<0.000000e+00> : vector<256x128xf32>
    %518 = tpu.matmul %516, %517, %cst_118 {dimension_numbers = #tpu.dot_dimension_numbers<[1], [0], [0], [1], [0, 0, 1, 1], [], []>} : vector<256x128xbf16>, vector<128x128xbf16>, vector<256x128xf32> -> vector<256x128xf32>
    %519 = arith.addf %515, %518 : vector<256x128xf32>
    %520 = arith.truncf %512 : vector<256x128xf32> to vector<256x128xbf16>
    %c0_119 = arith.constant 0 : index
    %c0_120 = arith.constant 0 : index
    %521 = vector.load %arg6[%c0_119, %c0_120] : memref<128x128xbf16, #tpu.memory_space<vmem>>, vector<128x128xbf16>
    %cst_121 = arith.constant dense<0.000000e+00> : vector<256x128xf32>
    %522 = tpu.matmul %520, %521, %cst_121 {dimension_numbers = #tpu.dot_dimension_numbers<[1], [0], [0], [1], [0, 0, 1, 1], [], []>} : vector<256x128xbf16>, vector<128x128xbf16>, vector<256x128xf32> -> vector<256x128xf32>
    %523 = arith.addf %519, %522 : vector<256x128xf32>
    %c0_122 = arith.constant 0 : index
    %c0_123 = arith.constant 0 : index
    %524 = vector.load %arg7[%c0_122, %c0_123] : memref<1x128xf32, #tpu.memory_space<vmem>>, vector<1x128xf32>
    %525 = vector.broadcast %524 : vector<1x128xf32> to vector<256x128xf32>
    %526 = arith.addf %523, %525 : vector<256x128xf32>
    %c4_i32_124 = arith.constant 4 : i32
    %527 = vector.broadcast %c4_i32_124 : i32 to vector<1x128xi32>
    %528 = arith.cmpi slt, %8, %527 : vector<1x128xi32>
    %cst_125 = arith.constant 0.000000e+00 : f32
    %529 = vector.broadcast %cst_125 : f32 to vector<256x128xf32>
    %530 = arith.maximumf %526, %529 : vector<256x128xf32>
    %531 = vector.shape_cast %528 : vector<1x128xi1> to vector<1x128xi1>
    %532 = vector.broadcast %531 : vector<1x128xi1> to vector<256x128xi1>
    %533 = arith.select %532, %526, %530 : vector<256x128xi1>, vector<256x128xf32>
    %c0_126 = arith.constant 0 : index
    %c0_127 = arith.constant 0 : index
    %534 = vector.load %arg8[%c0_126, %c0_127] : memref<256x128xf32, #tpu.memory_space<vmem>>, vector<256x128xf32>
    tpu.vector_store %arg8[%c0_126, %c0_127], %533 {strides = array<i32>} : memref<256x128xf32, #tpu.memory_space<vmem>>, vector<256x128xf32>,
    return
  }
  func.func @transform_0(%arg0: i32) -> (i32, i32) {
    %c0_i32 = arith.constant 0 : i32
    %c0_i32_0 = arith.constant 0 : i32
    return %arg0, %c0_i32 : i32, i32
  }
  func.func @transform_1(%arg0: i32) -> (i32, i32) {
    %c0_i32 = arith.constant 0 : i32
    %c0_i32_0 = arith.constant 0 : i32
    %c0_i32_1 = arith.constant 0 : i32
    return %c0_i32, %c0_i32_0 : i32, i32
  }
  func.func @transform_2(%arg0: i32) -> (i32, i32) {
    %c0_i32 = arith.constant 0 : i32
    %c0_i32_0 = arith.constant 0 : i32
    %c0_i32_1 = arith.constant 0 : i32
    return %c0_i32, %c0_i32_0 : i32, i32
  }
  func.func @transform_3(%arg0: i32) -> (i32, i32) {
    %c0_i32 = arith.constant 0 : i32
    %c0_i32_0 = arith.constant 0 : i32
    %c0_i32_1 = arith.constant 0 : i32
    return %c0_i32, %c0_i32_0 : i32, i32
  }
  func.func @transform_4(%arg0: i32) -> (i32, i32) {
    %c0_i32 = arith.constant 0 : i32
    %c0_i32_0 = arith.constant 0 : i32
    %c0_i32_1 = arith.constant 0 : i32
    return %c0_i32, %c0_i32_0 : i32, i32
  }
  func.func @transform_5(%arg0: i32) -> (i32, i32) {
    %c0_i32 = arith.constant 0 : i32
    %c0_i32_0 = arith.constant 0 : i32
    %c0_i32_1 = arith.constant 0 : i32
    return %c0_i32, %c0_i32_0 : i32, i32
  }
  func.func @transform_6(%arg0: i32) -> (i32, i32) {
    %c0_i32 = arith.constant 0 : i32
    %c0_i32_0 = arith.constant 0 : i32
    %c0_i32_1 = arith.constant 0 : i32
    return %c0_i32, %c0_i32_0 : i32, i32
  }
  func.func @transform_7(%arg0: i32) -> (i32, i32) {
    %c0_i32 = arith.constant 0 : i32
    %c0_i32_0 = arith.constant 0 : i32
    return %arg0, %c0_i32 : i32, i32
  }
}

</mosaic_0001>

<llo_original>
// kernel: tpu_custom_call.1
$region0: #{tpu_custom_call.1}
  #allocation0 [shape = 'u32[]', space=smem, size = 0x4, offset = 0x4, fixed_abs, tag = 'smem constant byte address 0x4 - core index']
  #allocation1 [shape = 'u32[144,128]{1,0:T(1,128)}', space=vmem, size = 0x12000, scoped, tag = 'internal scratch']
  %s0 = inlined_call_operand.hbm [shape: f32[512,128], index: 0, kind: input, shape index: {}]
  %s1 = inlined_call_operand.hbm [shape: bf16[128,256], index: 1, kind: input, shape index: {}]
  %s2 = inlined_call_operand.vmem [shape: f32[1,256], index: 2, kind: input, shape index: {}]
  %s3 = inlined_call_operand.hbm [shape: bf16[128,128], index: 3, kind: input, shape index: {}]
  %s4 = inlined_call_operand.hbm [shape: bf16[128,128], index: 4, kind: input, shape index: {}]
  %s5 = inlined_call_operand.hbm [shape: bf16[128,128], index: 5, kind: input, shape index: {}]
  %s6 = inlined_call_operand.vmem [shape: f32[1,128], index: 6, kind: input, shape index: {}]
  %s7 = inlined_call_operand.hbm [shape: f32[512,128], index: 7, kind: output, shape index: {}]
  %s8 = sld [smem:[#allocation0]]
  $region81: #{tpu_custom_call.1} parent=0
    _
  %s10 = ssub.s32 1, %s8
  %s11 = scalar_select 0, %s10, %s8
  $region1: #{tpu_custom_call.1} parent=0
    #allocation2 [shape = 'u8[262144]{0}', space=vmem, size = 0x40000, scoped, tag = 'input window, operand 0']
    #allocation3 [shape = 's32[2]{0}', space=sflag, size = 0x8, scoped, tag = 'scoped memory for tpu_custom_call.1']
    #allocation4 [shape = 's32[2]{0}', space=sflag, size = 0x8, scoped, tag = 'scoped memory for tpu_custom_call.1']
    #allocation5 [shape = 'u8[65536]{0}', space=vmem, size = 0x10000, scoped, tag = 'input window, operand 1, single buffered']
    #allocation6 [shape = 's32[1]{0}', space=sflag, size = 0x4, scoped, tag = 'scoped memory for tpu_custom_call.1']
    #allocation7 [shape = 'u8[32768]{0}', space=vmem, size = 0x8000, scoped, tag = 'input window, operand 3, single buffered']
    #allocation8 [shape = 'u8[32768]{0}', space=vmem, size = 0x8000, scoped, tag = 'input window, operand 4, single buffered']
    #allocation9 [shape = 's32[1]{0}', space=sflag, size = 0x4, scoped, tag = 'scoped memory for tpu_custom_call.1']
    #allocation10 [shape = 'u8[32768]{0}', space=vmem, size = 0x8000, scoped, tag = 'input window, operand 5, single buffered']
    #allocation11 [shape = 'u8[262144]{0}', space=vmem, size = 0x40000, scoped, tag = 'output window, operand 0']
    %12 = vsyncpa [#allocation3], 0
    %s13 = scalar_lea.sflag [#allocation3], 1
    %14 = vsyncpa %s13, 0
    %15 = vsyncpa [#allocation6], 0
    %16 = vsyncpa [#allocation9], 0
    %17 = vsyncpa [#allocation4], 0
    %s18 = scalar_lea.sflag [#allocation4], 1
    %19 = vsyncpa %s18, 0
    loop: start=0, step=1, limit=4
    $region2: #{tpu_custom_call.1} parent=1 // loop_pre_header
      _
    $region3: #{tpu_custom_call.1} parent=1 // loop_header
      %s21 = sphi 0, %s25
      %p22 = scmp.ge.s32.totalorder %s21, 4
      %s31 = sphi 0, %s33
      %s34 = sphi 0, %s31
      %s35 = sphi 0, %s34
      %s51 = sphi 0, %s35
      %s55 = sphi 0, %s55
      %s57 = sphi 0, %s55
      %s58 = sphi 0, %s57
      %s72 = sphi 0, %s58
      %s76 = sphi 0, %s76
      %s78 = sphi 0, %s76
      %s79 = sphi 0, %s78
      %s93 = sphi 0, %s79
      %s97 = sphi 0, %s97
      %s99 = sphi 0, %s97
      %s100 = sphi 0, %s99
      %s114 = sphi 0, %s100
      %s118 = sphi 0, %s118
      %s120 = sphi 0, %s118
      %s121 = sphi 0, %s120
      %s135 = sphi 0, %s121
      %s139 = sphi 0, %s139
      %s141 = sphi 0, %s139
      %s142 = sphi 0, %s141
      %s156 = sphi 0, %s142
      %s160 = sphi 0, %s160
      %s162 = sphi 0, %s160
      %s163 = sphi 0, %s162
      %s177 = sphi 0, %s163
      %s183 = sphi 0, %s185
      %s186 = sphi 0, %s183
      %s187 = sphi 0, %s186
      %s203 = sphi 0, %s187
    $region4: #{tpu_custom_call.1} parent=1 // loop_header_branch
      %24 = sbr.rel (%p22) target = $region8
    $region5: #{tpu_custom_call.1} parent=1 // loop_body
      %s26 = ssub.s32 %s21, 1
      %s27 = ssub.s32 %s21, 2
      %s28 = sadd.s32 %s21, 1
      %s29 = ssub.s32 %s21, %s28
      %p30 = scmp.eq.s32.totalorder %s29, 0
      %s32 = sadd.s32 %s31, 1
      %s33 = scalar_select %p30, %s31, %s32
      %p36 = pneg %p30
      %p37 = scmp.eq.s32.totalorder %s21, 1
      %p38 = por %p36, %p37
      %p39 = scmp.ne.s32.totalorder %s31, %s34
      %p40 = scmp.eq.s32.totalorder %s21, 0
      %p41 = por %p39, %p40
      %p42 = scmp.ne.s32.totalorder %s31, %s34
      %p43 = scmp.eq.s32.totalorder %s26, 1
      %p44 = por %p42, %p43
      %p45 = scmp.ne.s32.totalorder %s34, %s35
      %p46 = scmp.eq.s32.totalorder %s26, 0
      %p47 = por %p45, %p46
      %p48 = scmp.ne.s32.totalorder %s34, %s35
      %p49 = scmp.eq.s32.totalorder %s27, 1
      %p50 = por %p48, %p49
      %p52 = scmp.ne.s32.totalorder %s35, %s51
      %p53 = scmp.eq.s32.totalorder %s27, 0
      %p54 = por %p52, %p53
      %s56 = sadd.s32 %s55, 1
      %p59 = scmp.eq.s32.totalorder %s21, 1
      %p60 = scmp.ne.s32.totalorder %s55, %s57
      %p61 = scmp.eq.s32.totalorder %s21, 0
      %p62 = por %p60, %p61
      %p63 = scmp.ne.s32.totalorder %s55, %s57
      %p64 = scmp.eq.s32.totalorder %s26, 1
      %p65 = por %p63, %p64
      %p66 = scmp.ne.s32.totalorder %s57, %s58
      %p67 = scmp.eq.s32.totalorder %s26, 0
      %p68 = por %p66, %p67
      %p69 = scmp.ne.s32.totalorder %s57, %s58
      %p70 = scmp.eq.s32.totalorder %s27, 1
      %p71 = por %p69, %p70
      %p73 = scmp.ne.s32.totalorder %s58, %s72
      %p74 = scmp.eq.s32.totalorder %s27, 0
      %p75 = por %p73, %p74
      %s77 = sadd.s32 %s76, 1
      %p80 = scmp.eq.s32.totalorder %s21, 1
      %p81 = scmp.ne.s32.totalorder %s76, %s78
      %p82 = scmp.eq.s32.totalorder %s21, 0
      %p83 = por %p81, %p82
      %p84 = scmp.ne.s32.totalorder %s76, %s78
      %p85 = scmp.eq.s32.totalorder %s26, 1
      %p86 = por %p84, %p85
      %p87 = scmp.ne.s32.totalorder %s78, %s79
      %p88 = scmp.eq.s32.totalorder %s26, 0
      %p89 = por %p87, %p88
      %p90 = scmp.ne.s32.totalorder %s78, %s79
      %p91 = scmp.eq.s32.totalorder %s27, 1
      %p92 = por %p90, %p91
      %p94 = scmp.ne.s32.totalorder %s79, %s93
      %p95 = scmp.eq.s32.totalorder %s27, 0
      %p96 = por %p94, %p95
      %s98 = sadd.s32 %s97, 1
      %p101 = scmp.eq.s32.totalorder %s21, 1
      %p102 = scmp.ne.s32.totalorder %s97, %s99
      %p103 = scmp.eq.s32.totalorder %s21, 0
      %p104 = por %p102, %p103
      %p105 = scmp.ne.s32.totalorder %s97, %s99
      %p106 = scmp.eq.s32.totalorder %s26, 1
      %p107 = por %p105, %p106
      %p108 = scmp.ne.s32.totalorder %s99, %s100
      %p109 = scmp.eq.s32.totalorder %s26, 0
      %p110 = por %p108, %p109
      %p111 = scmp.ne.s32.totalorder %s99, %s100
      %p112 = scmp.eq.s32.totalorder %s27, 1
      %p113 = por %p111, %p112
      %p115 = scmp.ne.s32.totalorder %s100, %s114
      %p116 = scmp.eq.s32.totalorder %s27, 0
      %p117 = por %p115, %p116
      %s119 = sadd.s32 %s118, 1
      %p122 = scmp.eq.s32.totalorder %s21, 1
      %p123 = scmp.ne.s32.totalorder %s118, %s120
      %p124 = scmp.eq.s32.totalorder %s21, 0
      %p125 = por %p123, %p124
      %p126 = scmp.ne.s32.totalorder %s118, %s120
      %p127 = scmp.eq.s32.totalorder %s26, 1
      %p128 = por %p126, %p127
      %p129 = scmp.ne.s32.totalorder %s120, %s121
      %p130 = scmp.eq.s32.totalorder %s26, 0
      %p131 = por %p129, %p130
      %p132 = scmp.ne.s32.totalorder %s120, %s121
      %p133 = scmp.eq.s32.totalorder %s27, 1
      %p134 = por %p132, %p133
      %p136 = scmp.ne.s32.totalorder %s121, %s135
      %p137 = scmp.eq.s32.totalorder %s27, 0
      %p138 = por %p136, %p137
      %s140 = sadd.s32 %s139, 1
      %p143 = scmp.eq.s32.totalorder %s21, 1
      %p144 = scmp.ne.s32.totalorder %s139, %s141
      %p145 = scmp.eq.s32.totalorder %s21, 0
      %p146 = por %p144, %p145
      %p147 = scmp.ne.s32.totalorder %s139, %s141
      %p148 = scmp.eq.s32.totalorder %s26, 1
      %p149 = por %p147, %p148
      %p150 = scmp.ne.s32.totalorder %s141, %s142
      %p151 = scmp.eq.s32.totalorder %s26, 0
      %p152 = por %p150, %p151
      %p153 = scmp.ne.s32.totalorder %s141, %s142
      %p154 = scmp.eq.s32.totalorder %s27, 1
      %p155 = por %p153, %p154
      %p157 = scmp.ne.s32.totalorder %s142, %s156
      %p158 = scmp.eq.s32.totalorder %s27, 0
      %p159 = por %p157, %p158
      %s161 = sadd.s32 %s160, 1
      %p164 = scmp.eq.s32.totalorder %s21, 1
      %p165 = scmp.ne.s32.totalorder %s160, %s162
      %p166 = scmp.eq.s32.totalorder %s21, 0
      %p167 = por %p165, %p166
      %p168 = scmp.ne.s32.totalorder %s160, %s162
      %p169 = scmp.eq.s32.totalorder %s26, 1
      %p170 = por %p168, %p169
      %p171 = scmp.ne.s32.totalorder %s162, %s163
      %p172 = scmp.eq.s32.totalorder %s26, 0
      %p173 = por %p171, %p172
      %p174 = scmp.ne.s32.totalorder %s162, %s163
      %p175 = scmp.eq.s32.totalorder %s27, 1
      %p176 = por %p174, %p175
      %p178 = scmp.ne.s32.totalorder %s163, %s177
      %p179 = scmp.eq.s32.totalorder %s27, 0
      %p180 = por %p178, %p179
      %s181 = ssub.s32 %s21, %s28
      %p182 = scmp.eq.s32.totalorder %s181, 0
      %s184 = sadd.s32 %s183, 1
      %s185 = scalar_select %p182, %s183, %s184
      %p188 = pneg %p182
      %p189 = scmp.eq.s32.totalorder %s21, 1
      %p190 = por %p188, %p189
      %p191 = scmp.ne.s32.totalorder %s183, %s186
      %p192 = scmp.eq.s32.totalorder %s21, 0
      %p193 = por %p191, %p192
      %p194 = scmp.ne.s32.totalorder %s183, %s186
      %p195 = scmp.eq.s32.totalorder %s26, 1
      %p196 = por %p194, %p195
      %p197 = scmp.ne.s32.totalorder %s186, %s187
      %p198 = scmp.eq.s32.totalorder %s26, 0
      %p199 = por %p197, %p198
      %p200 = scmp.ne.s32.totalorder %s186, %s187
      %p201 = scmp.eq.s32.totalorder %s27, 1
      %p202 = por %p200, %p201
      %p204 = scmp.ne.s32.totalorder %s187, %s203
      %p205 = scmp.eq.s32.totalorder %s27, 0
      %p206 = por %p204, %p205
      %p207 = scmp.le.s32.totalorder 1, %s21
      %p208 = scmp.lt.s32.totalorder %s21, 3
      %p209 = pnand %p207, %p208
      %p210 = pneg %p209
      // Predicated region
      $region9: #{tpu_custom_call.1} parent=5 // pred_check
        _
      $region10: #{tpu_custom_call.1} parent=5 // pred_check_branch
        %212 = sbr.rel (%p209) target = $region12
      $region11: #{tpu_custom_call.1} parent=5 // pred_region
        %s213 = ssub.s32 %s21, 1
        // Predicated region
        $region13: #{tpu_custom_call.1} parent=11 // pred_check
          %p214 = pneg %p68
        $region14: #{tpu_custom_call.1} parent=11 // pred_check_branch
          %216 = sbr.rel (%p214) target = $region16
        $region15: #{tpu_custom_call.1} parent=11 // pred_region
          %s218 = ssub.s32 2048, 2048
          %219 = vsyncadd [#allocation6], %s218
          %s220 = sshll.u32 [#allocation5], 4
          %s221 = int_to_ptr.vmem [resolvable:$true] %s220
          %226 = dma.hbm_to_vmem [thread:$0]  %s1, 2048, %s221, [#allocation6], 128, 128, 8
        $region16: #{tpu_custom_call.1} parent=11 // pred_fallthru
          _
        // Predicated region
        $region17: #{tpu_custom_call.1} parent=11 // pred_check
          %p227 = pneg %p89
        $region18: #{tpu_custom_call.1} parent=11 // pred_check_branch
          %229 = sbr.rel (%p227) target = $region20
        $region19: #{tpu_custom_call.1} parent=11 // pred_region
          _
        $region20: #{tpu_custom_call.1} parent=11 // pred_fallthru
          _
        // Predicated region
        $region21: #{tpu_custom_call.1} parent=11 // pred_check
          %p230 = pneg %p110
        $region22: #{tpu_custom_call.1} parent=11 // pred_check_branch
          %232 = sbr.rel (%p230) target = $region24
        $region23: #{tpu_custom_call.1} parent=11 // pred_region
          %s234 = ssub.s32 1024, 1024
          %235 = vsyncadd [#allocation6], %s234
          %s236 = sshll.u32 [#allocation7], 4
          %s237 = int_to_ptr.vmem [resolvable:$true] %s236
          %242 = dma.hbm_to_vmem [thread:$0]  %s3, 1024, %s237, [#allocation6], 64, 64, 4
        $region24: #{tpu_custom_call.1} parent=11 // pred_fallthru
          _
        // Predicated region
        $region25: #{tpu_custom_call.1} parent=11 // pred_check
          %p243 = pneg %p131
        $region26: #{tpu_custom_call.1} parent=11 // pred_check_branch
          %245 = sbr.rel (%p243) target = $region28
        $region27: #{tpu_custom_call.1} parent=11 // pred_region
          %s247 = ssub.s32 1024, 1024
          %248 = vsyncadd [#allocation9], %s247
          %s249 = sshll.u32 [#allocation8], 4
          %s250 = int_to_ptr.vmem [resolvable:$true] %s249
          %255 = dma.hbm_to_vmem [thread:$0]  %s4, 1024, %s250, [#allocation9], 64, 64, 4
        $region28: #{tpu_custom_call.1} parent=11 // pred_fallthru
          _
        // Predicated region
        $region29: #{tpu_custom_call.1} parent=11 // pred_check
          %p256 = pneg %p152
        $region30: #{tpu_custom_call.1} parent=11 // pred_check_branch
          %258 = sbr.rel (%p256) target = $region32
        $region31: #{tpu_custom_call.1} parent=11 // pred_region
          %s260 = ssub.s32 1024, 1024
          %261 = vsyncadd [#allocation9], %s260
          %s262 = sshll.u32 [#allocation10], 4
          %s263 = int_to_ptr.vmem [resolvable:$true] %s262
          %268 = dma.hbm_to_vmem [thread:$0]  %s5, 1024, %s263, [#allocation9], 64, 64, 4
        $region32: #{tpu_custom_call.1} parent=11 // pred_fallthru
          _
        // Predicated region
        $region33: #{tpu_custom_call.1} parent=11 // pred_check
          %p269 = pneg %p173
        $region34: #{tpu_custom_call.1} parent=11 // pred_check_branch
          %271 = sbr.rel (%p269) target = $region36
        $region35: #{tpu_custom_call.1} parent=11 // pred_region
          _
        $region36: #{tpu_custom_call.1} parent=11 // pred_fallthru
          _
      $region12: #{tpu_custom_call.1} parent=5 // pred_fallthru
        _
      %p272 = scmp.lt.s32.totalorder %s21, 2
      // Predicated region
      $region37: #{tpu_custom_call.1} parent=5 // pred_check
        %p273 = pneg %p272
      $region38: #{tpu_custom_call.1} parent=5 // pred_check_branch
        %275 = sbr.rel (%p273) target = $region40
      $region39: #{tpu_custom_call.1} parent=5 // pred_region
        // Predicated region
        $region41: #{tpu_custom_call.1} parent=39 // pred_check
          %p276 = pneg %p41
        $region42: #{tpu_custom_call.1} parent=39 // pred_check_branch
          %278 = sbr.rel (%p276) target = $region44
        $region43: #{tpu_custom_call.1} parent=39 // pred_region
          %s279 = sand.u32 %s31, 1
          %s280 = scalar_lea.sflag [#allocation3], %s279
          %s281 = sand.u32 %s31, 1
          %s282 = smul.addr %s281, 256
          %s283 = scalar_lea.vmem [#allocation2], %s282
          %s284 = smul.u32 32, %s21
          %s286 = ssub.s32 4096, 4096
          %287 = vsyncadd %s280, %s286
          %s288 = smul.addr %s284, 128
          %s289 = scalar_lea.hbm %s0, %s288
          %s290 = sshll.u32 %s283, 4
          %s291 = int_to_ptr.vmem [resolvable:$true] %s290
          %296 = dma.hbm_to_vmem [thread:$0]  %s289, 4096, %s291, %s280, 128, 128, 8
        $region44: #{tpu_custom_call.1} parent=39 // pred_fallthru
          _
      $region40: #{tpu_custom_call.1} parent=5 // pred_fallthru
        _
      %p297 = scmp.le.s32.totalorder 1, %s21
      %p298 = scmp.lt.s32.totalorder %s21, 3
      %p299 = pnand %p297, %p298
      %p300 = pneg %p299
      // Predicated region
      $region45: #{tpu_custom_call.1} parent=5 // pred_check
        _
      $region46: #{tpu_custom_call.1} parent=5 // pred_check_branch
        %302 = sbr.rel (%p299) target = $region48
      $region47: #{tpu_custom_call.1} parent=5 // pred_region
        %s303 = ssub.s32 %s21, 1
        %s304 = sand.u32 %s34, 1
        %s305 = scalar_lea.sflag [#allocation3], %s304
        %s306 = sand.u32 %s34, 1
        %s307 = smul.addr %s306, 256
        %s308 = scalar_lea.vmem [#allocation2], %s307
        // Predicated region
        $region49: #{tpu_custom_call.1} parent=47 // pred_check
          %p309 = pneg %p47
        $region50: #{tpu_custom_call.1} parent=47 // pred_check_branch
          %311 = sbr.rel (%p309) target = $region52
        $region51: #{tpu_custom_call.1} parent=47 // pred_region
          %312 = dma.done %s305, 4096
        $region52: #{tpu_custom_call.1} parent=47 // pred_fallthru
          _
        // Predicated region
        $region53: #{tpu_custom_call.1} parent=47 // pred_check
          %p313 = pneg %p68
        $region54: #{tpu_custom_call.1} parent=47 // pred_check_branch
          %315 = sbr.rel (%p313) target = $region56
        $region55: #{tpu_custom_call.1} parent=47 // pred_region
          %316 = dma.done [#allocation6], 2048
        $region56: #{tpu_custom_call.1} parent=47 // pred_fallthru
          _
        // Predicated region
        $region57: #{tpu_custom_call.1} parent=47 // pred_check
          %p317 = pneg %p110
        $region58: #{tpu_custom_call.1} parent=47 // pred_check_branch
          %319 = sbr.rel (%p317) target = $region60
        $region59: #{tpu_custom_call.1} parent=47 // pred_region
          %320 = dma.done [#allocation6], 1024
        $region60: #{tpu_custom_call.1} parent=47 // pred_fallthru
          _
        // Predicated region
        $region61: #{tpu_custom_call.1} parent=47 // pred_check
          %p321 = pneg %p131
        $region62: #{tpu_custom_call.1} parent=47 // pred_check_branch
          %323 = sbr.rel (%p321) target = $region64
        $region63: #{tpu_custom_call.1} parent=47 // pred_region
          %324 = dma.done [#allocation9], 1024
        $region64: #{tpu_custom_call.1} parent=47 // pred_fallthru
          _
        // Predicated region
        $region65: #{tpu_custom_call.1} parent=47 // pred_check
          %p325 = pneg %p152
        $region66: #{tpu_custom_call.1} parent=47 // pred_check_branch
          %327 = sbr.rel (%p325) target = $region68
        $region67: #{tpu_custom_call.1} parent=47 // pred_region
          %328 = dma.done [#allocation9], 1024
        $region68: #{tpu_custom_call.1} parent=47 // pred_fallthru
          _
        %s329 = sand.u32 %s34, 1
        %s330 = scalar_lea.sflag [#allocation3], %s329
        %s331 = sand.u32 %s34, 1
        %s332 = smul.addr %s331, 256
        %s333 = scalar_lea.vmem [#allocation2], %s332
        %p334 = pneg %p47
        %p335 = pneg %p44
        %p336 = pneg %p68
        %p337 = pneg %p65
        %p338 = pneg %p89
        %p339 = pneg %p86
        %p340 = pneg %p110
        %p341 = pneg %p107
        %p342 = pneg %p131
        %p343 = pneg %p128
        %p344 = pneg %p152
        %p345 = pneg %p149
        %p346 = pneg %p173
        %p347 = pneg %p170
        %p348 = pneg %p199
        %p349 = pneg %p196
        %s350 = sand.u32 %s186, 1
        %s351 = scalar_lea.sflag [#allocation4], %s350
        %s352 = sand.u32 %s186, 1
        %s353 = smul.addr %s352, 256
        %s354 = scalar_lea.vmem [#allocation11], %s353
        %s355 = smul.u32 32, %s26
        %s356 = smul.u32 32, %s26
        %v358 = vld [vmem:[%s308] sm:$0xff]
        %v359 = vld [vmem:[%s308 + $0x8] sm:$0xff]
        %v360 = vld [vmem:[%s308 + $0x10] sm:$0xff]
        %v361 = vld [vmem:[%s308 + $0x18] sm:$0xff]
        %v362 = vld [vmem:[%s308 + $0x20] sm:$0xff]
        %v363 = vld [vmem:[%s308 + $0x28] sm:$0xff]
        %v364 = vld [vmem:[%s308 + $0x30] sm:$0xff]
        %v365 = vld [vmem:[%s308 + $0x38] sm:$0xff]
        %v366 = vld [vmem:[%s308 + $0x40] sm:$0xff]
        %v367 = vld [vmem:[%s308 + $0x48] sm:$0xff]
        %v368 = vld [vmem:[%s308 + $0x50] sm:$0xff]
        %v369 = vld [vmem:[%s308 + $0x58] sm:$0xff]
        %v370 = vld [vmem:[%s308 + $0x60] sm:$0xff]
        %v371 = vld [vmem:[%s308 + $0x68] sm:$0xff]
        %v372 = vld [vmem:[%s308 + $0x70] sm:$0xff]
        %v373 = vld [vmem:[%s308 + $0x78] sm:$0xff]
        %v374 = vld [vmem:[%s308 + $0x80] sm:$0xff]
        %v375 = vld [vmem:[%s308 + $0x88] sm:$0xff]
        %v376 = vld [vmem:[%s308 + $0x90] sm:$0xff]
        %v377 = vld [vmem:[%s308 + $0x98] sm:$0xff]
        %v378 = vld [vmem:[%s308 + $0xa0] sm:$0xff]
        %v379 = vld [vmem:[%s308 + $0xa8] sm:$0xff]
        %v380 = vld [vmem:[%s308 + $0xb0] sm:$0xff]
        %v381 = vld [vmem:[%s308 + $0xb8] sm:$0xff]
        %v382 = vld [vmem:[%s308 + $0xc0] sm:$0xff]
        %v383 = vld [vmem:[%s308 + $0xc8] sm:$0xff]
        %v384 = vld [vmem:[%s308 + $0xd0] sm:$0xff]
        %v385 = vld [vmem:[%s308 + $0xd8] sm:$0xff]
        %v386 = vld [vmem:[%s308 + $0xe0] sm:$0xff]
        %v387 = vld [vmem:[%s308 + $0xe8] sm:$0xff]
        %v388 = vld [vmem:[%s308 + $0xf0] sm:$0xff]
        %v389 = vld [vmem:[%s308 + $0xf8] sm:$0xff]
        %v390 = vlaneseq
        %v391 = vshrl.u32 %v390, 7
        %v392 = vadd.s32 %v391, 8
        %v393 = vadd.s32 %v391, 16
        %v394 = vadd.s32 %v391, 24
        %v395 = vadd.s32 %v391, 32
        %v396 = vadd.s32 %v391, 40
        %v397 = vadd.s32 %v391, 48
        %v398 = vadd.s32 %v391, 56
        %v399 = vadd.s32 %v391, 64
        %v400 = vadd.s32 %v391, 72
        %v401 = vadd.s32 %v391, 80
        %v402 = vadd.s32 %v391, 88
        %v403 = vadd.s32 %v391, 96
        %v404 = vadd.s32 %v391, 104
        %v405 = vadd.s32 %v391, 112
        %v406 = vadd.s32 %v391, 120
        %v407 = vadd.s32 %v391, 128
        %v408 = vadd.s32 %v391, 136
        %v409 = vadd.s32 %v391, 144
        %v410 = vadd.s32 %v391, 152
        %v411 = vadd.s32 %v391, 160
        %v412 = vadd.s32 %v391, 168
        %v413 = vadd.s32 %v391, 176
        %v414 = vadd.s32 %v391, 184
        %v415 = vadd.s32 %v391, 192
        %v416 = vadd.s32 %v391, 200
        %v417 = vadd.s32 %v391, 208
        %v418 = vadd.s32 %v391, 216
        %v419 = vadd.s32 %v391, 224
        %v420 = vadd.s32 %v391, 232
        %v421 = vadd.s32 %v391, 240
        %v422 = vadd.s32 %v391, 248
        %v423 = vand.u32 %v391, 15
        %v424 = vand.u32 %v392, 15
        %v425 = vand.u32 %v393, 15
        %v426 = vand.u32 %v394, 15
        %v427 = vand.u32 %v395, 15
        %v428 = vand.u32 %v396, 15
        %v429 = vand.u32 %v397, 15
        %v430 = vand.u32 %v398, 15
        %v431 = vand.u32 %v399, 15
        %v432 = vand.u32 %v400, 15
        %v433 = vand.u32 %v401, 15
        %v434 = vand.u32 %v402, 15
        %v435 = vand.u32 %v403, 15
        %v436 = vand.u32 %v404, 15
        %v437 = vand.u32 %v405, 15
        %v438 = vand.u32 %v406, 15
        %v439 = vand.u32 %v407, 15
        %v440 = vand.u32 %v408, 15
        %v441 = vand.u32 %v409, 15
        %v442 = vand.u32 %v410, 15
        %v443 = vand.u32 %v411, 15
        %v444 = vand.u32 %v412, 15
        %v445 = vand.u32 %v413, 15
        %v446 = vand.u32 %v414, 15
        %v447 = vand.u32 %v415, 15
        %v448 = vand.u32 %v416, 15
        %v449 = vand.u32 %v417, 15
        %v450 = vand.u32 %v418, 15
        %v451 = vand.u32 %v419, 15
        %v452 = vand.u32 %v420, 15
        %v453 = vand.u32 %v421, 15
        %v454 = vand.u32 %v422, 15
        %v455 = vshra.s32 %v391, 4
        %v456 = vshra.s32 %v392, 4
        %v457 = vshra.s32 %v393, 4
        %v458 = vshra.s32 %v394, 4
        %v459 = vshra.s32 %v395, 4
        %v460 = vshra.s32 %v396, 4
        %v461 = vshra.s32 %v397, 4
        %v462 = vshra.s32 %v398, 4
        %v463 = vshra.s32 %v399, 4
        %v464 = vshra.s32 %v400, 4
        %v465 = vshra.s32 %v401, 4
        %v466 = vshra.s32 %v402, 4
        %v467 = vshra.s32 %v403, 4
        %v468 = vshra.s32 %v404, 4
        %v469 = vshra.s32 %v405, 4
        %v470 = vshra.s32 %v406, 4
        %v471 = vshra.s32 %v407, 4
        %v472 = vshra.s32 %v408, 4
        %v473 = vshra.s32 %v409, 4
        %v474 = vshra.s32 %v410, 4
        %v475 = vshra.s32 %v411, 4
        %v476 = vshra.s32 %v412, 4
        %v477 = vshra.s32 %v413, 4
        %v478 = vshra.s32 %v414, 4
        %v479 = vshra.s32 %v415, 4
        %v480 = vshra.s32 %v416, 4
        %v481 = vshra.s32 %v417, 4
        %v482 = vshra.s32 %v418, 4
        %v483 = vshra.s32 %v419, 4
        %v484 = vshra.s32 %v420, 4
        %v485 = vshra.s32 %v421, 4
        %v486 = vshra.s32 %v422, 4
        %v487 = vand.u32 %v455, 15
        %v488 = vand.u32 %v456, 15
        %v489 = vand.u32 %v457, 15
        %v490 = vand.u32 %v458, 15
        %v491 = vand.u32 %v459, 15
        %v492 = vand.u32 %v460, 15
        %v493 = vand.u32 %v461, 15
        %v494 = vand.u32 %v462, 15
        %v495 = vand.u32 %v463, 15
        %v496 = vand.u32 %v464, 15
        %v497 = vand.u32 %v465, 15
        %v498 = vand.u32 %v466, 15
        %v499 = vand.u32 %v467, 15
        %v500 = vand.u32 %v468, 15
        %v501 = vand.u32 %v469, 15
        %v502 = vand.u32 %v470, 15
        %v503 = vand.u32 %v471, 15
        %v504 = vand.u32 %v472, 15
        %v505 = vand.u32 %v473, 15
        %v506 = vand.u32 %v474, 15
        %v507 = vand.u32 %v475, 15
        %v508 = vand.u32 %v476, 15
        %v509 = vand.u32 %v477, 15
        %v510 = vand.u32 %v478, 15
        %v511 = vand.u32 %v479, 15
        %v512 = vand.u32 %v480, 15
        %v513 = vand.u32 %v481, 15
        %v514 = vand.u32 %v482, 15
        %v515 = vand.u32 %v483, 15
        %v516 = vand.u32 %v484, 15
        %v517 = vand.u32 %v485, 15
        %v518 = vand.u32 %v486, 15
        %v519 = vlaneseq
        %v520 = vand.u32 %v519, 127
        %v521 = vadd.s32 %v520, 128
        %v522 = vpack.c.bf16 %v359, %v358
        %v523 = vpack.c.bf16 %v361, %v360
        %v524 = vpack.c.bf16 %v363, %v362
        %v525 = vpack.c.bf16 %v365, %v364
        %v526 = vpack.c.bf16 %v367, %v366
        %v527 = vpack.c.bf16 %v369, %v368
        %v528 = vpack.c.bf16 %v371, %v370
        %v529 = vpack.c.bf16 %v373, %v372
        %v530 = vpack.c.bf16 %v375, %v374
        %v531 = vpack.c.bf16 %v377, %v376
        %v532 = vpack.c.bf16 %v379, %v378
        %v533 = vpack.c.bf16 %v381, %v380
        %v534 = vpack.c.bf16 %v383, %v382
        %v535 = vpack.c.bf16 %v385, %v384
        %v536 = vpack.c.bf16 %v387, %v386
        %v537 = vpack.c.bf16 %v389, %v388
        %v538 = vld [vmem:[#allocation5] sm:$0xff]
        %v539 = vld [vmem:[#allocation5 + $0x8] sm:$0xff]
        %v540 = vld [vmem:[#allocation5 + $0x10] sm:$0xff]
        %v541 = vld [vmem:[#allocation5 + $0x18] sm:$0xff]
        %v542 = vld [vmem:[#allocation5 + $0x20] sm:$0xff]
        %v543 = vld [vmem:[#allocation5 + $0x28] sm:$0xff]
        %v544 = vld [vmem:[#allocation5 + $0x30] sm:$0xff]
        %v545 = vld [vmem:[#allocation5 + $0x38] sm:$0xff]
        %v546 = vld [vmem:[#allocation5 + $0x40] sm:$0xff]
        %v547 = vld [vmem:[#allocation5 + $0x48] sm:$0xff]
        %v548 = vld [vmem:[#allocation5 + $0x50] sm:$0xff]
        %v549 = vld [vmem:[#allocation5 + $0x58] sm:$0xff]
        %v550 = vld [vmem:[#allocation5 + $0x60] sm:$0xff]
        %v551 = vld [vmem:[#allocation5 + $0x68] sm:$0xff]
        %v552 = vld [vmem:[#allocation5 + $0x70] sm:$0xff]
        %v553 = vld [vmem:[#allocation5 + $0x78] sm:$0xff]
        %v554 = vld [vmem:[%s2] sm:$0x3]
        %v556 = vlaneseq
        %v557 = vshrl.u32 %v556, 7
        %v558 = vsub.s32 0, %v557
        %v559 = vrot.slane %v554, %v558
        %v560 = vlaneseq
        %v561 = vshrl.u32 %v560, 7
        %v562 = vsub.s32 1, %v561
        %v563 = vrot.slane %v554, %v562
        %v582 = vunpack.c.l.b16 %v538
        %v583 = vunpack.c.h.b16 %v538
        %v584 = vunpack.c.l.b16 %v539
        %v585 = vunpack.c.h.b16 %v539
        %v586 = vunpack.c.l.b16 %v540
        %v587 = vunpack.c.h.b16 %v540
        %v588 = vunpack.c.l.b16 %v541
        %v589 = vunpack.c.h.b16 %v541
        %v590 = vunpack.c.l.b16 %v542
        %v591 = vunpack.c.h.b16 %v542
        %v592 = vunpack.c.l.b16 %v543
        %v593 = vunpack.c.h.b16 %v543
        %v594 = vunpack.c.l.b16 %v544
        %v595 = vunpack.c.h.b16 %v544
        %v596 = vunpack.c.l.b16 %v545
        %v597 = vunpack.c.h.b16 %v545
        %v598 = vunpack.c.l.b16 %v546
        %v599 = vunpack.c.h.b16 %v546
        %v600 = vunpack.c.l.b16 %v547
        %v601 = vunpack.c.h.b16 %v547
        %v602 = vunpack.c.l.b16 %v548
        %v603 = vunpack.c.h.b16 %v548
        %v604 = vunpack.c.l.b16 %v549
        %v605 = vunpack.c.h.b16 %v549
        %v606 = vunpack.c.l.b16 %v550
        %v607 = vunpack.c.h.b16 %v550
        %v608 = vunpack.c.l.b16 %v551
        %v609 = vunpack.c.h.b16 %v551
        %v610 = vunpack.c.l.b16 %v552
        %v611 = vunpack.c.h.b16 %v552
        %v612 = vunpack.c.l.b16 %v553
        %v613 = vunpack.c.h.b16 %v553
        %v614 = vpack.c.b16 %v584, %v582
        %v615 = vpack.c.b16 %v585, %v583
        %v616 = vpack.c.b16 %v588, %v586
        %v617 = vpack.c.b16 %v589, %v587
        %v618 = vpack.c.b16 %v592, %v590
        %v619 = vpack.c.b16 %v593, %v591
        %v620 = vpack.c.b16 %v596, %v594
        %v621 = vpack.c.b16 %v597, %v595
        %v622 = vpack.c.b16 %v600, %v598
        %v623 = vpack.c.b16 %v601, %v599
        %v624 = vpack.c.b16 %v604, %v602
        %v625 = vpack.c.b16 %v605, %v603
        %v626 = vpack.c.b16 %v608, %v606
        %v627 = vpack.c.b16 %v609, %v607
        %v628 = vpack.c.b16 %v612, %v610
        %v629 = vpack.c.b16 %v613, %v611
        %646 = vmatprep.subr.bf16.mxu0 %v629
        %647 = vmatpush1.bf16.msra.mxu0 %v628
        %648 = vmatprep.subr.bf16.mxu0 %v627
        %649 = vmatpush1.bf16.msra.mxu0 %v626
        %650 = vmatprep.subr.bf16.mxu0 %v625
        %651 = vmatpush1.bf16.msra.mxu0 %v624
        %652 = vmatprep.subr.bf16.mxu0 %v623
        %653 = vmatpush1.bf16.msra.mxu0 %v622
        %654 = vmatprep.subr.bf16.mxu0 %v621
        %655 = vmatpush1.bf16.msra.mxu0 %v620
        %656 = vmatprep.subr.bf16.mxu0 %v619
        %657 = vmatpush1.bf16.msra.mxu0 %v618
        %658 = vmatprep.subr.bf16.mxu0 %v617
        %659 = vmatpush1.bf16.msra.mxu0 %v616
        %660 = vmatprep.subr.bf16.mxu0 %v615
        %661 = vmatpush1.bf16.msra.mxu0 %v614
        %662 = vmatprep.subr.bf16.mxu0 0
        %663 = vmatpush2.bf16.msra.mxu0 0
        %664 = vmatprep.subr.bf16.mxu0 0
        %665 = vmatpush2.bf16.msra.mxu0 0
        %666 = vmatprep.subr.bf16.mxu0 0
        %667 = vmatpush2.bf16.msra.mxu0 0
        %668 = vmatprep.subr.bf16.mxu0 0
        %669 = vmatpush2.bf16.msra.mxu0 0
        %670 = vmatprep.subr.bf16.mxu0 0
        %671 = vmatpush2.bf16.msra.mxu0 0
        %672 = vmatprep.subr.bf16.mxu0 0
        %673 = vmatpush2.bf16.msra.mxu0 0
        %674 = vmatprep.subr.bf16.mxu0 0
        %675 = vmatpush2.bf16.msra.mxu0 0
        %676 = vmatprep.subr.bf16.mxu0 0
        %677 = vmatpush2.bf16.msra.mxu0 0
        %678 = vmatprep.mubr.bf16.mxu0 0
        %679 = vmatmul.mubr.bf16.gmra.mxu0 %v522
        %v680 = vpop.f32.mrf.mxu0
        %v681 = vadd.f32 %v559, %v680
        %v682 = vpop.f32.mrf.mxu0
        %v683 = vadd.f32 %v563, %v682
        %v684 = vpop.f32.mrf.mxu0
        %v685 = vadd.f32 %v559, %v684
        %v686 = vpop.f32.mrf.mxu0
        %v687 = vadd.f32 %v563, %v686
        %688 = vmatprep.mubr.bf16.mxu0 0
        %689 = vmatmul.mubr.bf16.gmra.mxu0 %v523
        %v690 = vpop.f32.mrf.mxu0
        %v691 = vadd.f32 %v559, %v690
        %v692 = vpop.f32.mrf.mxu0
        %v693 = vadd.f32 %v563, %v692
        %v694 = vpop.f32.mrf.mxu0
        %v695 = vadd.f32 %v559, %v694
        %v696 = vpop.f32.mrf.mxu0
        %v697 = vadd.f32 %v563, %v696
        %698 = vmatprep.mubr.bf16.mxu0 0
        %699 = vmatmul.mubr.bf16.gmra.mxu0 %v524
        %v700 = vpop.f32.mrf.mxu0
        %v701 = vadd.f32 %v559, %v700
        %v702 = vpop.f32.mrf.mxu0
        %v703 = vadd.f32 %v563, %v702
        %v704 = vpop.f32.mrf.mxu0
        %v705 = vadd.f32 %v559, %v704
        %v706 = vpop.f32.mrf.mxu0
        %v707 = vadd.f32 %v563, %v706
        %708 = vmatprep.mubr.bf16.mxu0 0
        %709 = vmatmul.mubr.bf16.gmra.mxu0 %v525
        %v710 = vpop.f32.mrf.mxu0
        %v711 = vadd.f32 %v559, %v710
        %v712 = vpop.f32.mrf.mxu0
        %v713 = vadd.f32 %v563, %v712
        %v714 = vpop.f32.mrf.mxu0
        %v715 = vadd.f32 %v559, %v714
        %v716 = vpop.f32.mrf.mxu0
        %v717 = vadd.f32 %v563, %v716
        %718 = vmatprep.mubr.bf16.mxu0 0
        %719 = vmatmul.mubr.bf16.gmra.mxu0 %v526
        %v720 = vpop.f32.mrf.mxu0
        %v721 = vadd.f32 %v559, %v720
        %v722 = vpop.f32.mrf.mxu0
        %v723 = vadd.f32 %v563, %v722
        %v724 = vpop.f32.mrf.mxu0
        %v725 = vadd.f32 %v559, %v724
        %v726 = vpop.f32.mrf.mxu0
        %v727 = vadd.f32 %v563, %v726
        %728 = vmatprep.mubr.bf16.mxu0 0
        %729 = vmatmul.mubr.bf16.gmra.mxu0 %v527
        %v730 = vpop.f32.mrf.mxu0
        %v731 = vadd.f32 %v559, %v730
        %v732 = vpop.f32.mrf.mxu0
        %v733 = vadd.f32 %v563, %v732
        %v734 = vpop.f32.mrf.mxu0
        %v735 = vadd.f32 %v559, %v734
        %v736 = vpop.f32.mrf.mxu0
        %v737 = vadd.f32 %v563, %v736
        %738 = vmatprep.mubr.bf16.mxu0 0
        %739 = vmatmul.mubr.bf16.gmra.mxu0 %v528
        %v740 = vpop.f32.mrf.mxu0
        %v741 = vadd.f32 %v559, %v740
        %v742 = vpop.f32.mrf.mxu0
        %v743 = vadd.f32 %v563, %v742
        %v744 = vpop.f32.mrf.mxu0
        %v745 = vadd.f32 %v559, %v744
        %v746 = vpop.f32.mrf.mxu0
        %v747 = vadd.f32 %v563, %v746
        %748 = vmatprep.mubr.bf16.mxu0 0
        %749 = vmatmul.mubr.bf16.gmra.mxu0 %v529
        %v750 = vpop.f32.mrf.mxu0
        %v751 = vadd.f32 %v559, %v750
        %v752 = vpop.f32.mrf.mxu0
        %v753 = vadd.f32 %v563, %v752
        %v754 = vpop.f32.mrf.mxu0
        %v755 = vadd.f32 %v559, %v754
        %v756 = vpop.f32.mrf.mxu0
        %v757 = vadd.f32 %v563, %v756
        %758 = vmatprep.mubr.bf16.mxu0 0
        %759 = vmatmul.mubr.bf16.gmra.mxu0 %v530
        %v760 = vpop.f32.mrf.mxu0
        %v761 = vadd.f32 %v559, %v760
        %v762 = vpop.f32.mrf.mxu0
        %v763 = vadd.f32 %v563, %v762
        %v764 = vpop.f32.mrf.mxu0
        %v765 = vadd.f32 %v559, %v764
        %v766 = vpop.f32.mrf.mxu0
        %v767 = vadd.f32 %v563, %v766
        %768 = vmatprep.mubr.bf16.mxu0 0
        %769 = vmatmul.mubr.bf16.gmra.mxu0 %v531
        %v770 = vpop.f32.mrf.mxu0
        %v771 = vadd.f32 %v559, %v770
        %v772 = vpop.f32.mrf.mxu0
        %v773 = vadd.f32 %v563, %v772
        %v774 = vpop.f32.mrf.mxu0
        %v775 = vadd.f32 %v559, %v774
        %v776 = vpop.f32.mrf.mxu0
        %v777 = vadd.f32 %v563, %v776
        %778 = vmatprep.mubr.bf16.mxu0 0
        %779 = vmatmul.mubr.bf16.gmra.mxu0 %v532
        %v780 = vpop.f32.mrf.mxu0
        %v781 = vadd.f32 %v559, %v780
        %v782 = vpop.f32.mrf.mxu0
        %v783 = vadd.f32 %v563, %v782
        %v784 = vpop.f32.mrf.mxu0
        %v785 = vadd.f32 %v559, %v784
        %v786 = vpop.f32.mrf.mxu0
        %v787 = vadd.f32 %v563, %v786
        %788 = vmatprep.mubr.bf16.mxu0 0
        %789 = vmatmul.mubr.bf16.gmra.mxu0 %v533
        %v790 = vpop.f32.mrf.mxu0
        %v791 = vadd.f32 %v559, %v790
        %v792 = vpop.f32.mrf.mxu0
        %v793 = vadd.f32 %v563, %v792
        %v794 = vpop.f32.mrf.mxu0
        %v795 = vadd.f32 %v559, %v794
        %v796 = vpop.f32.mrf.mxu0
        %v797 = vadd.f32 %v563, %v796
        %798 = vmatprep.mubr.bf16.mxu0 0
        %799 = vmatmul.mubr.bf16.gmra.mxu0 %v534
        %v800 = vpop.f32.mrf.mxu0
        %v801 = vadd.f32 %v559, %v800
        %v802 = vpop.f32.mrf.mxu0
        %v803 = vadd.f32 %v563, %v802
        %v804 = vpop.f32.mrf.mxu0
        %v805 = vadd.f32 %v559, %v804
        %v806 = vpop.f32.mrf.mxu0
        %v807 = vadd.f32 %v563, %v806
        %808 = vmatprep.mubr.bf16.mxu0 0
        %809 = vmatmul.mubr.bf16.gmra.mxu0 %v535
        %v810 = vpop.f32.mrf.mxu0
        %v811 = vadd.f32 %v559, %v810
        %v812 = vpop.f32.mrf.mxu0
        %v813 = vadd.f32 %v563, %v812
        %v814 = vpop.f32.mrf.mxu0
        %v815 = vadd.f32 %v559, %v814
        %v816 = vpop.f32.mrf.mxu0
        %v817 = vadd.f32 %v563, %v816
        %818 = vmatprep.mubr.bf16.mxu0 0
        %819 = vmatmul.mubr.bf16.gmra.mxu0 %v536
        %v820 = vpop.f32.mrf.mxu0
        %v821 = vadd.f32 %v559, %v820
        %v822 = vpop.f32.mrf.mxu0
        %v823 = vadd.f32 %v563, %v822
        %v824 = vpop.f32.mrf.mxu0
        %v825 = vadd.f32 %v559, %v824
        %v826 = vpop.f32.mrf.mxu0
        %v827 = vadd.f32 %v563, %v826
        %828 = vmatprep.mubr.bf16.mxu0 0
        %829 = vmatmul.mubr.bf16.gmra.mxu0 %v537
        %v830 = vpop.f32.mrf.mxu0
        %v831 = vadd.f32 %v559, %v830
        %v832 = vpop.f32.mrf.mxu0
        %v833 = vadd.f32 %v563, %v832
        %v834 = vpop.f32.mrf.mxu0
        %v835 = vadd.f32 %v559, %v834
        %v836 = vpop.f32.mrf.mxu0
        %v837 = vadd.f32 %v563, %v836
        %838 = vdwg.mxu0
        %vm839 = vcmp.ge.s32.totalorder %v520, 36
        %vm840 = vcmp.ge.s32.totalorder %v521, 36
        %vm841 = vcmp.lt.s32.totalorder %v520, 40
        %vm842 = vcmp.lt.s32.totalorder %v521, 40
        %vm843 = vmand %vm839, %vm841
        %vm844 = vmand %vm840, %vm842
        %v845 = vmax.f32 %v681, 0.0
        %v846 = vmax.f32 %v683, 0.0
        %v847 = vmax.f32 %v685, 0.0
        %v848 = vmax.f32 %v687, 0.0
        %v849 = vmax.f32 %v691, 0.0
        %v850 = vmax.f32 %v693, 0.0
        %v851 = vmax.f32 %v695, 0.0
        %v852 = vmax.f32 %v697, 0.0
        %v853 = vmax.f32 %v701, 0.0
        %v854 = vmax.f32 %v703, 0.0
        %v855 = vmax.f32 %v705, 0.0
        %v856 = vmax.f32 %v707, 0.0
        %v857 = vmax.f32 %v711, 0.0
        %v858 = vmax.f32 %v713, 0.0
        %v859 = vmax.f32 %v715, 0.0
        %v860 = vmax.f32 %v717, 0.0
        %v861 = vmax.f32 %v721, 0.0
        %v862 = vmax.f32 %v723, 0.0
        %v863 = vmax.f32 %v725, 0.0
        %v864 = vmax.f32 %v727, 0.0
        %v865 = vmax.f32 %v731, 0.0
        %v866 = vmax.f32 %v733, 0.0
        %v867 = vmax.f32 %v735, 0.0
        %v868 = vmax.f32 %v737, 0.0
        %v869 = vmax.f32 %v741, 0.0
        %v870 = vmax.f32 %v743, 0.0
        %v871 = vmax.f32 %v745, 0.0
        %v872 = vmax.f32 %v747, 0.0
        %v873 = vmax.f32 %v751, 0.0
        %v874 = vmax.f32 %v753, 0.0
        %v875 = vmax.f32 %v755, 0.0
        %v876 = vmax.f32 %v757, 0.0
        %v877 = vmax.f32 %v761, 0.0
        %v878 = vmax.f32 %v763, 0.0
        %v879 = vmax.f32 %v765, 0.0
        %v880 = vmax.f32 %v767, 0.0
        %v881 = vmax.f32 %v771, 0.0
        %v882 = vmax.f32 %v773, 0.0
        %v883 = vmax.f32 %v775, 0.0
        %v884 = vmax.f32 %v777, 0.0
        %v885 = vmax.f32 %v781, 0.0
        %v886 = vmax.f32 %v783, 0.0
        %v887 = vmax.f32 %v785, 0.0
        %v888 = vmax.f32 %v787, 0.0
        %v889 = vmax.f32 %v791, 0.0
        %v890 = vmax.f32 %v793, 0.0
        %v891 = vmax.f32 %v795, 0.0
        %v892 = vmax.f32 %v797, 0.0
        %v893 = vmax.f32 %v801, 0.0
        %v894 = vmax.f32 %v803, 0.0
        %v895 = vmax.f32 %v805, 0.0
        %v896 = vmax.f32 %v807, 0.0
        %v897 = vmax.f32 %v811, 0.0
        %v898 = vmax.f32 %v813, 0.0
        %v899 = vmax.f32 %v815, 0.0
        %v900 = vmax.f32 %v817, 0.0
        %v901 = vmax.f32 %v821, 0.0
        %v902 = vmax.f32 %v823, 0.0
        %v903 = vmax.f32 %v825, 0.0
        %v904 = vmax.f32 %v827, 0.0
        %v905 = vmax.f32 %v831, 0.0
        %v906 = vmax.f32 %v833, 0.0
        %v907 = vmax.f32 %v835, 0.0
        %v908 = vmax.f32 %v837, 0.0
        %v909 = vsel %vm843, 1, 0
        %v910 = vsel %vm844, 1, 0
        %vm911 = vcmp.eq.s32.totalorder %v909, 1
        %vm912 = vcmp.eq.s32.totalorder %v910, 1
        %v913 = vsel %vm911, %v681, %v845
        %v914 = vsel %vm912, %v683, %v846
        %v915 = vsel %vm911, %v685, %v847
        %v916 = vsel %vm912, %v687, %v848
        %v917 = vsel %vm911, %v691, %v849
        %v918 = vsel %vm912, %v693, %v850
        %v919 = vsel %vm911, %v695, %v851
        %v920 = vsel %vm912, %v697, %v852
        %v921 = vsel %vm911, %v701, %v853
        %v922 = vsel %vm912, %v703, %v854
        %v923 = vsel %vm911, %v705, %v855
        %v924 = vsel %vm912, %v707, %v856
        %v925 = vsel %vm911, %v711, %v857
        %v926 = vsel %vm912, %v713, %v858
        %v927 = vsel %vm911, %v715, %v859
        %v928 = vsel %vm912, %v717, %v860
        %v929 = vsel %vm911, %v721, %v861
        %v930 = vsel %vm912, %v723, %v862
        %v931 = vsel %vm911, %v725, %v863
        %v932 = vsel %vm912, %v727, %v864
        %v933 = vsel %vm911, %v731, %v865
        %v934 = vsel %vm912, %v733, %v866
        %v935 = vsel %vm911, %v735, %v867
        %v936 = vsel %vm912, %v737, %v868
        %v937 = vsel %vm911, %v741, %v869
        %v938 = vsel %vm912, %v743, %v870
        %v939 = vsel %vm911, %v745, %v871
        %v940 = vsel %vm912, %v747, %v872
        %v941 = vsel %vm911, %v751, %v873
        %v942 = vsel %vm912, %v753, %v874
        %v943 = vsel %vm911, %v755, %v875
        %v944 = vsel %vm912, %v757, %v876
        %v945 = vsel %vm911, %v761, %v877
        %v946 = vsel %vm912, %v763, %v878
        %v947 = vsel %vm911, %v765, %v879
        %v948 = vsel %vm912, %v767, %v880
        %v949 = vsel %vm911, %v771, %v881
        %v950 = vsel %vm912, %v773, %v882
        %v951 = vsel %vm911, %v775, %v883
        %v952 = vsel %vm912, %v777, %v884
        %v953 = vsel %vm911, %v781, %v885
        %v954 = vsel %vm912, %v783, %v886
        %v955 = vsel %vm911, %v785, %v887
        %v956 = vsel %vm912, %v787, %v888
        %v957 = vsel %vm911, %v791, %v889
        %v958 = vsel %vm912, %v793, %v890
        %v959 = vsel %vm911, %v795, %v891
        %v960 = vsel %vm912, %v797, %v892
        %v961 = vsel %vm911, %v801, %v893
        %v962 = vsel %vm912, %v803, %v894
        %v963 = vsel %vm911, %v805, %v895
        %v964 = vsel %vm912, %v807, %v896
        %v965 = vsel %vm911, %v811, %v897
        %v966 = vsel %vm912, %v813, %v898
        %v967 = vsel %vm911, %v815, %v899
        %v968 = vsel %vm912, %v817, %v900
        %v969 = vsel %vm911, %v821, %v901
        %v970 = vsel %vm912, %v823, %v902
        %v971 = vsel %vm911, %v825, %v903
        %v972 = vsel %vm912, %v827, %v904
        %v973 = vsel %vm911, %v831, %v905
        %v974 = vsel %vm912, %v833, %v906
        %v975 = vsel %vm911, %v835, %v907
        %v976 = vsel %vm912, %v837, %v908
        %v977 = vadd.s32 %v487, 4294967294
        %v978 = vadd.s32 %v488, 4294967294
        %v979 = vadd.s32 %v489, 4294967294
        %v980 = vadd.s32 %v490, 4294967294
        %v981 = vadd.s32 %v491, 4294967294
        %v982 = vadd.s32 %v492, 4294967294
        %v983 = vadd.s32 %v493, 4294967294
        %v984 = vadd.s32 %v494, 4294967294
        %v985 = vadd.s32 %v495, 4294967294
        %v986 = vadd.s32 %v496, 4294967294
        %v987 = vadd.s32 %v497, 4294967294
        %v988 = vadd.s32 %v498, 4294967294
        %v989 = vadd.s32 %v499, 4294967294
        %v990 = vadd.s32 %v500, 4294967294
        %v991 = vadd.s32 %v501, 4294967294
        %v992 = vadd.s32 %v502, 4294967294
        %v993 = vadd.s32 %v503, 4294967294
        %v994 = vadd.s32 %v504, 4294967294
        %v995 = vadd.s32 %v505, 4294967294
        %v996 = vadd.s32 %v506, 4294967294
        %v997 = vadd.s32 %v507, 4294967294
        %v998 = vadd.s32 %v508, 4294967294
        %v999 = vadd.s32 %v509, 4294967294
        %v1000 = vadd.s32 %v510, 4294967294
        %v1001 = vadd.s32 %v511, 4294967294
        %v1002 = vadd.s32 %v512, 4294967294
        %v1003 = vadd.s32 %v513, 4294967294
        %v1004 = vadd.s32 %v514, 4294967294
        %v1005 = vadd.s32 %v515, 4294967294
        %v1006 = vadd.s32 %v516, 4294967294
        %v1007 = vadd.s32 %v517, 4294967294
        %v1008 = vadd.s32 %v518, 4294967294
        %vm1009 = vcmp.ge.s32.totalorder %v977, 0
        %vm1010 = vcmp.ge.s32.totalorder %v978, 0
        %vm1011 = vcmp.ge.s32.totalorder %v979, 0
        %vm1012 = vcmp.ge.s32.totalorder %v980, 0
        %vm1013 = vcmp.ge.s32.totalorder %v981, 0
        %vm1014 = vcmp.ge.s32.totalorder %v982, 0
        %vm1015 = vcmp.ge.s32.totalorder %v983, 0
        %vm1016 = vcmp.ge.s32.totalorder %v984, 0
        %vm1017 = vcmp.ge.s32.totalorder %v985, 0
        %vm1018 = vcmp.ge.s32.totalorder %v986, 0
        %vm1019 = vcmp.ge.s32.totalorder %v987, 0
        %vm1020 = vcmp.ge.s32.totalorder %v988, 0
        %vm1021 = vcmp.ge.s32.totalorder %v989, 0
        %vm1022 = vcmp.ge.s32.totalorder %v990, 0
        %vm1023 = vcmp.ge.s32.totalorder %v991, 0
        %vm1024 = vcmp.ge.s32.totalorder %v992, 0
        %vm1025 = vcmp.ge.s32.totalorder %v993, 0
        %vm1026 = vcmp.ge.s32.totalorder %v994, 0
        %vm1027 = vcmp.ge.s32.totalorder %v995, 0
        %vm1028 = vcmp.ge.s32.totalorder %v996, 0
        %vm1029 = vcmp.ge.s32.totalorder %v997, 0
        %vm1030 = vcmp.ge.s32.totalorder %v998, 0
        %vm1031 = vcmp.ge.s32.totalorder %v999, 0
        %vm1032 = vcmp.ge.s32.totalorder %v1000, 0
        %vm1033 = vcmp.ge.s32.totalorder %v1001, 0
        %vm1034 = vcmp.ge.s32.totalorder %v1002, 0
        %vm1035 = vcmp.ge.s32.totalorder %v1003, 0
        %vm1036 = vcmp.ge.s32.totalorder %v1004, 0
        %vm1037 = vcmp.ge.s32.totalorder %v1005, 0
        %vm1038 = vcmp.ge.s32.totalorder %v1006, 0
        %vm1039 = vcmp.ge.s32.totalorder %v1007, 0
        %vm1040 = vcmp.ge.s32.totalorder %v1008, 0
        %vm1041 = vcmp.lt.s32.totalorder %v977, 16
        %vm1042 = vcmp.lt.s32.totalorder %v978, 16
        %vm1043 = vcmp.lt.s32.totalorder %v979, 16
        %vm1044 = vcmp.lt.s32.totalorder %v980, 16
        %vm1045 = vcmp.lt.s32.totalorder %v981, 16
        %vm1046 = vcmp.lt.s32.totalorder %v982, 16
        %vm1047 = vcmp.lt.s32.totalorder %v983, 16
        %vm1048 = vcmp.lt.s32.totalorder %v984, 16
        %vm1049 = vcmp.lt.s32.totalorder %v985, 16
        %vm1050 = vcmp.lt.s32.totalorder %v986, 16
        %vm1051 = vcmp.lt.s32.totalorder %v987, 16
        %vm1052 = vcmp.lt.s32.totalorder %v988, 16
        %vm1053 = vcmp.lt.s32.totalorder %v989, 16
        %vm1054 = vcmp.lt.s32.totalorder %v990, 16
        %vm1055 = vcmp.lt.s32.totalorder %v991, 16
        %vm1056 = vcmp.lt.s32.totalorder %v992, 16
        %vm1057 = vcmp.lt.s32.totalorder %v993, 16
        %vm1058 = vcmp.lt.s32.totalorder %v994, 16
        %vm1059 = vcmp.lt.s32.totalorder %v995, 16
        %vm1060 = vcmp.lt.s32.totalorder %v996, 16
        %vm1061 = vcmp.lt.s32.totalorder %v997, 16
        %vm1062 = vcmp.lt.s32.totalorder %v998, 16
        %vm1063 = vcmp.lt.s32.totalorder %v999, 16
        %vm1064 = vcmp.lt.s32.totalorder %v1000, 16
        %vm1065 = vcmp.lt.s32.totalorder %v1001, 16
        %vm1066 = vcmp.lt.s32.totalorder %v1002, 16
        %vm1067 = vcmp.lt.s32.totalorder %v1003, 16
        %vm1068 = vcmp.lt.s32.totalorder %v1004, 16
        %vm1069 = vcmp.lt.s32.totalorder %v1005, 16
        %vm1070 = vcmp.lt.s32.totalorder %v1006, 16
        %vm1071 = vcmp.lt.s32.totalorder %v1007, 16
        %vm1072 = vcmp.lt.s32.totalorder %v1008, 16
        %vm1073 = vmand %vm1009, %vm1041
        %vm1074 = vmand %vm1010, %vm1042
        %vm1075 = vmand %vm1011, %vm1043
        %vm1076 = vmand %vm1012, %vm1044
        %vm1077 = vmand %vm1013, %vm1045
        %vm1078 = vmand %vm1014, %vm1046
        %vm1079 = vmand %vm1015, %vm1047
        %vm1080 = vmand %vm1016, %vm1048
        %vm1081 = vmand %vm1017, %vm1049
        %vm1082 = vmand %vm1018, %vm1050
        %vm1083 = vmand %vm1019, %vm1051
        %vm1084 = vmand %vm1020, %vm1052
        %vm1085 = vmand %vm1021, %vm1053
        %vm1086 = vmand %vm1022, %vm1054
        %vm1087 = vmand %vm1023, %vm1055
        %vm1088 = vmand %vm1024, %vm1056
        %vm1089 = vmand %vm1025, %vm1057
        %vm1090 = vmand %vm1026, %vm1058
        %vm1091 = vmand %vm1027, %vm1059
        %vm1092 = vmand %vm1028, %vm1060
        %vm1093 = vmand %vm1029, %vm1061
        %vm1094 = vmand %vm1030, %vm1062
        %vm1095 = vmand %vm1031, %vm1063
        %vm1096 = vmand %vm1032, %vm1064
        %vm1097 = vmand %vm1033, %vm1065
        %vm1098 = vmand %vm1034, %vm1066
        %vm1099 = vmand %vm1035, %vm1067
        %vm1100 = vmand %vm1036, %vm1068
        %vm1101 = vmand %vm1037, %vm1069
        %vm1102 = vmand %vm1038, %vm1070
        %vm1103 = vmand %vm1039, %vm1071
        %vm1104 = vmand %vm1040, %vm1072
        %v1105 = vadd.s32 %v487, 4294967295
        %v1106 = vadd.s32 %v488, 4294967295
        %v1107 = vadd.s32 %v489, 4294967295
        %v1108 = vadd.s32 %v490, 4294967295
        %v1109 = vadd.s32 %v491, 4294967295
        %v1110 = vadd.s32 %v492, 4294967295
        %v1111 = vadd.s32 %v493, 4294967295
        %v1112 = vadd.s32 %v494, 4294967295
        %v1113 = vadd.s32 %v495, 4294967295
        %v1114 = vadd.s32 %v496, 4294967295
        %v1115 = vadd.s32 %v497, 4294967295
        %v1116 = vadd.s32 %v498, 4294967295
        %v1117 = vadd.s32 %v499, 4294967295
        %v1118 = vadd.s32 %v500, 4294967295
        %v1119 = vadd.s32 %v501, 4294967295
        %v1120 = vadd.s32 %v502, 4294967295
        %v1121 = vadd.s32 %v503, 4294967295
        %v1122 = vadd.s32 %v504, 4294967295
        %v1123 = vadd.s32 %v505, 4294967295
        %v1124 = vadd.s32 %v506, 4294967295
        %v1125 = vadd.s32 %v507, 4294967295
        %v1126 = vadd.s32 %v508, 4294967295
        %v1127 = vadd.s32 %v509, 4294967295
        %v1128 = vadd.s32 %v510, 4294967295
        %v1129 = vadd.s32 %v511, 4294967295
        %v1130 = vadd.s32 %v512, 4294967295
        %v1131 = vadd.s32 %v513, 4294967295
        %v1132 = vadd.s32 %v514, 4294967295
        %v1133 = vadd.s32 %v515, 4294967295
        %v1134 = vadd.s32 %v516, 4294967295
        %v1135 = vadd.s32 %v517, 4294967295
        %v1136 = vadd.s32 %v518, 4294967295
        %vm1137 = vcmp.ge.s32.totalorder %v1105, 0
        %vm1138 = vcmp.ge.s32.totalorder %v1106, 0
        %vm1139 = vcmp.ge.s32.totalorder %v1107, 0
        %vm1140 = vcmp.ge.s32.totalorder %v1108, 0
        %vm1141 = vcmp.ge.s32.totalorder %v1109, 0
        %vm1142 = vcmp.ge.s32.totalorder %v1110, 0
        %vm1143 = vcmp.ge.s32.totalorder %v1111, 0
        %vm1144 = vcmp.ge.s32.totalorder %v1112, 0
        %vm1145 = vcmp.ge.s32.totalorder %v1113, 0
        %vm1146 = vcmp.ge.s32.totalorder %v1114, 0
        %vm1147 = vcmp.ge.s32.totalorder %v1115, 0
        %vm1148 = vcmp.ge.s32.totalorder %v1116, 0
        %vm1149 = vcmp.ge.s32.totalorder %v1117, 0
        %vm1150 = vcmp.ge.s32.totalorder %v1118, 0
        %vm1151 = vcmp.ge.s32.totalorder %v1119, 0
        %vm1152 = vcmp.ge.s32.totalorder %v1120, 0
        %vm1153 = vcmp.ge.s32.totalorder %v1121, 0
        %vm1154 = vcmp.ge.s32.totalorder %v1122, 0
        %vm1155 = vcmp.ge.s32.totalorder %v1123, 0
        %vm1156 = vcmp.ge.s32.totalorder %v1124, 0
        %vm1157 = vcmp.ge.s32.totalorder %v1125, 0
        %vm1158 = vcmp.ge.s32.totalorder %v1126, 0
        %vm1159 = vcmp.ge.s32.totalorder %v1127, 0
        %vm1160 = vcmp.ge.s32.totalorder %v1128, 0
        %vm1161 = vcmp.ge.s32.totalorder %v1129, 0
        %vm1162 = vcmp.ge.s32.totalorder %v1130, 0
        %vm1163 = vcmp.ge.s32.totalorder %v1131, 0
        %vm1164 = vcmp.ge.s32.totalorder %v1132, 0
        %vm1165 = vcmp.ge.s32.totalorder %v1133, 0
        %vm1166 = vcmp.ge.s32.totalorder %v1134, 0
        %vm1167 = vcmp.ge.s32.totalorder %v1135, 0
        %vm1168 = vcmp.ge.s32.totalorder %v1136, 0
        %vm1169 = vcmp.lt.s32.totalorder %v1105, 16
        %vm1170 = vcmp.lt.s32.totalorder %v1106, 16
        %vm1171 = vcmp.lt.s32.totalorder %v1107, 16
        %vm1172 = vcmp.lt.s32.totalorder %v1108, 16
        %vm1173 = vcmp.lt.s32.totalorder %v1109, 16
        %vm1174 = vcmp.lt.s32.totalorder %v1110, 16
        %vm1175 = vcmp.lt.s32.totalorder %v1111, 16
        %vm1176 = vcmp.lt.s32.totalorder %v1112, 16
        %vm1177 = vcmp.lt.s32.totalorder %v1113, 16
        %vm1178 = vcmp.lt.s32.totalorder %v1114, 16
        %vm1179 = vcmp.lt.s32.totalorder %v1115, 16
        %vm1180 = vcmp.lt.s32.totalorder %v1116, 16
        %vm1181 = vcmp.lt.s32.totalorder %v1117, 16
        %vm1182 = vcmp.lt.s32.totalorder %v1118, 16
        %vm1183 = vcmp.lt.s32.totalorder %v1119, 16
        %vm1184 = vcmp.lt.s32.totalorder %v1120, 16
        %vm1185 = vcmp.lt.s32.totalorder %v1121, 16
        %vm1186 = vcmp.lt.s32.totalorder %v1122, 16
        %vm1187 = vcmp.lt.s32.totalorder %v1123, 16
        %vm1188 = vcmp.lt.s32.totalorder %v1124, 16
        %vm1189 = vcmp.lt.s32.totalorder %v1125, 16
        %vm1190 = vcmp.lt.s32.totalorder %v1126, 16
        %vm1191 = vcmp.lt.s32.totalorder %v1127, 16
        %vm1192 = vcmp.lt.s32.totalorder %v1128, 16
        %vm1193 = vcmp.lt.s32.totalorder %v1129, 16
        %vm1194 = vcmp.lt.s32.totalorder %v1130, 16
        %vm1195 = vcmp.lt.s32.totalorder %v1131, 16
        %vm1196 = vcmp.lt.s32.totalorder %v1132, 16
        %vm1197 = vcmp.lt.s32.totalorder %v1133, 16
        %vm1198 = vcmp.lt.s32.totalorder %v1134, 16
        %vm1199 = vcmp.lt.s32.totalorder %v1135, 16
        %vm1200 = vcmp.lt.s32.totalorder %v1136, 16
        %vm1201 = vmand %vm1137, %vm1169
        %vm1202 = vmand %vm1138, %vm1170
        %vm1203 = vmand %vm1139, %vm1171
        %vm1204 = vmand %vm1140, %vm1172
        %vm1205 = vmand %vm1141, %vm1173
        %vm1206 = vmand %vm1142, %vm1174
        %vm1207 = vmand %vm1143, %vm1175
        %vm1208 = vmand %vm1144, %vm1176
        %vm1209 = vmand %vm1145, %vm1177
        %vm1210 = vmand %vm1146, %vm1178
        %vm1211 = vmand %vm1147, %vm1179
        %vm1212 = vmand %vm1148, %vm1180
        %vm1213 = vmand %vm1149, %vm1181
        %vm1214 = vmand %vm1150, %vm1182
        %vm1215 = vmand %vm1151, %vm1183
        %vm1216 = vmand %vm1152, %vm1184
        %vm1217 = vmand %vm1153, %vm1185
        %vm1218 = vmand %vm1154, %vm1186
        %vm1219 = vmand %vm1155, %vm1187
        %vm1220 = vmand %vm1156, %vm1188
        %vm1221 = vmand %vm1157, %vm1189
        %vm1222 = vmand %vm1158, %vm1190
        %vm1223 = vmand %vm1159, %vm1191
        %vm1224 = vmand %vm1160, %vm1192
        %vm1225 = vmand %vm1161, %vm1193
        %vm1226 = vmand %vm1162, %vm1194
        %vm1227 = vmand %vm1163, %vm1195
        %vm1228 = vmand %vm1164, %vm1196
        %vm1229 = vmand %vm1165, %vm1197
        %vm1230 = vmand %vm1166, %vm1198
        %vm1231 = vmand %vm1167, %vm1199
        %vm1232 = vmand %vm1168, %vm1200
        %vm1233 = vcmp.ge.s32.totalorder %v487, 0
        %vm1234 = vcmp.ge.s32.totalorder %v488, 0
        %vm1235 = vcmp.ge.s32.totalorder %v489, 0
        %vm1236 = vcmp.ge.s32.totalorder %v490, 0
        %vm1237 = vcmp.ge.s32.totalorder %v491, 0
        %vm1238 = vcmp.ge.s32.totalorder %v492, 0
        %vm1239 = vcmp.ge.s32.totalorder %v493, 0
        %vm1240 = vcmp.ge.s32.totalorder %v494, 0
        %vm1241 = vcmp.ge.s32.totalorder %v495, 0
        %vm1242 = vcmp.ge.s32.totalorder %v496, 0
        %vm1243 = vcmp.ge.s32.totalorder %v497, 0
        %vm1244 = vcmp.ge.s32.totalorder %v498, 0
        %vm1245 = vcmp.ge.s32.totalorder %v499, 0
        %vm1246 = vcmp.ge.s32.totalorder %v500, 0
        %vm1247 = vcmp.ge.s32.totalorder %v501, 0
        %vm1248 = vcmp.ge.s32.totalorder %v502, 0
        %vm1249 = vcmp.ge.s32.totalorder %v503, 0
        %vm1250 = vcmp.ge.s32.totalorder %v504, 0
        %vm1251 = vcmp.ge.s32.totalorder %v505, 0
        %vm1252 = vcmp.ge.s32.totalorder %v506, 0
        %vm1253 = vcmp.ge.s32.totalorder %v507, 0
        %vm1254 = vcmp.ge.s32.totalorder %v508, 0
        %vm1255 = vcmp.ge.s32.totalorder %v509, 0
        %vm1256 = vcmp.ge.s32.totalorder %v510, 0
        %vm1257 = vcmp.ge.s32.totalorder %v511, 0
        %vm1258 = vcmp.ge.s32.totalorder %v512, 0
        %vm1259 = vcmp.ge.s32.totalorder %v513, 0
        %vm1260 = vcmp.ge.s32.totalorder %v514, 0
        %vm1261 = vcmp.ge.s32.totalorder %v515, 0
        %vm1262 = vcmp.ge.s32.totalorder %v516, 0
        %vm1263 = vcmp.ge.s32.totalorder %v517, 0
        %vm1264 = vcmp.ge.s32.totalorder %v518, 0
        %vm1265 = vcmp.lt.s32.totalorder %v487, 16
        %vm1266 = vcmp.lt.s32.totalorder %v488, 16
        %vm1267 = vcmp.lt.s32.totalorder %v489, 16
        %vm1268 = vcmp.lt.s32.totalorder %v490, 16
        %vm1269 = vcmp.lt.s32.totalorder %v491, 16
        %vm1270 = vcmp.lt.s32.totalorder %v492, 16
        %vm1271 = vcmp.lt.s32.totalorder %v493, 16
        %vm1272 = vcmp.lt.s32.totalorder %v494, 16
        %vm1273 = vcmp.lt.s32.totalorder %v495, 16
        %vm1274 = vcmp.lt.s32.totalorder %v496, 16
        %vm1275 = vcmp.lt.s32.totalorder %v497, 16
        %vm1276 = vcmp.lt.s32.totalorder %v498, 16
        %vm1277 = vcmp.lt.s32.totalorder %v499, 16
        %vm1278 = vcmp.lt.s32.totalorder %v500, 16
        %vm1279 = vcmp.lt.s32.totalorder %v501, 16
        %vm1280 = vcmp.lt.s32.totalorder %v502, 16
        %vm1281 = vcmp.lt.s32.totalorder %v503, 16
        %vm1282 = vcmp.lt.s32.totalorder %v504, 16
        %vm1283 = vcmp.lt.s32.totalorder %v505, 16
        %vm1284 = vcmp.lt.s32.totalorder %v506, 16
        %vm1285 = vcmp.lt.s32.totalorder %v507, 16
        %vm1286 = vcmp.lt.s32.totalorder %v508, 16
        %vm1287 = vcmp.lt.s32.totalorder %v509, 16
        %vm1288 = vcmp.lt.s32.totalorder %v510, 16
        %vm1289 = vcmp.lt.s32.totalorder %v511, 16
        %vm1290 = vcmp.lt.s32.totalorder %v512, 16
        %vm1291 = vcmp.lt.s32.totalorder %v513, 16
        %vm1292 = vcmp.lt.s32.totalorder %v514, 16
        %vm1293 = vcmp.lt.s32.totalorder %v515, 16
        %vm1294 = vcmp.lt.s32.totalorder %v516, 16
        %vm1295 = vcmp.lt.s32.totalorder %v517, 16
        %vm1296 = vcmp.lt.s32.totalorder %v518, 16
        %vm1297 = vmand %vm1233, %vm1265
        %vm1298 = vmand %vm1234, %vm1266
        %vm1299 = vmand %vm1235, %vm1267
        %vm1300 = vmand %vm1236, %vm1268
        %vm1301 = vmand %vm1237, %vm1269
        %vm1302 = vmand %vm1238, %vm1270
        %vm1303 = vmand %vm1239, %vm1271
        %vm1304 = vmand %vm1240, %vm1272
        %vm1305 = vmand %vm1241, %vm1273
        %vm1306 = vmand %vm1242, %vm1274
        %vm1307 = vmand %vm1243, %vm1275
        %vm1308 = vmand %vm1244, %vm1276
        %vm1309 = vmand %vm1245, %vm1277
        %vm1310 = vmand %vm1246, %vm1278
        %vm1311 = vmand %vm1247, %vm1279
        %vm1312 = vmand %vm1248, %vm1280
        %vm1313 = vmand %vm1249, %vm1281
        %vm1314 = vmand %vm1250, %vm1282
        %vm1315 = vmand %vm1251, %vm1283
        %vm1316 = vmand %vm1252, %vm1284
        %vm1317 = vmand %vm1253, %vm1285
        %vm1318 = vmand %vm1254, %vm1286
        %vm1319 = vmand %vm1255, %vm1287
        %vm1320 = vmand %vm1256, %vm1288
        %vm1321 = vmand %vm1257, %vm1289
        %vm1322 = vmand %vm1258, %vm1290
        %vm1323 = vmand %vm1259, %vm1291
        %vm1324 = vmand %vm1260, %vm1292
        %vm1325 = vmand %vm1261, %vm1293
        %vm1326 = vmand %vm1262, %vm1294
        %vm1327 = vmand %vm1263, %vm1295
        %vm1328 = vmand %vm1264, %vm1296
        %v1329 = vadd.s32 %v487, 1
        %v1330 = vadd.s32 %v488, 1
        %v1331 = vadd.s32 %v489, 1
        %v1332 = vadd.s32 %v490, 1
        %v1333 = vadd.s32 %v491, 1
        %v1334 = vadd.s32 %v492, 1
        %v1335 = vadd.s32 %v493, 1
        %v1336 = vadd.s32 %v494, 1
        %v1337 = vadd.s32 %v495, 1
        %v1338 = vadd.s32 %v496, 1
        %v1339 = vadd.s32 %v497, 1
        %v1340 = vadd.s32 %v498, 1
        %v1341 = vadd.s32 %v499, 1
        %v1342 = vadd.s32 %v500, 1
        %v1343 = vadd.s32 %v501, 1
        %v1344 = vadd.s32 %v502, 1
        %v1345 = vadd.s32 %v503, 1
        %v1346 = vadd.s32 %v504, 1
        %v1347 = vadd.s32 %v505, 1
        %v1348 = vadd.s32 %v506, 1
        %v1349 = vadd.s32 %v507, 1
        %v1350 = vadd.s32 %v508, 1
        %v1351 = vadd.s32 %v509, 1
        %v1352 = vadd.s32 %v510, 1
        %v1353 = vadd.s32 %v511, 1
        %v1354 = vadd.s32 %v512, 1
        %v1355 = vadd.s32 %v513, 1
        %v1356 = vadd.s32 %v514, 1
        %v1357 = vadd.s32 %v515, 1
        %v1358 = vadd.s32 %v516, 1
        %v1359 = vadd.s32 %v517, 1
        %v1360 = vadd.s32 %v518, 1
        %vm1361 = vcmp.ge.s32.totalorder %v1329, 0
        %vm1362 = vcmp.ge.s32.totalorder %v1330, 0
        %vm1363 = vcmp.ge.s32.totalorder %v1331, 0
        %vm1364 = vcmp.ge.s32.totalorder %v1332, 0
        %vm1365 = vcmp.ge.s32.totalorder %v1333, 0
        %vm1366 = vcmp.ge.s32.totalorder %v1334, 0
        %vm1367 = vcmp.ge.s32.totalorder %v1335, 0
        %vm1368 = vcmp.ge.s32.totalorder %v1336, 0
        %vm1369 = vcmp.ge.s32.totalorder %v1337, 0
        %vm1370 = vcmp.ge.s32.totalorder %v1338, 0
        %vm1371 = vcmp.ge.s32.totalorder %v1339, 0
        %vm1372 = vcmp.ge.s32.totalorder %v1340, 0
        %vm1373 = vcmp.ge.s32.totalorder %v1341, 0
        %vm1374 = vcmp.ge.s32.totalorder %v1342, 0
        %vm1375 = vcmp.ge.s32.totalorder %v1343, 0
        %vm1376 = vcmp.ge.s32.totalorder %v1344, 0
        %vm1377 = vcmp.ge.s32.totalorder %v1345, 0
        %vm1378 = vcmp.ge.s32.totalorder %v1346, 0
        %vm1379 = vcmp.ge.s32.totalorder %v1347, 0
        %vm1380 = vcmp.ge.s32.totalorder %v1348, 0
        %vm1381 = vcmp.ge.s32.totalorder %v1349, 0
        %vm1382 = vcmp.ge.s32.totalorder %v1350, 0
        %vm1383 = vcmp.ge.s32.totalorder %v1351, 0
        %vm1384 = vcmp.ge.s32.totalorder %v1352, 0
        %vm1385 = vcmp.ge.s32.totalorder %v1353, 0
        %vm1386 = vcmp.ge.s32.totalorder %v1354, 0
        %vm1387 = vcmp.ge.s32.totalorder %v1355, 0
        %vm1388 = vcmp.ge.s32.totalorder %v1356, 0
        %vm1389 = vcmp.ge.s32.totalorder %v1357, 0
        %vm1390 = vcmp.ge.s32.totalorder %v1358, 0
        %vm1391 = vcmp.ge.s32.totalorder %v1359, 0
        %vm1392 = vcmp.ge.s32.totalorder %v1360, 0
        %vm1393 = vcmp.lt.s32.totalorder %v1329, 16
        %vm1394 = vcmp.lt.s32.totalorder %v1330, 16
        %vm1395 = vcmp.lt.s32.totalorder %v1331, 16
        %vm1396 = vcmp.lt.s32.totalorder %v1332, 16
        %vm1397 = vcmp.lt.s32.totalorder %v1333, 16
        %vm1398 = vcmp.lt.s32.totalorder %v1334, 16
        %vm1399 = vcmp.lt.s32.totalorder %v1335, 16
        %vm1400 = vcmp.lt.s32.totalorder %v1336, 16
        %vm1401 = vcmp.lt.s32.totalorder %v1337, 16
        %vm1402 = vcmp.lt.s32.totalorder %v1338, 16
        %vm1403 = vcmp.lt.s32.totalorder %v1339, 16
        %vm1404 = vcmp.lt.s32.totalorder %v1340, 16
        %vm1405 = vcmp.lt.s32.totalorder %v1341, 16
        %vm1406 = vcmp.lt.s32.totalorder %v1342, 16
        %vm1407 = vcmp.lt.s32.totalorder %v1343, 16
        %vm1408 = vcmp.lt.s32.totalorder %v1344, 16
        %vm1409 = vcmp.lt.s32.totalorder %v1345, 16
        %vm1410 = vcmp.lt.s32.totalorder %v1346, 16
        %vm1411 = vcmp.lt.s32.totalorder %v1347, 16
        %vm1412 = vcmp.lt.s32.totalorder %v1348, 16
        %vm1413 = vcmp.lt.s32.totalorder %v1349, 16
        %vm1414 = vcmp.lt.s32.totalorder %v1350, 16
        %vm1415 = vcmp.lt.s32.totalorder %v1351, 16
        %vm1416 = vcmp.lt.s32.totalorder %v1352, 16
        %vm1417 = vcmp.lt.s32.totalorder %v1353, 16
        %vm1418 = vcmp.lt.s32.totalorder %v1354, 16
        %vm1419 = vcmp.lt.s32.totalorder %v1355, 16
        %vm1420 = vcmp.lt.s32.totalorder %v1356, 16
        %vm1421 = vcmp.lt.s32.totalorder %v1357, 16
        %vm1422 = vcmp.lt.s32.totalorder %v1358, 16
        %vm1423 = vcmp.lt.s32.totalorder %v1359, 16
        %vm1424 = vcmp.lt.s32.totalorder %v1360, 16
        %vm1425 = vmand %vm1361, %vm1393
        %vm1426 = vmand %vm1362, %vm1394
        %vm1427 = vmand %vm1363, %vm1395
        %vm1428 = vmand %vm1364, %vm1396
        %vm1429 = vmand %vm1365, %vm1397
        %vm1430 = vmand %vm1366, %vm1398
        %vm1431 = vmand %vm1367, %vm1399
        %vm1432 = vmand %vm1368, %vm1400
        %vm1433 = vmand %vm1369, %vm1401
        %vm1434 = vmand %vm1370, %vm1402
        %vm1435 = vmand %vm1371, %vm1403
        %vm1436 = vmand %vm1372, %vm1404
        %vm1437 = vmand %vm1373, %vm1405
        %vm1438 = vmand %vm1374, %vm1406
        %vm1439 = vmand %vm1375, %vm1407
        %vm1440 = vmand %vm1376, %vm1408
        %vm1441 = vmand %vm1377, %vm1409
        %vm1442 = vmand %vm1378, %vm1410
        %vm1443 = vmand %vm1379, %vm1411
        %vm1444 = vmand %vm1380, %vm1412
        %vm1445 = vmand %vm1381, %vm1413
        %vm1446 = vmand %vm1382, %vm1414
        %vm1447 = vmand %vm1383, %vm1415
        %vm1448 = vmand %vm1384, %vm1416
        %vm1449 = vmand %vm1385, %vm1417
        %vm1450 = vmand %vm1386, %vm1418
        %vm1451 = vmand %vm1387, %vm1419
        %vm1452 = vmand %vm1388, %vm1420
        %vm1453 = vmand %vm1389, %vm1421
        %vm1454 = vmand %vm1390, %vm1422
        %vm1455 = vmand %vm1391, %vm1423
        %vm1456 = vmand %vm1392, %vm1424
        %v1457 = vadd.s32 %v487, 2
        %v1458 = vadd.s32 %v488, 2
        %v1459 = vadd.s32 %v489, 2
        %v1460 = vadd.s32 %v490, 2
        %v1461 = vadd.s32 %v491, 2
        %v1462 = vadd.s32 %v492, 2
        %v1463 = vadd.s32 %v493, 2
        %v1464 = vadd.s32 %v494, 2
        %v1465 = vadd.s32 %v495, 2
        %v1466 = vadd.s32 %v496, 2
        %v1467 = vadd.s32 %v497, 2
        %v1468 = vadd.s32 %v498, 2
        %v1469 = vadd.s32 %v499, 2
        %v1470 = vadd.s32 %v500, 2
        %v1471 = vadd.s32 %v501, 2
        %v1472 = vadd.s32 %v502, 2
        %v1473 = vadd.s32 %v503, 2
        %v1474 = vadd.s32 %v504, 2
        %v1475 = vadd.s32 %v505, 2
        %v1476 = vadd.s32 %v506, 2
        %v1477 = vadd.s32 %v507, 2
        %v1478 = vadd.s32 %v508, 2
        %v1479 = vadd.s32 %v509, 2
        %v1480 = vadd.s32 %v510, 2
        %v1481 = vadd.s32 %v511, 2
        %v1482 = vadd.s32 %v512, 2
        %v1483 = vadd.s32 %v513, 2
        %v1484 = vadd.s32 %v514, 2
        %v1485 = vadd.s32 %v515, 2
        %v1486 = vadd.s32 %v516, 2
        %v1487 = vadd.s32 %v517, 2
        %v1488 = vadd.s32 %v518, 2
        %vm1489 = vcmp.ge.s32.totalorder %v1457, 0
        %vm1490 = vcmp.ge.s32.totalorder %v1458, 0
        %vm1491 = vcmp.ge.s32.totalorder %v1459, 0
        %vm1492 = vcmp.ge.s32.totalorder %v1460, 0
        %vm1493 = vcmp.ge.s32.totalorder %v1461, 0
        %vm1494 = vcmp.ge.s32.totalorder %v1462, 0
        %vm1495 = vcmp.ge.s32.totalorder %v1463, 0
        %vm1496 = vcmp.ge.s32.totalorder %v1464, 0
        %vm1497 = vcmp.ge.s32.totalorder %v1465, 0
        %vm1498 = vcmp.ge.s32.totalorder %v1466, 0
        %vm1499 = vcmp.ge.s32.totalorder %v1467, 0
        %vm1500 = vcmp.ge.s32.totalorder %v1468, 0
        %vm1501 = vcmp.ge.s32.totalorder %v1469, 0
        %vm1502 = vcmp.ge.s32.totalorder %v1470, 0
        %vm1503 = vcmp.ge.s32.totalorder %v1471, 0
        %vm1504 = vcmp.ge.s32.totalorder %v1472, 0
        %vm1505 = vcmp.ge.s32.totalorder %v1473, 0
        %vm1506 = vcmp.ge.s32.totalorder %v1474, 0
        %vm1507 = vcmp.ge.s32.totalorder %v1475, 0
        %vm1508 = vcmp.ge.s32.totalorder %v1476, 0
        %vm1509 = vcmp.ge.s32.totalorder %v1477, 0
        %vm1510 = vcmp.ge.s32.totalorder %v1478, 0
        %vm1511 = vcmp.ge.s32.totalorder %v1479, 0
        %vm1512 = vcmp.ge.s32.totalorder %v1480, 0
        %vm1513 = vcmp.ge.s32.totalorder %v1481, 0
        %vm1514 = vcmp.ge.s32.totalorder %v1482, 0
        %vm1515 = vcmp.ge.s32.totalorder %v1483, 0
        %vm1516 = vcmp.ge.s32.totalorder %v1484, 0
        %vm1517 = vcmp.ge.s32.totalorder %v1485, 0
        %vm1518 = vcmp.ge.s32.totalorder %v1486, 0
        %vm1519 = vcmp.ge.s32.totalorder %v1487, 0
        %vm1520 = vcmp.ge.s32.totalorder %v1488, 0
        %vm1521 = vcmp.lt.s32.totalorder %v1457, 16
        %vm1522 = vcmp.lt.s32.totalorder %v1458, 16
        %vm1523 = vcmp.lt.s32.totalorder %v1459, 16
        %vm1524 = vcmp.lt.s32.totalorder %v1460, 16
        %vm1525 = vcmp.lt.s32.totalorder %v1461, 16
        %vm1526 = vcmp.lt.s32.totalorder %v1462, 16
        %vm1527 = vcmp.lt.s32.totalorder %v1463, 16
        %vm1528 = vcmp.lt.s32.totalorder %v1464, 16
        %vm1529 = vcmp.lt.s32.totalorder %v1465, 16
        %vm1530 = vcmp.lt.s32.totalorder %v1466, 16
        %vm1531 = vcmp.lt.s32.totalorder %v1467, 16
        %vm1532 = vcmp.lt.s32.totalorder %v1468, 16
        %vm1533 = vcmp.lt.s32.totalorder %v1469, 16
        %vm1534 = vcmp.lt.s32.totalorder %v1470, 16
        %vm1535 = vcmp.lt.s32.totalorder %v1471, 16
        %vm1536 = vcmp.lt.s32.totalorder %v1472, 16
        %vm1537 = vcmp.lt.s32.totalorder %v1473, 16
        %vm1538 = vcmp.lt.s32.totalorder %v1474, 16
        %vm1539 = vcmp.lt.s32.totalorder %v1475, 16
        %vm1540 = vcmp.lt.s32.totalorder %v1476, 16
        %vm1541 = vcmp.lt.s32.totalorder %v1477, 16
        %vm1542 = vcmp.lt.s32.totalorder %v1478, 16
        %vm1543 = vcmp.lt.s32.totalorder %v1479, 16
        %vm1544 = vcmp.lt.s32.totalorder %v1480, 16
        %vm1545 = vcmp.lt.s32.totalorder %v1481, 16
        %vm1546 = vcmp.lt.s32.totalorder %v1482, 16
        %vm1547 = vcmp.lt.s32.totalorder %v1483, 16
        %vm1548 = vcmp.lt.s32.totalorder %v1484, 16
        %vm1549 = vcmp.lt.s32.totalorder %v1485, 16
        %vm1550 = vcmp.lt.s32.totalorder %v1486, 16
        %vm1551 = vcmp.lt.s32.totalorder %v1487, 16
        %vm1552 = vcmp.lt.s32.totalorder %v1488, 16
        %vm1553 = vmand %vm1489, %vm1521
        %vm1554 = vmand %vm1490, %vm1522
        %vm1555 = vmand %vm1491, %vm1523
        %vm1556 = vmand %vm1492, %vm1524
        %vm1557 = vmand %vm1493, %vm1525
        %vm1558 = vmand %vm1494, %vm1526
        %vm1559 = vmand %vm1495, %vm1527
        %vm1560 = vmand %vm1496, %vm1528
        %vm1561 = vmand %vm1497, %vm1529
        %vm1562 = vmand %vm1498, %vm1530
        %vm1563 = vmand %vm1499, %vm1531
        %vm1564 = vmand %vm1500, %vm1532
        %vm1565 = vmand %vm1501, %vm1533
        %vm1566 = vmand %vm1502, %vm1534
        %vm1567 = vmand %vm1503, %vm1535
        %vm1568 = vmand %vm1504, %vm1536
        %vm1569 = vmand %vm1505, %vm1537
        %vm1570 = vmand %vm1506, %vm1538
        %vm1571 = vmand %vm1507, %vm1539
        %vm1572 = vmand %vm1508, %vm1540
        %vm1573 = vmand %vm1509, %vm1541
        %vm1574 = vmand %vm1510, %vm1542
        %vm1575 = vmand %vm1511, %vm1543
        %vm1576 = vmand %vm1512, %vm1544
        %vm1577 = vmand %vm1513, %vm1545
        %vm1578 = vmand %vm1514, %vm1546
        %vm1579 = vmand %vm1515, %vm1547
        %vm1580 = vmand %vm1516, %vm1548
        %vm1581 = vmand %vm1517, %vm1549
        %vm1582 = vmand %vm1518, %vm1550
        %vm1583 = vmand %vm1519, %vm1551
        %vm1584 = vmand %vm1520, %vm1552
        %v1585 = vadd.s32 %v423, 4294967294
        %v1586 = vadd.s32 %v424, 4294967294
        %v1587 = vadd.s32 %v425, 4294967294
        %v1588 = vadd.s32 %v426, 4294967294
        %v1589 = vadd.s32 %v427, 4294967294
        %v1590 = vadd.s32 %v428, 4294967294
        %v1591 = vadd.s32 %v429, 4294967294
        %v1592 = vadd.s32 %v430, 4294967294
        %v1593 = vadd.s32 %v431, 4294967294
        %v1594 = vadd.s32 %v432, 4294967294
        %v1595 = vadd.s32 %v433, 4294967294
        %v1596 = vadd.s32 %v434, 4294967294
        %v1597 = vadd.s32 %v435, 4294967294
        %v1598 = vadd.s32 %v436, 4294967294
        %v1599 = vadd.s32 %v437, 4294967294
        %v1600 = vadd.s32 %v438, 4294967294
        %v1601 = vadd.s32 %v439, 4294967294
        %v1602 = vadd.s32 %v440, 4294967294
        %v1603 = vadd.s32 %v441, 4294967294
        %v1604 = vadd.s32 %v442, 4294967294
        %v1605 = vadd.s32 %v443, 4294967294
        %v1606 = vadd.s32 %v444, 4294967294
        %v1607 = vadd.s32 %v445, 4294967294
        %v1608 = vadd.s32 %v446, 4294967294
        %v1609 = vadd.s32 %v447, 4294967294
        %v1610 = vadd.s32 %v448, 4294967294
        %v1611 = vadd.s32 %v449, 4294967294
        %v1612 = vadd.s32 %v450, 4294967294
        %v1613 = vadd.s32 %v451, 4294967294
        %v1614 = vadd.s32 %v452, 4294967294
        %v1615 = vadd.s32 %v453, 4294967294
        %v1616 = vadd.s32 %v454, 4294967294
        %vm1617 = vcmp.ge.s32.totalorder %v1585, 0
        %vm1618 = vcmp.ge.s32.totalorder %v1586, 0
        %vm1619 = vcmp.ge.s32.totalorder %v1587, 0
        %vm1620 = vcmp.ge.s32.totalorder %v1588, 0
        %vm1621 = vcmp.ge.s32.totalorder %v1589, 0
        %vm1622 = vcmp.ge.s32.totalorder %v1590, 0
        %vm1623 = vcmp.ge.s32.totalorder %v1591, 0
        %vm1624 = vcmp.ge.s32.totalorder %v1592, 0
        %vm1625 = vcmp.ge.s32.totalorder %v1593, 0
        %vm1626 = vcmp.ge.s32.totalorder %v1594, 0
        %vm1627 = vcmp.ge.s32.totalorder %v1595, 0
        %vm1628 = vcmp.ge.s32.totalorder %v1596, 0
        %vm1629 = vcmp.ge.s32.totalorder %v1597, 0
        %vm1630 = vcmp.ge.s32.totalorder %v1598, 0
        %vm1631 = vcmp.ge.s32.totalorder %v1599, 0
        %vm1632 = vcmp.ge.s32.totalorder %v1600, 0
        %vm1633 = vcmp.ge.s32.totalorder %v1601, 0
        %vm1634 = vcmp.ge.s32.totalorder %v1602, 0
        %vm1635 = vcmp.ge.s32.totalorder %v1603, 0
        %vm1636 = vcmp.ge.s32.totalorder %v1604, 0
        %vm1637 = vcmp.ge.s32.totalorder %v1605, 0
        %vm1638 = vcmp.ge.s32.totalorder %v1606, 0
        %vm1639 = vcmp.ge.s32.totalorder %v1607, 0
        %vm1640 = vcmp.ge.s32.totalorder %v1608, 0
        %vm1641 = vcmp.ge.s32.totalorder %v1609, 0
        %vm1642 = vcmp.ge.s32.totalorder %v1610, 0
        %vm1643 = vcmp.ge.s32.totalorder %v1611, 0
        %vm1644 = vcmp.ge.s32.totalorder %v1612, 0
        %vm1645 = vcmp.ge.s32.totalorder %v1613, 0
        %vm1646 = vcmp.ge.s32.totalorder %v1614, 0
        %vm1647 = vcmp.ge.s32.totalorder %v1615, 0
        %vm1648 = vcmp.ge.s32.totalorder %v1616, 0
        %vm1649 = vcmp.lt.s32.totalorder %v1585, 16
        %vm1650 = vcmp.lt.s32.totalorder %v1586, 16
        %vm1651 = vcmp.lt.s32.totalorder %v1587, 16
        %vm1652 = vcmp.lt.s32.totalorder %v1588, 16
        %vm1653 = vcmp.lt.s32.totalorder %v1589, 16
        %vm1654 = vcmp.lt.s32.totalorder %v1590, 16
        %vm1655 = vcmp.lt.s32.totalorder %v1591, 16
        %vm1656 = vcmp.lt.s32.totalorder %v1592, 16
        %vm1657 = vcmp.lt.s32.totalorder %v1593, 16
        %vm1658 = vcmp.lt.s32.totalorder %v1594, 16
        %vm1659 = vcmp.lt.s32.totalorder %v1595, 16
        %vm1660 = vcmp.lt.s32.totalorder %v1596, 16
        %vm1661 = vcmp.lt.s32.totalorder %v1597, 16
        %vm1662 = vcmp.lt.s32.totalorder %v1598, 16
        %vm1663 = vcmp.lt.s32.totalorder %v1599, 16
        %vm1664 = vcmp.lt.s32.totalorder %v1600, 16
        %vm1665 = vcmp.lt.s32.totalorder %v1601, 16
        %vm1666 = vcmp.lt.s32.totalorder %v1602, 16
        %vm1667 = vcmp.lt.s32.totalorder %v1603, 16
        %vm1668 = vcmp.lt.s32.totalorder %v1604, 16
        %vm1669 = vcmp.lt.s32.totalorder %v1605, 16
        %vm1670 = vcmp.lt.s32.totalorder %v1606, 16
        %vm1671 = vcmp.lt.s32.totalorder %v1607, 16
        %vm1672 = vcmp.lt.s32.totalorder %v1608, 16
        %vm1673 = vcmp.lt.s32.totalorder %v1609, 16
        %vm1674 = vcmp.lt.s32.totalorder %v1610, 16
        %vm1675 = vcmp.lt.s32.totalorder %v1611, 16
        %vm1676 = vcmp.lt.s32.totalorder %v1612, 16
        %vm1677 = vcmp.lt.s32.totalorder %v1613, 16
        %vm1678 = vcmp.lt.s32.totalorder %v1614, 16
        %vm1679 = vcmp.lt.s32.totalorder %v1615, 16
        %vm1680 = vcmp.lt.s32.totalorder %v1616, 16
        %vm1681 = vmand %vm1617, %vm1649
        %vm1682 = vmand %vm1618, %vm1650
        %vm1683 = vmand %vm1619, %vm1651
        %vm1684 = vmand %vm1620, %vm1652
        %vm1685 = vmand %vm1621, %vm1653
        %vm1686 = vmand %vm1622, %vm1654
        %vm1687 = vmand %vm1623, %vm1655
        %vm1688 = vmand %vm1624, %vm1656
        %vm1689 = vmand %vm1625, %vm1657
        %vm1690 = vmand %vm1626, %vm1658
        %vm1691 = vmand %vm1627, %vm1659
        %vm1692 = vmand %vm1628, %vm1660
        %vm1693 = vmand %vm1629, %vm1661
        %vm1694 = vmand %vm1630, %vm1662
        %vm1695 = vmand %vm1631, %vm1663
        %vm1696 = vmand %vm1632, %vm1664
        %vm1697 = vmand %vm1633, %vm1665
        %vm1698 = vmand %vm1634, %vm1666
        %vm1699 = vmand %vm1635, %vm1667
        %vm1700 = vmand %vm1636, %vm1668
        %vm1701 = vmand %vm1637, %vm1669
        %vm1702 = vmand %vm1638, %vm1670
        %vm1703 = vmand %vm1639, %vm1671
        %vm1704 = vmand %vm1640, %vm1672
        %vm1705 = vmand %vm1641, %vm1673
        %vm1706 = vmand %vm1642, %vm1674
        %vm1707 = vmand %vm1643, %vm1675
        %vm1708 = vmand %vm1644, %vm1676
        %vm1709 = vmand %vm1645, %vm1677
        %vm1710 = vmand %vm1646, %vm1678
        %vm1711 = vmand %vm1647, %vm1679
        %vm1712 = vmand %vm1648, %vm1680
        %v1713 = vadd.s32 %v423, 4294967295
        %v1714 = vadd.s32 %v424, 4294967295
        %v1715 = vadd.s32 %v425, 4294967295
        %v1716 = vadd.s32 %v426, 4294967295
        %v1717 = vadd.s32 %v427, 4294967295
        %v1718 = vadd.s32 %v428, 4294967295
        %v1719 = vadd.s32 %v429, 4294967295
        %v1720 = vadd.s32 %v430, 4294967295
        %v1721 = vadd.s32 %v431, 4294967295
        %v1722 = vadd.s32 %v432, 4294967295
        %v1723 = vadd.s32 %v433, 4294967295
        %v1724 = vadd.s32 %v434, 4294967295
        %v1725 = vadd.s32 %v435, 4294967295
        %v1726 = vadd.s32 %v436, 4294967295
        %v1727 = vadd.s32 %v437, 4294967295
        %v1728 = vadd.s32 %v438, 4294967295
        %v1729 = vadd.s32 %v439, 4294967295
        %v1730 = vadd.s32 %v440, 4294967295
        %v1731 = vadd.s32 %v441, 4294967295
        %v1732 = vadd.s32 %v442, 4294967295
        %v1733 = vadd.s32 %v443, 4294967295
        %v1734 = vadd.s32 %v444, 4294967295
        %v1735 = vadd.s32 %v445, 4294967295
        %v1736 = vadd.s32 %v446, 4294967295
        %v1737 = vadd.s32 %v447, 4294967295
        %v1738 = vadd.s32 %v448, 4294967295
        %v1739 = vadd.s32 %v449, 4294967295
        %v1740 = vadd.s32 %v450, 4294967295
        %v1741 = vadd.s32 %v451, 4294967295
        %v1742 = vadd.s32 %v452, 4294967295
        %v1743 = vadd.s32 %v453, 4294967295
        %v1744 = vadd.s32 %v454, 4294967295
        %vm1745 = vcmp.ge.s32.totalorder %v1713, 0
        %vm1746 = vcmp.ge.s32.totalorder %v1714, 0
        %vm1747 = vcmp.ge.s32.totalorder %v1715, 0
        %vm1748 = vcmp.ge.s32.totalorder %v1716, 0
        %vm1749 = vcmp.ge.s32.totalorder %v1717, 0
        %vm1750 = vcmp.ge.s32.totalorder %v1718, 0
        %vm1751 = vcmp.ge.s32.totalorder %v1719, 0
        %vm1752 = vcmp.ge.s32.totalorder %v1720, 0
        %vm1753 = vcmp.ge.s32.totalorder %v1721, 0
        %vm1754 = vcmp.ge.s32.totalorder %v1722, 0
        %vm1755 = vcmp.ge.s32.totalorder %v1723, 0
        %vm1756 = vcmp.ge.s32.totalorder %v1724, 0
        %vm1757 = vcmp.ge.s32.totalorder %v1725, 0
        %vm1758 = vcmp.ge.s32.totalorder %v1726, 0
        %vm1759 = vcmp.ge.s32.totalorder %v1727, 0
        %vm1760 = vcmp.ge.s32.totalorder %v1728, 0
        %vm1761 = vcmp.ge.s32.totalorder %v1729, 0
        %vm1762 = vcmp.ge.s32.totalorder %v1730, 0
        %vm1763 = vcmp.ge.s32.totalorder %v1731, 0
        %vm1764 = vcmp.ge.s32.totalorder %v1732, 0
        %vm1765 = vcmp.ge.s32.totalorder %v1733, 0
        %vm1766 = vcmp.ge.s32.totalorder %v1734, 0
        %vm1767 = vcmp.ge.s32.totalorder %v1735, 0
        %vm1768 = vcmp.ge.s32.totalorder %v1736, 0
        %vm1769 = vcmp.ge.s32.totalorder %v1737, 0
        %vm1770 = vcmp.ge.s32.totalorder %v1738, 0
        %vm1771 = vcmp.ge.s32.totalorder %v1739, 0
        %vm1772 = vcmp.ge.s32.totalorder %v1740, 0
        %vm1773 = vcmp.ge.s32.totalorder %v1741, 0
        %vm1774 = vcmp.ge.s32.totalorder %v1742, 0
        %vm1775 = vcmp.ge.s32.totalorder %v1743, 0
        %vm1776 = vcmp.ge.s32.totalorder %v1744, 0
        %vm1777 = vcmp.lt.s32.totalorder %v1713, 16
        %vm1778 = vcmp.lt.s32.totalorder %v1714, 16
        %vm1779 = vcmp.lt.s32.totalorder %v1715, 16
        %vm1780 = vcmp.lt.s32.totalorder %v1716, 16
        %vm1781 = vcmp.lt.s32.totalorder %v1717, 16
        %vm1782 = vcmp.lt.s32.totalorder %v1718, 16
        %vm1783 = vcmp.lt.s32.totalorder %v1719, 16
        %vm1784 = vcmp.lt.s32.totalorder %v1720, 16
        %vm1785 = vcmp.lt.s32.totalorder %v1721, 16
        %vm1786 = vcmp.lt.s32.totalorder %v1722, 16
        %vm1787 = vcmp.lt.s32.totalorder %v1723, 16
        %vm1788 = vcmp.lt.s32.totalorder %v1724, 16
        %vm1789 = vcmp.lt.s32.totalorder %v1725, 16
        %vm1790 = vcmp.lt.s32.totalorder %v1726, 16
        %vm1791 = vcmp.lt.s32.totalorder %v1727, 16
        %vm1792 = vcmp.lt.s32.totalorder %v1728, 16
        %vm1793 = vcmp.lt.s32.totalorder %v1729, 16
        %vm1794 = vcmp.lt.s32.totalorder %v1730, 16
        %vm1795 = vcmp.lt.s32.totalorder %v1731, 16
        %vm1796 = vcmp.lt.s32.totalorder %v1732, 16
        %vm1797 = vcmp.lt.s32.totalorder %v1733, 16
        %vm1798 = vcmp.lt.s32.totalorder %v1734, 16
        %vm1799 = vcmp.lt.s32.totalorder %v1735, 16
        %vm1800 = vcmp.lt.s32.totalorder %v1736, 16
        %vm1801 = vcmp.lt.s32.totalorder %v1737, 16
        %vm1802 = vcmp.lt.s32.totalorder %v1738, 16
        %vm1803 = vcmp.lt.s32.totalorder %v1739, 16
        %vm1804 = vcmp.lt.s32.totalorder %v1740, 16
        %vm1805 = vcmp.lt.s32.totalorder %v1741, 16
        %vm1806 = vcmp.lt.s32.totalorder %v1742, 16
        %vm1807 = vcmp.lt.s32.totalorder %v1743, 16
        %vm1808 = vcmp.lt.s32.totalorder %v1744, 16
        %vm1809 = vmand %vm1745, %vm1777
        %vm1810 = vmand %vm1746, %vm1778
        %vm1811 = vmand %vm1747, %vm1779
        %vm1812 = vmand %vm1748, %vm1780
        %vm1813 = vmand %vm1749, %vm1781
        %vm1814 = vmand %vm1750, %vm1782
        %vm1815 = vmand %vm1751, %vm1783
        %vm1816 = vmand %vm1752, %vm1784
        %vm1817 = vmand %vm1753, %vm1785
        %vm1818 = vmand %vm1754, %vm1786
        %vm1819 = vmand %vm1755, %vm1787
        %vm1820 = vmand %vm1756, %vm1788
        %vm1821 = vmand %vm1757, %vm1789
        %vm1822 = vmand %vm1758, %vm1790
        %vm1823 = vmand %vm1759, %vm1791
        %vm1824 = vmand %vm1760, %vm1792
        %vm1825 = vmand %vm1761, %vm1793
        %vm1826 = vmand %vm1762, %vm1794
        %vm1827 = vmand %vm1763, %vm1795
        %vm1828 = vmand %vm1764, %vm1796
        %vm1829 = vmand %vm1765, %vm1797
        %vm1830 = vmand %vm1766, %vm1798
        %vm1831 = vmand %vm1767, %vm1799
        %vm1832 = vmand %vm1768, %vm1800
        %vm1833 = vmand %vm1769, %vm1801
        %vm1834 = vmand %vm1770, %vm1802
        %vm1835 = vmand %vm1771, %vm1803
        %vm1836 = vmand %vm1772, %vm1804
        %vm1837 = vmand %vm1773, %vm1805
        %vm1838 = vmand %vm1774, %vm1806
        %vm1839 = vmand %vm1775, %vm1807
        %vm1840 = vmand %vm1776, %vm1808
        %vm1841 = vcmp.ge.s32.totalorder %v423, 0
        %vm1842 = vcmp.ge.s32.totalorder %v424, 0
        %vm1843 = vcmp.ge.s32.totalorder %v425, 0
        %vm1844 = vcmp.ge.s32.totalorder %v426, 0
        %vm1845 = vcmp.ge.s32.totalorder %v427, 0
        %vm1846 = vcmp.ge.s32.totalorder %v428, 0
        %vm1847 = vcmp.ge.s32.totalorder %v429, 0
        %vm1848 = vcmp.ge.s32.totalorder %v430, 0
        %vm1849 = vcmp.ge.s32.totalorder %v431, 0
        %vm1850 = vcmp.ge.s32.totalorder %v432, 0
        %vm1851 = vcmp.ge.s32.totalorder %v433, 0
        %vm1852 = vcmp.ge.s32.totalorder %v434, 0
        %vm1853 = vcmp.ge.s32.totalorder %v435, 0
        %vm1854 = vcmp.ge.s32.totalorder %v436, 0
        %vm1855 = vcmp.ge.s32.totalorder %v437, 0
        %vm1856 = vcmp.ge.s32.totalorder %v438, 0
        %vm1857 = vcmp.ge.s32.totalorder %v439, 0
        %vm1858 = vcmp.ge.s32.totalorder %v440, 0
        %vm1859 = vcmp.ge.s32.totalorder %v441, 0
        %vm1860 = vcmp.ge.s32.totalorder %v442, 0
        %vm1861 = vcmp.ge.s32.totalorder %v443, 0
        %vm1862 = vcmp.ge.s32.totalorder %v444, 0
        %vm1863 = vcmp.ge.s32.totalorder %v445, 0
        %vm1864 = vcmp.ge.s32.totalorder %v446, 0
        %vm1865 = vcmp.ge.s32.totalorder %v447, 0
        %vm1866 = vcmp.ge.s32.totalorder %v448, 0
        %vm1867 = vcmp.ge.s32.totalorder %v449, 0
        %vm1868 = vcmp.ge.s32.totalorder %v450, 0
        %vm1869 = vcmp.ge.s32.totalorder %v451, 0
        %vm1870 = vcmp.ge.s32.totalorder %v452, 0
        %vm1871 = vcmp.ge.s32.totalorder %v453, 0
        %vm1872 = vcmp.ge.s32.totalorder %v454, 0
        %vm1873 = vcmp.lt.s32.totalorder %v423, 16
        %vm1874 = vcmp.lt.s32.totalorder %v424, 16
        %vm1875 = vcmp.lt.s32.totalorder %v425, 16
        %vm1876 = vcmp.lt.s32.totalorder %v426, 16
        %vm1877 = vcmp.lt.s32.totalorder %v427, 16
        %vm1878 = vcmp.lt.s32.totalorder %v428, 16
        %vm1879 = vcmp.lt.s32.totalorder %v429, 16
        %vm1880 = vcmp.lt.s32.totalorder %v430, 16
        %vm1881 = vcmp.lt.s32.totalorder %v431, 16
        %vm1882 = vcmp.lt.s32.totalorder %v432, 16
        %vm1883 = vcmp.lt.s32.totalorder %v433, 16
        %vm1884 = vcmp.lt.s32.totalorder %v434, 16
        %vm1885 = vcmp.lt.s32.totalorder %v435, 16
        %vm1886 = vcmp.lt.s32.totalorder %v436, 16
        %vm1887 = vcmp.lt.s32.totalorder %v437, 16
        %vm1888 = vcmp.lt.s32.totalorder %v438, 16
        %vm1889 = vcmp.lt.s32.totalorder %v439, 16
        %vm1890 = vcmp.lt.s32.totalorder %v440, 16
        %vm1891 = vcmp.lt.s32.totalorder %v441, 16
        %vm1892 = vcmp.lt.s32.totalorder %v442, 16
        %vm1893 = vcmp.lt.s32.totalorder %v443, 16
        %vm1894 = vcmp.lt.s32.totalorder %v444, 16
        %vm1895 = vcmp.lt.s32.totalorder %v445, 16
        %vm1896 = vcmp.lt.s32.totalorder %v446, 16
        %vm1897 = vcmp.lt.s32.totalorder %v447, 16
        %vm1898 = vcmp.lt.s32.totalorder %v448, 16
        %vm1899 = vcmp.lt.s32.totalorder %v449, 16
        %vm1900 = vcmp.lt.s32.totalorder %v450, 16
        %vm1901 = vcmp.lt.s32.totalorder %v451, 16
        %vm1902 = vcmp.lt.s32.totalorder %v452, 16
        %vm1903 = vcmp.lt.s32.totalorder %v453, 16
        %vm1904 = vcmp.lt.s32.totalorder %v454, 16
        %vm1905 = vmand %vm1841, %vm1873
        %vm1906 = vmand %vm1842, %vm1874
        %vm1907 = vmand %vm1843, %vm1875
        %vm1908 = vmand %vm1844, %vm1876
        %vm1909 = vmand %vm1845, %vm1877
        %vm1910 = vmand %vm1846, %vm1878
        %vm1911 = vmand %vm1847, %vm1879
        %vm1912 = vmand %vm1848, %vm1880
        %vm1913 = vmand %vm1849, %vm1881
        %vm1914 = vmand %vm1850, %vm1882
        %vm1915 = vmand %vm1851, %vm1883
        %vm1916 = vmand %vm1852, %vm1884
        %vm1917 = vmand %vm1853, %vm1885
        %vm1918 = vmand %vm1854, %vm1886
        %vm1919 = vmand %vm1855, %vm1887
        %vm1920 = vmand %vm1856, %vm1888
        %vm1921 = vmand %vm1857, %vm1889
        %vm1922 = vmand %vm1858, %vm1890
        %vm1923 = vmand %vm1859, %vm1891
        %vm1924 = vmand %vm1860, %vm1892
        %vm1925 = vmand %vm1861, %vm1893
        %vm1926 = vmand %vm1862, %vm1894
        %vm1927 = vmand %vm1863, %vm1895
        %vm1928 = vmand %vm1864, %vm1896
        %vm1929 = vmand %vm1865, %vm1897
        %vm1930 = vmand %vm1866, %vm1898
        %vm1931 = vmand %vm1867, %vm1899
        %vm1932 = vmand %vm1868, %vm1900
        %vm1933 = vmand %vm1869, %vm1901
        %vm1934 = vmand %vm1870, %vm1902
        %vm1935 = vmand %vm1871, %vm1903
        %vm1936 = vmand %vm1872, %vm1904
        %v1937 = vadd.s32 %v423, 1
        %v1938 = vadd.s32 %v424, 1
        %v1939 = vadd.s32 %v425, 1
        %v1940 = vadd.s32 %v426, 1
        %v1941 = vadd.s32 %v427, 1
        %v1942 = vadd.s32 %v428, 1
        %v1943 = vadd.s32 %v429, 1
        %v1944 = vadd.s32 %v430, 1
        %v1945 = vadd.s32 %v431, 1
        %v1946 = vadd.s32 %v432, 1
        %v1947 = vadd.s32 %v433, 1
        %v1948 = vadd.s32 %v434, 1
        %v1949 = vadd.s32 %v435, 1
        %v1950 = vadd.s32 %v436, 1
        %v1951 = vadd.s32 %v437, 1
        %v1952 = vadd.s32 %v438, 1
        %v1953 = vadd.s32 %v439, 1
        %v1954 = vadd.s32 %v440, 1
        %v1955 = vadd.s32 %v441, 1
        %v1956 = vadd.s32 %v442, 1
        %v1957 = vadd.s32 %v443, 1
        %v1958 = vadd.s32 %v444, 1
        %v1959 = vadd.s32 %v445, 1
        %v1960 = vadd.s32 %v446, 1
        %v1961 = vadd.s32 %v447, 1
        %v1962 = vadd.s32 %v448, 1
        %v1963 = vadd.s32 %v449, 1
        %v1964 = vadd.s32 %v450, 1
        %v1965 = vadd.s32 %v451, 1
        %v1966 = vadd.s32 %v452, 1
        %v1967 = vadd.s32 %v453, 1
        %v1968 = vadd.s32 %v454, 1
        %vm1969 = vcmp.ge.s32.totalorder %v1937, 0
        %vm1970 = vcmp.ge.s32.totalorder %v1938, 0
        %vm1971 = vcmp.ge.s32.totalorder %v1939, 0
        %vm1972 = vcmp.ge.s32.totalorder %v1940, 0
        %vm1973 = vcmp.ge.s32.totalorder %v1941, 0
        %vm1974 = vcmp.ge.s32.totalorder %v1942, 0
        %vm1975 = vcmp.ge.s32.totalorder %v1943, 0
        %vm1976 = vcmp.ge.s32.totalorder %v1944, 0
        %vm1977 = vcmp.ge.s32.totalorder %v1945, 0
        %vm1978 = vcmp.ge.s32.totalorder %v1946, 0
        %vm1979 = vcmp.ge.s32.totalorder %v1947, 0
        %vm1980 = vcmp.ge.s32.totalorder %v1948, 0
        %vm1981 = vcmp.ge.s32.totalorder %v1949, 0
        %vm1982 = vcmp.ge.s32.totalorder %v1950, 0
        %vm1983 = vcmp.ge.s32.totalorder %v1951, 0
        %vm1984 = vcmp.ge.s32.totalorder %v1952, 0
        %vm1985 = vcmp.ge.s32.totalorder %v1953, 0
        %vm1986 = vcmp.ge.s32.totalorder %v1954, 0
        %vm1987 = vcmp.ge.s32.totalorder %v1955, 0
        %vm1988 = vcmp.ge.s32.totalorder %v1956, 0
        %vm1989 = vcmp.ge.s32.totalorder %v1957, 0
        %vm1990 = vcmp.ge.s32.totalorder %v1958, 0
        %vm1991 = vcmp.ge.s32.totalorder %v1959, 0
        %vm1992 = vcmp.ge.s32.totalorder %v1960, 0
        %vm1993 = vcmp.ge.s32.totalorder %v1961, 0
        %vm1994 = vcmp.ge.s32.totalorder %v1962, 0
        %vm1995 = vcmp.ge.s32.totalorder %v1963, 0
        %vm1996 = vcmp.ge.s32.totalorder %v1964, 0
        %vm1997 = vcmp.ge.s32.totalorder %v1965, 0
        %vm1998 = vcmp.ge.s32.totalorder %v1966, 0
        %vm1999 = vcmp.ge.s32.totalorder %v1967, 0
        %vm2000 = vcmp.ge.s32.totalorder %v1968, 0
        %vm2001 = vcmp.lt.s32.totalorder %v1937, 16
        %vm2002 = vcmp.lt.s32.totalorder %v1938, 16
        %vm2003 = vcmp.lt.s32.totalorder %v1939, 16
        %vm2004 = vcmp.lt.s32.totalorder %v1940, 16
        %vm2005 = vcmp.lt.s32.totalorder %v1941, 16
        %vm2006 = vcmp.lt.s32.totalorder %v1942, 16
        %vm2007 = vcmp.lt.s32.totalorder %v1943, 16
        %vm2008 = vcmp.lt.s32.totalorder %v1944, 16
        %vm2009 = vcmp.lt.s32.totalorder %v1945, 16
        %vm2010 = vcmp.lt.s32.totalorder %v1946, 16
        %vm2011 = vcmp.lt.s32.totalorder %v1947, 16
        %vm2012 = vcmp.lt.s32.totalorder %v1948, 16
        %vm2013 = vcmp.lt.s32.totalorder %v1949, 16
        %vm2014 = vcmp.lt.s32.totalorder %v1950, 16
        %vm2015 = vcmp.lt.s32.totalorder %v1951, 16
        %vm2016 = vcmp.lt.s32.totalorder %v1952, 16
        %vm2017 = vcmp.lt.s32.totalorder %v1953, 16
        %vm2018 = vcmp.lt.s32.totalorder %v1954, 16
        %vm2019 = vcmp.lt.s32.totalorder %v1955, 16
        %vm2020 = vcmp.lt.s32.totalorder %v1956, 16
        %vm2021 = vcmp.lt.s32.totalorder %v1957, 16
        %vm2022 = vcmp.lt.s32.totalorder %v1958, 16
        %vm2023 = vcmp.lt.s32.totalorder %v1959, 16
        %vm2024 = vcmp.lt.s32.totalorder %v1960, 16
        %vm2025 = vcmp.lt.s32.totalorder %v1961, 16
        %vm2026 = vcmp.lt.s32.totalorder %v1962, 16
        %vm2027 = vcmp.lt.s32.totalorder %v1963, 16
        %vm2028 = vcmp.lt.s32.totalorder %v1964, 16
        %vm2029 = vcmp.lt.s32.totalorder %v1965, 16
        %vm2030 = vcmp.lt.s32.totalorder %v1966, 16
        %vm2031 = vcmp.lt.s32.totalorder %v1967, 16
        %vm2032 = vcmp.lt.s32.totalorder %v1968, 16
        %vm2033 = vmand %vm1969, %vm2001
        %vm2034 = vmand %vm1970, %vm2002
        %vm2035 = vmand %vm1971, %vm2003
        %vm2036 = vmand %vm1972, %vm2004
        %vm2037 = vmand %vm1973, %vm2005
        %vm2038 = vmand %vm1974, %vm2006
        %vm2039 = vmand %vm1975, %vm2007
        %vm2040 = vmand %vm1976, %vm2008
        %vm2041 = vmand %vm1977, %vm2009
        %vm2042 = vmand %vm1978, %vm2010
        %vm2043 = vmand %vm1979, %vm2011
        %vm2044 = vmand %vm1980, %vm2012
        %vm2045 = vmand %vm1981, %vm2013
        %vm2046 = vmand %vm1982, %vm2014
        %vm2047 = vmand %vm1983, %vm2015
        %vm2048 = vmand %vm1984, %vm2016
        %vm2049 = vmand %vm1985, %vm2017
        %vm2050 = vmand %vm1986, %vm2018
        %vm2051 = vmand %vm1987, %vm2019
        %vm2052 = vmand %vm1988, %vm2020
        %vm2053 = vmand %vm1989, %vm2021
        %vm2054 = vmand %vm1990, %vm2022
        %vm2055 = vmand %vm1991, %vm2023
        %vm2056 = vmand %vm1992, %vm2024
        %vm2057 = vmand %vm1993, %vm2025
        %vm2058 = vmand %vm1994, %vm2026
        %vm2059 = vmand %vm1995, %vm2027
        %vm2060 = vmand %vm1996, %vm2028
        %vm2061 = vmand %vm1997, %vm2029
        %vm2062 = vmand %vm1998, %vm2030
        %vm2063 = vmand %vm1999, %vm2031
        %vm2064 = vmand %vm2000, %vm2032
        %v2065 = vadd.s32 %v423, 2
        %v2066 = vadd.s32 %v424, 2
        %v2067 = vadd.s32 %v425, 2
        %v2068 = vadd.s32 %v426, 2
        %v2069 = vadd.s32 %v427, 2
        %v2070 = vadd.s32 %v428, 2
        %v2071 = vadd.s32 %v429, 2
        %v2072 = vadd.s32 %v430, 2
        %v2073 = vadd.s32 %v431, 2
        %v2074 = vadd.s32 %v432, 2
        %v2075 = vadd.s32 %v433, 2
        %v2076 = vadd.s32 %v434, 2
        %v2077 = vadd.s32 %v435, 2
        %v2078 = vadd.s32 %v436, 2
        %v2079 = vadd.s32 %v437, 2
        %v2080 = vadd.s32 %v438, 2
        %v2081 = vadd.s32 %v439, 2
        %v2082 = vadd.s32 %v440, 2
        %v2083 = vadd.s32 %v441, 2
        %v2084 = vadd.s32 %v442, 2
        %v2085 = vadd.s32 %v443, 2
        %v2086 = vadd.s32 %v444, 2
        %v2087 = vadd.s32 %v445, 2
        %v2088 = vadd.s32 %v446, 2
        %v2089 = vadd.s32 %v447, 2
        %v2090 = vadd.s32 %v448, 2
        %v2091 = vadd.s32 %v449, 2
        %v2092 = vadd.s32 %v450, 2
        %v2093 = vadd.s32 %v451, 2
        %v2094 = vadd.s32 %v452, 2
        %v2095 = vadd.s32 %v453, 2
        %v2096 = vadd.s32 %v454, 2
        %vm2097 = vcmp.ge.s32.totalorder %v2065, 0
        %vm2098 = vcmp.ge.s32.totalorder %v2066, 0
        %vm2099 = vcmp.ge.s32.totalorder %v2067, 0
        %vm2100 = vcmp.ge.s32.totalorder %v2068, 0
        %vm2101 = vcmp.ge.s32.totalorder %v2069, 0
        %vm2102 = vcmp.ge.s32.totalorder %v2070, 0
        %vm2103 = vcmp.ge.s32.totalorder %v2071, 0
        %vm2104 = vcmp.ge.s32.totalorder %v2072, 0
        %vm2105 = vcmp.ge.s32.totalorder %v2073, 0
        %vm2106 = vcmp.ge.s32.totalorder %v2074, 0
        %vm2107 = vcmp.ge.s32.totalorder %v2075, 0
        %vm2108 = vcmp.ge.s32.totalorder %v2076, 0
        %vm2109 = vcmp.ge.s32.totalorder %v2077, 0
        %vm2110 = vcmp.ge.s32.totalorder %v2078, 0
        %vm2111 = vcmp.ge.s32.totalorder %v2079, 0
        %vm2112 = vcmp.ge.s32.totalorder %v2080, 0
        %vm2113 = vcmp.ge.s32.totalorder %v2081, 0
        %vm2114 = vcmp.ge.s32.totalorder %v2082, 0
        %vm2115 = vcmp.ge.s32.totalorder %v2083, 0
        %vm2116 = vcmp.ge.s32.totalorder %v2084, 0
        %vm2117 = vcmp.ge.s32.totalorder %v2085, 0
        %vm2118 = vcmp.ge.s32.totalorder %v2086, 0
        %vm2119 = vcmp.ge.s32.totalorder %v2087, 0
        %vm2120 = vcmp.ge.s32.totalorder %v2088, 0
        %vm2121 = vcmp.ge.s32.totalorder %v2089, 0
        %vm2122 = vcmp.ge.s32.totalorder %v2090, 0
        %vm2123 = vcmp.ge.s32.totalorder %v2091, 0
        %vm2124 = vcmp.ge.s32.totalorder %v2092, 0
        %vm2125 = vcmp.ge.s32.totalorder %v2093, 0
        %vm2126 = vcmp.ge.s32.totalorder %v2094, 0
        %vm2127 = vcmp.ge.s32.totalorder %v2095, 0
        %vm2128 = vcmp.ge.s32.totalorder %v2096, 0
        %vm2129 = vcmp.lt.s32.totalorder %v2065, 16
        %vm2130 = vcmp.lt.s32.totalorder %v2066, 16
        %vm2131 = vcmp.lt.s32.totalorder %v2067, 16
        %vm2132 = vcmp.lt.s32.totalorder %v2068, 16
        %vm2133 = vcmp.lt.s32.totalorder %v2069, 16
        %vm2134 = vcmp.lt.s32.totalorder %v2070, 16
        %vm2135 = vcmp.lt.s32.totalorder %v2071, 16
        %vm2136 = vcmp.lt.s32.totalorder %v2072, 16
        %vm2137 = vcmp.lt.s32.totalorder %v2073, 16
        %vm2138 = vcmp.lt.s32.totalorder %v2074, 16
        %vm2139 = vcmp.lt.s32.totalorder %v2075, 16
        %vm2140 = vcmp.lt.s32.totalorder %v2076, 16
        %vm2141 = vcmp.lt.s32.totalorder %v2077, 16
        %vm2142 = vcmp.lt.s32.totalorder %v2078, 16
        %vm2143 = vcmp.lt.s32.totalorder %v2079, 16
        %vm2144 = vcmp.lt.s32.totalorder %v2080, 16
        %vm2145 = vcmp.lt.s32.totalorder %v2081, 16
        %vm2146 = vcmp.lt.s32.totalorder %v2082, 16
        %vm2147 = vcmp.lt.s32.totalorder %v2083, 16
        %vm2148 = vcmp.lt.s32.totalorder %v2084, 16
        %vm2149 = vcmp.lt.s32.totalorder %v2085, 16
        %vm2150 = vcmp.lt.s32.totalorder %v2086, 16
        %vm2151 = vcmp.lt.s32.totalorder %v2087, 16
        %vm2152 = vcmp.lt.s32.totalorder %v2088, 16
        %vm2153 = vcmp.lt.s32.totalorder %v2089, 16
        %vm2154 = vcmp.lt.s32.totalorder %v2090, 16
        %vm2155 = vcmp.lt.s32.totalorder %v2091, 16
        %vm2156 = vcmp.lt.s32.totalorder %v2092, 16
        %vm2157 = vcmp.lt.s32.totalorder %v2093, 16
        %vm2158 = vcmp.lt.s32.totalorder %v2094, 16
        %vm2159 = vcmp.lt.s32.totalorder %v2095, 16
        %vm2160 = vcmp.lt.s32.totalorder %v2096, 16
        %vm2161 = vmand %vm2097, %vm2129
        %vm2162 = vmand %vm2098, %vm2130
        %vm2163 = vmand %vm2099, %vm2131
        %vm2164 = vmand %vm2100, %vm2132
        %vm2165 = vmand %vm2101, %vm2133
        %vm2166 = vmand %vm2102, %vm2134
        %vm2167 = vmand %vm2103, %vm2135
        %vm2168 = vmand %vm2104, %vm2136
        %vm2169 = vmand %vm2105, %vm2137
        %vm2170 = vmand %vm2106, %vm2138
        %vm2171 = vmand %vm2107, %vm2139
        %vm2172 = vmand %vm2108, %vm2140
        %vm2173 = vmand %vm2109, %vm2141
        %vm2174 = vmand %vm2110, %vm2142
        %vm2175 = vmand %vm2111, %vm2143
        %vm2176 = vmand %vm2112, %vm2144
        %vm2177 = vmand %vm2113, %vm2145
        %vm2178 = vmand %vm2114, %vm2146
        %vm2179 = vmand %vm2115, %vm2147
        %vm2180 = vmand %vm2116, %vm2148
        %vm2181 = vmand %vm2117, %vm2149
        %vm2182 = vmand %vm2118, %vm2150
        %vm2183 = vmand %vm2119, %vm2151
        %vm2184 = vmand %vm2120, %vm2152
        %vm2185 = vmand %vm2121, %vm2153
        %vm2186 = vmand %vm2122, %vm2154
        %vm2187 = vmand %vm2123, %vm2155
        %vm2188 = vmand %vm2124, %vm2156
        %vm2189 = vmand %vm2125, %vm2157
        %vm2190 = vmand %vm2126, %vm2158
        %vm2191 = vmand %vm2127, %vm2159
        %vm2192 = vmand %vm2128, %vm2160
        %vm2193 = vmand %vm1073, %vm1681
        %vm2194 = vmand %vm1074, %vm1682
        %vm2195 = vmand %vm1075, %vm1683
        %vm2196 = vmand %vm1076, %vm1684
        %vm2197 = vmand %vm1077, %vm1685
        %vm2198 = vmand %vm1078, %vm1686
        %vm2199 = vmand %vm1079, %vm1687
        %vm2200 = vmand %vm1080, %vm1688
        %vm2201 = vmand %vm1081, %vm1689
        %vm2202 = vmand %vm1082, %vm1690
        %vm2203 = vmand %vm1083, %vm1691
        %vm2204 = vmand %vm1084, %vm1692
        %vm2205 = vmand %vm1085, %vm1693
        %vm2206 = vmand %vm1086, %vm1694
        %vm2207 = vmand %vm1087, %vm1695
        %vm2208 = vmand %vm1088, %vm1696
        %vm2209 = vmand %vm1089, %vm1697
        %vm2210 = vmand %vm1090, %vm1698
        %vm2211 = vmand %vm1091, %vm1699
        %vm2212 = vmand %vm1092, %vm1700
        %vm2213 = vmand %vm1093, %vm1701
        %vm2214 = vmand %vm1094, %vm1702
        %vm2215 = vmand %vm1095, %vm1703
        %vm2216 = vmand %vm1096, %vm1704
        %vm2217 = vmand %vm1097, %vm1705
        %vm2218 = vmand %vm1098, %vm1706
        %vm2219 = vmand %vm1099, %vm1707
        %vm2220 = vmand %vm1100, %vm1708
        %vm2221 = vmand %vm1101, %vm1709
        %vm2222 = vmand %vm1102, %vm1710
        %vm2223 = vmand %vm1103, %vm1711
        %vm2224 = vmand %vm1104, %vm1712
        %vm2225 = vmand %vm1073, %vm1809
        %vm2226 = vmand %vm1074, %vm1810
        %vm2227 = vmand %vm1075, %vm1811
        %vm2228 = vmand %vm1076, %vm1812
        %vm2229 = vmand %vm1077, %vm1813
        %vm2230 = vmand %vm1078, %vm1814
        %vm2231 = vmand %vm1079, %vm1815
        %vm2232 = vmand %vm1080, %vm1816
        %vm2233 = vmand %vm1081, %vm1817
        %vm2234 = vmand %vm1082, %vm1818
        %vm2235 = vmand %vm1083, %vm1819
        %vm2236 = vmand %vm1084, %vm1820
        %vm2237 = vmand %vm1085, %vm1821
        %vm2238 = vmand %vm1086, %vm1822
        %vm2239 = vmand %vm1087, %vm1823
        %vm2240 = vmand %vm1088, %vm1824
        %vm2241 = vmand %vm1089, %vm1825
        %vm2242 = vmand %vm1090, %vm1826
        %vm2243 = vmand %vm1091, %vm1827
        %vm2244 = vmand %vm1092, %vm1828
        %vm2245 = vmand %vm1093, %vm1829
        %vm2246 = vmand %vm1094, %vm1830
        %vm2247 = vmand %vm1095, %vm1831
        %vm2248 = vmand %vm1096, %vm1832
        %vm2249 = vmand %vm1097, %vm1833
        %vm2250 = vmand %vm1098, %vm1834
        %vm2251 = vmand %vm1099, %vm1835
        %vm2252 = vmand %vm1100, %vm1836
        %vm2253 = vmand %vm1101, %vm1837
        %vm2254 = vmand %vm1102, %vm1838
        %vm2255 = vmand %vm1103, %vm1839
        %vm2256 = vmand %vm1104, %vm1840
        %vm2257 = vmand %vm1073, %vm1905
        %vm2258 = vmand %vm1074, %vm1906
        %vm2259 = vmand %vm1075, %vm1907
        %vm2260 = vmand %vm1076, %vm1908
        %vm2261 = vmand %vm1077, %vm1909
        %vm2262 = vmand %vm1078, %vm1910
        %vm2263 = vmand %vm1079, %vm1911
        %vm2264 = vmand %vm1080, %vm1912
        %vm2265 = vmand %vm1081, %vm1913
        %vm2266 = vmand %vm1082, %vm1914
        %vm2267 = vmand %vm1083, %vm1915
        %vm2268 = vmand %vm1084, %vm1916
        %vm2269 = vmand %vm1085, %vm1917
        %vm2270 = vmand %vm1086, %vm1918
        %vm2271 = vmand %vm1087, %vm1919
        %vm2272 = vmand %vm1088, %vm1920
        %vm2273 = vmand %vm1089, %vm1921
        %vm2274 = vmand %vm1090, %vm1922
        %vm2275 = vmand %vm1091, %vm1923
        %vm2276 = vmand %vm1092, %vm1924
        %vm2277 = vmand %vm1093, %vm1925
        %vm2278 = vmand %vm1094, %vm1926
        %vm2279 = vmand %vm1095, %vm1927
        %vm2280 = vmand %vm1096, %vm1928
        %vm2281 = vmand %vm1097, %vm1929
        %vm2282 = vmand %vm1098, %vm1930
        %vm2283 = vmand %vm1099, %vm1931
        %vm2284 = vmand %vm1100, %vm1932
        %vm2285 = vmand %vm1101, %vm1933
        %vm2286 = vmand %vm1102, %vm1934
        %vm2287 = vmand %vm1103, %vm1935
        %vm2288 = vmand %vm1104, %vm1936
        %vm2289 = vmand %vm1073, %vm2033
        %vm2290 = vmand %vm1074, %vm2034
        %vm2291 = vmand %vm1075, %vm2035
        %vm2292 = vmand %vm1076, %vm2036
        %vm2293 = vmand %vm1077, %vm2037
        %vm2294 = vmand %vm1078, %vm2038
        %vm2295 = vmand %vm1079, %vm2039
        %vm2296 = vmand %vm1080, %vm2040
        %vm2297 = vmand %vm1081, %vm2041
        %vm2298 = vmand %vm1082, %vm2042
        %vm2299 = vmand %vm1083, %vm2043
        %vm2300 = vmand %vm1084, %vm2044
        %vm2301 = vmand %vm1085, %vm2045
        %vm2302 = vmand %vm1086, %vm2046
        %vm2303 = vmand %vm1087, %vm2047
        %vm2304 = vmand %vm1088, %vm2048
        %vm2305 = vmand %vm1089, %vm2049
        %vm2306 = vmand %vm1090, %vm2050
        %vm2307 = vmand %vm1091, %vm2051
        %vm2308 = vmand %vm1092, %vm2052
        %vm2309 = vmand %vm1093, %vm2053
        %vm2310 = vmand %vm1094, %vm2054
        %vm2311 = vmand %vm1095, %vm2055
        %vm2312 = vmand %vm1096, %vm2056
        %vm2313 = vmand %vm1097, %vm2057
        %vm2314 = vmand %vm1098, %vm2058
        %vm2315 = vmand %vm1099, %vm2059
        %vm2316 = vmand %vm1100, %vm2060
        %vm2317 = vmand %vm1101, %vm2061
        %vm2318 = vmand %vm1102, %vm2062
        %vm2319 = vmand %vm1103, %vm2063
        %vm2320 = vmand %vm1104, %vm2064
        %vm2321 = vmand %vm1073, %vm2161
        %vm2322 = vmand %vm1074, %vm2162
        %vm2323 = vmand %vm1075, %vm2163
        %vm2324 = vmand %vm1076, %vm2164
        %vm2325 = vmand %vm1077, %vm2165
        %vm2326 = vmand %vm1078, %vm2166
        %vm2327 = vmand %vm1079, %vm2167
        %vm2328 = vmand %vm1080, %vm2168
        %vm2329 = vmand %vm1081, %vm2169
        %vm2330 = vmand %vm1082, %vm2170
        %vm2331 = vmand %vm1083, %vm2171
        %vm2332 = vmand %vm1084, %vm2172
        %vm2333 = vmand %vm1085, %vm2173
        %vm2334 = vmand %vm1086, %vm2174
        %vm2335 = vmand %vm1087, %vm2175
        %vm2336 = vmand %vm1088, %vm2176
        %vm2337 = vmand %vm1089, %vm2177
        %vm2338 = vmand %vm1090, %vm2178
        %vm2339 = vmand %vm1091, %vm2179
        %vm2340 = vmand %vm1092, %vm2180
        %vm2341 = vmand %vm1093, %vm2181
        %vm2342 = vmand %vm1094, %vm2182
        %vm2343 = vmand %vm1095, %vm2183
        %vm2344 = vmand %vm1096, %vm2184
        %vm2345 = vmand %vm1097, %vm2185
        %vm2346 = vmand %vm1098, %vm2186
        %vm2347 = vmand %vm1099, %vm2187
        %vm2348 = vmand %vm1100, %vm2188
        %vm2349 = vmand %vm1101, %vm2189
        %vm2350 = vmand %vm1102, %vm2190
        %vm2351 = vmand %vm1103, %vm2191
        %vm2352 = vmand %vm1104, %vm2192
        %vm2353 = vmand %vm1201, %vm1681
        %vm2354 = vmand %vm1202, %vm1682
        %vm2355 = vmand %vm1203, %vm1683
        %vm2356 = vmand %vm1204, %vm1684
        %vm2357 = vmand %vm1205, %vm1685
        %vm2358 = vmand %vm1206, %vm1686
        %vm2359 = vmand %vm1207, %vm1687
        %vm2360 = vmand %vm1208, %vm1688
        %vm2361 = vmand %vm1209, %vm1689
        %vm2362 = vmand %vm1210, %vm1690
        %vm2363 = vmand %vm1211, %vm1691
        %vm2364 = vmand %vm1212, %vm1692
        %vm2365 = vmand %vm1213, %vm1693
        %vm2366 = vmand %vm1214, %vm1694
        %vm2367 = vmand %vm1215, %vm1695
        %vm2368 = vmand %vm1216, %vm1696
        %vm2369 = vmand %vm1217, %vm1697
        %vm2370 = vmand %vm1218, %vm1698
        %vm2371 = vmand %vm1219, %vm1699
        %vm2372 = vmand %vm1220, %vm1700
        %vm2373 = vmand %vm1221, %vm1701
        %vm2374 = vmand %vm1222, %vm1702
        %vm2375 = vmand %vm1223, %vm1703
        %vm2376 = vmand %vm1224, %vm1704
        %vm2377 = vmand %vm1225, %vm1705
        %vm2378 = vmand %vm1226, %vm1706
        %vm2379 = vmand %vm1227, %vm1707
        %vm2380 = vmand %vm1228, %vm1708
        %vm2381 = vmand %vm1229, %vm1709
        %vm2382 = vmand %vm1230, %vm1710
        %vm2383 = vmand %vm1231, %vm1711
        %vm2384 = vmand %vm1232, %vm1712
        %vm2385 = vmand %vm1201, %vm1809
        %vm2386 = vmand %vm1202, %vm1810
        %vm2387 = vmand %vm1203, %vm1811
        %vm2388 = vmand %vm1204, %vm1812
        %vm2389 = vmand %vm1205, %vm1813
        %vm2390 = vmand %vm1206, %vm1814
        %vm2391 = vmand %vm1207, %vm1815
        %vm2392 = vmand %vm1208, %vm1816
        %vm2393 = vmand %vm1209, %vm1817
        %vm2394 = vmand %vm1210, %vm1818
        %vm2395 = vmand %vm1211, %vm1819
        %vm2396 = vmand %vm1212, %vm1820
        %vm2397 = vmand %vm1213, %vm1821
        %vm2398 = vmand %vm1214, %vm1822
        %vm2399 = vmand %vm1215, %vm1823
        %vm2400 = vmand %vm1216, %vm1824
        %vm2401 = vmand %vm1217, %vm1825
        %vm2402 = vmand %vm1218, %vm1826
        %vm2403 = vmand %vm1219, %vm1827
        %vm2404 = vmand %vm1220, %vm1828
        %vm2405 = vmand %vm1221, %vm1829
        %vm2406 = vmand %vm1222, %vm1830
        %vm2407 = vmand %vm1223, %vm1831
        %vm2408 = vmand %vm1224, %vm1832
        %vm2409 = vmand %vm1225, %vm1833
        %vm2410 = vmand %vm1226, %vm1834
        %vm2411 = vmand %vm1227, %vm1835
        %vm2412 = vmand %vm1228, %vm1836
        %vm2413 = vmand %vm1229, %vm1837
        %vm2414 = vmand %vm1230, %vm1838
        %vm2415 = vmand %vm1231, %vm1839
        %vm2416 = vmand %vm1232, %vm1840
        %vm2417 = vmand %vm1201, %vm1905
        %vm2418 = vmand %vm1202, %vm1906
        %vm2419 = vmand %vm1203, %vm1907
        %vm2420 = vmand %vm1204, %vm1908
        %vm2421 = vmand %vm1205, %vm1909
        %vm2422 = vmand %vm1206, %vm1910
        %vm2423 = vmand %vm1207, %vm1911
        %vm2424 = vmand %vm1208, %vm1912
        %vm2425 = vmand %vm1209, %vm1913
        %vm2426 = vmand %vm1210, %vm1914
        %vm2427 = vmand %vm1211, %vm1915
        %vm2428 = vmand %vm1212, %vm1916
        %vm2429 = vmand %vm1213, %vm1917
        %vm2430 = vmand %vm1214, %vm1918
        %vm2431 = vmand %vm1215, %vm1919
        %vm2432 = vmand %vm1216, %vm1920
        %vm2433 = vmand %vm1217, %vm1921
        %vm2434 = vmand %vm1218, %vm1922
        %vm2435 = vmand %vm1219, %vm1923
        %vm2436 = vmand %vm1220, %vm1924
        %vm2437 = vmand %vm1221, %vm1925
        %vm2438 = vmand %vm1222, %vm1926
        %vm2439 = vmand %vm1223, %vm1927
        %vm2440 = vmand %vm1224, %vm1928
        %vm2441 = vmand %vm1225, %vm1929
        %vm2442 = vmand %vm1226, %vm1930
        %vm2443 = vmand %vm1227, %vm1931
        %vm2444 = vmand %vm1228, %vm1932
        %vm2445 = vmand %vm1229, %vm1933
        %vm2446 = vmand %vm1230, %vm1934
        %vm2447 = vmand %vm1231, %vm1935
        %vm2448 = vmand %vm1232, %vm1936
        %vm2449 = vmand %vm1201, %vm2033
        %vm2450 = vmand %vm1202, %vm2034
        %vm2451 = vmand %vm1203, %vm2035
        %vm2452 = vmand %vm1204, %vm2036
        %vm2453 = vmand %vm1205, %vm2037
        %vm2454 = vmand %vm1206, %vm2038
        %vm2455 = vmand %vm1207, %vm2039
        %vm2456 = vmand %vm1208, %vm2040
        %vm2457 = vmand %vm1209, %vm2041
        %vm2458 = vmand %vm1210, %vm2042
        %vm2459 = vmand %vm1211, %vm2043
        %vm2460 = vmand %vm1212, %vm2044
        %vm2461 = vmand %vm1213, %vm2045
        %vm2462 = vmand %vm1214, %vm2046
        %vm2463 = vmand %vm1215, %vm2047
        %vm2464 = vmand %vm1216, %vm2048
        %vm2465 = vmand %vm1217, %vm2049
        %vm2466 = vmand %vm1218, %vm2050
        %vm2467 = vmand %vm1219, %vm2051
        %vm2468 = vmand %vm1220, %vm2052
        %vm2469 = vmand %vm1221, %vm2053
        %vm2470 = vmand %vm1222, %vm2054
        %vm2471 = vmand %vm1223, %vm2055
        %vm2472 = vmand %vm1224, %vm2056
        %vm2473 = vmand %vm1225, %vm2057
        %vm2474 = vmand %vm1226, %vm2058
        %vm2475 = vmand %vm1227, %vm2059
        %vm2476 = vmand %vm1228, %vm2060
        %vm2477 = vmand %vm1229, %vm2061
        %vm2478 = vmand %vm1230, %vm2062
        %vm2479 = vmand %vm1231, %vm2063
        %vm2480 = vmand %vm1232, %vm2064
        %vm2481 = vmand %vm1201, %vm2161
        %vm2482 = vmand %vm1202, %vm2162
        %vm2483 = vmand %vm1203, %vm2163
        %vm2484 = vmand %vm1204, %vm2164
        %vm2485 = vmand %vm1205, %vm2165
        %vm2486 = vmand %vm1206, %vm2166
        %vm2487 = vmand %vm1207, %vm2167
        %vm2488 = vmand %vm1208, %vm2168
        %vm2489 = vmand %vm1209, %vm2169
        %vm2490 = vmand %vm1210, %vm2170
        %vm2491 = vmand %vm1211, %vm2171
        %vm2492 = vmand %vm1212, %vm2172
        %vm2493 = vmand %vm1213, %vm2173
        %vm2494 = vmand %vm1214, %vm2174
        %vm2495 = vmand %vm1215, %vm2175
        %vm2496 = vmand %vm1216, %vm2176
        %vm2497 = vmand %vm1217, %vm2177
        %vm2498 = vmand %vm1218, %vm2178
        %vm2499 = vmand %vm1219, %vm2179
        %vm2500 = vmand %vm1220, %vm2180
        %vm2501 = vmand %vm1221, %vm2181
        %vm2502 = vmand %vm1222, %vm2182
        %vm2503 = vmand %vm1223, %vm2183
        %vm2504 = vmand %vm1224, %vm2184
        %vm2505 = vmand %vm1225, %vm2185
        %vm2506 = vmand %vm1226, %vm2186
        %vm2507 = vmand %vm1227, %vm2187
        %vm2508 = vmand %vm1228, %vm2188
        %vm2509 = vmand %vm1229, %vm2189
        %vm2510 = vmand %vm1230, %vm2190
        %vm2511 = vmand %vm1231, %vm2191
        %vm2512 = vmand %vm1232, %vm2192
        %vm2513 = vmand %vm1297, %vm1681
        %vm2514 = vmand %vm1298, %vm1682
        %vm2515 = vmand %vm1299, %vm1683
        %vm2516 = vmand %vm1300, %vm1684
        %vm2517 = vmand %vm1301, %vm1685
        %vm2518 = vmand %vm1302, %vm1686
        %vm2519 = vmand %vm1303, %vm1687
        %vm2520 = vmand %vm1304, %vm1688
        %vm2521 = vmand %vm1305, %vm1689
        %vm2522 = vmand %vm1306, %vm1690
        %vm2523 = vmand %vm1307, %vm1691
        %vm2524 = vmand %vm1308, %vm1692
        %vm2525 = vmand %vm1309, %vm1693
        %vm2526 = vmand %vm1310, %vm1694
        %vm2527 = vmand %vm1311, %vm1695
        %vm2528 = vmand %vm1312, %vm1696
        %vm2529 = vmand %vm1313, %vm1697
        %vm2530 = vmand %vm1314, %vm1698
        %vm2531 = vmand %vm1315, %vm1699
        %vm2532 = vmand %vm1316, %vm1700
        %vm2533 = vmand %vm1317, %vm1701
        %vm2534 = vmand %vm1318, %vm1702
        %vm2535 = vmand %vm1319, %vm1703
        %vm2536 = vmand %vm1320, %vm1704
        %vm2537 = vmand %vm1321, %vm1705
        %vm2538 = vmand %vm1322, %vm1706
        %vm2539 = vmand %vm1323, %vm1707
        %vm2540 = vmand %vm1324, %vm1708
        %vm2541 = vmand %vm1325, %vm1709
        %vm2542 = vmand %vm1326, %vm1710
        %vm2543 = vmand %vm1327, %vm1711
        %vm2544 = vmand %vm1328, %vm1712
        %vm2545 = vmand %vm1297, %vm1809
        %vm2546 = vmand %vm1298, %vm1810
        %vm2547 = vmand %vm1299, %vm1811
        %vm2548 = vmand %vm1300, %vm1812
        %vm2549 = vmand %vm1301, %vm1813
        %vm2550 = vmand %vm1302, %vm1814
        %vm2551 = vmand %vm1303, %vm1815
        %vm2552 = vmand %vm1304, %vm1816
        %vm2553 = vmand %vm1305, %vm1817
        %vm2554 = vmand %vm1306, %vm1818
        %vm2555 = vmand %vm1307, %vm1819
        %vm2556 = vmand %vm1308, %vm1820
        %vm2557 = vmand %vm1309, %vm1821
        %vm2558 = vmand %vm1310, %vm1822
        %vm2559 = vmand %vm1311, %vm1823
        %vm2560 = vmand %vm1312, %vm1824
        %vm2561 = vmand %vm1313, %vm1825
        %vm2562 = vmand %vm1314, %vm1826
        %vm2563 = vmand %vm1315, %vm1827
        %vm2564 = vmand %vm1316, %vm1828
        %vm2565 = vmand %vm1317, %vm1829
        %vm2566 = vmand %vm1318, %vm1830
        %vm2567 = vmand %vm1319, %vm1831
        %vm2568 = vmand %vm1320, %vm1832
        %vm2569 = vmand %vm1321, %vm1833
        %vm2570 = vmand %vm1322, %vm1834
        %vm2571 = vmand %vm1323, %vm1835
        %vm2572 = vmand %vm1324, %vm1836
        %vm2573 = vmand %vm1325, %vm1837
        %vm2574 = vmand %vm1326, %vm1838
        %vm2575 = vmand %vm1327, %vm1839
        %vm2576 = vmand %vm1328, %vm1840
        %vm2577 = vmand %vm1297, %vm1905
        %vm2578 = vmand %vm1298, %vm1906
        %vm2579 = vmand %vm1299, %vm1907
        %vm2580 = vmand %vm1300, %vm1908
        %vm2581 = vmand %vm1301, %vm1909
        %vm2582 = vmand %vm1302, %vm1910
        %vm2583 = vmand %vm1303, %vm1911
        %vm2584 = vmand %vm1304, %vm1912
        %vm2585 = vmand %vm1305, %vm1913
        %vm2586 = vmand %vm1306, %vm1914
        %vm2587 = vmand %vm1307, %vm1915
        %vm2588 = vmand %vm1308, %vm1916
        %vm2589 = vmand %vm1309, %vm1917
        %vm2590 = vmand %vm1310, %vm1918
        %vm2591 = vmand %vm1311, %vm1919
        %vm2592 = vmand %vm1312, %vm1920
        %vm2593 = vmand %vm1313, %vm1921
        %vm2594 = vmand %vm1314, %vm1922
        %vm2595 = vmand %vm1315, %vm1923
        %vm2596 = vmand %vm1316, %vm1924
        %vm2597 = vmand %vm1317, %vm1925
        %vm2598 = vmand %vm1318, %vm1926
        %vm2599 = vmand %vm1319, %vm1927
        %vm2600 = vmand %vm1320, %vm1928
        %vm2601 = vmand %vm1321, %vm1929
        %vm2602 = vmand %vm1322, %vm1930
        %vm2603 = vmand %vm1323, %vm1931
        %vm2604 = vmand %vm1324, %vm1932
        %vm2605 = vmand %vm1325, %vm1933
        %vm2606 = vmand %vm1326, %vm1934
        %vm2607 = vmand %vm1327, %vm1935
        %vm2608 = vmand %vm1328, %vm1936
        %vm2609 = vmand %vm1297, %vm2033
        %vm2610 = vmand %vm1298, %vm2034
        %vm2611 = vmand %vm1299, %vm2035
        %vm2612 = vmand %vm1300, %vm2036
        %vm2613 = vmand %vm1301, %vm2037
        %vm2614 = vmand %vm1302, %vm2038
        %vm2615 = vmand %vm1303, %vm2039
        %vm2616 = vmand %vm1304, %vm2040
        %vm2617 = vmand %vm1305, %vm2041
        %vm2618 = vmand %vm1306, %vm2042
        %vm2619 = vmand %vm1307, %vm2043
        %vm2620 = vmand %vm1308, %vm2044
        %vm2621 = vmand %vm1309, %vm2045
        %vm2622 = vmand %vm1310, %vm2046
        %vm2623 = vmand %vm1311, %vm2047
        %vm2624 = vmand %vm1312, %vm2048
        %vm2625 = vmand %vm1313, %vm2049
        %vm2626 = vmand %vm1314, %vm2050
        %vm2627 = vmand %vm1315, %vm2051
        %vm2628 = vmand %vm1316, %vm2052
        %vm2629 = vmand %vm1317, %vm2053
        %vm2630 = vmand %vm1318, %vm2054
        %vm2631 = vmand %vm1319, %vm2055
        %vm2632 = vmand %vm1320, %vm2056
        %vm2633 = vmand %vm1321, %vm2057
        %vm2634 = vmand %vm1322, %vm2058
        %vm2635 = vmand %vm1323, %vm2059
        %vm2636 = vmand %vm1324, %vm2060
        %vm2637 = vmand %vm1325, %vm2061
        %vm2638 = vmand %vm1326, %vm2062
        %vm2639 = vmand %vm1327, %vm2063
        %vm2640 = vmand %vm1328, %vm2064
        %vm2641 = vmand %vm1297, %vm2161
        %vm2642 = vmand %vm1298, %vm2162
        %vm2643 = vmand %vm1299, %vm2163
        %vm2644 = vmand %vm1300, %vm2164
        %vm2645 = vmand %vm1301, %vm2165
        %vm2646 = vmand %vm1302, %vm2166
        %vm2647 = vmand %vm1303, %vm2167
        %vm2648 = vmand %vm1304, %vm2168
        %vm2649 = vmand %vm1305, %vm2169
        %vm2650 = vmand %vm1306, %vm2170
        %vm2651 = vmand %vm1307, %vm2171
        %vm2652 = vmand %vm1308, %vm2172
        %vm2653 = vmand %vm1309, %vm2173
        %vm2654 = vmand %vm1310, %vm2174
        %vm2655 = vmand %vm1311, %vm2175
        %vm2656 = vmand %vm1312, %vm2176
        %vm2657 = vmand %vm1313, %vm2177
        %vm2658 = vmand %vm1314, %vm2178
        %vm2659 = vmand %vm1315, %vm2179
        %vm2660 = vmand %vm1316, %vm2180
        %vm2661 = vmand %vm1317, %vm2181
        %vm2662 = vmand %vm1318, %vm2182
        %vm2663 = vmand %vm1319, %vm2183
        %vm2664 = vmand %vm1320, %vm2184
        %vm2665 = vmand %vm1321, %vm2185
        %vm2666 = vmand %vm1322, %vm2186
        %vm2667 = vmand %vm1323, %vm2187
        %vm2668 = vmand %vm1324, %vm2188
        %vm2669 = vmand %vm1325, %vm2189
        %vm2670 = vmand %vm1326, %vm2190
        %vm2671 = vmand %vm1327, %vm2191
        %vm2672 = vmand %vm1328, %vm2192
        %vm2673 = vmand %vm1425, %vm1681
        %vm2674 = vmand %vm1426, %vm1682
        %vm2675 = vmand %vm1427, %vm1683
        %vm2676 = vmand %vm1428, %vm1684
        %vm2677 = vmand %vm1429, %vm1685
        %vm2678 = vmand %vm1430, %vm1686
        %vm2679 = vmand %vm1431, %vm1687
        %vm2680 = vmand %vm1432, %vm1688
        %vm2681 = vmand %vm1433, %vm1689
        %vm2682 = vmand %vm1434, %vm1690
        %vm2683 = vmand %vm1435, %vm1691
        %vm2684 = vmand %vm1436, %vm1692
        %vm2685 = vmand %vm1437, %vm1693
        %vm2686 = vmand %vm1438, %vm1694
        %vm2687 = vmand %vm1439, %vm1695
        %vm2688 = vmand %vm1440, %vm1696
        %vm2689 = vmand %vm1441, %vm1697
        %vm2690 = vmand %vm1442, %vm1698
        %vm2691 = vmand %vm1443, %vm1699
        %vm2692 = vmand %vm1444, %vm1700
        %vm2693 = vmand %vm1445, %vm1701
        %vm2694 = vmand %vm1446, %vm1702
        %vm2695 = vmand %vm1447, %vm1703
        %vm2696 = vmand %vm1448, %vm1704
        %vm2697 = vmand %vm1449, %vm1705
        %vm2698 = vmand %vm1450, %vm1706
        %vm2699 = vmand %vm1451, %vm1707
        %vm2700 = vmand %vm1452, %vm1708
        %vm2701 = vmand %vm1453, %vm1709
        %vm2702 = vmand %vm1454, %vm1710
        %vm2703 = vmand %vm1455, %vm1711
        %vm2704 = vmand %vm1456, %vm1712
        %vm2705 = vmand %vm1425, %vm1809
        %vm2706 = vmand %vm1426, %vm1810
        %vm2707 = vmand %vm1427, %vm1811
        %vm2708 = vmand %vm1428, %vm1812
        %vm2709 = vmand %vm1429, %vm1813
        %vm2710 = vmand %vm1430, %vm1814
        %vm2711 = vmand %vm1431, %vm1815
        %vm2712 = vmand %vm1432, %vm1816
        %vm2713 = vmand %vm1433, %vm1817
        %vm2714 = vmand %vm1434, %vm1818
        %vm2715 = vmand %vm1435, %vm1819
        %vm2716 = vmand %vm1436, %vm1820
        %vm2717 = vmand %vm1437, %vm1821
        %vm2718 = vmand %vm1438, %vm1822
        %vm2719 = vmand %vm1439, %vm1823
        %vm2720 = vmand %vm1440, %vm1824
        %vm2721 = vmand %vm1441, %vm1825
        %vm2722 = vmand %vm1442, %vm1826
        %vm2723 = vmand %vm1443, %vm1827
        %vm2724 = vmand %vm1444, %vm1828
        %vm2725 = vmand %vm1445, %vm1829
        %vm2726 = vmand %vm1446, %vm1830
        %vm2727 = vmand %vm1447, %vm1831
        %vm2728 = vmand %vm1448, %vm1832
        %vm2729 = vmand %vm1449, %vm1833
        %vm2730 = vmand %vm1450, %vm1834
        %vm2731 = vmand %vm1451, %vm1835
        %vm2732 = vmand %vm1452, %vm1836
        %vm2733 = vmand %vm1453, %vm1837
        %vm2734 = vmand %vm1454, %vm1838
        %vm2735 = vmand %vm1455, %vm1839
        %vm2736 = vmand %vm1456, %vm1840
        %vm2737 = vmand %vm1425, %vm1905
        %vm2738 = vmand %vm1426, %vm1906
        %vm2739 = vmand %vm1427, %vm1907
        %vm2740 = vmand %vm1428, %vm1908
        %vm2741 = vmand %vm1429, %vm1909
        %vm2742 = vmand %vm1430, %vm1910
        %vm2743 = vmand %vm1431, %vm1911
        %vm2744 = vmand %vm1432, %vm1912
        %vm2745 = vmand %vm1433, %vm1913
        %vm2746 = vmand %vm1434, %vm1914
        %vm2747 = vmand %vm1435, %vm1915
        %vm2748 = vmand %vm1436, %vm1916
        %vm2749 = vmand %vm1437, %vm1917
        %vm2750 = vmand %vm1438, %vm1918
        %vm2751 = vmand %vm1439, %vm1919
        %vm2752 = vmand %vm1440, %vm1920
        %vm2753 = vmand %vm1441, %vm1921
        %vm2754 = vmand %vm1442, %vm1922
        %vm2755 = vmand %vm1443, %vm1923
        %vm2756 = vmand %vm1444, %vm1924
        %vm2757 = vmand %vm1445, %vm1925
        %vm2758 = vmand %vm1446, %vm1926
        %vm2759 = vmand %vm1447, %vm1927
        %vm2760 = vmand %vm1448, %vm1928
        %vm2761 = vmand %vm1449, %vm1929
        %vm2762 = vmand %vm1450, %vm1930
        %vm2763 = vmand %vm1451, %vm1931
        %vm2764 = vmand %vm1452, %vm1932
        %vm2765 = vmand %vm1453, %vm1933
        %vm2766 = vmand %vm1454, %vm1934
        %vm2767 = vmand %vm1455, %vm1935
        %vm2768 = vmand %vm1456, %vm1936
        %vm2769 = vmand %vm1425, %vm2033
        %vm2770 = vmand %vm1426, %vm2034
        %vm2771 = vmand %vm1427, %vm2035
        %vm2772 = vmand %vm1428, %vm2036
        %vm2773 = vmand %vm1429, %vm2037
        %vm2774 = vmand %vm1430, %vm2038
        %vm2775 = vmand %vm1431, %vm2039
        %vm2776 = vmand %vm1432, %vm2040
        %vm2777 = vmand %vm1433, %vm2041
        %vm2778 = vmand %vm1434, %vm2042
        %vm2779 = vmand %vm1435, %vm2043
        %vm2780 = vmand %vm1436, %vm2044
        %vm2781 = vmand %vm1437, %vm2045
        %vm2782 = vmand %vm1438, %vm2046
        %vm2783 = vmand %vm1439, %vm2047
        %vm2784 = vmand %vm1440, %vm2048
        %vm2785 = vmand %vm1441, %vm2049
        %vm2786 = vmand %vm1442, %vm2050
        %vm2787 = vmand %vm1443, %vm2051
        %vm2788 = vmand %vm1444, %vm2052
        %vm2789 = vmand %vm1445, %vm2053
        %vm2790 = vmand %vm1446, %vm2054
        %vm2791 = vmand %vm1447, %vm2055
        %vm2792 = vmand %vm1448, %vm2056
        %vm2793 = vmand %vm1449, %vm2057
        %vm2794 = vmand %vm1450, %vm2058
        %vm2795 = vmand %vm1451, %vm2059
        %vm2796 = vmand %vm1452, %vm2060
        %vm2797 = vmand %vm1453, %vm2061
        %vm2798 = vmand %vm1454, %vm2062
        %vm2799 = vmand %vm1455, %vm2063
        %vm2800 = vmand %vm1456, %vm2064
        %vm2801 = vmand %vm1425, %vm2161
        %vm2802 = vmand %vm1426, %vm2162
        %vm2803 = vmand %vm1427, %vm2163
        %vm2804 = vmand %vm1428, %vm2164
        %vm2805 = vmand %vm1429, %vm2165
        %vm2806 = vmand %vm1430, %vm2166
        %vm2807 = vmand %vm1431, %vm2167
        %vm2808 = vmand %vm1432, %vm2168
        %vm2809 = vmand %vm1433, %vm2169
        %vm2810 = vmand %vm1434, %vm2170
        %vm2811 = vmand %vm1435, %vm2171
        %vm2812 = vmand %vm1436, %vm2172
        %vm2813 = vmand %vm1437, %vm2173
        %vm2814 = vmand %vm1438, %vm2174
        %vm2815 = vmand %vm1439, %vm2175
        %vm2816 = vmand %vm1440, %vm2176
        %vm2817 = vmand %vm1441, %vm2177
        %vm2818 = vmand %vm1442, %vm2178
        %vm2819 = vmand %vm1443, %vm2179
        %vm2820 = vmand %vm1444, %vm2180
        %vm2821 = vmand %vm1445, %vm2181
        %vm2822 = vmand %vm1446, %vm2182
        %vm2823 = vmand %vm1447, %vm2183
        %vm2824 = vmand %vm1448, %vm2184
        %vm2825 = vmand %vm1449, %vm2185
        %vm2826 = vmand %vm1450, %vm2186
        %vm2827 = vmand %vm1451, %vm2187
        %vm2828 = vmand %vm1452, %vm2188
        %vm2829 = vmand %vm1453, %vm2189
        %vm2830 = vmand %vm1454, %vm2190
        %vm2831 = vmand %vm1455, %vm2191
        %vm2832 = vmand %vm1456, %vm2192
        %vm2833 = vmand %vm1553, %vm1681
        %vm2834 = vmand %vm1554, %vm1682
        %vm2835 = vmand %vm1555, %vm1683
        %vm2836 = vmand %vm1556, %vm1684
        %vm2837 = vmand %vm1557, %vm1685
        %vm2838 = vmand %vm1558, %vm1686
        %vm2839 = vmand %vm1559, %vm1687
        %vm2840 = vmand %vm1560, %vm1688
        %vm2841 = vmand %vm1561, %vm1689
        %vm2842 = vmand %vm1562, %vm1690
        %vm2843 = vmand %vm1563, %vm1691
        %vm2844 = vmand %vm1564, %vm1692
        %vm2845 = vmand %vm1565, %vm1693
        %vm2846 = vmand %vm1566, %vm1694
        %vm2847 = vmand %vm1567, %vm1695
        %vm2848 = vmand %vm1568, %vm1696
        %vm2849 = vmand %vm1569, %vm1697
        %vm2850 = vmand %vm1570, %vm1698
        %vm2851 = vmand %vm1571, %vm1699
        %vm2852 = vmand %vm1572, %vm1700
        %vm2853 = vmand %vm1573, %vm1701
        %vm2854 = vmand %vm1574, %vm1702
        %vm2855 = vmand %vm1575, %vm1703
        %vm2856 = vmand %vm1576, %vm1704
        %vm2857 = vmand %vm1577, %vm1705
        %vm2858 = vmand %vm1578, %vm1706
        %vm2859 = vmand %vm1579, %vm1707
        %vm2860 = vmand %vm1580, %vm1708
        %vm2861 = vmand %vm1581, %vm1709
        %vm2862 = vmand %vm1582, %vm1710
        %vm2863 = vmand %vm1583, %vm1711
        %vm2864 = vmand %vm1584, %vm1712
        %vm2865 = vmand %vm1553, %vm1809
        %vm2866 = vmand %vm1554, %vm1810
        %vm2867 = vmand %vm1555, %vm1811
        %vm2868 = vmand %vm1556, %vm1812
        %vm2869 = vmand %vm1557, %vm1813
        %vm2870 = vmand %vm1558, %vm1814
        %vm2871 = vmand %vm1559, %vm1815
        %vm2872 = vmand %vm1560, %vm1816
        %vm2873 = vmand %vm1561, %vm1817
        %vm2874 = vmand %vm1562, %vm1818
        %vm2875 = vmand %vm1563, %vm1819
        %vm2876 = vmand %vm1564, %vm1820
        %vm2877 = vmand %vm1565, %vm1821
        %vm2878 = vmand %vm1566, %vm1822
        %vm2879 = vmand %vm1567, %vm1823
        %vm2880 = vmand %vm1568, %vm1824
        %vm2881 = vmand %vm1569, %vm1825
        %vm2882 = vmand %vm1570, %vm1826
        %vm2883 = vmand %vm1571, %vm1827
        %vm2884 = vmand %vm1572, %vm1828
        %vm2885 = vmand %vm1573, %vm1829
        %vm2886 = vmand %vm1574, %vm1830
        %vm2887 = vmand %vm1575, %vm1831
        %vm2888 = vmand %vm1576, %vm1832
        %vm2889 = vmand %vm1577, %vm1833
        %vm2890 = vmand %vm1578, %vm1834
        %vm2891 = vmand %vm1579, %vm1835
        %vm2892 = vmand %vm1580, %vm1836
        %vm2893 = vmand %vm1581, %vm1837
        %vm2894 = vmand %vm1582, %vm1838
        %vm2895 = vmand %vm1583, %vm1839
        %vm2896 = vmand %vm1584, %vm1840
        %vm2897 = vmand %vm1553, %vm1905
        %vm2898 = vmand %vm1554, %vm1906
        %vm2899 = vmand %vm1555, %vm1907
        %vm2900 = vmand %vm1556, %vm1908
        %vm2901 = vmand %vm1557, %vm1909
        %vm2902 = vmand %vm1558, %vm1910
        %vm2903 = vmand %vm1559, %vm1911
        %vm2904 = vmand %vm1560, %vm1912
        %vm2905 = vmand %vm1561, %vm1913
        %vm2906 = vmand %vm1562, %vm1914
        %vm2907 = vmand %vm1563, %vm1915
        %vm2908 = vmand %vm1564, %vm1916
        %vm2909 = vmand %vm1565, %vm1917
        %vm2910 = vmand %vm1566, %vm1918
        %vm2911 = vmand %vm1567, %vm1919
        %vm2912 = vmand %vm1568, %vm1920
        %vm2913 = vmand %vm1569, %vm1921
        %vm2914 = vmand %vm1570, %vm1922
        %vm2915 = vmand %vm1571, %vm1923
        %vm2916 = vmand %vm1572, %vm1924
        %vm2917 = vmand %vm1573, %vm1925
        %vm2918 = vmand %vm1574, %vm1926
        %vm2919 = vmand %vm1575, %vm1927
        %vm2920 = vmand %vm1576, %vm1928
        %vm2921 = vmand %vm1577, %vm1929
        %vm2922 = vmand %vm1578, %vm1930
        %vm2923 = vmand %vm1579, %vm1931
        %vm2924 = vmand %vm1580, %vm1932
        %vm2925 = vmand %vm1581, %vm1933
        %vm2926 = vmand %vm1582, %vm1934
        %vm2927 = vmand %vm1583, %vm1935
        %vm2928 = vmand %vm1584, %vm1936
        %vm2929 = vmand %vm1553, %vm2033
        %vm2930 = vmand %vm1554, %vm2034
        %vm2931 = vmand %vm1555, %vm2035
        %vm2932 = vmand %vm1556, %vm2036
        %vm2933 = vmand %vm1557, %vm2037
        %vm2934 = vmand %vm1558, %vm2038
        %vm2935 = vmand %vm1559, %vm2039
        %vm2936 = vmand %vm1560, %vm2040
        %vm2937 = vmand %vm1561, %vm2041
        %vm2938 = vmand %vm1562, %vm2042
        %vm2939 = vmand %vm1563, %vm2043
        %vm2940 = vmand %vm1564, %vm2044
        %vm2941 = vmand %vm1565, %vm2045
        %vm2942 = vmand %vm1566, %vm2046
        %vm2943 = vmand %vm1567, %vm2047
        %vm2944 = vmand %vm1568, %vm2048
        %vm2945 = vmand %vm1569, %vm2049
        %vm2946 = vmand %vm1570, %vm2050
        %vm2947 = vmand %vm1571, %vm2051
        %vm2948 = vmand %vm1572, %vm2052
        %vm2949 = vmand %vm1573, %vm2053
        %vm2950 = vmand %vm1574, %vm2054
        %vm2951 = vmand %vm1575, %vm2055
        %vm2952 = vmand %vm1576, %vm2056
        %vm2953 = vmand %vm1577, %vm2057
        %vm2954 = vmand %vm1578, %vm2058
        %vm2955 = vmand %vm1579, %vm2059
        %vm2956 = vmand %vm1580, %vm2060
        %vm2957 = vmand %vm1581, %vm2061
        %vm2958 = vmand %vm1582, %vm2062
        %vm2959 = vmand %vm1583, %vm2063
        %vm2960 = vmand %vm1584, %vm2064
        %vm2961 = vmand %vm1553, %vm2161
        %vm2962 = vmand %vm1554, %vm2162
        %vm2963 = vmand %vm1555, %vm2163
        %vm2964 = vmand %vm1556, %vm2164
        %vm2965 = vmand %vm1557, %vm2165
        %vm2966 = vmand %vm1558, %vm2166
        %vm2967 = vmand %vm1559, %vm2167
        %vm2968 = vmand %vm1560, %vm2168
        %vm2969 = vmand %vm1561, %vm2169
        %vm2970 = vmand %vm1562, %vm2170
        %vm2971 = vmand %vm1563, %vm2171
        %vm2972 = vmand %vm1564, %vm2172
        %vm2973 = vmand %vm1565, %vm2173
        %vm2974 = vmand %vm1566, %vm2174
        %vm2975 = vmand %vm1567, %vm2175
        %vm2976 = vmand %vm1568, %vm2176
        %vm2977 = vmand %vm1569, %vm2177
        %vm2978 = vmand %vm1570, %vm2178
        %vm2979 = vmand %vm1571, %vm2179
        %vm2980 = vmand %vm1572, %vm2180
        %vm2981 = vmand %vm1573, %vm2181
        %vm2982 = vmand %vm1574, %vm2182
        %vm2983 = vmand %vm1575, %vm2183
        %vm2984 = vmand %vm1576, %vm2184
        %vm2985 = vmand %vm1577, %vm2185
        %vm2986 = vmand %vm1578, %vm2186
        %vm2987 = vmand %vm1579, %vm2187
        %vm2988 = vmand %vm1580, %vm2188
        %vm2989 = vmand %vm1581, %vm2189
        %vm2990 = vmand %vm1582, %vm2190
        %vm2991 = vmand %vm1583, %vm2191
        %vm2992 = vmand %vm1584, %vm2192
        %vm2993 = vcmp.ge.s32.totalorder %v520, 0
        %vm2994 = vcmp.lt.s32.totalorder %v520, 4
        %vm2995 = vmand %vm2993, %vm2994
        %v2996 = vsel %vm2385, 1, 0
        %v2997 = vsel %vm2386, 1, 0
        %v2998 = vsel %vm2387, 1, 0
        %v2999 = vsel %vm2388, 1, 0
        %v3000 = vsel %vm2389, 1, 0
        %v3001 = vsel %vm2390, 1, 0
        %v3002 = vsel %vm2391, 1, 0
        %v3003 = vsel %vm2392, 1, 0
        %v3004 = vsel %vm2393, 1, 0
        %v3005 = vsel %vm2394, 1, 0
        %v3006 = vsel %vm2395, 1, 0
        %v3007 = vsel %vm2396, 1, 0
        %v3008 = vsel %vm2397, 1, 0
        %v3009 = vsel %vm2398, 1, 0
        %v3010 = vsel %vm2399, 1, 0
        %v3011 = vsel %vm2400, 1, 0
        %v3012 = vsel %vm2401, 1, 0
        %v3013 = vsel %vm2402, 1, 0
        %v3014 = vsel %vm2403, 1, 0
        %v3015 = vsel %vm2404, 1, 0
        %v3016 = vsel %vm2405, 1, 0
        %v3017 = vsel %vm2406, 1, 0
        %v3018 = vsel %vm2407, 1, 0
        %v3019 = vsel %vm2408, 1, 0
        %v3020 = vsel %vm2409, 1, 0
        %v3021 = vsel %vm2410, 1, 0
        %v3022 = vsel %vm2411, 1, 0
        %v3023 = vsel %vm2412, 1, 0
        %v3024 = vsel %vm2413, 1, 0
        %v3025 = vsel %vm2414, 1, 0
        %v3026 = vsel %vm2415, 1, 0
        %v3027 = vsel %vm2416, 1, 0
        %vm3028 = vcmp.eq.s32.totalorder %v2996, 1
        %vm3029 = vcmp.eq.s32.totalorder %v2997, 1
        %vm3030 = vcmp.eq.s32.totalorder %v2998, 1
        %vm3031 = vcmp.eq.s32.totalorder %v2999, 1
        %vm3032 = vcmp.eq.s32.totalorder %v3000, 1
        %vm3033 = vcmp.eq.s32.totalorder %v3001, 1
        %vm3034 = vcmp.eq.s32.totalorder %v3002, 1
        %vm3035 = vcmp.eq.s32.totalorder %v3003, 1
        %vm3036 = vcmp.eq.s32.totalorder %v3004, 1
        %vm3037 = vcmp.eq.s32.totalorder %v3005, 1
        %vm3038 = vcmp.eq.s32.totalorder %v3006, 1
        %vm3039 = vcmp.eq.s32.totalorder %v3007, 1
        %vm3040 = vcmp.eq.s32.totalorder %v3008, 1
        %vm3041 = vcmp.eq.s32.totalorder %v3009, 1
        %vm3042 = vcmp.eq.s32.totalorder %v3010, 1
        %vm3043 = vcmp.eq.s32.totalorder %v3011, 1
        %vm3044 = vcmp.eq.s32.totalorder %v3012, 1
        %vm3045 = vcmp.eq.s32.totalorder %v3013, 1
        %vm3046 = vcmp.eq.s32.totalorder %v3014, 1
        %vm3047 = vcmp.eq.s32.totalorder %v3015, 1
        %vm3048 = vcmp.eq.s32.totalorder %v3016, 1
        %vm3049 = vcmp.eq.s32.totalorder %v3017, 1
        %vm3050 = vcmp.eq.s32.totalorder %v3018, 1
        %vm3051 = vcmp.eq.s32.totalorder %v3019, 1
        %vm3052 = vcmp.eq.s32.totalorder %v3020, 1
        %vm3053 = vcmp.eq.s32.totalorder %v3021, 1
        %vm3054 = vcmp.eq.s32.totalorder %v3022, 1
        %vm3055 = vcmp.eq.s32.totalorder %v3023, 1
        %vm3056 = vcmp.eq.s32.totalorder %v3024, 1
        %vm3057 = vcmp.eq.s32.totalorder %v3025, 1
        %vm3058 = vcmp.eq.s32.totalorder %v3026, 1
        %vm3059 = vcmp.eq.s32.totalorder %v3027, 1
        %v3060 = vsel %vm2995, 1, 0
        %vm3061 = vcmp.eq.s32.totalorder %v3060, 1
        %vm3062 = vmand %vm3028, %vm3061
        %vm3063 = vmand %vm3029, %vm3061
        %vm3064 = vmand %vm3030, %vm3061
        %vm3065 = vmand %vm3031, %vm3061
        %vm3066 = vmand %vm3032, %vm3061
        %vm3067 = vmand %vm3033, %vm3061
        %vm3068 = vmand %vm3034, %vm3061
        %vm3069 = vmand %vm3035, %vm3061
        %vm3070 = vmand %vm3036, %vm3061
        %vm3071 = vmand %vm3037, %vm3061
        %vm3072 = vmand %vm3038, %vm3061
        %vm3073 = vmand %vm3039, %vm3061
        %vm3074 = vmand %vm3040, %vm3061
        %vm3075 = vmand %vm3041, %vm3061
        %vm3076 = vmand %vm3042, %vm3061
        %vm3077 = vmand %vm3043, %vm3061
        %vm3078 = vmand %vm3044, %vm3061
        %vm3079 = vmand %vm3045, %vm3061
        %vm3080 = vmand %vm3046, %vm3061
        %vm3081 = vmand %vm3047, %vm3061
        %vm3082 = vmand %vm3048, %vm3061
        %vm3083 = vmand %vm3049, %vm3061
        %vm3084 = vmand %vm3050, %vm3061
        %vm3085 = vmand %vm3051, %vm3061
        %vm3086 = vmand %vm3052, %vm3061
        %vm3087 = vmand %vm3053, %vm3061
        %vm3088 = vmand %vm3054, %vm3061
        %vm3089 = vmand %vm3055, %vm3061
        %vm3090 = vmand %vm3056, %vm3061
        %vm3091 = vmand %vm3057, %vm3061
        %vm3092 = vmand %vm3058, %vm3061
        %vm3093 = vmand %vm3059, %vm3061
        %v3094 = vrot.slane %v913, 7
        %v3095 = vrot.slane %v915, 7
        %v3096 = vrot.slane %v917, 7
        %v3097 = vrot.slane %v919, 7
        %v3098 = vrot.slane %v921, 7
        %v3099 = vrot.slane %v923, 7
        %v3100 = vrot.slane %v925, 7
        %v3101 = vrot.slane %v927, 7
        %v3102 = vrot.slane %v929, 7
        %v3103 = vrot.slane %v931, 7
        %v3104 = vrot.slane %v933, 7
        %v3105 = vrot.slane %v935, 7
        %v3106 = vrot.slane %v937, 7
        %v3107 = vrot.slane %v939, 7
        %v3108 = vrot.slane %v941, 7
        %v3109 = vrot.slane %v943, 7
        %v3110 = vrot.slane %v945, 7
        %v3111 = vrot.slane %v947, 7
        %v3112 = vrot.slane %v949, 7
        %v3113 = vrot.slane %v951, 7
        %v3114 = vrot.slane %v953, 7
        %v3115 = vrot.slane %v955, 7
        %v3116 = vrot.slane %v957, 7
        %v3117 = vrot.slane %v959, 7
        %v3118 = vrot.slane %v961, 7
        %v3119 = vrot.slane %v963, 7
        %v3120 = vrot.slane %v965, 7
        %v3121 = vrot.slane %v967, 7
        %v3122 = vrot.slane %v969, 7
        %v3123 = vrot.slane %v971, 7
        %v3124 = vrot.slane %v973, 7
        %v3125 = vrot.slane %v975, 7
        %vm3126 = vcmp.lt.s32.totalorder %v391, 1
        %v3127 = vsel %vm3126, %v3124, %v3125
        %v3128 = vsel %vm3126, %v3123, %v3124
        %v3129 = vsel %vm3126, %v3122, %v3123
        %v3130 = vsel %vm3126, %v3121, %v3122
        %v3131 = vsel %vm3126, %v3120, %v3121
        %v3132 = vsel %vm3126, %v3119, %v3120
        %v3133 = vsel %vm3126, %v3118, %v3119
        %v3134 = vsel %vm3126, %v3117, %v3118
        %v3135 = vsel %vm3126, %v3116, %v3117
        %v3136 = vsel %vm3126, %v3115, %v3116
        %v3137 = vsel %vm3126, %v3114, %v3115
        %v3138 = vsel %vm3126, %v3113, %v3114
        %v3139 = vsel %vm3126, %v3112, %v3113
        %v3140 = vsel %vm3126, %v3111, %v3112
        %v3141 = vsel %vm3126, %v3110, %v3111
        %v3142 = vsel %vm3126, %v3109, %v3110
        %v3143 = vsel %vm3126, %v3108, %v3109
        %v3144 = vsel %vm3126, %v3107, %v3108
        %v3145 = vsel %vm3126, %v3106, %v3107
        %v3146 = vsel %vm3126, %v3105, %v3106
        %v3147 = vsel %vm3126, %v3104, %v3105
        %v3148 = vsel %vm3126, %v3103, %v3104
        %v3149 = vsel %vm3126, %v3102, %v3103
        %v3150 = vsel %vm3126, %v3101, %v3102
        %v3151 = vsel %vm3126, %v3100, %v3101
        %v3152 = vsel %vm3126, %v3099, %v3100
        %v3153 = vsel %vm3126, %v3098, %v3099
        %v3154 = vsel %vm3126, %v3097, %v3098
        %v3155 = vsel %vm3126, %v3096, %v3097
        %v3156 = vsel %vm3126, %v3095, %v3096
        %v3157 = vsel %vm3126, %v3094, %v3095
        %v3158 = vsel %vm3126, %v3125, %v3094
        %v3159 = vsel %vm3062, %v3128, 0.0
        %v3160 = vsel %vm3063, %v3127, 0.0
        %v3161 = vsel %vm3064, %v3158, 0.0
        %v3162 = vsel %vm3065, %v3157, 0.0
        %v3163 = vsel %vm3066, %v3156, 0.0
        %v3164 = vsel %vm3067, %v3155, 0.0
        %v3165 = vsel %vm3068, %v3154, 0.0
        %v3166 = vsel %vm3069, %v3153, 0.0
        %v3167 = vsel %vm3070, %v3152, 0.0
        %v3168 = vsel %vm3071, %v3151, 0.0
        %v3169 = vsel %vm3072, %v3150, 0.0
        %v3170 = vsel %vm3073, %v3149, 0.0
        %v3171 = vsel %vm3074, %v3148, 0.0
        %v3172 = vsel %vm3075, %v3147, 0.0
        %v3173 = vsel %vm3076, %v3146, 0.0
        %v3174 = vsel %vm3077, %v3145, 0.0
        %v3175 = vsel %vm3078, %v3144, 0.0
        %v3176 = vsel %vm3079, %v3143, 0.0
        %v3177 = vsel %vm3080, %v3142, 0.0
        %v3178 = vsel %vm3081, %v3141, 0.0
        %v3179 = vsel %vm3082, %v3140, 0.0
        %v3180 = vsel %vm3083, %v3139, 0.0
        %v3181 = vsel %vm3084, %v3138, 0.0
        %v3182 = vsel %vm3085, %v3137, 0.0
        %v3183 = vsel %vm3086, %v3136, 0.0
        %v3184 = vsel %vm3087, %v3135, 0.0
        %v3185 = vsel %vm3088, %v3134, 0.0
        %v3186 = vsel %vm3089, %v3133, 0.0
        %v3187 = vsel %vm3090, %v3132, 0.0
        %v3188 = vsel %vm3091, %v3131, 0.0
        %v3189 = vsel %vm3092, %v3130, 0.0
        %v3190 = vsel %vm3093, %v3129, 0.0
        %vm3191 = vcmp.ge.s32.totalorder %v520, 4
        %vm3192 = vcmp.lt.s32.totalorder %v520, 8
        %vm3193 = vmand %vm3191, %vm3192
        %v3194 = vsel %vm2417, 1, 0
        %v3195 = vsel %vm2418, 1, 0
        %v3196 = vsel %vm2419, 1, 0
        %v3197 = vsel %vm2420, 1, 0
        %v3198 = vsel %vm2421, 1, 0
        %v3199 = vsel %vm2422, 1, 0
        %v3200 = vsel %vm2423, 1, 0
        %v3201 = vsel %vm2424, 1, 0
        %v3202 = vsel %vm2425, 1, 0
        %v3203 = vsel %vm2426, 1, 0
        %v3204 = vsel %vm2427, 1, 0
        %v3205 = vsel %vm2428, 1, 0
        %v3206 = vsel %vm2429, 1, 0
        %v3207 = vsel %vm2430, 1, 0
        %v3208 = vsel %vm2431, 1, 0
        %v3209 = vsel %vm2432, 1, 0
        %v3210 = vsel %vm2433, 1, 0
        %v3211 = vsel %vm2434, 1, 0
        %v3212 = vsel %vm2435, 1, 0
        %v3213 = vsel %vm2436, 1, 0
        %v3214 = vsel %vm2437, 1, 0
        %v3215 = vsel %vm2438, 1, 0
        %v3216 = vsel %vm2439, 1, 0
        %v3217 = vsel %vm2440, 1, 0
        %v3218 = vsel %vm2441, 1, 0
        %v3219 = vsel %vm2442, 1, 0
        %v3220 = vsel %vm2443, 1, 0
        %v3221 = vsel %vm2444, 1, 0
        %v3222 = vsel %vm2445, 1, 0
        %v3223 = vsel %vm2446, 1, 0
        %v3224 = vsel %vm2447, 1, 0
        %v3225 = vsel %vm2448, 1, 0
        %vm3226 = vcmp.eq.s32.totalorder %v3194, 1
        %vm3227 = vcmp.eq.s32.totalorder %v3195, 1
        %vm3228 = vcmp.eq.s32.totalorder %v3196, 1
        %vm3229 = vcmp.eq.s32.totalorder %v3197, 1
        %vm3230 = vcmp.eq.s32.totalorder %v3198, 1
        %vm3231 = vcmp.eq.s32.totalorder %v3199, 1
        %vm3232 = vcmp.eq.s32.totalorder %v3200, 1
        %vm3233 = vcmp.eq.s32.totalorder %v3201, 1
        %vm3234 = vcmp.eq.s32.totalorder %v3202, 1
        %vm3235 = vcmp.eq.s32.totalorder %v3203, 1
        %vm3236 = vcmp.eq.s32.totalorder %v3204, 1
        %vm3237 = vcmp.eq.s32.totalorder %v3205, 1
        %vm3238 = vcmp.eq.s32.totalorder %v3206, 1
        %vm3239 = vcmp.eq.s32.totalorder %v3207, 1
        %vm3240 = vcmp.eq.s32.totalorder %v3208, 1
        %vm3241 = vcmp.eq.s32.totalorder %v3209, 1
        %vm3242 = vcmp.eq.s32.totalorder %v3210, 1
        %vm3243 = vcmp.eq.s32.totalorder %v3211, 1
        %vm3244 = vcmp.eq.s32.totalorder %v3212, 1
        %vm3245 = vcmp.eq.s32.totalorder %v3213, 1
        %vm3246 = vcmp.eq.s32.totalorder %v3214, 1
        %vm3247 = vcmp.eq.s32.totalorder %v3215, 1
        %vm3248 = vcmp.eq.s32.totalorder %v3216, 1
        %vm3249 = vcmp.eq.s32.totalorder %v3217, 1
        %vm3250 = vcmp.eq.s32.totalorder %v3218, 1
        %vm3251 = vcmp.eq.s32.totalorder %v3219, 1
        %vm3252 = vcmp.eq.s32.totalorder %v3220, 1
        %vm3253 = vcmp.eq.s32.totalorder %v3221, 1
        %vm3254 = vcmp.eq.s32.totalorder %v3222, 1
        %vm3255 = vcmp.eq.s32.totalorder %v3223, 1
        %vm3256 = vcmp.eq.s32.totalorder %v3224, 1
        %vm3257 = vcmp.eq.s32.totalorder %v3225, 1
        %v3258 = vsel %vm3193, 1, 0
        %vm3259 = vcmp.eq.s32.totalorder %v3258, 1
        %vm3260 = vmand %vm3226, %vm3259
        %vm3261 = vmand %vm3227, %vm3259
        %vm3262 = vmand %vm3228, %vm3259
        %vm3263 = vmand %vm3229, %vm3259
        %vm3264 = vmand %vm3230, %vm3259
        %vm3265 = vmand %vm3231, %vm3259
        %vm3266 = vmand %vm3232, %vm3259
        %vm3267 = vmand %vm3233, %vm3259
        %vm3268 = vmand %vm3234, %vm3259
        %vm3269 = vmand %vm3235, %vm3259
        %vm3270 = vmand %vm3236, %vm3259
        %vm3271 = vmand %vm3237, %vm3259
        %vm3272 = vmand %vm3238, %vm3259
        %vm3273 = vmand %vm3239, %vm3259
        %vm3274 = vmand %vm3240, %vm3259
        %vm3275 = vmand %vm3241, %vm3259
        %vm3276 = vmand %vm3242, %vm3259
        %vm3277 = vmand %vm3243, %vm3259
        %vm3278 = vmand %vm3244, %vm3259
        %vm3279 = vmand %vm3245, %vm3259
        %vm3280 = vmand %vm3246, %vm3259
        %vm3281 = vmand %vm3247, %vm3259
        %vm3282 = vmand %vm3248, %vm3259
        %vm3283 = vmand %vm3249, %vm3259
        %vm3284 = vmand %vm3250, %vm3259
        %vm3285 = vmand %vm3251, %vm3259
        %vm3286 = vmand %vm3252, %vm3259
        %vm3287 = vmand %vm3253, %vm3259
        %vm3288 = vmand %vm3254, %vm3259
        %vm3289 = vmand %vm3255, %vm3259
        %vm3290 = vmand %vm3256, %vm3259
        %vm3291 = vmand %vm3257, %vm3259
        %v3292 = vsel %vm3260, %v973, %v3159
        %v3293 = vsel %vm3261, %v975, %v3160
        %v3294 = vsel %vm3262, %v913, %v3161
        %v3295 = vsel %vm3263, %v915, %v3162
        %v3296 = vsel %vm3264, %v917, %v3163
        %v3297 = vsel %vm3265, %v919, %v3164
        %v3298 = vsel %vm3266, %v921, %v3165
        %v3299 = vsel %vm3267, %v923, %v3166
        %v3300 = vsel %vm3268, %v925, %v3167
        %v3301 = vsel %vm3269, %v927, %v3168
        %v3302 = vsel %vm3270, %v929, %v3169
        %v3303 = vsel %vm3271, %v931, %v3170
        %v3304 = vsel %vm3272, %v933, %v3171
        %v3305 = vsel %vm3273, %v935, %v3172
        %v3306 = vsel %vm3274, %v937, %v3173
        %v3307 = vsel %vm3275, %v939, %v3174
        %v3308 = vsel %vm3276, %v941, %v3175
        %v3309 = vsel %vm3277, %v943, %v3176
        %v3310 = vsel %vm3278, %v945, %v3177
        %v3311 = vsel %vm3279, %v947, %v3178
        %v3312 = vsel %vm3280, %v949, %v3179
        %v3313 = vsel %vm3281, %v951, %v3180
        %v3314 = vsel %vm3282, %v953, %v3181
        %v3315 = vsel %vm3283, %v955, %v3182
        %v3316 = vsel %vm3284, %v957, %v3183
        %v3317 = vsel %vm3285, %v959, %v3184
        %v3318 = vsel %vm3286, %v961, %v3185
        %v3319 = vsel %vm3287, %v963, %v3186
        %v3320 = vsel %vm3288, %v965, %v3187
        %v3321 = vsel %vm3289, %v967, %v3188
        %v3322 = vsel %vm3290, %v969, %v3189
        %v3323 = vsel %vm3291, %v971, %v3190
        %vm3324 = vcmp.ge.s32.totalorder %v520, 8
        %vm3325 = vcmp.lt.s32.totalorder %v520, 12
        %vm3326 = vmand %vm3324, %vm3325
        %v3327 = vsel %vm2449, 1, 0
        %v3328 = vsel %vm2450, 1, 0
        %v3329 = vsel %vm2451, 1, 0
        %v3330 = vsel %vm2452, 1, 0
        %v3331 = vsel %vm2453, 1, 0
        %v3332 = vsel %vm2454, 1, 0
        %v3333 = vsel %vm2455, 1, 0
        %v3334 = vsel %vm2456, 1, 0
        %v3335 = vsel %vm2457, 1, 0
        %v3336 = vsel %vm2458, 1, 0
        %v3337 = vsel %vm2459, 1, 0
        %v3338 = vsel %vm2460, 1, 0
        %v3339 = vsel %vm2461, 1, 0
        %v3340 = vsel %vm2462, 1, 0
        %v3341 = vsel %vm2463, 1, 0
        %v3342 = vsel %vm2464, 1, 0
        %v3343 = vsel %vm2465, 1, 0
        %v3344 = vsel %vm2466, 1, 0
        %v3345 = vsel %vm2467, 1, 0
        %v3346 = vsel %vm2468, 1, 0
        %v3347 = vsel %vm2469, 1, 0
        %v3348 = vsel %vm2470, 1, 0
        %v3349 = vsel %vm2471, 1, 0
        %v3350 = vsel %vm2472, 1, 0
        %v3351 = vsel %vm2473, 1, 0
        %v3352 = vsel %vm2474, 1, 0
        %v3353 = vsel %vm2475, 1, 0
        %v3354 = vsel %vm2476, 1, 0
        %v3355 = vsel %vm2477, 1, 0
        %v3356 = vsel %vm2478, 1, 0
        %v3357 = vsel %vm2479, 1, 0
        %v3358 = vsel %vm2480, 1, 0
        %vm3359 = vcmp.eq.s32.totalorder %v3327, 1
        %vm3360 = vcmp.eq.s32.totalorder %v3328, 1
        %vm3361 = vcmp.eq.s32.totalorder %v3329, 1
        %vm3362 = vcmp.eq.s32.totalorder %v3330, 1
        %vm3363 = vcmp.eq.s32.totalorder %v3331, 1
        %vm3364 = vcmp.eq.s32.totalorder %v3332, 1
        %vm3365 = vcmp.eq.s32.totalorder %v3333, 1
        %vm3366 = vcmp.eq.s32.totalorder %v3334, 1
        %vm3367 = vcmp.eq.s32.totalorder %v3335, 1
        %vm3368 = vcmp.eq.s32.totalorder %v3336, 1
        %vm3369 = vcmp.eq.s32.totalorder %v3337, 1
        %vm3370 = vcmp.eq.s32.totalorder %v3338, 1
        %vm3371 = vcmp.eq.s32.totalorder %v3339, 1
        %vm3372 = vcmp.eq.s32.totalorder %v3340, 1
        %vm3373 = vcmp.eq.s32.totalorder %v3341, 1
        %vm3374 = vcmp.eq.s32.totalorder %v3342, 1
        %vm3375 = vcmp.eq.s32.totalorder %v3343, 1
        %vm3376 = vcmp.eq.s32.totalorder %v3344, 1
        %vm3377 = vcmp.eq.s32.totalorder %v3345, 1
        %vm3378 = vcmp.eq.s32.totalorder %v3346, 1
        %vm3379 = vcmp.eq.s32.totalorder %v3347, 1
        %vm3380 = vcmp.eq.s32.totalorder %v3348, 1
        %vm3381 = vcmp.eq.s32.totalorder %v3349, 1
        %vm3382 = vcmp.eq.s32.totalorder %v3350, 1
        %vm3383 = vcmp.eq.s32.totalorder %v3351, 1
        %vm3384 = vcmp.eq.s32.totalorder %v3352, 1
        %vm3385 = vcmp.eq.s32.totalorder %v3353, 1
        %vm3386 = vcmp.eq.s32.totalorder %v3354, 1
        %vm3387 = vcmp.eq.s32.totalorder %v3355, 1
        %vm3388 = vcmp.eq.s32.totalorder %v3356, 1
        %vm3389 = vcmp.eq.s32.totalorder %v3357, 1
        %vm3390 = vcmp.eq.s32.totalorder %v3358, 1
        %v3391 = vsel %vm3326, 1, 0
        %vm3392 = vcmp.eq.s32.totalorder %v3391, 1
        %vm3393 = vmand %vm3359, %vm3392
        %vm3394 = vmand %vm3360, %vm3392
        %vm3395 = vmand %vm3361, %vm3392
        %vm3396 = vmand %vm3362, %vm3392
        %vm3397 = vmand %vm3363, %vm3392
        %vm3398 = vmand %vm3364, %vm3392
        %vm3399 = vmand %vm3365, %vm3392
        %vm3400 = vmand %vm3366, %vm3392
        %vm3401 = vmand %vm3367, %vm3392
        %vm3402 = vmand %vm3368, %vm3392
        %vm3403 = vmand %vm3369, %vm3392
        %vm3404 = vmand %vm3370, %vm3392
        %vm3405 = vmand %vm3371, %vm3392
        %vm3406 = vmand %vm3372, %vm3392
        %vm3407 = vmand %vm3373, %vm3392
        %vm3408 = vmand %vm3374, %vm3392
        %vm3409 = vmand %vm3375, %vm3392
        %vm3410 = vmand %vm3376, %vm3392
        %vm3411 = vmand %vm3377, %vm3392
        %vm3412 = vmand %vm3378, %vm3392
        %vm3413 = vmand %vm3379, %vm3392
        %vm3414 = vmand %vm3380, %vm3392
        %vm3415 = vmand %vm3381, %vm3392
        %vm3416 = vmand %vm3382, %vm3392
        %vm3417 = vmand %vm3383, %vm3392
        %vm3418 = vmand %vm3384, %vm3392
        %vm3419 = vmand %vm3385, %vm3392
        %vm3420 = vmand %vm3386, %vm3392
        %vm3421 = vmand %vm3387, %vm3392
        %vm3422 = vmand %vm3388, %vm3392
        %vm3423 = vmand %vm3389, %vm3392
        %vm3424 = vmand %vm3390, %vm3392
        %v3425 = vrot.slane %v913, 1
        %v3426 = vrot.slane %v915, 1
        %v3427 = vrot.slane %v917, 1
        %v3428 = vrot.slane %v919, 1
        %v3429 = vrot.slane %v921, 1
        %v3430 = vrot.slane %v923, 1
        %v3431 = vrot.slane %v925, 1
        %v3432 = vrot.slane %v927, 1
        %v3433 = vrot.slane %v929, 1
        %v3434 = vrot.slane %v931, 1
        %v3435 = vrot.slane %v933, 1
        %v3436 = vrot.slane %v935, 1
        %v3437 = vrot.slane %v937, 1
        %v3438 = vrot.slane %v939, 1
        %v3439 = vrot.slane %v941, 1
        %v3440 = vrot.slane %v943, 1
        %v3441 = vrot.slane %v945, 1
        %v3442 = vrot.slane %v947, 1
        %v3443 = vrot.slane %v949, 1
        %v3444 = vrot.slane %v951, 1
        %v3445 = vrot.slane %v953, 1
        %v3446 = vrot.slane %v955, 1
        %v3447 = vrot.slane %v957, 1
        %v3448 = vrot.slane %v959, 1
        %v3449 = vrot.slane %v961, 1
        %v3450 = vrot.slane %v963, 1
        %v3451 = vrot.slane %v965, 1
        %v3452 = vrot.slane %v967, 1
        %v3453 = vrot.slane %v969, 1
        %v3454 = vrot.slane %v971, 1
        %v3455 = vrot.slane %v973, 1
        %v3456 = vrot.slane %v975, 1
        %vm3457 = vcmp.lt.s32.totalorder %v391, 7
        %v3458 = vsel %vm3457, %v3455, %v3456
        %v3459 = vsel %vm3457, %v3454, %v3455
        %v3460 = vsel %vm3457, %v3453, %v3454
        %v3461 = vsel %vm3457, %v3452, %v3453
        %v3462 = vsel %vm3457, %v3451, %v3452
        %v3463 = vsel %vm3457, %v3450, %v3451
        %v3464 = vsel %vm3457, %v3449, %v3450
        %v3465 = vsel %vm3457, %v3448, %v3449
        %v3466 = vsel %vm3457, %v3447, %v3448
        %v3467 = vsel %vm3457, %v3446, %v3447
        %v3468 = vsel %vm3457, %v3445, %v3446
        %v3469 = vsel %vm3457, %v3444, %v3445
        %v3470 = vsel %vm3457, %v3443, %v3444
        %v3471 = vsel %vm3457, %v3442, %v3443
        %v3472 = vsel %vm3457, %v3441, %v3442
        %v3473 = vsel %vm3457, %v3440, %v3441
        %v3474 = vsel %vm3457, %v3439, %v3440
        %v3475 = vsel %vm3457, %v3438, %v3439
        %v3476 = vsel %vm3457, %v3437, %v3438
        %v3477 = vsel %vm3457, %v3436, %v3437
        %v3478 = vsel %vm3457, %v3435, %v3436
        %v3479 = vsel %vm3457, %v3434, %v3435
        %v3480 = vsel %vm3457, %v3433, %v3434
        %v3481 = vsel %vm3457, %v3432, %v3433
        %v3482 = vsel %vm3457, %v3431, %v3432
        %v3483 = vsel %vm3457, %v3430, %v3431
        %v3484 = vsel %vm3457, %v3429, %v3430
        %v3485 = vsel %vm3457, %v3428, %v3429
        %v3486 = vsel %vm3457, %v3427, %v3428
        %v3487 = vsel %vm3457, %v3426, %v3427
        %v3488 = vsel %vm3457, %v3425, %v3426
        %v3489 = vsel %vm3457, %v3456, %v3425
        %v3490 = vsel %vm3393, %v3458, %v3292
        %v3491 = vsel %vm3394, %v3489, %v3293
        %v3492 = vsel %vm3395, %v3488, %v3294
        %v3493 = vsel %vm3396, %v3487, %v3295
        %v3494 = vsel %vm3397, %v3486, %v3296
        %v3495 = vsel %vm3398, %v3485, %v3297
        %v3496 = vsel %vm3399, %v3484, %v3298
        %v3497 = vsel %vm3400, %v3483, %v3299
        %v3498 = vsel %vm3401, %v3482, %v3300
        %v3499 = vsel %vm3402, %v3481, %v3301
        %v3500 = vsel %vm3403, %v3480, %v3302
        %v3501 = vsel %vm3404, %v3479, %v3303
        %v3502 = vsel %vm3405, %v3478, %v3304
        %v3503 = vsel %vm3406, %v3477, %v3305
        %v3504 = vsel %vm3407, %v3476, %v3306
        %v3505 = vsel %vm3408, %v3475, %v3307
        %v3506 = vsel %vm3409, %v3474, %v3308
        %v3507 = vsel %vm3410, %v3473, %v3309
        %v3508 = vsel %vm3411, %v3472, %v3310
        %v3509 = vsel %vm3412, %v3471, %v3311
        %v3510 = vsel %vm3413, %v3470, %v3312
        %v3511 = vsel %vm3414, %v3469, %v3313
        %v3512 = vsel %vm3415, %v3468, %v3314
        %v3513 = vsel %vm3416, %v3467, %v3315
        %v3514 = vsel %vm3417, %v3466, %v3316
        %v3515 = vsel %vm3418, %v3465, %v3317
        %v3516 = vsel %vm3419, %v3464, %v3318
        %v3517 = vsel %vm3420, %v3463, %v3319
        %v3518 = vsel %vm3421, %v3462, %v3320
        %v3519 = vsel %vm3422, %v3461, %v3321
        %v3520 = vsel %vm3423, %v3460, %v3322
        %v3521 = vsel %vm3424, %v3459, %v3323
        %vm3522 = vcmp.ge.s32.totalorder %v520, 12
        %vm3523 = vcmp.lt.s32.totalorder %v520, 16
        %vm3524 = vmand %vm3522, %vm3523
        %v3525 = vsel %vm2545, 1, 0
        %v3526 = vsel %vm2546, 1, 0
        %v3527 = vsel %vm2547, 1, 0
        %v3528 = vsel %vm2548, 1, 0
        %v3529 = vsel %vm2549, 1, 0
        %v3530 = vsel %vm2550, 1, 0
        %v3531 = vsel %vm2551, 1, 0
        %v3532 = vsel %vm2552, 1, 0
        %v3533 = vsel %vm2553, 1, 0
        %v3534 = vsel %vm2554, 1, 0
        %v3535 = vsel %vm2555, 1, 0
        %v3536 = vsel %vm2556, 1, 0
        %v3537 = vsel %vm2557, 1, 0
        %v3538 = vsel %vm2558, 1, 0
        %v3539 = vsel %vm2559, 1, 0
        %v3540 = vsel %vm2560, 1, 0
        %v3541 = vsel %vm2561, 1, 0
        %v3542 = vsel %vm2562, 1, 0
        %v3543 = vsel %vm2563, 1, 0
        %v3544 = vsel %vm2564, 1, 0
        %v3545 = vsel %vm2565, 1, 0
        %v3546 = vsel %vm2566, 1, 0
        %v3547 = vsel %vm2567, 1, 0
        %v3548 = vsel %vm2568, 1, 0
        %v3549 = vsel %vm2569, 1, 0
        %v3550 = vsel %vm2570, 1, 0
        %v3551 = vsel %vm2571, 1, 0
        %v3552 = vsel %vm2572, 1, 0
        %v3553 = vsel %vm2573, 1, 0
        %v3554 = vsel %vm2574, 1, 0
        %v3555 = vsel %vm2575, 1, 0
        %v3556 = vsel %vm2576, 1, 0
        %vm3557 = vcmp.eq.s32.totalorder %v3525, 1
        %vm3558 = vcmp.eq.s32.totalorder %v3526, 1
        %vm3559 = vcmp.eq.s32.totalorder %v3527, 1
        %vm3560 = vcmp.eq.s32.totalorder %v3528, 1
        %vm3561 = vcmp.eq.s32.totalorder %v3529, 1
        %vm3562 = vcmp.eq.s32.totalorder %v3530, 1
        %vm3563 = vcmp.eq.s32.totalorder %v3531, 1
        %vm3564 = vcmp.eq.s32.totalorder %v3532, 1
        %vm3565 = vcmp.eq.s32.totalorder %v3533, 1
        %vm3566 = vcmp.eq.s32.totalorder %v3534, 1
        %vm3567 = vcmp.eq.s32.totalorder %v3535, 1
        %vm3568 = vcmp.eq.s32.totalorder %v3536, 1
        %vm3569 = vcmp.eq.s32.totalorder %v3537, 1
        %vm3570 = vcmp.eq.s32.totalorder %v3538, 1
        %vm3571 = vcmp.eq.s32.totalorder %v3539, 1
        %vm3572 = vcmp.eq.s32.totalorder %v3540, 1
        %vm3573 = vcmp.eq.s32.totalorder %v3541, 1
        %vm3574 = vcmp.eq.s32.totalorder %v3542, 1
        %vm3575 = vcmp.eq.s32.totalorder %v3543, 1
        %vm3576 = vcmp.eq.s32.totalorder %v3544, 1
        %vm3577 = vcmp.eq.s32.totalorder %v3545, 1
        %vm3578 = vcmp.eq.s32.totalorder %v3546, 1
        %vm3579 = vcmp.eq.s32.totalorder %v3547, 1
        %vm3580 = vcmp.eq.s32.totalorder %v3548, 1
        %vm3581 = vcmp.eq.s32.totalorder %v3549, 1
        %vm3582 = vcmp.eq.s32.totalorder %v3550, 1
        %vm3583 = vcmp.eq.s32.totalorder %v3551, 1
        %vm3584 = vcmp.eq.s32.totalorder %v3552, 1
        %vm3585 = vcmp.eq.s32.totalorder %v3553, 1
        %vm3586 = vcmp.eq.s32.totalorder %v3554, 1
        %vm3587 = vcmp.eq.s32.totalorder %v3555, 1
        %vm3588 = vcmp.eq.s32.totalorder %v3556, 1
        %v3589 = vsel %vm3524, 1, 0
        %vm3590 = vcmp.eq.s32.totalorder %v3589, 1
        %vm3591 = vmand %vm3557, %vm3590
        %vm3592 = vmand %vm3558, %vm3590
        %vm3593 = vmand %vm3559, %vm3590
        %vm3594 = vmand %vm3560, %vm3590
        %vm3595 = vmand %vm3561, %vm3590
        %vm3596 = vmand %vm3562, %vm3590
        %vm3597 = vmand %vm3563, %vm3590
        %vm3598 = vmand %vm3564, %vm3590
        %vm3599 = vmand %vm3565, %vm3590
        %vm3600 = vmand %vm3566, %vm3590
        %vm3601 = vmand %vm3567, %vm3590
        %vm3602 = vmand %vm3568, %vm3590
        %vm3603 = vmand %vm3569, %vm3590
        %vm3604 = vmand %vm3570, %vm3590
        %vm3605 = vmand %vm3571, %vm3590
        %vm3606 = vmand %vm3572, %vm3590
        %vm3607 = vmand %vm3573, %vm3590
        %vm3608 = vmand %vm3574, %vm3590
        %vm3609 = vmand %vm3575, %vm3590
        %vm3610 = vmand %vm3576, %vm3590
        %vm3611 = vmand %vm3577, %vm3590
        %vm3612 = vmand %vm3578, %vm3590
        %vm3613 = vmand %vm3579, %vm3590
        %vm3614 = vmand %vm3580, %vm3590
        %vm3615 = vmand %vm3581, %vm3590
        %vm3616 = vmand %vm3582, %vm3590
        %vm3617 = vmand %vm3583, %vm3590
        %vm3618 = vmand %vm3584, %vm3590
        %vm3619 = vmand %vm3585, %vm3590
        %vm3620 = vmand %vm3586, %vm3590
        %vm3621 = vmand %vm3587, %vm3590
        %vm3622 = vmand %vm3588, %vm3590
        %v3623 = vsel %vm3591, %v3158, %v3490
        %v3624 = vsel %vm3592, %v3157, %v3491
        %v3625 = vsel %vm3593, %v3156, %v3492
        %v3626 = vsel %vm3594, %v3155, %v3493
        %v3627 = vsel %vm3595, %v3154, %v3494
        %v3628 = vsel %vm3596, %v3153, %v3495
        %v3629 = vsel %vm3597, %v3152, %v3496
        %v3630 = vsel %vm3598, %v3151, %v3497
        %v3631 = vsel %vm3599, %v3150, %v3498
        %v3632 = vsel %vm3600, %v3149, %v3499
        %v3633 = vsel %vm3601, %v3148, %v3500
        %v3634 = vsel %vm3602, %v3147, %v3501
        %v3635 = vsel %vm3603, %v3146, %v3502
        %v3636 = vsel %vm3604, %v3145, %v3503
        %v3637 = vsel %vm3605, %v3144, %v3504
        %v3638 = vsel %vm3606, %v3143, %v3505
        %v3639 = vsel %vm3607, %v3142, %v3506
        %v3640 = vsel %vm3608, %v3141, %v3507
        %v3641 = vsel %vm3609, %v3140, %v3508
        %v3642 = vsel %vm3610, %v3139, %v3509
        %v3643 = vsel %vm3611, %v3138, %v3510
        %v3644 = vsel %vm3612, %v3137, %v3511
        %v3645 = vsel %vm3613, %v3136, %v3512
        %v3646 = vsel %vm3614, %v3135, %v3513
        %v3647 = vsel %vm3615, %v3134, %v3514
        %v3648 = vsel %vm3616, %v3133, %v3515
        %v3649 = vsel %vm3617, %v3132, %v3516
        %v3650 = vsel %vm3618, %v3131, %v3517
        %v3651 = vsel %vm3619, %v3130, %v3518
        %v3652 = vsel %vm3620, %v3129, %v3519
        %v3653 = vsel %vm3621, %v3128, %v3520
        %v3654 = vsel %vm3622, %v3127, %v3521
        %vm3655 = vcmp.ge.s32.totalorder %v520, 16
        %vm3656 = vcmp.lt.s32.totalorder %v520, 20
        %vm3657 = vmand %vm3655, %vm3656
        %vm3658 = vmor %vm3657, %vm843
        %v3659 = vsel %vm2577, 1, 0
        %v3660 = vsel %vm2578, 1, 0
        %v3661 = vsel %vm2579, 1, 0
        %v3662 = vsel %vm2580, 1, 0
        %v3663 = vsel %vm2581, 1, 0
        %v3664 = vsel %vm2582, 1, 0
        %v3665 = vsel %vm2583, 1, 0
        %v3666 = vsel %vm2584, 1, 0
        %v3667 = vsel %vm2585, 1, 0
        %v3668 = vsel %vm2586, 1, 0
        %v3669 = vsel %vm2587, 1, 0
        %v3670 = vsel %vm2588, 1, 0
        %v3671 = vsel %vm2589, 1, 0
        %v3672 = vsel %vm2590, 1, 0
        %v3673 = vsel %vm2591, 1, 0
        %v3674 = vsel %vm2592, 1, 0
        %v3675 = vsel %vm2593, 1, 0
        %v3676 = vsel %vm2594, 1, 0
        %v3677 = vsel %vm2595, 1, 0
        %v3678 = vsel %vm2596, 1, 0
        %v3679 = vsel %vm2597, 1, 0
        %v3680 = vsel %vm2598, 1, 0
        %v3681 = vsel %vm2599, 1, 0
        %v3682 = vsel %vm2600, 1, 0
        %v3683 = vsel %vm2601, 1, 0
        %v3684 = vsel %vm2602, 1, 0
        %v3685 = vsel %vm2603, 1, 0
        %v3686 = vsel %vm2604, 1, 0
        %v3687 = vsel %vm2605, 1, 0
        %v3688 = vsel %vm2606, 1, 0
        %v3689 = vsel %vm2607, 1, 0
        %v3690 = vsel %vm2608, 1, 0
        %vm3691 = vcmp.eq.s32.totalorder %v3659, 1
        %vm3692 = vcmp.eq.s32.totalorder %v3660, 1
        %vm3693 = vcmp.eq.s32.totalorder %v3661, 1
        %vm3694 = vcmp.eq.s32.totalorder %v3662, 1
        %vm3695 = vcmp.eq.s32.totalorder %v3663, 1
        %vm3696 = vcmp.eq.s32.totalorder %v3664, 1
        %vm3697 = vcmp.eq.s32.totalorder %v3665, 1
        %vm3698 = vcmp.eq.s32.totalorder %v3666, 1
        %vm3699 = vcmp.eq.s32.totalorder %v3667, 1
        %vm3700 = vcmp.eq.s32.totalorder %v3668, 1
        %vm3701 = vcmp.eq.s32.totalorder %v3669, 1
        %vm3702 = vcmp.eq.s32.totalorder %v3670, 1
        %vm3703 = vcmp.eq.s32.totalorder %v3671, 1
        %vm3704 = vcmp.eq.s32.totalorder %v3672, 1
        %vm3705 = vcmp.eq.s32.totalorder %v3673, 1
        %vm3706 = vcmp.eq.s32.totalorder %v3674, 1
        %vm3707 = vcmp.eq.s32.totalorder %v3675, 1
        %vm3708 = vcmp.eq.s32.totalorder %v3676, 1
        %vm3709 = vcmp.eq.s32.totalorder %v3677, 1
        %vm3710 = vcmp.eq.s32.totalorder %v3678, 1
        %vm3711 = vcmp.eq.s32.totalorder %v3679, 1
        %vm3712 = vcmp.eq.s32.totalorder %v3680, 1
        %vm3713 = vcmp.eq.s32.totalorder %v3681, 1
        %vm3714 = vcmp.eq.s32.totalorder %v3682, 1
        %vm3715 = vcmp.eq.s32.totalorder %v3683, 1
        %vm3716 = vcmp.eq.s32.totalorder %v3684, 1
        %vm3717 = vcmp.eq.s32.totalorder %v3685, 1
        %vm3718 = vcmp.eq.s32.totalorder %v3686, 1
        %vm3719 = vcmp.eq.s32.totalorder %v3687, 1
        %vm3720 = vcmp.eq.s32.totalorder %v3688, 1
        %vm3721 = vcmp.eq.s32.totalorder %v3689, 1
        %vm3722 = vcmp.eq.s32.totalorder %v3690, 1
        %v3723 = vsel %vm3658, 1, 0
        %vm3724 = vcmp.eq.s32.totalorder %v3723, 1
        %vm3725 = vmand %vm3691, %vm3724
        %vm3726 = vmand %vm3692, %vm3724
        %vm3727 = vmand %vm3693, %vm3724
        %vm3728 = vmand %vm3694, %vm3724
        %vm3729 = vmand %vm3695, %vm3724
        %vm3730 = vmand %vm3696, %vm3724
        %vm3731 = vmand %vm3697, %vm3724
        %vm3732 = vmand %vm3698, %vm3724
        %vm3733 = vmand %vm3699, %vm3724
        %vm3734 = vmand %vm3700, %vm3724
        %vm3735 = vmand %vm3701, %vm3724
        %vm3736 = vmand %vm3702, %vm3724
        %vm3737 = vmand %vm3703, %vm3724
        %vm3738 = vmand %vm3704, %vm3724
        %vm3739 = vmand %vm3705, %vm3724
        %vm3740 = vmand %vm3706, %vm3724
        %vm3741 = vmand %vm3707, %vm3724
        %vm3742 = vmand %vm3708, %vm3724
        %vm3743 = vmand %vm3709, %vm3724
        %vm3744 = vmand %vm3710, %vm3724
        %vm3745 = vmand %vm3711, %vm3724
        %vm3746 = vmand %vm3712, %vm3724
        %vm3747 = vmand %vm3713, %vm3724
        %vm3748 = vmand %vm3714, %vm3724
        %vm3749 = vmand %vm3715, %vm3724
        %vm3750 = vmand %vm3716, %vm3724
        %vm3751 = vmand %vm3717, %vm3724
        %vm3752 = vmand %vm3718, %vm3724
        %vm3753 = vmand %vm3719, %vm3724
        %vm3754 = vmand %vm3720, %vm3724
        %vm3755 = vmand %vm3721, %vm3724
        %vm3756 = vmand %vm3722, %vm3724
        %v3757 = vsel %vm3725, %v913, %v3623
        %v3758 = vsel %vm3726, %v915, %v3624
        %v3759 = vsel %vm3727, %v917, %v3625
        %v3760 = vsel %vm3728, %v919, %v3626
        %v3761 = vsel %vm3729, %v921, %v3627
        %v3762 = vsel %vm3730, %v923, %v3628
        %v3763 = vsel %vm3731, %v925, %v3629
        %v3764 = vsel %vm3732, %v927, %v3630
        %v3765 = vsel %vm3733, %v929, %v3631
        %v3766 = vsel %vm3734, %v931, %v3632
        %v3767 = vsel %vm3735, %v933, %v3633
        %v3768 = vsel %vm3736, %v935, %v3634
        %v3769 = vsel %vm3737, %v937, %v3635
        %v3770 = vsel %vm3738, %v939, %v3636
        %v3771 = vsel %vm3739, %v941, %v3637
        %v3772 = vsel %vm3740, %v943, %v3638
        %v3773 = vsel %vm3741, %v945, %v3639
        %v3774 = vsel %vm3742, %v947, %v3640
        %v3775 = vsel %vm3743, %v949, %v3641
        %v3776 = vsel %vm3744, %v951, %v3642
        %v3777 = vsel %vm3745, %v953, %v3643
        %v3778 = vsel %vm3746, %v955, %v3644
        %v3779 = vsel %vm3747, %v957, %v3645
        %v3780 = vsel %vm3748, %v959, %v3646
        %v3781 = vsel %vm3749, %v961, %v3647
        %v3782 = vsel %vm3750, %v963, %v3648
        %v3783 = vsel %vm3751, %v965, %v3649
        %v3784 = vsel %vm3752, %v967, %v3650
        %v3785 = vsel %vm3753, %v969, %v3651
        %v3786 = vsel %vm3754, %v971, %v3652
        %v3787 = vsel %vm3755, %v973, %v3653
        %v3788 = vsel %vm3756, %v975, %v3654
        %vm3789 = vcmp.ge.s32.totalorder %v520, 20
        %vm3790 = vcmp.lt.s32.totalorder %v520, 24
        %vm3791 = vmand %vm3789, %vm3790
        %v3792 = vsel %vm2609, 1, 0
        %v3793 = vsel %vm2610, 1, 0
        %v3794 = vsel %vm2611, 1, 0
        %v3795 = vsel %vm2612, 1, 0
        %v3796 = vsel %vm2613, 1, 0
        %v3797 = vsel %vm2614, 1, 0
        %v3798 = vsel %vm2615, 1, 0
        %v3799 = vsel %vm2616, 1, 0
        %v3800 = vsel %vm2617, 1, 0
        %v3801 = vsel %vm2618, 1, 0
        %v3802 = vsel %vm2619, 1, 0
        %v3803 = vsel %vm2620, 1, 0
        %v3804 = vsel %vm2621, 1, 0
        %v3805 = vsel %vm2622, 1, 0
        %v3806 = vsel %vm2623, 1, 0
        %v3807 = vsel %vm2624, 1, 0
        %v3808 = vsel %vm2625, 1, 0
        %v3809 = vsel %vm2626, 1, 0
        %v3810 = vsel %vm2627, 1, 0
        %v3811 = vsel %vm2628, 1, 0
        %v3812 = vsel %vm2629, 1, 0
        %v3813 = vsel %vm2630, 1, 0
        %v3814 = vsel %vm2631, 1, 0
        %v3815 = vsel %vm2632, 1, 0
        %v3816 = vsel %vm2633, 1, 0
        %v3817 = vsel %vm2634, 1, 0
        %v3818 = vsel %vm2635, 1, 0
        %v3819 = vsel %vm2636, 1, 0
        %v3820 = vsel %vm2637, 1, 0
        %v3821 = vsel %vm2638, 1, 0
        %v3822 = vsel %vm2639, 1, 0
        %v3823 = vsel %vm2640, 1, 0
        %vm3824 = vcmp.eq.s32.totalorder %v3792, 1
        %vm3825 = vcmp.eq.s32.totalorder %v3793, 1
        %vm3826 = vcmp.eq.s32.totalorder %v3794, 1
        %vm3827 = vcmp.eq.s32.totalorder %v3795, 1
        %vm3828 = vcmp.eq.s32.totalorder %v3796, 1
        %vm3829 = vcmp.eq.s32.totalorder %v3797, 1
        %vm3830 = vcmp.eq.s32.totalorder %v3798, 1
        %vm3831 = vcmp.eq.s32.totalorder %v3799, 1
        %vm3832 = vcmp.eq.s32.totalorder %v3800, 1
        %vm3833 = vcmp.eq.s32.totalorder %v3801, 1
        %vm3834 = vcmp.eq.s32.totalorder %v3802, 1
        %vm3835 = vcmp.eq.s32.totalorder %v3803, 1
        %vm3836 = vcmp.eq.s32.totalorder %v3804, 1
        %vm3837 = vcmp.eq.s32.totalorder %v3805, 1
        %vm3838 = vcmp.eq.s32.totalorder %v3806, 1
        %vm3839 = vcmp.eq.s32.totalorder %v3807, 1
        %vm3840 = vcmp.eq.s32.totalorder %v3808, 1
        %vm3841 = vcmp.eq.s32.totalorder %v3809, 1
        %vm3842 = vcmp.eq.s32.totalorder %v3810, 1
        %vm3843 = vcmp.eq.s32.totalorder %v3811, 1
        %vm3844 = vcmp.eq.s32.totalorder %v3812, 1
        %vm3845 = vcmp.eq.s32.totalorder %v3813, 1
        %vm3846 = vcmp.eq.s32.totalorder %v3814, 1
        %vm3847 = vcmp.eq.s32.totalorder %v3815, 1
        %vm3848 = vcmp.eq.s32.totalorder %v3816, 1
        %vm3849 = vcmp.eq.s32.totalorder %v3817, 1
        %vm3850 = vcmp.eq.s32.totalorder %v3818, 1
        %vm3851 = vcmp.eq.s32.totalorder %v3819, 1
        %vm3852 = vcmp.eq.s32.totalorder %v3820, 1
        %vm3853 = vcmp.eq.s32.totalorder %v3821, 1
        %vm3854 = vcmp.eq.s32.totalorder %v3822, 1
        %vm3855 = vcmp.eq.s32.totalorder %v3823, 1
        %v3856 = vsel %vm3791, 1, 0
        %vm3857 = vcmp.eq.s32.totalorder %v3856, 1
        %vm3858 = vmand %vm3824, %vm3857
        %vm3859 = vmand %vm3825, %vm3857
        %vm3860 = vmand %vm3826, %vm3857
        %vm3861 = vmand %vm3827, %vm3857
        %vm3862 = vmand %vm3828, %vm3857
        %vm3863 = vmand %vm3829, %vm3857
        %vm3864 = vmand %vm3830, %vm3857
        %vm3865 = vmand %vm3831, %vm3857
        %vm3866 = vmand %vm3832, %vm3857
        %vm3867 = vmand %vm3833, %vm3857
        %vm3868 = vmand %vm3834, %vm3857
        %vm3869 = vmand %vm3835, %vm3857
        %vm3870 = vmand %vm3836, %vm3857
        %vm3871 = vmand %vm3837, %vm3857
        %vm3872 = vmand %vm3838, %vm3857
        %vm3873 = vmand %vm3839, %vm3857
        %vm3874 = vmand %vm3840, %vm3857
        %vm3875 = vmand %vm3841, %vm3857
        %vm3876 = vmand %vm3842, %vm3857
        %vm3877 = vmand %vm3843, %vm3857
        %vm3878 = vmand %vm3844, %vm3857
        %vm3879 = vmand %vm3845, %vm3857
        %vm3880 = vmand %vm3846, %vm3857
        %vm3881 = vmand %vm3847, %vm3857
        %vm3882 = vmand %vm3848, %vm3857
        %vm3883 = vmand %vm3849, %vm3857
        %vm3884 = vmand %vm3850, %vm3857
        %vm3885 = vmand %vm3851, %vm3857
        %vm3886 = vmand %vm3852, %vm3857
        %vm3887 = vmand %vm3853, %vm3857
        %vm3888 = vmand %vm3854, %vm3857
        %vm3889 = vmand %vm3855, %vm3857
        %v3890 = vsel %vm3858, %v3488, %v3757
        %v3891 = vsel %vm3859, %v3487, %v3758
        %v3892 = vsel %vm3860, %v3486, %v3759
        %v3893 = vsel %vm3861, %v3485, %v3760
        %v3894 = vsel %vm3862, %v3484, %v3761
        %v3895 = vsel %vm3863, %v3483, %v3762
        %v3896 = vsel %vm3864, %v3482, %v3763
        %v3897 = vsel %vm3865, %v3481, %v3764
        %v3898 = vsel %vm3866, %v3480, %v3765
        %v3899 = vsel %vm3867, %v3479, %v3766
        %v3900 = vsel %vm3868, %v3478, %v3767
        %v3901 = vsel %vm3869, %v3477, %v3768
        %v3902 = vsel %vm3870, %v3476, %v3769
        %v3903 = vsel %vm3871, %v3475, %v3770
        %v3904 = vsel %vm3872, %v3474, %v3771
        %v3905 = vsel %vm3873, %v3473, %v3772
        %v3906 = vsel %vm3874, %v3472, %v3773
        %v3907 = vsel %vm3875, %v3471, %v3774
        %v3908 = vsel %vm3876, %v3470, %v3775
        %v3909 = vsel %vm3877, %v3469, %v3776
        %v3910 = vsel %vm3878, %v3468, %v3777
        %v3911 = vsel %vm3879, %v3467, %v3778
        %v3912 = vsel %vm3880, %v3466, %v3779
        %v3913 = vsel %vm3881, %v3465, %v3780
        %v3914 = vsel %vm3882, %v3464, %v3781
        %v3915 = vsel %vm3883, %v3463, %v3782
        %v3916 = vsel %vm3884, %v3462, %v3783
        %v3917 = vsel %vm3885, %v3461, %v3784
        %v3918 = vsel %vm3886, %v3460, %v3785
        %v3919 = vsel %vm3887, %v3459, %v3786
        %v3920 = vsel %vm3888, %v3458, %v3787
        %v3921 = vsel %vm3889, %v3489, %v3788
        %vm3922 = vcmp.ge.s32.totalorder %v520, 24
        %vm3923 = vcmp.lt.s32.totalorder %v520, 28
        %vm3924 = vmand %vm3922, %vm3923
        %v3925 = vsel %vm2705, 1, 0
        %v3926 = vsel %vm2706, 1, 0
        %v3927 = vsel %vm2707, 1, 0
        %v3928 = vsel %vm2708, 1, 0
        %v3929 = vsel %vm2709, 1, 0
        %v3930 = vsel %vm2710, 1, 0
        %v3931 = vsel %vm2711, 1, 0
        %v3932 = vsel %vm2712, 1, 0
        %v3933 = vsel %vm2713, 1, 0
        %v3934 = vsel %vm2714, 1, 0
        %v3935 = vsel %vm2715, 1, 0
        %v3936 = vsel %vm2716, 1, 0
        %v3937 = vsel %vm2717, 1, 0
        %v3938 = vsel %vm2718, 1, 0
        %v3939 = vsel %vm2719, 1, 0
        %v3940 = vsel %vm2720, 1, 0
        %v3941 = vsel %vm2721, 1, 0
        %v3942 = vsel %vm2722, 1, 0
        %v3943 = vsel %vm2723, 1, 0
        %v3944 = vsel %vm2724, 1, 0
        %v3945 = vsel %vm2725, 1, 0
        %v3946 = vsel %vm2726, 1, 0
        %v3947 = vsel %vm2727, 1, 0
        %v3948 = vsel %vm2728, 1, 0
        %v3949 = vsel %vm2729, 1, 0
        %v3950 = vsel %vm2730, 1, 0
        %v3951 = vsel %vm2731, 1, 0
        %v3952 = vsel %vm2732, 1, 0
        %v3953 = vsel %vm2733, 1, 0
        %v3954 = vsel %vm2734, 1, 0
        %v3955 = vsel %vm2735, 1, 0
        %v3956 = vsel %vm2736, 1, 0
        %vm3957 = vcmp.eq.s32.totalorder %v3925, 1
        %vm3958 = vcmp.eq.s32.totalorder %v3926, 1
        %vm3959 = vcmp.eq.s32.totalorder %v3927, 1
        %vm3960 = vcmp.eq.s32.totalorder %v3928, 1
        %vm3961 = vcmp.eq.s32.totalorder %v3929, 1
        %vm3962 = vcmp.eq.s32.totalorder %v3930, 1
        %vm3963 = vcmp.eq.s32.totalorder %v3931, 1
        %vm3964 = vcmp.eq.s32.totalorder %v3932, 1
        %vm3965 = vcmp.eq.s32.totalorder %v3933, 1
        %vm3966 = vcmp.eq.s32.totalorder %v3934, 1
        %vm3967 = vcmp.eq.s32.totalorder %v3935, 1
        %vm3968 = vcmp.eq.s32.totalorder %v3936, 1
        %vm3969 = vcmp.eq.s32.totalorder %v3937, 1
        %vm3970 = vcmp.eq.s32.totalorder %v3938, 1
        %vm3971 = vcmp.eq.s32.totalorder %v3939, 1
        %vm3972 = vcmp.eq.s32.totalorder %v3940, 1
        %vm3973 = vcmp.eq.s32.totalorder %v3941, 1
        %vm3974 = vcmp.eq.s32.totalorder %v3942, 1
        %vm3975 = vcmp.eq.s32.totalorder %v3943, 1
        %vm3976 = vcmp.eq.s32.totalorder %v3944, 1
        %vm3977 = vcmp.eq.s32.totalorder %v3945, 1
        %vm3978 = vcmp.eq.s32.totalorder %v3946, 1
        %vm3979 = vcmp.eq.s32.totalorder %v3947, 1
        %vm3980 = vcmp.eq.s32.totalorder %v3948, 1
        %vm3981 = vcmp.eq.s32.totalorder %v3949, 1
        %vm3982 = vcmp.eq.s32.totalorder %v3950, 1
        %vm3983 = vcmp.eq.s32.totalorder %v3951, 1
        %vm3984 = vcmp.eq.s32.totalorder %v3952, 1
        %vm3985 = vcmp.eq.s32.totalorder %v3953, 1
        %vm3986 = vcmp.eq.s32.totalorder %v3954, 1
        %vm3987 = vcmp.eq.s32.totalorder %v3955, 1
        %vm3988 = vcmp.eq.s32.totalorder %v3956, 1
        %v3989 = vsel %vm3924, 1, 0
        %vm3990 = vcmp.eq.s32.totalorder %v3989, 1
        %vm3991 = vmand %vm3957, %vm3990
        %vm3992 = vmand %vm3958, %vm3990
        %vm3993 = vmand %vm3959, %vm3990
        %vm3994 = vmand %vm3960, %vm3990
        %vm3995 = vmand %vm3961, %vm3990
        %vm3996 = vmand %vm3962, %vm3990
        %vm3997 = vmand %vm3963, %vm3990
        %vm3998 = vmand %vm3964, %vm3990
        %vm3999 = vmand %vm3965, %vm3990
        %vm4000 = vmand %vm3966, %vm3990
        %vm4001 = vmand %vm3967, %vm3990
        %vm4002 = vmand %vm3968, %vm3990
        %vm4003 = vmand %vm3969, %vm3990
        %vm4004 = vmand %vm3970, %vm3990
        %vm4005 = vmand %vm3971, %vm3990
        %vm4006 = vmand %vm3972, %vm3990
        %vm4007 = vmand %vm3973, %vm3990
        %vm4008 = vmand %vm3974, %vm3990
        %vm4009 = vmand %vm3975, %vm3990
        %vm4010 = vmand %vm3976, %vm3990
        %vm4011 = vmand %vm3977, %vm3990
        %vm4012 = vmand %vm3978, %vm3990
        %vm4013 = vmand %vm3979, %vm3990
        %vm4014 = vmand %vm3980, %vm3990
        %vm4015 = vmand %vm3981, %vm3990
        %vm4016 = vmand %vm3982, %vm3990
        %vm4017 = vmand %vm3983, %vm3990
        %vm4018 = vmand %vm3984, %vm3990
        %vm4019 = vmand %vm3985, %vm3990
        %vm4020 = vmand %vm3986, %vm3990
        %vm4021 = vmand %vm3987, %vm3990
        %vm4022 = vmand %vm3988, %vm3990
        %v4023 = vsel %vm3991, %v3156, %v3890
        %v4024 = vsel %vm3992, %v3155, %v3891
        %v4025 = vsel %vm3993, %v3154, %v3892
        %v4026 = vsel %vm3994, %v3153, %v3893
        %v4027 = vsel %vm3995, %v3152, %v3894
        %v4028 = vsel %vm3996, %v3151, %v3895
        %v4029 = vsel %vm3997, %v3150, %v3896
        %v4030 = vsel %vm3998, %v3149, %v3897
        %v4031 = vsel %vm3999, %v3148, %v3898
        %v4032 = vsel %vm4000, %v3147, %v3899
        %v4033 = vsel %vm4001, %v3146, %v3900
        %v4034 = vsel %vm4002, %v3145, %v3901
        %v4035 = vsel %vm4003, %v3144, %v3902
        %v4036 = vsel %vm4004, %v3143, %v3903
        %v4037 = vsel %vm4005, %v3142, %v3904
        %v4038 = vsel %vm4006, %v3141, %v3905
        %v4039 = vsel %vm4007, %v3140, %v3906
        %v4040 = vsel %vm4008, %v3139, %v3907
        %v4041 = vsel %vm4009, %v3138, %v3908
        %v4042 = vsel %vm4010, %v3137, %v3909
        %v4043 = vsel %vm4011, %v3136, %v3910
        %v4044 = vsel %vm4012, %v3135, %v3911
        %v4045 = vsel %vm4013, %v3134, %v3912
        %v4046 = vsel %vm4014, %v3133, %v3913
        %v4047 = vsel %vm4015, %v3132, %v3914
        %v4048 = vsel %vm4016, %v3131, %v3915
        %v4049 = vsel %vm4017, %v3130, %v3916
        %v4050 = vsel %vm4018, %v3129, %v3917
        %v4051 = vsel %vm4019, %v3128, %v3918
        %v4052 = vsel %vm4020, %v3127, %v3919
        %v4053 = vsel %vm4021, %v3158, %v3920
        %v4054 = vsel %vm4022, %v3157, %v3921
        %vm4055 = vcmp.ge.s32.totalorder %v520, 28
        %vm4056 = vcmp.lt.s32.totalorder %v520, 32
        %vm4057 = vmand %vm4055, %vm4056
        %v4058 = vsel %vm2737, 1, 0
        %v4059 = vsel %vm2738, 1, 0
        %v4060 = vsel %vm2739, 1, 0
        %v4061 = vsel %vm2740, 1, 0
        %v4062 = vsel %vm2741, 1, 0
        %v4063 = vsel %vm2742, 1, 0
        %v4064 = vsel %vm2743, 1, 0
        %v4065 = vsel %vm2744, 1, 0
        %v4066 = vsel %vm2745, 1, 0
        %v4067 = vsel %vm2746, 1, 0
        %v4068 = vsel %vm2747, 1, 0
        %v4069 = vsel %vm2748, 1, 0
        %v4070 = vsel %vm2749, 1, 0
        %v4071 = vsel %vm2750, 1, 0
        %v4072 = vsel %vm2751, 1, 0
        %v4073 = vsel %vm2752, 1, 0
        %v4074 = vsel %vm2753, 1, 0
        %v4075 = vsel %vm2754, 1, 0
        %v4076 = vsel %vm2755, 1, 0
        %v4077 = vsel %vm2756, 1, 0
        %v4078 = vsel %vm2757, 1, 0
        %v4079 = vsel %vm2758, 1, 0
        %v4080 = vsel %vm2759, 1, 0
        %v4081 = vsel %vm2760, 1, 0
        %v4082 = vsel %vm2761, 1, 0
        %v4083 = vsel %vm2762, 1, 0
        %v4084 = vsel %vm2763, 1, 0
        %v4085 = vsel %vm2764, 1, 0
        %v4086 = vsel %vm2765, 1, 0
        %v4087 = vsel %vm2766, 1, 0
        %v4088 = vsel %vm2767, 1, 0
        %v4089 = vsel %vm2768, 1, 0
        %vm4090 = vcmp.eq.s32.totalorder %v4058, 1
        %vm4091 = vcmp.eq.s32.totalorder %v4059, 1
        %vm4092 = vcmp.eq.s32.totalorder %v4060, 1
        %vm4093 = vcmp.eq.s32.totalorder %v4061, 1
        %vm4094 = vcmp.eq.s32.totalorder %v4062, 1
        %vm4095 = vcmp.eq.s32.totalorder %v4063, 1
        %vm4096 = vcmp.eq.s32.totalorder %v4064, 1
        %vm4097 = vcmp.eq.s32.totalorder %v4065, 1
        %vm4098 = vcmp.eq.s32.totalorder %v4066, 1
        %vm4099 = vcmp.eq.s32.totalorder %v4067, 1
        %vm4100 = vcmp.eq.s32.totalorder %v4068, 1
        %vm4101 = vcmp.eq.s32.totalorder %v4069, 1
        %vm4102 = vcmp.eq.s32.totalorder %v4070, 1
        %vm4103 = vcmp.eq.s32.totalorder %v4071, 1
        %vm4104 = vcmp.eq.s32.totalorder %v4072, 1
        %vm4105 = vcmp.eq.s32.totalorder %v4073, 1
        %vm4106 = vcmp.eq.s32.totalorder %v4074, 1
        %vm4107 = vcmp.eq.s32.totalorder %v4075, 1
        %vm4108 = vcmp.eq.s32.totalorder %v4076, 1
        %vm4109 = vcmp.eq.s32.totalorder %v4077, 1
        %vm4110 = vcmp.eq.s32.totalorder %v4078, 1
        %vm4111 = vcmp.eq.s32.totalorder %v4079, 1
        %vm4112 = vcmp.eq.s32.totalorder %v4080, 1
        %vm4113 = vcmp.eq.s32.totalorder %v4081, 1
        %vm4114 = vcmp.eq.s32.totalorder %v4082, 1
        %vm4115 = vcmp.eq.s32.totalorder %v4083, 1
        %vm4116 = vcmp.eq.s32.totalorder %v4084, 1
        %vm4117 = vcmp.eq.s32.totalorder %v4085, 1
        %vm4118 = vcmp.eq.s32.totalorder %v4086, 1
        %vm4119 = vcmp.eq.s32.totalorder %v4087, 1
        %vm4120 = vcmp.eq.s32.totalorder %v4088, 1
        %vm4121 = vcmp.eq.s32.totalorder %v4089, 1
        %v4122 = vsel %vm4057, 1, 0
        %vm4123 = vcmp.eq.s32.totalorder %v4122, 1
        %vm4124 = vmand %vm4090, %vm4123
        %vm4125 = vmand %vm4091, %vm4123
        %vm4126 = vmand %vm4092, %vm4123
        %vm4127 = vmand %vm4093, %vm4123
        %vm4128 = vmand %vm4094, %vm4123
        %vm4129 = vmand %vm4095, %vm4123
        %vm4130 = vmand %vm4096, %vm4123
        %vm4131 = vmand %vm4097, %vm4123
        %vm4132 = vmand %vm4098, %vm4123
        %vm4133 = vmand %vm4099, %vm4123
        %vm4134 = vmand %vm4100, %vm4123
        %vm4135 = vmand %vm4101, %vm4123
        %vm4136 = vmand %vm4102, %vm4123
        %vm4137 = vmand %vm4103, %vm4123
        %vm4138 = vmand %vm4104, %vm4123
        %vm4139 = vmand %vm4105, %vm4123
        %vm4140 = vmand %vm4106, %vm4123
        %vm4141 = vmand %vm4107, %vm4123
        %vm4142 = vmand %vm4108, %vm4123
        %vm4143 = vmand %vm4109, %vm4123
        %vm4144 = vmand %vm4110, %vm4123
        %vm4145 = vmand %vm4111, %vm4123
        %vm4146 = vmand %vm4112, %vm4123
        %vm4147 = vmand %vm4113, %vm4123
        %vm4148 = vmand %vm4114, %vm4123
        %vm4149 = vmand %vm4115, %vm4123
        %vm4150 = vmand %vm4116, %vm4123
        %vm4151 = vmand %vm4117, %vm4123
        %vm4152 = vmand %vm4118, %vm4123
        %vm4153 = vmand %vm4119, %vm4123
        %vm4154 = vmand %vm4120, %vm4123
        %vm4155 = vmand %vm4121, %vm4123
        %v4156 = vsel %vm4124, %v917, %v4023
        %v4157 = vsel %vm4125, %v919, %v4024
        %v4158 = vsel %vm4126, %v921, %v4025
        %v4159 = vsel %vm4127, %v923, %v4026
        %v4160 = vsel %vm4128, %v925, %v4027
        %v4161 = vsel %vm4129, %v927, %v4028
        %v4162 = vsel %vm4130, %v929, %v4029
        %v4163 = vsel %vm4131, %v931, %v4030
        %v4164 = vsel %vm4132, %v933, %v4031
        %v4165 = vsel %vm4133, %v935, %v4032
        %v4166 = vsel %vm4134, %v937, %v4033
        %v4167 = vsel %vm4135, %v939, %v4034
        %v4168 = vsel %vm4136, %v941, %v4035
        %v4169 = vsel %vm4137, %v943, %v4036
        %v4170 = vsel %vm4138, %v945, %v4037
        %v4171 = vsel %vm4139, %v947, %v4038
        %v4172 = vsel %vm4140, %v949, %v4039
        %v4173 = vsel %vm4141, %v951, %v4040
        %v4174 = vsel %vm4142, %v953, %v4041
        %v4175 = vsel %vm4143, %v955, %v4042
        %v4176 = vsel %vm4144, %v957, %v4043
        %v4177 = vsel %vm4145, %v959, %v4044
        %v4178 = vsel %vm4146, %v961, %v4045
        %v4179 = vsel %vm4147, %v963, %v4046
        %v4180 = vsel %vm4148, %v965, %v4047
        %v4181 = vsel %vm4149, %v967, %v4048
        %v4182 = vsel %vm4150, %v969, %v4049
        %v4183 = vsel %vm4151, %v971, %v4050
        %v4184 = vsel %vm4152, %v973, %v4051
        %v4185 = vsel %vm4153, %v975, %v4052
        %v4186 = vsel %vm4154, %v913, %v4053
        %v4187 = vsel %vm4155, %v915, %v4054
        %vm4188 = vcmp.ge.s32.totalorder %v520, 32
        %vm4189 = vcmp.lt.s32.totalorder %v520, 36
        %vm4190 = vmand %vm4188, %vm4189
        %v4191 = vsel %vm2769, 1, 0
        %v4192 = vsel %vm2770, 1, 0
        %v4193 = vsel %vm2771, 1, 0
        %v4194 = vsel %vm2772, 1, 0
        %v4195 = vsel %vm2773, 1, 0
        %v4196 = vsel %vm2774, 1, 0
        %v4197 = vsel %vm2775, 1, 0
        %v4198 = vsel %vm2776, 1, 0
        %v4199 = vsel %vm2777, 1, 0
        %v4200 = vsel %vm2778, 1, 0
        %v4201 = vsel %vm2779, 1, 0
        %v4202 = vsel %vm2780, 1, 0
        %v4203 = vsel %vm2781, 1, 0
        %v4204 = vsel %vm2782, 1, 0
        %v4205 = vsel %vm2783, 1, 0
        %v4206 = vsel %vm2784, 1, 0
        %v4207 = vsel %vm2785, 1, 0
        %v4208 = vsel %vm2786, 1, 0
        %v4209 = vsel %vm2787, 1, 0
        %v4210 = vsel %vm2788, 1, 0
        %v4211 = vsel %vm2789, 1, 0
        %v4212 = vsel %vm2790, 1, 0
        %v4213 = vsel %vm2791, 1, 0
        %v4214 = vsel %vm2792, 1, 0
        %v4215 = vsel %vm2793, 1, 0
        %v4216 = vsel %vm2794, 1, 0
        %v4217 = vsel %vm2795, 1, 0
        %v4218 = vsel %vm2796, 1, 0
        %v4219 = vsel %vm2797, 1, 0
        %v4220 = vsel %vm2798, 1, 0
        %v4221 = vsel %vm2799, 1, 0
        %v4222 = vsel %vm2800, 1, 0
        %vm4223 = vcmp.eq.s32.totalorder %v4191, 1
        %vm4224 = vcmp.eq.s32.totalorder %v4192, 1
        %vm4225 = vcmp.eq.s32.totalorder %v4193, 1
        %vm4226 = vcmp.eq.s32.totalorder %v4194, 1
        %vm4227 = vcmp.eq.s32.totalorder %v4195, 1
        %vm4228 = vcmp.eq.s32.totalorder %v4196, 1
        %vm4229 = vcmp.eq.s32.totalorder %v4197, 1
        %vm4230 = vcmp.eq.s32.totalorder %v4198, 1
        %vm4231 = vcmp.eq.s32.totalorder %v4199, 1
        %vm4232 = vcmp.eq.s32.totalorder %v4200, 1
        %vm4233 = vcmp.eq.s32.totalorder %v4201, 1
        %vm4234 = vcmp.eq.s32.totalorder %v4202, 1
        %vm4235 = vcmp.eq.s32.totalorder %v4203, 1
        %vm4236 = vcmp.eq.s32.totalorder %v4204, 1
        %vm4237 = vcmp.eq.s32.totalorder %v4205, 1
        %vm4238 = vcmp.eq.s32.totalorder %v4206, 1
        %vm4239 = vcmp.eq.s32.totalorder %v4207, 1
        %vm4240 = vcmp.eq.s32.totalorder %v4208, 1
        %vm4241 = vcmp.eq.s32.totalorder %v4209, 1
        %vm4242 = vcmp.eq.s32.totalorder %v4210, 1
        %vm4243 = vcmp.eq.s32.totalorder %v4211, 1
        %vm4244 = vcmp.eq.s32.totalorder %v4212, 1
        %vm4245 = vcmp.eq.s32.totalorder %v4213, 1
        %vm4246 = vcmp.eq.s32.totalorder %v4214, 1
        %vm4247 = vcmp.eq.s32.totalorder %v4215, 1
        %vm4248 = vcmp.eq.s32.totalorder %v4216, 1
        %vm4249 = vcmp.eq.s32.totalorder %v4217, 1
        %vm4250 = vcmp.eq.s32.totalorder %v4218, 1
        %vm4251 = vcmp.eq.s32.totalorder %v4219, 1
        %vm4252 = vcmp.eq.s32.totalorder %v4220, 1
        %vm4253 = vcmp.eq.s32.totalorder %v4221, 1
        %vm4254 = vcmp.eq.s32.totalorder %v4222, 1
        %v4255 = vsel %vm4190, 1, 0
        %vm4256 = vcmp.eq.s32.totalorder %v4255, 1
        %vm4257 = vmand %vm4223, %vm4256
        %vm4258 = vmand %vm4224, %vm4256
        %vm4259 = vmand %vm4225, %vm4256
        %vm4260 = vmand %vm4226, %vm4256
        %vm4261 = vmand %vm4227, %vm4256
        %vm4262 = vmand %vm4228, %vm4256
        %vm4263 = vmand %vm4229, %vm4256
        %vm4264 = vmand %vm4230, %vm4256
        %vm4265 = vmand %vm4231, %vm4256
        %vm4266 = vmand %vm4232, %vm4256
        %vm4267 = vmand %vm4233, %vm4256
        %vm4268 = vmand %vm4234, %vm4256
        %vm4269 = vmand %vm4235, %vm4256
        %vm4270 = vmand %vm4236, %vm4256
        %vm4271 = vmand %vm4237, %vm4256
        %vm4272 = vmand %vm4238, %vm4256
        %vm4273 = vmand %vm4239, %vm4256
        %vm4274 = vmand %vm4240, %vm4256
        %vm4275 = vmand %vm4241, %vm4256
        %vm4276 = vmand %vm4242, %vm4256
        %vm4277 = vmand %vm4243, %vm4256
        %vm4278 = vmand %vm4244, %vm4256
        %vm4279 = vmand %vm4245, %vm4256
        %vm4280 = vmand %vm4246, %vm4256
        %vm4281 = vmand %vm4247, %vm4256
        %vm4282 = vmand %vm4248, %vm4256
        %vm4283 = vmand %vm4249, %vm4256
        %vm4284 = vmand %vm4250, %vm4256
        %vm4285 = vmand %vm4251, %vm4256
        %vm4286 = vmand %vm4252, %vm4256
        %vm4287 = vmand %vm4253, %vm4256
        %vm4288 = vmand %vm4254, %vm4256
        %v4289 = vsel %vm4257, %v3486, %v4156
        %v4290 = vsel %vm4258, %v3485, %v4157
        %v4291 = vsel %vm4259, %v3484, %v4158
        %v4292 = vsel %vm4260, %v3483, %v4159
        %v4293 = vsel %vm4261, %v3482, %v4160
        %v4294 = vsel %vm4262, %v3481, %v4161
        %v4295 = vsel %vm4263, %v3480, %v4162
        %v4296 = vsel %vm4264, %v3479, %v4163
        %v4297 = vsel %vm4265, %v3478, %v4164
        %v4298 = vsel %vm4266, %v3477, %v4165
        %v4299 = vsel %vm4267, %v3476, %v4166
        %v4300 = vsel %vm4268, %v3475, %v4167
        %v4301 = vsel %vm4269, %v3474, %v4168
        %v4302 = vsel %vm4270, %v3473, %v4169
        %v4303 = vsel %vm4271, %v3472, %v4170
        %v4304 = vsel %vm4272, %v3471, %v4171
        %v4305 = vsel %vm4273, %v3470, %v4172
        %v4306 = vsel %vm4274, %v3469, %v4173
        %v4307 = vsel %vm4275, %v3468, %v4174
        %v4308 = vsel %vm4276, %v3467, %v4175
        %v4309 = vsel %vm4277, %v3466, %v4176
        %v4310 = vsel %vm4278, %v3465, %v4177
        %v4311 = vsel %vm4279, %v3464, %v4178
        %v4312 = vsel %vm4280, %v3463, %v4179
        %v4313 = vsel %vm4281, %v3462, %v4180
        %v4314 = vsel %vm4282, %v3461, %v4181
        %v4315 = vsel %vm4283, %v3460, %v4182
        %v4316 = vsel %vm4284, %v3459, %v4183
        %v4317 = vsel %vm4285, %v3458, %v4184
        %v4318 = vsel %vm4286, %v3489, %v4185
        %v4319 = vsel %vm4287, %v3488, %v4186
        %v4320 = vsel %vm4288, %v3487, %v4187
        %v4321 = vsel %vm2193, 1, 0
        %v4322 = vsel %vm2194, 1, 0
        %v4323 = vsel %vm2195, 1, 0
        %v4324 = vsel %vm2196, 1, 0
        %v4325 = vsel %vm2197, 1, 0
        %v4326 = vsel %vm2198, 1, 0
        %v4327 = vsel %vm2199, 1, 0
        %v4328 = vsel %vm2200, 1, 0
        %v4329 = vsel %vm2201, 1, 0
        %v4330 = vsel %vm2202, 1, 0
        %v4331 = vsel %vm2203, 1, 0
        %v4332 = vsel %vm2204, 1, 0
        %v4333 = vsel %vm2205, 1, 0
        %v4334 = vsel %vm2206, 1, 0
        %v4335 = vsel %vm2207, 1, 0
        %v4336 = vsel %vm2208, 1, 0
        %v4337 = vsel %vm2209, 1, 0
        %v4338 = vsel %vm2210, 1, 0
        %v4339 = vsel %vm2211, 1, 0
        %v4340 = vsel %vm2212, 1, 0
        %v4341 = vsel %vm2213, 1, 0
        %v4342 = vsel %vm2214, 1, 0
        %v4343 = vsel %vm2215, 1, 0
        %v4344 = vsel %vm2216, 1, 0
        %v4345 = vsel %vm2217, 1, 0
        %v4346 = vsel %vm2218, 1, 0
        %v4347 = vsel %vm2219, 1, 0
        %v4348 = vsel %vm2220, 1, 0
        %v4349 = vsel %vm2221, 1, 0
        %v4350 = vsel %vm2222, 1, 0
        %v4351 = vsel %vm2223, 1, 0
        %v4352 = vsel %vm2224, 1, 0
        %vm4353 = vcmp.eq.s32.totalorder %v4321, 1
        %vm4354 = vcmp.eq.s32.totalorder %v4322, 1
        %vm4355 = vcmp.eq.s32.totalorder %v4323, 1
        %vm4356 = vcmp.eq.s32.totalorder %v4324, 1
        %vm4357 = vcmp.eq.s32.totalorder %v4325, 1
        %vm4358 = vcmp.eq.s32.totalorder %v4326, 1
        %vm4359 = vcmp.eq.s32.totalorder %v4327, 1
        %vm4360 = vcmp.eq.s32.totalorder %v4328, 1
        %vm4361 = vcmp.eq.s32.totalorder %v4329, 1
        %vm4362 = vcmp.eq.s32.totalorder %v4330, 1
        %vm4363 = vcmp.eq.s32.totalorder %v4331, 1
        %vm4364 = vcmp.eq.s32.totalorder %v4332, 1
        %vm4365 = vcmp.eq.s32.totalorder %v4333, 1
        %vm4366 = vcmp.eq.s32.totalorder %v4334, 1
        %vm4367 = vcmp.eq.s32.totalorder %v4335, 1
        %vm4368 = vcmp.eq.s32.totalorder %v4336, 1
        %vm4369 = vcmp.eq.s32.totalorder %v4337, 1
        %vm4370 = vcmp.eq.s32.totalorder %v4338, 1
        %vm4371 = vcmp.eq.s32.totalorder %v4339, 1
        %vm4372 = vcmp.eq.s32.totalorder %v4340, 1
        %vm4373 = vcmp.eq.s32.totalorder %v4341, 1
        %vm4374 = vcmp.eq.s32.totalorder %v4342, 1
        %vm4375 = vcmp.eq.s32.totalorder %v4343, 1
        %vm4376 = vcmp.eq.s32.totalorder %v4344, 1
        %vm4377 = vcmp.eq.s32.totalorder %v4345, 1
        %vm4378 = vcmp.eq.s32.totalorder %v4346, 1
        %vm4379 = vcmp.eq.s32.totalorder %v4347, 1
        %vm4380 = vcmp.eq.s32.totalorder %v4348, 1
        %vm4381 = vcmp.eq.s32.totalorder %v4349, 1
        %vm4382 = vcmp.eq.s32.totalorder %v4350, 1
        %vm4383 = vcmp.eq.s32.totalorder %v4351, 1
        %vm4384 = vcmp.eq.s32.totalorder %v4352, 1
        %vm4385 = vmand %vm4353, %vm3061
        %vm4386 = vmand %vm4354, %vm3061
        %vm4387 = vmand %vm4355, %vm3061
        %vm4388 = vmand %vm4356, %vm3061
        %vm4389 = vmand %vm4357, %vm3061
        %vm4390 = vmand %vm4358, %vm3061
        %vm4391 = vmand %vm4359, %vm3061
        %vm4392 = vmand %vm4360, %vm3061
        %vm4393 = vmand %vm4361, %vm3061
        %vm4394 = vmand %vm4362, %vm3061
        %vm4395 = vmand %vm4363, %vm3061
        %vm4396 = vmand %vm4364, %vm3061
        %vm4397 = vmand %vm4365, %vm3061
        %vm4398 = vmand %vm4366, %vm3061
        %vm4399 = vmand %vm4367, %vm3061
        %vm4400 = vmand %vm4368, %vm3061
        %vm4401 = vmand %vm4369, %vm3061
        %vm4402 = vmand %vm4370, %vm3061
        %vm4403 = vmand %vm4371, %vm3061
        %vm4404 = vmand %vm4372, %vm3061
        %vm4405 = vmand %vm4373, %vm3061
        %vm4406 = vmand %vm4374, %vm3061
        %vm4407 = vmand %vm4375, %vm3061
        %vm4408 = vmand %vm4376, %vm3061
        %vm4409 = vmand %vm4377, %vm3061
        %vm4410 = vmand %vm4378, %vm3061
        %vm4411 = vmand %vm4379, %vm3061
        %vm4412 = vmand %vm4380, %vm3061
        %vm4413 = vmand %vm4381, %vm3061
        %vm4414 = vmand %vm4382, %vm3061
        %vm4415 = vmand %vm4383, %vm3061
        %vm4416 = vmand %vm4384, %vm3061
        %v4417 = vrot.slane %v914, 6
        %v4418 = vrot.slane %v916, 6
        %v4419 = vrot.slane %v918, 6
        %v4420 = vrot.slane %v920, 6
        %v4421 = vrot.slane %v922, 6
        %v4422 = vrot.slane %v924, 6
        %v4423 = vrot.slane %v926, 6
        %v4424 = vrot.slane %v928, 6
        %v4425 = vrot.slane %v930, 6
        %v4426 = vrot.slane %v932, 6
        %v4427 = vrot.slane %v934, 6
        %v4428 = vrot.slane %v936, 6
        %v4429 = vrot.slane %v938, 6
        %v4430 = vrot.slane %v940, 6
        %v4431 = vrot.slane %v942, 6
        %v4432 = vrot.slane %v944, 6
        %v4433 = vrot.slane %v946, 6
        %v4434 = vrot.slane %v948, 6
        %v4435 = vrot.slane %v950, 6
        %v4436 = vrot.slane %v952, 6
        %v4437 = vrot.slane %v954, 6
        %v4438 = vrot.slane %v956, 6
        %v4439 = vrot.slane %v958, 6
        %v4440 = vrot.slane %v960, 6
        %v4441 = vrot.slane %v962, 6
        %v4442 = vrot.slane %v964, 6
        %v4443 = vrot.slane %v966, 6
        %v4444 = vrot.slane %v968, 6
        %v4445 = vrot.slane %v970, 6
        %v4446 = vrot.slane %v972, 6
        %v4447 = vrot.slane %v974, 6
        %v4448 = vrot.slane %v976, 6
        %vm4449 = vcmp.lt.s32.totalorder %v391, 2
        %v4450 = vsel %vm4449, %v4447, %v4448
        %v4451 = vsel %vm4449, %v4446, %v4447
        %v4452 = vsel %vm4449, %v4445, %v4446
        %v4453 = vsel %vm4449, %v4444, %v4445
        %v4454 = vsel %vm4449, %v4443, %v4444
        %v4455 = vsel %vm4449, %v4442, %v4443
        %v4456 = vsel %vm4449, %v4441, %v4442
        %v4457 = vsel %vm4449, %v4440, %v4441
        %v4458 = vsel %vm4449, %v4439, %v4440
        %v4459 = vsel %vm4449, %v4438, %v4439
        %v4460 = vsel %vm4449, %v4437, %v4438
        %v4461 = vsel %vm4449, %v4436, %v4437
        %v4462 = vsel %vm4449, %v4435, %v4436
        %v4463 = vsel %vm4449, %v4434, %v4435
        %v4464 = vsel %vm4449, %v4433, %v4434
        %v4465 = vsel %vm4449, %v4432, %v4433
        %v4466 = vsel %vm4449, %v4431, %v4432
        %v4467 = vsel %vm4449, %v4430, %v4431
        %v4468 = vsel %vm4449, %v4429, %v4430
        %v4469 = vsel %vm4449, %v4428, %v4429
        %v4470 = vsel %vm4449, %v4427, %v4428
        %v4471 = vsel %vm4449, %v4426, %v4427
        %v4472 = vsel %vm4449, %v4425, %v4426
        %v4473 = vsel %vm4449, %v4424, %v4425
        %v4474 = vsel %vm4449, %v4423, %v4424
        %v4475 = vsel %vm4449, %v4422, %v4423
        %v4476 = vsel %vm4449, %v4421, %v4422
        %v4477 = vsel %vm4449, %v4420, %v4421
        %v4478 = vsel %vm4449, %v4419, %v4420
        %v4479 = vsel %vm4449, %v4418, %v4419
        %v4480 = vsel %vm4449, %v4417, %v4418
        %v4481 = vsel %vm4449, %v4448, %v4417
        %v4482 = vsel %vm4385, %v4453, 0.0
        %v4483 = vsel %vm4386, %v4452, 0.0
        %v4484 = vsel %vm4387, %v4451, 0.0
        %v4485 = vsel %vm4388, %v4450, 0.0
        %v4486 = vsel %vm4389, %v4481, 0.0
        %v4487 = vsel %vm4390, %v4480, 0.0
        %v4488 = vsel %vm4391, %v4479, 0.0
        %v4489 = vsel %vm4392, %v4478, 0.0
        %v4490 = vsel %vm4393, %v4477, 0.0
        %v4491 = vsel %vm4394, %v4476, 0.0
        %v4492 = vsel %vm4395, %v4475, 0.0
        %v4493 = vsel %vm4396, %v4474, 0.0
        %v4494 = vsel %vm4397, %v4473, 0.0
        %v4495 = vsel %vm4398, %v4472, 0.0
        %v4496 = vsel %vm4399, %v4471, 0.0
        %v4497 = vsel %vm4400, %v4470, 0.0
        %v4498 = vsel %vm4401, %v4469, 0.0
        %v4499 = vsel %vm4402, %v4468, 0.0
        %v4500 = vsel %vm4403, %v4467, 0.0
        %v4501 = vsel %vm4404, %v4466, 0.0
        %v4502 = vsel %vm4405, %v4465, 0.0
        %v4503 = vsel %vm4406, %v4464, 0.0
        %v4504 = vsel %vm4407, %v4463, 0.0
        %v4505 = vsel %vm4408, %v4462, 0.0
        %v4506 = vsel %vm4409, %v4461, 0.0
        %v4507 = vsel %vm4410, %v4460, 0.0
        %v4508 = vsel %vm4411, %v4459, 0.0
        %v4509 = vsel %vm4412, %v4458, 0.0
        %v4510 = vsel %vm4413, %v4457, 0.0
        %v4511 = vsel %vm4414, %v4456, 0.0
        %v4512 = vsel %vm4415, %v4455, 0.0
        %v4513 = vsel %vm4416, %v4454, 0.0
        %v4514 = vsel %vm2225, 1, 0
        %v4515 = vsel %vm2226, 1, 0
        %v4516 = vsel %vm2227, 1, 0
        %v4517 = vsel %vm2228, 1, 0
        %v4518 = vsel %vm2229, 1, 0
        %v4519 = vsel %vm2230, 1, 0
        %v4520 = vsel %vm2231, 1, 0
        %v4521 = vsel %vm2232, 1, 0
        %v4522 = vsel %vm2233, 1, 0
        %v4523 = vsel %vm2234, 1, 0
        %v4524 = vsel %vm2235, 1, 0
        %v4525 = vsel %vm2236, 1, 0
        %v4526 = vsel %vm2237, 1, 0
        %v4527 = vsel %vm2238, 1, 0
        %v4528 = vsel %vm2239, 1, 0
        %v4529 = vsel %vm2240, 1, 0
        %v4530 = vsel %vm2241, 1, 0
        %v4531 = vsel %vm2242, 1, 0
        %v4532 = vsel %vm2243, 1, 0
        %v4533 = vsel %vm2244, 1, 0
        %v4534 = vsel %vm2245, 1, 0
        %v4535 = vsel %vm2246, 1, 0
        %v4536 = vsel %vm2247, 1, 0
        %v4537 = vsel %vm2248, 1, 0
        %v4538 = vsel %vm2249, 1, 0
        %v4539 = vsel %vm2250, 1, 0
        %v4540 = vsel %vm2251, 1, 0
        %v4541 = vsel %vm2252, 1, 0
        %v4542 = vsel %vm2253, 1, 0
        %v4543 = vsel %vm2254, 1, 0
        %v4544 = vsel %vm2255, 1, 0
        %v4545 = vsel %vm2256, 1, 0
        %vm4546 = vcmp.eq.s32.totalorder %v4514, 1
        %vm4547 = vcmp.eq.s32.totalorder %v4515, 1
        %vm4548 = vcmp.eq.s32.totalorder %v4516, 1
        %vm4549 = vcmp.eq.s32.totalorder %v4517, 1
        %vm4550 = vcmp.eq.s32.totalorder %v4518, 1
        %vm4551 = vcmp.eq.s32.totalorder %v4519, 1
        %vm4552 = vcmp.eq.s32.totalorder %v4520, 1
        %vm4553 = vcmp.eq.s32.totalorder %v4521, 1
        %vm4554 = vcmp.eq.s32.totalorder %v4522, 1
        %vm4555 = vcmp.eq.s32.totalorder %v4523, 1
        %vm4556 = vcmp.eq.s32.totalorder %v4524, 1
        %vm4557 = vcmp.eq.s32.totalorder %v4525, 1
        %vm4558 = vcmp.eq.s32.totalorder %v4526, 1
        %vm4559 = vcmp.eq.s32.totalorder %v4527, 1
        %vm4560 = vcmp.eq.s32.totalorder %v4528, 1
        %vm4561 = vcmp.eq.s32.totalorder %v4529, 1
        %vm4562 = vcmp.eq.s32.totalorder %v4530, 1
        %vm4563 = vcmp.eq.s32.totalorder %v4531, 1
        %vm4564 = vcmp.eq.s32.totalorder %v4532, 1
        %vm4565 = vcmp.eq.s32.totalorder %v4533, 1
        %vm4566 = vcmp.eq.s32.totalorder %v4534, 1
        %vm4567 = vcmp.eq.s32.totalorder %v4535, 1
        %vm4568 = vcmp.eq.s32.totalorder %v4536, 1
        %vm4569 = vcmp.eq.s32.totalorder %v4537, 1
        %vm4570 = vcmp.eq.s32.totalorder %v4538, 1
        %vm4571 = vcmp.eq.s32.totalorder %v4539, 1
        %vm4572 = vcmp.eq.s32.totalorder %v4540, 1
        %vm4573 = vcmp.eq.s32.totalorder %v4541, 1
        %vm4574 = vcmp.eq.s32.totalorder %v4542, 1
        %vm4575 = vcmp.eq.s32.totalorder %v4543, 1
        %vm4576 = vcmp.eq.s32.totalorder %v4544, 1
        %vm4577 = vcmp.eq.s32.totalorder %v4545, 1
        %vm4578 = vmand %vm4546, %vm3259
        %vm4579 = vmand %vm4547, %vm3259
        %vm4580 = vmand %vm4548, %vm3259
        %vm4581 = vmand %vm4549, %vm3259
        %vm4582 = vmand %vm4550, %vm3259
        %vm4583 = vmand %vm4551, %vm3259
        %vm4584 = vmand %vm4552, %vm3259
        %vm4585 = vmand %vm4553, %vm3259
        %vm4586 = vmand %vm4554, %vm3259
        %vm4587 = vmand %vm4555, %vm3259
        %vm4588 = vmand %vm4556, %vm3259
        %vm4589 = vmand %vm4557, %vm3259
        %vm4590 = vmand %vm4558, %vm3259
        %vm4591 = vmand %vm4559, %vm3259
        %vm4592 = vmand %vm4560, %vm3259
        %vm4593 = vmand %vm4561, %vm3259
        %vm4594 = vmand %vm4562, %vm3259
        %vm4595 = vmand %vm4563, %vm3259
        %vm4596 = vmand %vm4564, %vm3259
        %vm4597 = vmand %vm4565, %vm3259
        %vm4598 = vmand %vm4566, %vm3259
        %vm4599 = vmand %vm4567, %vm3259
        %vm4600 = vmand %vm4568, %vm3259
        %vm4601 = vmand %vm4569, %vm3259
        %vm4602 = vmand %vm4570, %vm3259
        %vm4603 = vmand %vm4571, %vm3259
        %vm4604 = vmand %vm4572, %vm3259
        %vm4605 = vmand %vm4573, %vm3259
        %vm4606 = vmand %vm4574, %vm3259
        %vm4607 = vmand %vm4575, %vm3259
        %vm4608 = vmand %vm4576, %vm3259
        %vm4609 = vmand %vm4577, %vm3259
        %v4610 = vrot.slane %v914, 7
        %v4611 = vrot.slane %v916, 7
        %v4612 = vrot.slane %v918, 7
        %v4613 = vrot.slane %v920, 7
        %v4614 = vrot.slane %v922, 7
        %v4615 = vrot.slane %v924, 7
        %v4616 = vrot.slane %v926, 7
        %v4617 = vrot.slane %v928, 7
        %v4618 = vrot.slane %v930, 7
        %v4619 = vrot.slane %v932, 7
        %v4620 = vrot.slane %v934, 7
        %v4621 = vrot.slane %v936, 7
        %v4622 = vrot.slane %v938, 7
        %v4623 = vrot.slane %v940, 7
        %v4624 = vrot.slane %v942, 7
        %v4625 = vrot.slane %v944, 7
        %v4626 = vrot.slane %v946, 7
        %v4627 = vrot.slane %v948, 7
        %v4628 = vrot.slane %v950, 7
        %v4629 = vrot.slane %v952, 7
        %v4630 = vrot.slane %v954, 7
        %v4631 = vrot.slane %v956, 7
        %v4632 = vrot.slane %v958, 7
        %v4633 = vrot.slane %v960, 7
        %v4634 = vrot.slane %v962, 7
        %v4635 = vrot.slane %v964, 7
        %v4636 = vrot.slane %v966, 7
        %v4637 = vrot.slane %v968, 7
        %v4638 = vrot.slane %v970, 7
        %v4639 = vrot.slane %v972, 7
        %v4640 = vrot.slane %v974, 7
        %v4641 = vrot.slane %v976, 7
        %v4642 = vsel %vm3126, %v4640, %v4641
        %v4643 = vsel %vm3126, %v4639, %v4640
        %v4644 = vsel %vm3126, %v4638, %v4639
        %v4645 = vsel %vm3126, %v4637, %v4638
        %v4646 = vsel %vm3126, %v4636, %v4637
        %v4647 = vsel %vm3126, %v4635, %v4636
        %v4648 = vsel %vm3126, %v4634, %v4635
        %v4649 = vsel %vm3126, %v4633, %v4634
        %v4650 = vsel %vm3126, %v4632, %v4633
        %v4651 = vsel %vm3126, %v4631, %v4632
        %v4652 = vsel %vm3126, %v4630, %v4631
        %v4653 = vsel %vm3126, %v4629, %v4630
        %v4654 = vsel %vm3126, %v4628, %v4629
        %v4655 = vsel %vm3126, %v4627, %v4628
        %v4656 = vsel %vm3126, %v4626, %v4627
        %v4657 = vsel %vm3126, %v4625, %v4626
        %v4658 = vsel %vm3126, %v4624, %v4625
        %v4659 = vsel %vm3126, %v4623, %v4624
        %v4660 = vsel %vm3126, %v4622, %v4623
        %v4661 = vsel %vm3126, %v4621, %v4622
        %v4662 = vsel %vm3126, %v4620, %v4621
        %v4663 = vsel %vm3126, %v4619, %v4620
        %v4664 = vsel %vm3126, %v4618, %v4619
        %v4665 = vsel %vm3126, %v4617, %v4618
        %v4666 = vsel %vm3126, %v4616, %v4617
        %v4667 = vsel %vm3126, %v4615, %v4616
        %v4668 = vsel %vm3126, %v4614, %v4615
        %v4669 = vsel %vm3126, %v4613, %v4614
        %v4670 = vsel %vm3126, %v4612, %v4613
        %v4671 = vsel %vm3126, %v4611, %v4612
        %v4672 = vsel %vm3126, %v4610, %v4611
        %v4673 = vsel %vm3126, %v4641, %v4610
        %v4674 = vsel %vm4578, %v4645, %v4482
        %v4675 = vsel %vm4579, %v4644, %v4483
        %v4676 = vsel %vm4580, %v4643, %v4484
        %v4677 = vsel %vm4581, %v4642, %v4485
        %v4678 = vsel %vm4582, %v4673, %v4486
        %v4679 = vsel %vm4583, %v4672, %v4487
        %v4680 = vsel %vm4584, %v4671, %v4488
        %v4681 = vsel %vm4585, %v4670, %v4489
        %v4682 = vsel %vm4586, %v4669, %v4490
        %v4683 = vsel %vm4587, %v4668, %v4491
        %v4684 = vsel %vm4588, %v4667, %v4492
        %v4685 = vsel %vm4589, %v4666, %v4493
        %v4686 = vsel %vm4590, %v4665, %v4494
        %v4687 = vsel %vm4591, %v4664, %v4495
        %v4688 = vsel %vm4592, %v4663, %v4496
        %v4689 = vsel %vm4593, %v4662, %v4497
        %v4690 = vsel %vm4594, %v4661, %v4498
        %v4691 = vsel %vm4595, %v4660, %v4499
        %v4692 = vsel %vm4596, %v4659, %v4500
        %v4693 = vsel %vm4597, %v4658, %v4501
        %v4694 = vsel %vm4598, %v4657, %v4502
        %v4695 = vsel %vm4599, %v4656, %v4503
        %v4696 = vsel %vm4600, %v4655, %v4504
        %v4697 = vsel %vm4601, %v4654, %v4505
        %v4698 = vsel %vm4602, %v4653, %v4506
        %v4699 = vsel %vm4603, %v4652, %v4507
        %v4700 = vsel %vm4604, %v4651, %v4508
        %v4701 = vsel %vm4605, %v4650, %v4509
        %v4702 = vsel %vm4606, %v4649, %v4510
        %v4703 = vsel %vm4607, %v4648, %v4511
        %v4704 = vsel %vm4608, %v4647, %v4512
        %v4705 = vsel %vm4609, %v4646, %v4513
        %v4706 = vsel %vm2257, 1, 0
        %v4707 = vsel %vm2258, 1, 0
        %v4708 = vsel %vm2259, 1, 0
        %v4709 = vsel %vm2260, 1, 0
        %v4710 = vsel %vm2261, 1, 0
        %v4711 = vsel %vm2262, 1, 0
        %v4712 = vsel %vm2263, 1, 0
        %v4713 = vsel %vm2264, 1, 0
        %v4714 = vsel %vm2265, 1, 0
        %v4715 = vsel %vm2266, 1, 0
        %v4716 = vsel %vm2267, 1, 0
        %v4717 = vsel %vm2268, 1, 0
        %v4718 = vsel %vm2269, 1, 0
        %v4719 = vsel %vm2270, 1, 0
        %v4720 = vsel %vm2271, 1, 0
        %v4721 = vsel %vm2272, 1, 0
        %v4722 = vsel %vm2273, 1, 0
        %v4723 = vsel %vm2274, 1, 0
        %v4724 = vsel %vm2275, 1, 0
        %v4725 = vsel %vm2276, 1, 0
        %v4726 = vsel %vm2277, 1, 0
        %v4727 = vsel %vm2278, 1, 0
        %v4728 = vsel %vm2279, 1, 0
        %v4729 = vsel %vm2280, 1, 0
        %v4730 = vsel %vm2281, 1, 0
        %v4731 = vsel %vm2282, 1, 0
        %v4732 = vsel %vm2283, 1, 0
        %v4733 = vsel %vm2284, 1, 0
        %v4734 = vsel %vm2285, 1, 0
        %v4735 = vsel %vm2286, 1, 0
        %v4736 = vsel %vm2287, 1, 0
        %v4737 = vsel %vm2288, 1, 0
        %vm4738 = vcmp.eq.s32.totalorder %v4706, 1
        %vm4739 = vcmp.eq.s32.totalorder %v4707, 1
        %vm4740 = vcmp.eq.s32.totalorder %v4708, 1
        %vm4741 = vcmp.eq.s32.totalorder %v4709, 1
        %vm4742 = vcmp.eq.s32.totalorder %v4710, 1
        %vm4743 = vcmp.eq.s32.totalorder %v4711, 1
        %vm4744 = vcmp.eq.s32.totalorder %v4712, 1
        %vm4745 = vcmp.eq.s32.totalorder %v4713, 1
        %vm4746 = vcmp.eq.s32.totalorder %v4714, 1
        %vm4747 = vcmp.eq.s32.totalorder %v4715, 1
        %vm4748 = vcmp.eq.s32.totalorder %v4716, 1
        %vm4749 = vcmp.eq.s32.totalorder %v4717, 1
        %vm4750 = vcmp.eq.s32.totalorder %v4718, 1
        %vm4751 = vcmp.eq.s32.totalorder %v4719, 1
        %vm4752 = vcmp.eq.s32.totalorder %v4720, 1
        %vm4753 = vcmp.eq.s32.totalorder %v4721, 1
        %vm4754 = vcmp.eq.s32.totalorder %v4722, 1
        %vm4755 = vcmp.eq.s32.totalorder %v4723, 1
        %vm4756 = vcmp.eq.s32.totalorder %v4724, 1
        %vm4757 = vcmp.eq.s32.totalorder %v4725, 1
        %vm4758 = vcmp.eq.s32.totalorder %v4726, 1
        %vm4759 = vcmp.eq.s32.totalorder %v4727, 1
        %vm4760 = vcmp.eq.s32.totalorder %v4728, 1
        %vm4761 = vcmp.eq.s32.totalorder %v4729, 1
        %vm4762 = vcmp.eq.s32.totalorder %v4730, 1
        %vm4763 = vcmp.eq.s32.totalorder %v4731, 1
        %vm4764 = vcmp.eq.s32.totalorder %v4732, 1
        %vm4765 = vcmp.eq.s32.totalorder %v4733, 1
        %vm4766 = vcmp.eq.s32.totalorder %v4734, 1
        %vm4767 = vcmp.eq.s32.totalorder %v4735, 1
        %vm4768 = vcmp.eq.s32.totalorder %v4736, 1
        %vm4769 = vcmp.eq.s32.totalorder %v4737, 1
        %vm4770 = vmand %vm4738, %vm3392
        %vm4771 = vmand %vm4739, %vm3392
        %vm4772 = vmand %vm4740, %vm3392
        %vm4773 = vmand %vm4741, %vm3392
        %vm4774 = vmand %vm4742, %vm3392
        %vm4775 = vmand %vm4743, %vm3392
        %vm4776 = vmand %vm4744, %vm3392
        %vm4777 = vmand %vm4745, %vm3392
        %vm4778 = vmand %vm4746, %vm3392
        %vm4779 = vmand %vm4747, %vm3392
        %vm4780 = vmand %vm4748, %vm3392
        %vm4781 = vmand %vm4749, %vm3392
        %vm4782 = vmand %vm4750, %vm3392
        %vm4783 = vmand %vm4751, %vm3392
        %vm4784 = vmand %vm4752, %vm3392
        %vm4785 = vmand %vm4753, %vm3392
        %vm4786 = vmand %vm4754, %vm3392
        %vm4787 = vmand %vm4755, %vm3392
        %vm4788 = vmand %vm4756, %vm3392
        %vm4789 = vmand %vm4757, %vm3392
        %vm4790 = vmand %vm4758, %vm3392
        %vm4791 = vmand %vm4759, %vm3392
        %vm4792 = vmand %vm4760, %vm3392
        %vm4793 = vmand %vm4761, %vm3392
        %vm4794 = vmand %vm4762, %vm3392
        %vm4795 = vmand %vm4763, %vm3392
        %vm4796 = vmand %vm4764, %vm3392
        %vm4797 = vmand %vm4765, %vm3392
        %vm4798 = vmand %vm4766, %vm3392
        %vm4799 = vmand %vm4767, %vm3392
        %vm4800 = vmand %vm4768, %vm3392
        %vm4801 = vmand %vm4769, %vm3392
        %v4802 = vsel %vm4770, %v970, %v4674
        %v4803 = vsel %vm4771, %v972, %v4675
        %v4804 = vsel %vm4772, %v974, %v4676
        %v4805 = vsel %vm4773, %v976, %v4677
        %v4806 = vsel %vm4774, %v914, %v4678
        %v4807 = vsel %vm4775, %v916, %v4679
        %v4808 = vsel %vm4776, %v918, %v4680
        %v4809 = vsel %vm4777, %v920, %v4681
        %v4810 = vsel %vm4778, %v922, %v4682
        %v4811 = vsel %vm4779, %v924, %v4683
        %v4812 = vsel %vm4780, %v926, %v4684
        %v4813 = vsel %vm4781, %v928, %v4685
        %v4814 = vsel %vm4782, %v930, %v4686
        %v4815 = vsel %vm4783, %v932, %v4687
        %v4816 = vsel %vm4784, %v934, %v4688
        %v4817 = vsel %vm4785, %v936, %v4689
        %v4818 = vsel %vm4786, %v938, %v4690
        %v4819 = vsel %vm4787, %v940, %v4691
        %v4820 = vsel %vm4788, %v942, %v4692
        %v4821 = vsel %vm4789, %v944, %v4693
        %v4822 = vsel %vm4790, %v946, %v4694
        %v4823 = vsel %vm4791, %v948, %v4695
        %v4824 = vsel %vm4792, %v950, %v4696
        %v4825 = vsel %vm4793, %v952, %v4697
        %v4826 = vsel %vm4794, %v954, %v4698
        %v4827 = vsel %vm4795, %v956, %v4699
        %v4828 = vsel %vm4796, %v958, %v4700
        %v4829 = vsel %vm4797, %v960, %v4701
        %v4830 = vsel %vm4798, %v962, %v4702
        %v4831 = vsel %vm4799, %v964, %v4703
        %v4832 = vsel %vm4800, %v966, %v4704
        %v4833 = vsel %vm4801, %v968, %v4705
        %v4834 = vsel %vm2289, 1, 0
        %v4835 = vsel %vm2290, 1, 0
        %v4836 = vsel %vm2291, 1, 0
        %v4837 = vsel %vm2292, 1, 0
        %v4838 = vsel %vm2293, 1, 0
        %v4839 = vsel %vm2294, 1, 0
        %v4840 = vsel %vm2295, 1, 0
        %v4841 = vsel %vm2296, 1, 0
        %v4842 = vsel %vm2297, 1, 0
        %v4843 = vsel %vm2298, 1, 0
        %v4844 = vsel %vm2299, 1, 0
        %v4845 = vsel %vm2300, 1, 0
        %v4846 = vsel %vm2301, 1, 0
        %v4847 = vsel %vm2302, 1, 0
        %v4848 = vsel %vm2303, 1, 0
        %v4849 = vsel %vm2304, 1, 0
        %v4850 = vsel %vm2305, 1, 0
        %v4851 = vsel %vm2306, 1, 0
        %v4852 = vsel %vm2307, 1, 0
        %v4853 = vsel %vm2308, 1, 0
        %v4854 = vsel %vm2309, 1, 0
        %v4855 = vsel %vm2310, 1, 0
        %v4856 = vsel %vm2311, 1, 0
        %v4857 = vsel %vm2312, 1, 0
        %v4858 = vsel %vm2313, 1, 0
        %v4859 = vsel %vm2314, 1, 0
        %v4860 = vsel %vm2315, 1, 0
        %v4861 = vsel %vm2316, 1, 0
        %v4862 = vsel %vm2317, 1, 0
        %v4863 = vsel %vm2318, 1, 0
        %v4864 = vsel %vm2319, 1, 0
        %v4865 = vsel %vm2320, 1, 0
        %vm4866 = vcmp.eq.s32.totalorder %v4834, 1
        %vm4867 = vcmp.eq.s32.totalorder %v4835, 1
        %vm4868 = vcmp.eq.s32.totalorder %v4836, 1
        %vm4869 = vcmp.eq.s32.totalorder %v4837, 1
        %vm4870 = vcmp.eq.s32.totalorder %v4838, 1
        %vm4871 = vcmp.eq.s32.totalorder %v4839, 1
        %vm4872 = vcmp.eq.s32.totalorder %v4840, 1
        %vm4873 = vcmp.eq.s32.totalorder %v4841, 1
        %vm4874 = vcmp.eq.s32.totalorder %v4842, 1
        %vm4875 = vcmp.eq.s32.totalorder %v4843, 1
        %vm4876 = vcmp.eq.s32.totalorder %v4844, 1
        %vm4877 = vcmp.eq.s32.totalorder %v4845, 1
        %vm4878 = vcmp.eq.s32.totalorder %v4846, 1
        %vm4879 = vcmp.eq.s32.totalorder %v4847, 1
        %vm4880 = vcmp.eq.s32.totalorder %v4848, 1
        %vm4881 = vcmp.eq.s32.totalorder %v4849, 1
        %vm4882 = vcmp.eq.s32.totalorder %v4850, 1
        %vm4883 = vcmp.eq.s32.totalorder %v4851, 1
        %vm4884 = vcmp.eq.s32.totalorder %v4852, 1
        %vm4885 = vcmp.eq.s32.totalorder %v4853, 1
        %vm4886 = vcmp.eq.s32.totalorder %v4854, 1
        %vm4887 = vcmp.eq.s32.totalorder %v4855, 1
        %vm4888 = vcmp.eq.s32.totalorder %v4856, 1
        %vm4889 = vcmp.eq.s32.totalorder %v4857, 1
        %vm4890 = vcmp.eq.s32.totalorder %v4858, 1
        %vm4891 = vcmp.eq.s32.totalorder %v4859, 1
        %vm4892 = vcmp.eq.s32.totalorder %v4860, 1
        %vm4893 = vcmp.eq.s32.totalorder %v4861, 1
        %vm4894 = vcmp.eq.s32.totalorder %v4862, 1
        %vm4895 = vcmp.eq.s32.totalorder %v4863, 1
        %vm4896 = vcmp.eq.s32.totalorder %v4864, 1
        %vm4897 = vcmp.eq.s32.totalorder %v4865, 1
        %vm4898 = vmand %vm4866, %vm3590
        %vm4899 = vmand %vm4867, %vm3590
        %vm4900 = vmand %vm4868, %vm3590
        %vm4901 = vmand %vm4869, %vm3590
        %vm4902 = vmand %vm4870, %vm3590
        %vm4903 = vmand %vm4871, %vm3590
        %vm4904 = vmand %vm4872, %vm3590
        %vm4905 = vmand %vm4873, %vm3590
        %vm4906 = vmand %vm4874, %vm3590
        %vm4907 = vmand %vm4875, %vm3590
        %vm4908 = vmand %vm4876, %vm3590
        %vm4909 = vmand %vm4877, %vm3590
        %vm4910 = vmand %vm4878, %vm3590
        %vm4911 = vmand %vm4879, %vm3590
        %vm4912 = vmand %vm4880, %vm3590
        %vm4913 = vmand %vm4881, %vm3590
        %vm4914 = vmand %vm4882, %vm3590
        %vm4915 = vmand %vm4883, %vm3590
        %vm4916 = vmand %vm4884, %vm3590
        %vm4917 = vmand %vm4885, %vm3590
        %vm4918 = vmand %vm4886, %vm3590
        %vm4919 = vmand %vm4887, %vm3590
        %vm4920 = vmand %vm4888, %vm3590
        %vm4921 = vmand %vm4889, %vm3590
        %vm4922 = vmand %vm4890, %vm3590
        %vm4923 = vmand %vm4891, %vm3590
        %vm4924 = vmand %vm4892, %vm3590
        %vm4925 = vmand %vm4893, %vm3590
        %vm4926 = vmand %vm4894, %vm3590
        %vm4927 = vmand %vm4895, %vm3590
        %vm4928 = vmand %vm4896, %vm3590
        %vm4929 = vmand %vm4897, %vm3590
        %v4930 = vrot.slane %v914, 1
        %v4931 = vrot.slane %v916, 1
        %v4932 = vrot.slane %v918, 1
        %v4933 = vrot.slane %v920, 1
        %v4934 = vrot.slane %v922, 1
        %v4935 = vrot.slane %v924, 1
        %v4936 = vrot.slane %v926, 1
        %v4937 = vrot.slane %v928, 1
        %v4938 = vrot.slane %v930, 1
        %v4939 = vrot.slane %v932, 1
        %v4940 = vrot.slane %v934, 1
        %v4941 = vrot.slane %v936, 1
        %v4942 = vrot.slane %v938, 1
        %v4943 = vrot.slane %v940, 1
        %v4944 = vrot.slane %v942, 1
        %v4945 = vrot.slane %v944, 1
        %v4946 = vrot.slane %v946, 1
        %v4947 = vrot.slane %v948, 1
        %v4948 = vrot.slane %v950, 1
        %v4949 = vrot.slane %v952, 1
        %v4950 = vrot.slane %v954, 1
        %v4951 = vrot.slane %v956, 1
        %v4952 = vrot.slane %v958, 1
        %v4953 = vrot.slane %v960, 1
        %v4954 = vrot.slane %v962, 1
        %v4955 = vrot.slane %v964, 1
        %v4956 = vrot.slane %v966, 1
        %v4957 = vrot.slane %v968, 1
        %v4958 = vrot.slane %v970, 1
        %v4959 = vrot.slane %v972, 1
        %v4960 = vrot.slane %v974, 1
        %v4961 = vrot.slane %v976, 1
        %v4962 = vsel %vm3457, %v4960, %v4961
        %v4963 = vsel %vm3457, %v4959, %v4960
        %v4964 = vsel %vm3457, %v4958, %v4959
        %v4965 = vsel %vm3457, %v4957, %v4958
        %v4966 = vsel %vm3457, %v4956, %v4957
        %v4967 = vsel %vm3457, %v4955, %v4956
        %v4968 = vsel %vm3457, %v4954, %v4955
        %v4969 = vsel %vm3457, %v4953, %v4954
        %v4970 = vsel %vm3457, %v4952, %v4953
        %v4971 = vsel %vm3457, %v4951, %v4952
        %v4972 = vsel %vm3457, %v4950, %v4951
        %v4973 = vsel %vm3457, %v4949, %v4950
        %v4974 = vsel %vm3457, %v4948, %v4949
        %v4975 = vsel %vm3457, %v4947, %v4948
        %v4976 = vsel %vm3457, %v4946, %v4947
        %v4977 = vsel %vm3457, %v4945, %v4946
        %v4978 = vsel %vm3457, %v4944, %v4945
        %v4979 = vsel %vm3457, %v4943, %v4944
        %v4980 = vsel %vm3457, %v4942, %v4943
        %v4981 = vsel %vm3457, %v4941, %v4942
        %v4982 = vsel %vm3457, %v4940, %v4941
        %v4983 = vsel %vm3457, %v4939, %v4940
        %v4984 = vsel %vm3457, %v4938, %v4939
        %v4985 = vsel %vm3457, %v4937, %v4938
        %v4986 = vsel %vm3457, %v4936, %v4937
        %v4987 = vsel %vm3457, %v4935, %v4936
        %v4988 = vsel %vm3457, %v4934, %v4935
        %v4989 = vsel %vm3457, %v4933, %v4934
        %v4990 = vsel %vm3457, %v4932, %v4933
        %v4991 = vsel %vm3457, %v4931, %v4932
        %v4992 = vsel %vm3457, %v4930, %v4931
        %v4993 = vsel %vm3457, %v4961, %v4930
        %v4994 = vsel %vm4898, %v4964, %v4802
        %v4995 = vsel %vm4899, %v4963, %v4803
        %v4996 = vsel %vm4900, %v4962, %v4804
        %v4997 = vsel %vm4901, %v4993, %v4805
        %v4998 = vsel %vm4902, %v4992, %v4806
        %v4999 = vsel %vm4903, %v4991, %v4807
        %v5000 = vsel %vm4904, %v4990, %v4808
        %v5001 = vsel %vm4905, %v4989, %v4809
        %v5002 = vsel %vm4906, %v4988, %v4810
        %v5003 = vsel %vm4907, %v4987, %v4811
        %v5004 = vsel %vm4908, %v4986, %v4812
        %v5005 = vsel %vm4909, %v4985, %v4813
        %v5006 = vsel %vm4910, %v4984, %v4814
        %v5007 = vsel %vm4911, %v4983, %v4815
        %v5008 = vsel %vm4912, %v4982, %v4816
        %v5009 = vsel %vm4913, %v4981, %v4817
        %v5010 = vsel %vm4914, %v4980, %v4818
        %v5011 = vsel %vm4915, %v4979, %v4819
        %v5012 = vsel %vm4916, %v4978, %v4820
        %v5013 = vsel %vm4917, %v4977, %v4821
        %v5014 = vsel %vm4918, %v4976, %v4822
        %v5015 = vsel %vm4919, %v4975, %v4823
        %v5016 = vsel %vm4920, %v4974, %v4824
        %v5017 = vsel %vm4921, %v4973, %v4825
        %v5018 = vsel %vm4922, %v4972, %v4826
        %v5019 = vsel %vm4923, %v4971, %v4827
        %v5020 = vsel %vm4924, %v4970, %v4828
        %v5021 = vsel %vm4925, %v4969, %v4829
        %v5022 = vsel %vm4926, %v4968, %v4830
        %v5023 = vsel %vm4927, %v4967, %v4831
        %v5024 = vsel %vm4928, %v4966, %v4832
        %v5025 = vsel %vm4929, %v4965, %v4833
        %v5026 = vsel %vm2321, 1, 0
        %v5027 = vsel %vm2322, 1, 0
        %v5028 = vsel %vm2323, 1, 0
        %v5029 = vsel %vm2324, 1, 0
        %v5030 = vsel %vm2325, 1, 0
        %v5031 = vsel %vm2326, 1, 0
        %v5032 = vsel %vm2327, 1, 0
        %v5033 = vsel %vm2328, 1, 0
        %v5034 = vsel %vm2329, 1, 0
        %v5035 = vsel %vm2330, 1, 0
        %v5036 = vsel %vm2331, 1, 0
        %v5037 = vsel %vm2332, 1, 0
        %v5038 = vsel %vm2333, 1, 0
        %v5039 = vsel %vm2334, 1, 0
        %v5040 = vsel %vm2335, 1, 0
        %v5041 = vsel %vm2336, 1, 0
        %v5042 = vsel %vm2337, 1, 0
        %v5043 = vsel %vm2338, 1, 0
        %v5044 = vsel %vm2339, 1, 0
        %v5045 = vsel %vm2340, 1, 0
        %v5046 = vsel %vm2341, 1, 0
        %v5047 = vsel %vm2342, 1, 0
        %v5048 = vsel %vm2343, 1, 0
        %v5049 = vsel %vm2344, 1, 0
        %v5050 = vsel %vm2345, 1, 0
        %v5051 = vsel %vm2346, 1, 0
        %v5052 = vsel %vm2347, 1, 0
        %v5053 = vsel %vm2348, 1, 0
        %v5054 = vsel %vm2349, 1, 0
        %v5055 = vsel %vm2350, 1, 0
        %v5056 = vsel %vm2351, 1, 0
        %v5057 = vsel %vm2352, 1, 0
        %vm5058 = vcmp.eq.s32.totalorder %v5026, 1
        %vm5059 = vcmp.eq.s32.totalorder %v5027, 1
        %vm5060 = vcmp.eq.s32.totalorder %v5028, 1
        %vm5061 = vcmp.eq.s32.totalorder %v5029, 1
        %vm5062 = vcmp.eq.s32.totalorder %v5030, 1
        %vm5063 = vcmp.eq.s32.totalorder %v5031, 1
        %vm5064 = vcmp.eq.s32.totalorder %v5032, 1
        %vm5065 = vcmp.eq.s32.totalorder %v5033, 1
        %vm5066 = vcmp.eq.s32.totalorder %v5034, 1
        %vm5067 = vcmp.eq.s32.totalorder %v5035, 1
        %vm5068 = vcmp.eq.s32.totalorder %v5036, 1
        %vm5069 = vcmp.eq.s32.totalorder %v5037, 1
        %vm5070 = vcmp.eq.s32.totalorder %v5038, 1
        %vm5071 = vcmp.eq.s32.totalorder %v5039, 1
        %vm5072 = vcmp.eq.s32.totalorder %v5040, 1
        %vm5073 = vcmp.eq.s32.totalorder %v5041, 1
        %vm5074 = vcmp.eq.s32.totalorder %v5042, 1
        %vm5075 = vcmp.eq.s32.totalorder %v5043, 1
        %vm5076 = vcmp.eq.s32.totalorder %v5044, 1
        %vm5077 = vcmp.eq.s32.totalorder %v5045, 1
        %vm5078 = vcmp.eq.s32.totalorder %v5046, 1
        %vm5079 = vcmp.eq.s32.totalorder %v5047, 1
        %vm5080 = vcmp.eq.s32.totalorder %v5048, 1
        %vm5081 = vcmp.eq.s32.totalorder %v5049, 1
        %vm5082 = vcmp.eq.s32.totalorder %v5050, 1
        %vm5083 = vcmp.eq.s32.totalorder %v5051, 1
        %vm5084 = vcmp.eq.s32.totalorder %v5052, 1
        %vm5085 = vcmp.eq.s32.totalorder %v5053, 1
        %vm5086 = vcmp.eq.s32.totalorder %v5054, 1
        %vm5087 = vcmp.eq.s32.totalorder %v5055, 1
        %vm5088 = vcmp.eq.s32.totalorder %v5056, 1
        %vm5089 = vcmp.eq.s32.totalorder %v5057, 1
        %v5090 = vsel %vm3657, 1, 0
        %vm5091 = vcmp.eq.s32.totalorder %v5090, 1
        %vm5092 = vmand %vm5058, %vm5091
        %vm5093 = vmand %vm5059, %vm5091
        %vm5094 = vmand %vm5060, %vm5091
        %vm5095 = vmand %vm5061, %vm5091
        %vm5096 = vmand %vm5062, %vm5091
        %vm5097 = vmand %vm5063, %vm5091
        %vm5098 = vmand %vm5064, %vm5091
        %vm5099 = vmand %vm5065, %vm5091
        %vm5100 = vmand %vm5066, %vm5091
        %vm5101 = vmand %vm5067, %vm5091
        %vm5102 = vmand %vm5068, %vm5091
        %vm5103 = vmand %vm5069, %vm5091
        %vm5104 = vmand %vm5070, %vm5091
        %vm5105 = vmand %vm5071, %vm5091
        %vm5106 = vmand %vm5072, %vm5091
        %vm5107 = vmand %vm5073, %vm5091
        %vm5108 = vmand %vm5074, %vm5091
        %vm5109 = vmand %vm5075, %vm5091
        %vm5110 = vmand %vm5076, %vm5091
        %vm5111 = vmand %vm5077, %vm5091
        %vm5112 = vmand %vm5078, %vm5091
        %vm5113 = vmand %vm5079, %vm5091
        %vm5114 = vmand %vm5080, %vm5091
        %vm5115 = vmand %vm5081, %vm5091
        %vm5116 = vmand %vm5082, %vm5091
        %vm5117 = vmand %vm5083, %vm5091
        %vm5118 = vmand %vm5084, %vm5091
        %vm5119 = vmand %vm5085, %vm5091
        %vm5120 = vmand %vm5086, %vm5091
        %vm5121 = vmand %vm5087, %vm5091
        %vm5122 = vmand %vm5088, %vm5091
        %vm5123 = vmand %vm5089, %vm5091
        %v5124 = vrot.slane %v914, 2
        %v5125 = vrot.slane %v916, 2
        %v5126 = vrot.slane %v918, 2
        %v5127 = vrot.slane %v920, 2
        %v5128 = vrot.slane %v922, 2
        %v5129 = vrot.slane %v924, 2
        %v5130 = vrot.slane %v926, 2
        %v5131 = vrot.slane %v928, 2
        %v5132 = vrot.slane %v930, 2
        %v5133 = vrot.slane %v932, 2
        %v5134 = vrot.slane %v934, 2
        %v5135 = vrot.slane %v936, 2
        %v5136 = vrot.slane %v938, 2
        %v5137 = vrot.slane %v940, 2
        %v5138 = vrot.slane %v942, 2
        %v5139 = vrot.slane %v944, 2
        %v5140 = vrot.slane %v946, 2
        %v5141 = vrot.slane %v948, 2
        %v5142 = vrot.slane %v950, 2
        %v5143 = vrot.slane %v952, 2
        %v5144 = vrot.slane %v954, 2
        %v5145 = vrot.slane %v956, 2
        %v5146 = vrot.slane %v958, 2
        %v5147 = vrot.slane %v960, 2
        %v5148 = vrot.slane %v962, 2
        %v5149 = vrot.slane %v964, 2
        %v5150 = vrot.slane %v966, 2
        %v5151 = vrot.slane %v968, 2
        %v5152 = vrot.slane %v970, 2
        %v5153 = vrot.slane %v972, 2
        %v5154 = vrot.slane %v974, 2
        %v5155 = vrot.slane %v976, 2
        %vm5156 = vcmp.lt.s32.totalorder %v391, 6
        %v5157 = vsel %vm5156, %v5154, %v5155
        %v5158 = vsel %vm5156, %v5153, %v5154
        %v5159 = vsel %vm5156, %v5152, %v5153
        %v5160 = vsel %vm5156, %v5151, %v5152
        %v5161 = vsel %vm5156, %v5150, %v5151
        %v5162 = vsel %vm5156, %v5149, %v5150
        %v5163 = vsel %vm5156, %v5148, %v5149
        %v5164 = vsel %vm5156, %v5147, %v5148
        %v5165 = vsel %vm5156, %v5146, %v5147
        %v5166 = vsel %vm5156, %v5145, %v5146
        %v5167 = vsel %vm5156, %v5144, %v5145
        %v5168 = vsel %vm5156, %v5143, %v5144
        %v5169 = vsel %vm5156, %v5142, %v5143
        %v5170 = vsel %vm5156, %v5141, %v5142
        %v5171 = vsel %vm5156, %v5140, %v5141
        %v5172 = vsel %vm5156, %v5139, %v5140
        %v5173 = vsel %vm5156, %v5138, %v5139
        %v5174 = vsel %vm5156, %v5137, %v5138
        %v5175 = vsel %vm5156, %v5136, %v5137
        %v5176 = vsel %vm5156, %v5135, %v5136
        %v5177 = vsel %vm5156, %v5134, %v5135
        %v5178 = vsel %vm5156, %v5133, %v5134
        %v5179 = vsel %vm5156, %v5132, %v5133
        %v5180 = vsel %vm5156, %v5131, %v5132
        %v5181 = vsel %vm5156, %v5130, %v5131
        %v5182 = vsel %vm5156, %v5129, %v5130
        %v5183 = vsel %vm5156, %v5128, %v5129
        %v5184 = vsel %vm5156, %v5127, %v5128
        %v5185 = vsel %vm5156, %v5126, %v5127
        %v5186 = vsel %vm5156, %v5125, %v5126
        %v5187 = vsel %vm5156, %v5124, %v5125
        %v5188 = vsel %vm5156, %v5155, %v5124
        %v5189 = vsel %vm5092, %v5159, %v4994
        %v5190 = vsel %vm5093, %v5158, %v4995
        %v5191 = vsel %vm5094, %v5157, %v4996
        %v5192 = vsel %vm5095, %v5188, %v4997
        %v5193 = vsel %vm5096, %v5187, %v4998
        %v5194 = vsel %vm5097, %v5186, %v4999
        %v5195 = vsel %vm5098, %v5185, %v5000
        %v5196 = vsel %vm5099, %v5184, %v5001
        %v5197 = vsel %vm5100, %v5183, %v5002
        %v5198 = vsel %vm5101, %v5182, %v5003
        %v5199 = vsel %vm5102, %v5181, %v5004
        %v5200 = vsel %vm5103, %v5180, %v5005
        %v5201 = vsel %vm5104, %v5179, %v5006
        %v5202 = vsel %vm5105, %v5178, %v5007
        %v5203 = vsel %vm5106, %v5177, %v5008
        %v5204 = vsel %vm5107, %v5176, %v5009
        %v5205 = vsel %vm5108, %v5175, %v5010
        %v5206 = vsel %vm5109, %v5174, %v5011
        %v5207 = vsel %vm5110, %v5173, %v5012
        %v5208 = vsel %vm5111, %v5172, %v5013
        %v5209 = vsel %vm5112, %v5171, %v5014
        %v5210 = vsel %vm5113, %v5170, %v5015
        %v5211 = vsel %vm5114, %v5169, %v5016
        %v5212 = vsel %vm5115, %v5168, %v5017
        %v5213 = vsel %vm5116, %v5167, %v5018
        %v5214 = vsel %vm5117, %v5166, %v5019
        %v5215 = vsel %vm5118, %v5165, %v5020
        %v5216 = vsel %vm5119, %v5164, %v5021
        %v5217 = vsel %vm5120, %v5163, %v5022
        %v5218 = vsel %vm5121, %v5162, %v5023
        %v5219 = vsel %vm5122, %v5161, %v5024
        %v5220 = vsel %vm5123, %v5160, %v5025
        %v5221 = vsel %vm2353, 1, 0
        %v5222 = vsel %vm2354, 1, 0
        %v5223 = vsel %vm2355, 1, 0
        %v5224 = vsel %vm2356, 1, 0
        %v5225 = vsel %vm2357, 1, 0
        %v5226 = vsel %vm2358, 1, 0
        %v5227 = vsel %vm2359, 1, 0
        %v5228 = vsel %vm2360, 1, 0
        %v5229 = vsel %vm2361, 1, 0
        %v5230 = vsel %vm2362, 1, 0
        %v5231 = vsel %vm2363, 1, 0
        %v5232 = vsel %vm2364, 1, 0
        %v5233 = vsel %vm2365, 1, 0
        %v5234 = vsel %vm2366, 1, 0
        %v5235 = vsel %vm2367, 1, 0
        %v5236 = vsel %vm2368, 1, 0
        %v5237 = vsel %vm2369, 1, 0
        %v5238 = vsel %vm2370, 1, 0
        %v5239 = vsel %vm2371, 1, 0
        %v5240 = vsel %vm2372, 1, 0
        %v5241 = vsel %vm2373, 1, 0
        %v5242 = vsel %vm2374, 1, 0
        %v5243 = vsel %vm2375, 1, 0
        %v5244 = vsel %vm2376, 1, 0
        %v5245 = vsel %vm2377, 1, 0
        %v5246 = vsel %vm2378, 1, 0
        %v5247 = vsel %vm2379, 1, 0
        %v5248 = vsel %vm2380, 1, 0
        %v5249 = vsel %vm2381, 1, 0
        %v5250 = vsel %vm2382, 1, 0
        %v5251 = vsel %vm2383, 1, 0
        %v5252 = vsel %vm2384, 1, 0
        %vm5253 = vcmp.eq.s32.totalorder %v5221, 1
        %vm5254 = vcmp.eq.s32.totalorder %v5222, 1
        %vm5255 = vcmp.eq.s32.totalorder %v5223, 1
        %vm5256 = vcmp.eq.s32.totalorder %v5224, 1
        %vm5257 = vcmp.eq.s32.totalorder %v5225, 1
        %vm5258 = vcmp.eq.s32.totalorder %v5226, 1
        %vm5259 = vcmp.eq.s32.totalorder %v5227, 1
        %vm5260 = vcmp.eq.s32.totalorder %v5228, 1
        %vm5261 = vcmp.eq.s32.totalorder %v5229, 1
        %vm5262 = vcmp.eq.s32.totalorder %v5230, 1
        %vm5263 = vcmp.eq.s32.totalorder %v5231, 1
        %vm5264 = vcmp.eq.s32.totalorder %v5232, 1
        %vm5265 = vcmp.eq.s32.totalorder %v5233, 1
        %vm5266 = vcmp.eq.s32.totalorder %v5234, 1
        %vm5267 = vcmp.eq.s32.totalorder %v5235, 1
        %vm5268 = vcmp.eq.s32.totalorder %v5236, 1
        %vm5269 = vcmp.eq.s32.totalorder %v5237, 1
        %vm5270 = vcmp.eq.s32.totalorder %v5238, 1
        %vm5271 = vcmp.eq.s32.totalorder %v5239, 1
        %vm5272 = vcmp.eq.s32.totalorder %v5240, 1
        %vm5273 = vcmp.eq.s32.totalorder %v5241, 1
        %vm5274 = vcmp.eq.s32.totalorder %v5242, 1
        %vm5275 = vcmp.eq.s32.totalorder %v5243, 1
        %vm5276 = vcmp.eq.s32.totalorder %v5244, 1
        %vm5277 = vcmp.eq.s32.totalorder %v5245, 1
        %vm5278 = vcmp.eq.s32.totalorder %v5246, 1
        %vm5279 = vcmp.eq.s32.totalorder %v5247, 1
        %vm5280 = vcmp.eq.s32.totalorder %v5248, 1
        %vm5281 = vcmp.eq.s32.totalorder %v5249, 1
        %vm5282 = vcmp.eq.s32.totalorder %v5250, 1
        %vm5283 = vcmp.eq.s32.totalorder %v5251, 1
        %vm5284 = vcmp.eq.s32.totalorder %v5252, 1
        %vm5285 = vmand %vm5253, %vm3857
        %vm5286 = vmand %vm5254, %vm3857
        %vm5287 = vmand %vm5255, %vm3857
        %vm5288 = vmand %vm5256, %vm3857
        %vm5289 = vmand %vm5257, %vm3857
        %vm5290 = vmand %vm5258, %vm3857
        %vm5291 = vmand %vm5259, %vm3857
        %vm5292 = vmand %vm5260, %vm3857
        %vm5293 = vmand %vm5261, %vm3857
        %vm5294 = vmand %vm5262, %vm3857
        %vm5295 = vmand %vm5263, %vm3857
        %vm5296 = vmand %vm5264, %vm3857
        %vm5297 = vmand %vm5265, %vm3857
        %vm5298 = vmand %vm5266, %vm3857
        %vm5299 = vmand %vm5267, %vm3857
        %vm5300 = vmand %vm5268, %vm3857
        %vm5301 = vmand %vm5269, %vm3857
        %vm5302 = vmand %vm5270, %vm3857
        %vm5303 = vmand %vm5271, %vm3857
        %vm5304 = vmand %vm5272, %vm3857
        %vm5305 = vmand %vm5273, %vm3857
        %vm5306 = vmand %vm5274, %vm3857
        %vm5307 = vmand %vm5275, %vm3857
        %vm5308 = vmand %vm5276, %vm3857
        %vm5309 = vmand %vm5277, %vm3857
        %vm5310 = vmand %vm5278, %vm3857
        %vm5311 = vmand %vm5279, %vm3857
        %vm5312 = vmand %vm5280, %vm3857
        %vm5313 = vmand %vm5281, %vm3857
        %vm5314 = vmand %vm5282, %vm3857
        %vm5315 = vmand %vm5283, %vm3857
        %vm5316 = vmand %vm5284, %vm3857
        %v5317 = vsel %vm5285, %v4451, %v5189
        %v5318 = vsel %vm5286, %v4450, %v5190
        %v5319 = vsel %vm5287, %v4481, %v5191
        %v5320 = vsel %vm5288, %v4480, %v5192
        %v5321 = vsel %vm5289, %v4479, %v5193
        %v5322 = vsel %vm5290, %v4478, %v5194
        %v5323 = vsel %vm5291, %v4477, %v5195
        %v5324 = vsel %vm5292, %v4476, %v5196
        %v5325 = vsel %vm5293, %v4475, %v5197
        %v5326 = vsel %vm5294, %v4474, %v5198
        %v5327 = vsel %vm5295, %v4473, %v5199
        %v5328 = vsel %vm5296, %v4472, %v5200
        %v5329 = vsel %vm5297, %v4471, %v5201
        %v5330 = vsel %vm5298, %v4470, %v5202
        %v5331 = vsel %vm5299, %v4469, %v5203
        %v5332 = vsel %vm5300, %v4468, %v5204
        %v5333 = vsel %vm5301, %v4467, %v5205
        %v5334 = vsel %vm5302, %v4466, %v5206
        %v5335 = vsel %vm5303, %v4465, %v5207
        %v5336 = vsel %vm5304, %v4464, %v5208
        %v5337 = vsel %vm5305, %v4463, %v5209
        %v5338 = vsel %vm5306, %v4462, %v5210
        %v5339 = vsel %vm5307, %v4461, %v5211
        %v5340 = vsel %vm5308, %v4460, %v5212
        %v5341 = vsel %vm5309, %v4459, %v5213
        %v5342 = vsel %vm5310, %v4458, %v5214
        %v5343 = vsel %vm5311, %v4457, %v5215
        %v5344 = vsel %vm5312, %v4456, %v5216
        %v5345 = vsel %vm5313, %v4455, %v5217
        %v5346 = vsel %vm5314, %v4454, %v5218
        %v5347 = vsel %vm5315, %v4453, %v5219
        %v5348 = vsel %vm5316, %v4452, %v5220
        %vm5349 = vmand %vm3028, %vm3990
        %vm5350 = vmand %vm3029, %vm3990
        %vm5351 = vmand %vm3030, %vm3990
        %vm5352 = vmand %vm3031, %vm3990
        %vm5353 = vmand %vm3032, %vm3990
        %vm5354 = vmand %vm3033, %vm3990
        %vm5355 = vmand %vm3034, %vm3990
        %vm5356 = vmand %vm3035, %vm3990
        %vm5357 = vmand %vm3036, %vm3990
        %vm5358 = vmand %vm3037, %vm3990
        %vm5359 = vmand %vm3038, %vm3990
        %vm5360 = vmand %vm3039, %vm3990
        %vm5361 = vmand %vm3040, %vm3990
        %vm5362 = vmand %vm3041, %vm3990
        %vm5363 = vmand %vm3042, %vm3990
        %vm5364 = vmand %vm3043, %vm3990
        %vm5365 = vmand %vm3044, %vm3990
        %vm5366 = vmand %vm3045, %vm3990
        %vm5367 = vmand %vm3046, %vm3990
        %vm5368 = vmand %vm3047, %vm3990
        %vm5369 = vmand %vm3048, %vm3990
        %vm5370 = vmand %vm3049, %vm3990
        %vm5371 = vmand %vm3050, %vm3990
        %vm5372 = vmand %vm3051, %vm3990
        %vm5373 = vmand %vm3052, %vm3990
        %vm5374 = vmand %vm3053, %vm3990
        %vm5375 = vmand %vm3054, %vm3990
        %vm5376 = vmand %vm3055, %vm3990
        %vm5377 = vmand %vm3056, %vm3990
        %vm5378 = vmand %vm3057, %vm3990
        %vm5379 = vmand %vm3058, %vm3990
        %vm5380 = vmand %vm3059, %vm3990
        %v5381 = vsel %vm5349, %v4643, %v5317
        %v5382 = vsel %vm5350, %v4642, %v5318
        %v5383 = vsel %vm5351, %v4673, %v5319
        %v5384 = vsel %vm5352, %v4672, %v5320
        %v5385 = vsel %vm5353, %v4671, %v5321
        %v5386 = vsel %vm5354, %v4670, %v5322
        %v5387 = vsel %vm5355, %v4669, %v5323
        %v5388 = vsel %vm5356, %v4668, %v5324
        %v5389 = vsel %vm5357, %v4667, %v5325
        %v5390 = vsel %vm5358, %v4666, %v5326
        %v5391 = vsel %vm5359, %v4665, %v5327
        %v5392 = vsel %vm5360, %v4664, %v5328
        %v5393 = vsel %vm5361, %v4663, %v5329
        %v5394 = vsel %vm5362, %v4662, %v5330
        %v5395 = vsel %vm5363, %v4661, %v5331
        %v5396 = vsel %vm5364, %v4660, %v5332
        %v5397 = vsel %vm5365, %v4659, %v5333
        %v5398 = vsel %vm5366, %v4658, %v5334
        %v5399 = vsel %vm5367, %v4657, %v5335
        %v5400 = vsel %vm5368, %v4656, %v5336
        %v5401 = vsel %vm5369, %v4655, %v5337
        %v5402 = vsel %vm5370, %v4654, %v5338
        %v5403 = vsel %vm5371, %v4653, %v5339
        %v5404 = vsel %vm5372, %v4652, %v5340
        %v5405 = vsel %vm5373, %v4651, %v5341
        %v5406 = vsel %vm5374, %v4650, %v5342
        %v5407 = vsel %vm5375, %v4649, %v5343
        %v5408 = vsel %vm5376, %v4648, %v5344
        %v5409 = vsel %vm5377, %v4647, %v5345
        %v5410 = vsel %vm5378, %v4646, %v5346
        %v5411 = vsel %vm5379, %v4645, %v5347
        %v5412 = vsel %vm5380, %v4644, %v5348
        %vm5413 = vmand %vm3226, %vm4123
        %vm5414 = vmand %vm3227, %vm4123
        %vm5415 = vmand %vm3228, %vm4123
        %vm5416 = vmand %vm3229, %vm4123
        %vm5417 = vmand %vm3230, %vm4123
        %vm5418 = vmand %vm3231, %vm4123
        %vm5419 = vmand %vm3232, %vm4123
        %vm5420 = vmand %vm3233, %vm4123
        %vm5421 = vmand %vm3234, %vm4123
        %vm5422 = vmand %vm3235, %vm4123
        %vm5423 = vmand %vm3236, %vm4123
        %vm5424 = vmand %vm3237, %vm4123
        %vm5425 = vmand %vm3238, %vm4123
        %vm5426 = vmand %vm3239, %vm4123
        %vm5427 = vmand %vm3240, %vm4123
        %vm5428 = vmand %vm3241, %vm4123
        %vm5429 = vmand %vm3242, %vm4123
        %vm5430 = vmand %vm3243, %vm4123
        %vm5431 = vmand %vm3244, %vm4123
        %vm5432 = vmand %vm3245, %vm4123
        %vm5433 = vmand %vm3246, %vm4123
        %vm5434 = vmand %vm3247, %vm4123
        %vm5435 = vmand %vm3248, %vm4123
        %vm5436 = vmand %vm3249, %vm4123
        %vm5437 = vmand %vm3250, %vm4123
        %vm5438 = vmand %vm3251, %vm4123
        %vm5439 = vmand %vm3252, %vm4123
        %vm5440 = vmand %vm3253, %vm4123
        %vm5441 = vmand %vm3254, %vm4123
        %vm5442 = vmand %vm3255, %vm4123
        %vm5443 = vmand %vm3256, %vm4123
        %vm5444 = vmand %vm3257, %vm4123
        %v5445 = vsel %vm5413, %v974, %v5381
        %v5446 = vsel %vm5414, %v976, %v5382
        %v5447 = vsel %vm5415, %v914, %v5383
        %v5448 = vsel %vm5416, %v916, %v5384
        %v5449 = vsel %vm5417, %v918, %v5385
        %v5450 = vsel %vm5418, %v920, %v5386
        %v5451 = vsel %vm5419, %v922, %v5387
        %v5452 = vsel %vm5420, %v924, %v5388
        %v5453 = vsel %vm5421, %v926, %v5389
        %v5454 = vsel %vm5422, %v928, %v5390
        %v5455 = vsel %vm5423, %v930, %v5391
        %v5456 = vsel %vm5424, %v932, %v5392
        %v5457 = vsel %vm5425, %v934, %v5393
        %v5458 = vsel %vm5426, %v936, %v5394
        %v5459 = vsel %vm5427, %v938, %v5395
        %v5460 = vsel %vm5428, %v940, %v5396
        %v5461 = vsel %vm5429, %v942, %v5397
        %v5462 = vsel %vm5430, %v944, %v5398
        %v5463 = vsel %vm5431, %v946, %v5399
        %v5464 = vsel %vm5432, %v948, %v5400
        %v5465 = vsel %vm5433, %v950, %v5401
        %v5466 = vsel %vm5434, %v952, %v5402
        %v5467 = vsel %vm5435, %v954, %v5403
        %v5468 = vsel %vm5436, %v956, %v5404
        %v5469 = vsel %vm5437, %v958, %v5405
        %v5470 = vsel %vm5438, %v960, %v5406
        %v5471 = vsel %vm5439, %v962, %v5407
        %v5472 = vsel %vm5440, %v964, %v5408
        %v5473 = vsel %vm5441, %v966, %v5409
        %v5474 = vsel %vm5442, %v968, %v5410
        %v5475 = vsel %vm5443, %v970, %v5411
        %v5476 = vsel %vm5444, %v972, %v5412
        %vm5477 = vmand %vm3359, %vm4256
        %vm5478 = vmand %vm3360, %vm4256
        %vm5479 = vmand %vm3361, %vm4256
        %vm5480 = vmand %vm3362, %vm4256
        %vm5481 = vmand %vm3363, %vm4256
        %vm5482 = vmand %vm3364, %vm4256
        %vm5483 = vmand %vm3365, %vm4256
        %vm5484 = vmand %vm3366, %vm4256
        %vm5485 = vmand %vm3367, %vm4256
        %vm5486 = vmand %vm3368, %vm4256
        %vm5487 = vmand %vm3369, %vm4256
        %vm5488 = vmand %vm3370, %vm4256
        %vm5489 = vmand %vm3371, %vm4256
        %vm5490 = vmand %vm3372, %vm4256
        %vm5491 = vmand %vm3373, %vm4256
        %vm5492 = vmand %vm3374, %vm4256
        %vm5493 = vmand %vm3375, %vm4256
        %vm5494 = vmand %vm3376, %vm4256
        %vm5495 = vmand %vm3377, %vm4256
        %vm5496 = vmand %vm3378, %vm4256
        %vm5497 = vmand %vm3379, %vm4256
        %vm5498 = vmand %vm3380, %vm4256
        %vm5499 = vmand %vm3381, %vm4256
        %vm5500 = vmand %vm3382, %vm4256
        %vm5501 = vmand %vm3383, %vm4256
        %vm5502 = vmand %vm3384, %vm4256
        %vm5503 = vmand %vm3385, %vm4256
        %vm5504 = vmand %vm3386, %vm4256
        %vm5505 = vmand %vm3387, %vm4256
        %vm5506 = vmand %vm3388, %vm4256
        %vm5507 = vmand %vm3389, %vm4256
        %vm5508 = vmand %vm3390, %vm4256
        %v5509 = vsel %vm5477, %v4962, %v5445
        %v5510 = vsel %vm5478, %v4993, %v5446
        %v5511 = vsel %vm5479, %v4992, %v5447
        %v5512 = vsel %vm5480, %v4991, %v5448
        %v5513 = vsel %vm5481, %v4990, %v5449
        %v5514 = vsel %vm5482, %v4989, %v5450
        %v5515 = vsel %vm5483, %v4988, %v5451
        %v5516 = vsel %vm5484, %v4987, %v5452
        %v5517 = vsel %vm5485, %v4986, %v5453
        %v5518 = vsel %vm5486, %v4985, %v5454
        %v5519 = vsel %vm5487, %v4984, %v5455
        %v5520 = vsel %vm5488, %v4983, %v5456
        %v5521 = vsel %vm5489, %v4982, %v5457
        %v5522 = vsel %vm5490, %v4981, %v5458
        %v5523 = vsel %vm5491, %v4980, %v5459
        %v5524 = vsel %vm5492, %v4979, %v5460
        %v5525 = vsel %vm5493, %v4978, %v5461
        %v5526 = vsel %vm5494, %v4977, %v5462
        %v5527 = vsel %vm5495, %v4976, %v5463
        %v5528 = vsel %vm5496, %v4975, %v5464
        %v5529 = vsel %vm5497, %v4974, %v5465
        %v5530 = vsel %vm5498, %v4973, %v5466
        %v5531 = vsel %vm5499, %v4972, %v5467
        %v5532 = vsel %vm5500, %v4971, %v5468
        %v5533 = vsel %vm5501, %v4970, %v5469
        %v5534 = vsel %vm5502, %v4969, %v5470
        %v5535 = vsel %vm5503, %v4968, %v5471
        %v5536 = vsel %vm5504, %v4967, %v5472
        %v5537 = vsel %vm5505, %v4966, %v5473
        %v5538 = vsel %vm5506, %v4965, %v5474
        %v5539 = vsel %vm5507, %v4964, %v5475
        %v5540 = vsel %vm5508, %v4963, %v5476
        %v5541 = vsel %vm2481, 1, 0
        %v5542 = vsel %vm2482, 1, 0
        %v5543 = vsel %vm2483, 1, 0
        %v5544 = vsel %vm2484, 1, 0
        %v5545 = vsel %vm2485, 1, 0
        %v5546 = vsel %vm2486, 1, 0
        %v5547 = vsel %vm2487, 1, 0
        %v5548 = vsel %vm2488, 1, 0
        %v5549 = vsel %vm2489, 1, 0
        %v5550 = vsel %vm2490, 1, 0
        %v5551 = vsel %vm2491, 1, 0
        %v5552 = vsel %vm2492, 1, 0
        %v5553 = vsel %vm2493, 1, 0
        %v5554 = vsel %vm2494, 1, 0
        %v5555 = vsel %vm2495, 1, 0
        %v5556 = vsel %vm2496, 1, 0
        %v5557 = vsel %vm2497, 1, 0
        %v5558 = vsel %vm2498, 1, 0
        %v5559 = vsel %vm2499, 1, 0
        %v5560 = vsel %vm2500, 1, 0
        %v5561 = vsel %vm2501, 1, 0
        %v5562 = vsel %vm2502, 1, 0
        %v5563 = vsel %vm2503, 1, 0
        %v5564 = vsel %vm2504, 1, 0
        %v5565 = vsel %vm2505, 1, 0
        %v5566 = vsel %vm2506, 1, 0
        %v5567 = vsel %vm2507, 1, 0
        %v5568 = vsel %vm2508, 1, 0
        %v5569 = vsel %vm2509, 1, 0
        %v5570 = vsel %vm2510, 1, 0
        %v5571 = vsel %vm2511, 1, 0
        %v5572 = vsel %vm2512, 1, 0
        %vm5573 = vcmp.eq.s32.totalorder %v5541, 1
        %vm5574 = vcmp.eq.s32.totalorder %v5542, 1
        %vm5575 = vcmp.eq.s32.totalorder %v5543, 1
        %vm5576 = vcmp.eq.s32.totalorder %v5544, 1
        %vm5577 = vcmp.eq.s32.totalorder %v5545, 1
        %vm5578 = vcmp.eq.s32.totalorder %v5546, 1
        %vm5579 = vcmp.eq.s32.totalorder %v5547, 1
        %vm5580 = vcmp.eq.s32.totalorder %v5548, 1
        %vm5581 = vcmp.eq.s32.totalorder %v5549, 1
        %vm5582 = vcmp.eq.s32.totalorder %v5550, 1
        %vm5583 = vcmp.eq.s32.totalorder %v5551, 1
        %vm5584 = vcmp.eq.s32.totalorder %v5552, 1
        %vm5585 = vcmp.eq.s32.totalorder %v5553, 1
        %vm5586 = vcmp.eq.s32.totalorder %v5554, 1
        %vm5587 = vcmp.eq.s32.totalorder %v5555, 1
        %vm5588 = vcmp.eq.s32.totalorder %v5556, 1
        %vm5589 = vcmp.eq.s32.totalorder %v5557, 1
        %vm5590 = vcmp.eq.s32.totalorder %v5558, 1
        %vm5591 = vcmp.eq.s32.totalorder %v5559, 1
        %vm5592 = vcmp.eq.s32.totalorder %v5560, 1
        %vm5593 = vcmp.eq.s32.totalorder %v5561, 1
        %vm5594 = vcmp.eq.s32.totalorder %v5562, 1
        %vm5595 = vcmp.eq.s32.totalorder %v5563, 1
        %vm5596 = vcmp.eq.s32.totalorder %v5564, 1
        %vm5597 = vcmp.eq.s32.totalorder %v5565, 1
        %vm5598 = vcmp.eq.s32.totalorder %v5566, 1
        %vm5599 = vcmp.eq.s32.totalorder %v5567, 1
        %vm5600 = vcmp.eq.s32.totalorder %v5568, 1
        %vm5601 = vcmp.eq.s32.totalorder %v5569, 1
        %vm5602 = vcmp.eq.s32.totalorder %v5570, 1
        %vm5603 = vcmp.eq.s32.totalorder %v5571, 1
        %vm5604 = vcmp.eq.s32.totalorder %v5572, 1
        %vm5605 = vmand %vm5573, %vm911
        %vm5606 = vmand %vm5574, %vm911
        %vm5607 = vmand %vm5575, %vm911
        %vm5608 = vmand %vm5576, %vm911
        %vm5609 = vmand %vm5577, %vm911
        %vm5610 = vmand %vm5578, %vm911
        %vm5611 = vmand %vm5579, %vm911
        %vm5612 = vmand %vm5580, %vm911
        %vm5613 = vmand %vm5581, %vm911
        %vm5614 = vmand %vm5582, %vm911
        %vm5615 = vmand %vm5583, %vm911
        %vm5616 = vmand %vm5584, %vm911
        %vm5617 = vmand %vm5585, %vm911
        %vm5618 = vmand %vm5586, %vm911
        %vm5619 = vmand %vm5587, %vm911
        %vm5620 = vmand %vm5588, %vm911
        %vm5621 = vmand %vm5589, %vm911
        %vm5622 = vmand %vm5590, %vm911
        %vm5623 = vmand %vm5591, %vm911
        %vm5624 = vmand %vm5592, %vm911
        %vm5625 = vmand %vm5593, %vm911
        %vm5626 = vmand %vm5594, %vm911
        %vm5627 = vmand %vm5595, %vm911
        %vm5628 = vmand %vm5596, %vm911
        %vm5629 = vmand %vm5597, %vm911
        %vm5630 = vmand %vm5598, %vm911
        %vm5631 = vmand %vm5599, %vm911
        %vm5632 = vmand %vm5600, %vm911
        %vm5633 = vmand %vm5601, %vm911
        %vm5634 = vmand %vm5602, %vm911
        %vm5635 = vmand %vm5603, %vm911
        %vm5636 = vmand %vm5604, %vm911
        %v5637 = vsel %vm5605, %v5157, %v5509
        %v5638 = vsel %vm5606, %v5188, %v5510
        %v5639 = vsel %vm5607, %v5187, %v5511
        %v5640 = vsel %vm5608, %v5186, %v5512
        %v5641 = vsel %vm5609, %v5185, %v5513
        %v5642 = vsel %vm5610, %v5184, %v5514
        %v5643 = vsel %vm5611, %v5183, %v5515
        %v5644 = vsel %vm5612, %v5182, %v5516
        %v5645 = vsel %vm5613, %v5181, %v5517
        %v5646 = vsel %vm5614, %v5180, %v5518
        %v5647 = vsel %vm5615, %v5179, %v5519
        %v5648 = vsel %vm5616, %v5178, %v5520
        %v5649 = vsel %vm5617, %v5177, %v5521
        %v5650 = vsel %vm5618, %v5176, %v5522
        %v5651 = vsel %vm5619, %v5175, %v5523
        %v5652 = vsel %vm5620, %v5174, %v5524
        %v5653 = vsel %vm5621, %v5173, %v5525
        %v5654 = vsel %vm5622, %v5172, %v5526
        %v5655 = vsel %vm5623, %v5171, %v5527
        %v5656 = vsel %vm5624, %v5170, %v5528
        %v5657 = vsel %vm5625, %v5169, %v5529
        %v5658 = vsel %vm5626, %v5168, %v5530
        %v5659 = vsel %vm5627, %v5167, %v5531
        %v5660 = vsel %vm5628, %v5166, %v5532
        %v5661 = vsel %vm5629, %v5165, %v5533
        %v5662 = vsel %vm5630, %v5164, %v5534
        %v5663 = vsel %vm5631, %v5163, %v5535
        %v5664 = vsel %vm5632, %v5162, %v5536
        %v5665 = vsel %vm5633, %v5161, %v5537
        %v5666 = vsel %vm5634, %v5160, %v5538
        %v5667 = vsel %vm5635, %v5159, %v5539
        %v5668 = vsel %vm5636, %v5158, %v5540
        %vm5669 = vcmp.ge.s32.totalorder %v520, 40
        %vm5670 = vcmp.lt.s32.totalorder %v520, 44
        %vm5671 = vmand %vm5669, %vm5670
        %v5672 = vsel %vm2513, 1, 0
        %v5673 = vsel %vm2514, 1, 0
        %v5674 = vsel %vm2515, 1, 0
        %v5675 = vsel %vm2516, 1, 0
        %v5676 = vsel %vm2517, 1, 0
        %v5677 = vsel %vm2518, 1, 0
        %v5678 = vsel %vm2519, 1, 0
        %v5679 = vsel %vm2520, 1, 0
        %v5680 = vsel %vm2521, 1, 0
        %v5681 = vsel %vm2522, 1, 0
        %v5682 = vsel %vm2523, 1, 0
        %v5683 = vsel %vm2524, 1, 0
        %v5684 = vsel %vm2525, 1, 0
        %v5685 = vsel %vm2526, 1, 0
        %v5686 = vsel %vm2527, 1, 0
        %v5687 = vsel %vm2528, 1, 0
        %v5688 = vsel %vm2529, 1, 0
        %v5689 = vsel %vm2530, 1, 0
        %v5690 = vsel %vm2531, 1, 0
        %v5691 = vsel %vm2532, 1, 0
        %v5692 = vsel %vm2533, 1, 0
        %v5693 = vsel %vm2534, 1, 0
        %v5694 = vsel %vm2535, 1, 0
        %v5695 = vsel %vm2536, 1, 0
        %v5696 = vsel %vm2537, 1, 0
        %v5697 = vsel %vm2538, 1, 0
        %v5698 = vsel %vm2539, 1, 0
        %v5699 = vsel %vm2540, 1, 0
        %v5700 = vsel %vm2541, 1, 0
        %v5701 = vsel %vm2542, 1, 0
        %v5702 = vsel %vm2543, 1, 0
        %v5703 = vsel %vm2544, 1, 0
        %vm5704 = vcmp.eq.s32.totalorder %v5672, 1
        %vm5705 = vcmp.eq.s32.totalorder %v5673, 1
        %vm5706 = vcmp.eq.s32.totalorder %v5674, 1
        %vm5707 = vcmp.eq.s32.totalorder %v5675, 1
        %vm5708 = vcmp.eq.s32.totalorder %v5676, 1
        %vm5709 = vcmp.eq.s32.totalorder %v5677, 1
        %vm5710 = vcmp.eq.s32.totalorder %v5678, 1
        %vm5711 = vcmp.eq.s32.totalorder %v5679, 1
        %vm5712 = vcmp.eq.s32.totalorder %v5680, 1
        %vm5713 = vcmp.eq.s32.totalorder %v5681, 1
        %vm5714 = vcmp.eq.s32.totalorder %v5682, 1
        %vm5715 = vcmp.eq.s32.totalorder %v5683, 1
        %vm5716 = vcmp.eq.s32.totalorder %v5684, 1
        %vm5717 = vcmp.eq.s32.totalorder %v5685, 1
        %vm5718 = vcmp.eq.s32.totalorder %v5686, 1
        %vm5719 = vcmp.eq.s32.totalorder %v5687, 1
        %vm5720 = vcmp.eq.s32.totalorder %v5688, 1
        %vm5721 = vcmp.eq.s32.totalorder %v5689, 1
        %vm5722 = vcmp.eq.s32.totalorder %v5690, 1
        %vm5723 = vcmp.eq.s32.totalorder %v5691, 1
        %vm5724 = vcmp.eq.s32.totalorder %v5692, 1
        %vm5725 = vcmp.eq.s32.totalorder %v5693, 1
        %vm5726 = vcmp.eq.s32.totalorder %v5694, 1
        %vm5727 = vcmp.eq.s32.totalorder %v5695, 1
        %vm5728 = vcmp.eq.s32.totalorder %v5696, 1
        %vm5729 = vcmp.eq.s32.totalorder %v5697, 1
        %vm5730 = vcmp.eq.s32.totalorder %v5698, 1
        %vm5731 = vcmp.eq.s32.totalorder %v5699, 1
        %vm5732 = vcmp.eq.s32.totalorder %v5700, 1
        %vm5733 = vcmp.eq.s32.totalorder %v5701, 1
        %vm5734 = vcmp.eq.s32.totalorder %v5702, 1
        %vm5735 = vcmp.eq.s32.totalorder %v5703, 1
        %v5736 = vsel %vm5671, 1, 0
        %vm5737 = vcmp.eq.s32.totalorder %v5736, 1
        %vm5738 = vmand %vm5704, %vm5737
        %vm5739 = vmand %vm5705, %vm5737
        %vm5740 = vmand %vm5706, %vm5737
        %vm5741 = vmand %vm5707, %vm5737
        %vm5742 = vmand %vm5708, %vm5737
        %vm5743 = vmand %vm5709, %vm5737
        %vm5744 = vmand %vm5710, %vm5737
        %vm5745 = vmand %vm5711, %vm5737
        %vm5746 = vmand %vm5712, %vm5737
        %vm5747 = vmand %vm5713, %vm5737
        %vm5748 = vmand %vm5714, %vm5737
        %vm5749 = vmand %vm5715, %vm5737
        %vm5750 = vmand %vm5716, %vm5737
        %vm5751 = vmand %vm5717, %vm5737
        %vm5752 = vmand %vm5718, %vm5737
        %vm5753 = vmand %vm5719, %vm5737
        %vm5754 = vmand %vm5720, %vm5737
        %vm5755 = vmand %vm5721, %vm5737
        %vm5756 = vmand %vm5722, %vm5737
        %vm5757 = vmand %vm5723, %vm5737
        %vm5758 = vmand %vm5724, %vm5737
        %vm5759 = vmand %vm5725, %vm5737
        %vm5760 = vmand %vm5726, %vm5737
        %vm5761 = vmand %vm5727, %vm5737
        %vm5762 = vmand %vm5728, %vm5737
        %vm5763 = vmand %vm5729, %vm5737
        %vm5764 = vmand %vm5730, %vm5737
        %vm5765 = vmand %vm5731, %vm5737
        %vm5766 = vmand %vm5732, %vm5737
        %vm5767 = vmand %vm5733, %vm5737
        %vm5768 = vmand %vm5734, %vm5737
        %vm5769 = vmand %vm5735, %vm5737
        %v5770 = vsel %vm5738, %v4481, %v5637
        %v5771 = vsel %vm5739, %v4480, %v5638
        %v5772 = vsel %vm5740, %v4479, %v5639
        %v5773 = vsel %vm5741, %v4478, %v5640
        %v5774 = vsel %vm5742, %v4477, %v5641
        %v5775 = vsel %vm5743, %v4476, %v5642
        %v5776 = vsel %vm5744, %v4475, %v5643
        %v5777 = vsel %vm5745, %v4474, %v5644
        %v5778 = vsel %vm5746, %v4473, %v5645
        %v5779 = vsel %vm5747, %v4472, %v5646
        %v5780 = vsel %vm5748, %v4471, %v5647
        %v5781 = vsel %vm5749, %v4470, %v5648
        %v5782 = vsel %vm5750, %v4469, %v5649
        %v5783 = vsel %vm5751, %v4468, %v5650
        %v5784 = vsel %vm5752, %v4467, %v5651
        %v5785 = vsel %vm5753, %v4466, %v5652
        %v5786 = vsel %vm5754, %v4465, %v5653
        %v5787 = vsel %vm5755, %v4464, %v5654
        %v5788 = vsel %vm5756, %v4463, %v5655
        %v5789 = vsel %vm5757, %v4462, %v5656
        %v5790 = vsel %vm5758, %v4461, %v5657
        %v5791 = vsel %vm5759, %v4460, %v5658
        %v5792 = vsel %vm5760, %v4459, %v5659
        %v5793 = vsel %vm5761, %v4458, %v5660
        %v5794 = vsel %vm5762, %v4457, %v5661
        %v5795 = vsel %vm5763, %v4456, %v5662
        %v5796 = vsel %vm5764, %v4455, %v5663
        %v5797 = vsel %vm5765, %v4454, %v5664
        %v5798 = vsel %vm5766, %v4453, %v5665
        %v5799 = vsel %vm5767, %v4452, %v5666
        %v5800 = vsel %vm5768, %v4451, %v5667
        %v5801 = vsel %vm5769, %v4450, %v5668
        %vm5802 = vcmp.ge.s32.totalorder %v520, 44
        %vm5803 = vcmp.lt.s32.totalorder %v520, 48
        %vm5804 = vmand %vm5802, %vm5803
        %v5805 = vsel %vm5804, 1, 0
        %vm5806 = vcmp.eq.s32.totalorder %v5805, 1
        %vm5807 = vmand %vm3557, %vm5806
        %vm5808 = vmand %vm3558, %vm5806
        %vm5809 = vmand %vm3559, %vm5806
        %vm5810 = vmand %vm3560, %vm5806
        %vm5811 = vmand %vm3561, %vm5806
        %vm5812 = vmand %vm3562, %vm5806
        %vm5813 = vmand %vm3563, %vm5806
        %vm5814 = vmand %vm3564, %vm5806
        %vm5815 = vmand %vm3565, %vm5806
        %vm5816 = vmand %vm3566, %vm5806
        %vm5817 = vmand %vm3567, %vm5806
        %vm5818 = vmand %vm3568, %vm5806
        %vm5819 = vmand %vm3569, %vm5806
        %vm5820 = vmand %vm3570, %vm5806
        %vm5821 = vmand %vm3571, %vm5806
        %vm5822 = vmand %vm3572, %vm5806
        %vm5823 = vmand %vm3573, %vm5806
        %vm5824 = vmand %vm3574, %vm5806
        %vm5825 = vmand %vm3575, %vm5806
        %vm5826 = vmand %vm3576, %vm5806
        %vm5827 = vmand %vm3577, %vm5806
        %vm5828 = vmand %vm3578, %vm5806
        %vm5829 = vmand %vm3579, %vm5806
        %vm5830 = vmand %vm3580, %vm5806
        %vm5831 = vmand %vm3581, %vm5806
        %vm5832 = vmand %vm3582, %vm5806
        %vm5833 = vmand %vm3583, %vm5806
        %vm5834 = vmand %vm3584, %vm5806
        %vm5835 = vmand %vm3585, %vm5806
        %vm5836 = vmand %vm3586, %vm5806
        %vm5837 = vmand %vm3587, %vm5806
        %vm5838 = vmand %vm3588, %vm5806
        %v5839 = vsel %vm5807, %v4673, %v5770
        %v5840 = vsel %vm5808, %v4672, %v5771
        %v5841 = vsel %vm5809, %v4671, %v5772
        %v5842 = vsel %vm5810, %v4670, %v5773
        %v5843 = vsel %vm5811, %v4669, %v5774
        %v5844 = vsel %vm5812, %v4668, %v5775
        %v5845 = vsel %vm5813, %v4667, %v5776
        %v5846 = vsel %vm5814, %v4666, %v5777
        %v5847 = vsel %vm5815, %v4665, %v5778
        %v5848 = vsel %vm5816, %v4664, %v5779
        %v5849 = vsel %vm5817, %v4663, %v5780
        %v5850 = vsel %vm5818, %v4662, %v5781
        %v5851 = vsel %vm5819, %v4661, %v5782
        %v5852 = vsel %vm5820, %v4660, %v5783
        %v5853 = vsel %vm5821, %v4659, %v5784
        %v5854 = vsel %vm5822, %v4658, %v5785
        %v5855 = vsel %vm5823, %v4657, %v5786
        %v5856 = vsel %vm5824, %v4656, %v5787
        %v5857 = vsel %vm5825, %v4655, %v5788
        %v5858 = vsel %vm5826, %v4654, %v5789
        %v5859 = vsel %vm5827, %v4653, %v5790
        %v5860 = vsel %vm5828, %v4652, %v5791
        %v5861 = vsel %vm5829, %v4651, %v5792
        %v5862 = vsel %vm5830, %v4650, %v5793
        %v5863 = vsel %vm5831, %v4649, %v5794
        %v5864 = vsel %vm5832, %v4648, %v5795
        %v5865 = vsel %vm5833, %v4647, %v5796
        %v5866 = vsel %vm5834, %v4646, %v5797
        %v5867 = vsel %vm5835, %v4645, %v5798
        %v5868 = vsel %vm5836, %v4644, %v5799
        %v5869 = vsel %vm5837, %v4643, %v5800
        %v5870 = vsel %vm5838, %v4642, %v5801
        %vm5871 = vcmp.ge.s32.totalorder %v520, 48
        %vm5872 = vcmp.lt.s32.totalorder %v520, 52
        %vm5873 = vmand %vm5871, %vm5872
        %v5874 = vsel %vm5873, 1, 0
        %vm5875 = vcmp.eq.s32.totalorder %v5874, 1
        %vm5876 = vmand %vm3691, %vm5875
        %vm5877 = vmand %vm3692, %vm5875
        %vm5878 = vmand %vm3693, %vm5875
        %vm5879 = vmand %vm3694, %vm5875
        %vm5880 = vmand %vm3695, %vm5875
        %vm5881 = vmand %vm3696, %vm5875
        %vm5882 = vmand %vm3697, %vm5875
        %vm5883 = vmand %vm3698, %vm5875
        %vm5884 = vmand %vm3699, %vm5875
        %vm5885 = vmand %vm3700, %vm5875
        %vm5886 = vmand %vm3701, %vm5875
        %vm5887 = vmand %vm3702, %vm5875
        %vm5888 = vmand %vm3703, %vm5875
        %vm5889 = vmand %vm3704, %vm5875
        %vm5890 = vmand %vm3705, %vm5875
        %vm5891 = vmand %vm3706, %vm5875
        %vm5892 = vmand %vm3707, %vm5875
        %vm5893 = vmand %vm3708, %vm5875
        %vm5894 = vmand %vm3709, %vm5875
        %vm5895 = vmand %vm3710, %vm5875
        %vm5896 = vmand %vm3711, %vm5875
        %vm5897 = vmand %vm3712, %vm5875
        %vm5898 = vmand %vm3713, %vm5875
        %vm5899 = vmand %vm3714, %vm5875
        %vm5900 = vmand %vm3715, %vm5875
        %vm5901 = vmand %vm3716, %vm5875
        %vm5902 = vmand %vm3717, %vm5875
        %vm5903 = vmand %vm3718, %vm5875
        %vm5904 = vmand %vm3719, %vm5875
        %vm5905 = vmand %vm3720, %vm5875
        %vm5906 = vmand %vm3721, %vm5875
        %vm5907 = vmand %vm3722, %vm5875
        %v5908 = vsel %vm5876, %v914, %v5839
        %v5909 = vsel %vm5877, %v916, %v5840
        %v5910 = vsel %vm5878, %v918, %v5841
        %v5911 = vsel %vm5879, %v920, %v5842
        %v5912 = vsel %vm5880, %v922, %v5843
        %v5913 = vsel %vm5881, %v924, %v5844
        %v5914 = vsel %vm5882, %v926, %v5845
        %v5915 = vsel %vm5883, %v928, %v5846
        %v5916 = vsel %vm5884, %v930, %v5847
        %v5917 = vsel %vm5885, %v932, %v5848
        %v5918 = vsel %vm5886, %v934, %v5849
        %v5919 = vsel %vm5887, %v936, %v5850
        %v5920 = vsel %vm5888, %v938, %v5851
        %v5921 = vsel %vm5889, %v940, %v5852
        %v5922 = vsel %vm5890, %v942, %v5853
        %v5923 = vsel %vm5891, %v944, %v5854
        %v5924 = vsel %vm5892, %v946, %v5855
        %v5925 = vsel %vm5893, %v948, %v5856
        %v5926 = vsel %vm5894, %v950, %v5857
        %v5927 = vsel %vm5895, %v952, %v5858
        %v5928 = vsel %vm5896, %v954, %v5859
        %v5929 = vsel %vm5897, %v956, %v5860
        %v5930 = vsel %vm5898, %v958, %v5861
        %v5931 = vsel %vm5899, %v960, %v5862
        %v5932 = vsel %vm5900, %v962, %v5863
        %v5933 = vsel %vm5901, %v964, %v5864
        %v5934 = vsel %vm5902, %v966, %v5865
        %v5935 = vsel %vm5903, %v968, %v5866
        %v5936 = vsel %vm5904, %v970, %v5867
        %v5937 = vsel %vm5905, %v972, %v5868
        %v5938 = vsel %vm5906, %v974, %v5869
        %v5939 = vsel %vm5907, %v976, %v5870
        %vm5940 = vcmp.ge.s32.totalorder %v520, 52
        %vm5941 = vcmp.lt.s32.totalorder %v520, 56
        %vm5942 = vmand %vm5940, %vm5941
        %v5943 = vsel %vm5942, 1, 0
        %vm5944 = vcmp.eq.s32.totalorder %v5943, 1
        %vm5945 = vmand %vm3824, %vm5944
        %vm5946 = vmand %vm3825, %vm5944
        %vm5947 = vmand %vm3826, %vm5944
        %vm5948 = vmand %vm3827, %vm5944
        %vm5949 = vmand %vm3828, %vm5944
        %vm5950 = vmand %vm3829, %vm5944
        %vm5951 = vmand %vm3830, %vm5944
        %vm5952 = vmand %vm3831, %vm5944
        %vm5953 = vmand %vm3832, %vm5944
        %vm5954 = vmand %vm3833, %vm5944
        %vm5955 = vmand %vm3834, %vm5944
        %vm5956 = vmand %vm3835, %vm5944
        %vm5957 = vmand %vm3836, %vm5944
        %vm5958 = vmand %vm3837, %vm5944
        %vm5959 = vmand %vm3838, %vm5944
        %vm5960 = vmand %vm3839, %vm5944
        %vm5961 = vmand %vm3840, %vm5944
        %vm5962 = vmand %vm3841, %vm5944
        %vm5963 = vmand %vm3842, %vm5944
        %vm5964 = vmand %vm3843, %vm5944
        %vm5965 = vmand %vm3844, %vm5944
        %vm5966 = vmand %vm3845, %vm5944
        %vm5967 = vmand %vm3846, %vm5944
        %vm5968 = vmand %vm3847, %vm5944
        %vm5969 = vmand %vm3848, %vm5944
        %vm5970 = vmand %vm3849, %vm5944
        %vm5971 = vmand %vm3850, %vm5944
        %vm5972 = vmand %vm3851, %vm5944
        %vm5973 = vmand %vm3852, %vm5944
        %vm5974 = vmand %vm3853, %vm5944
        %vm5975 = vmand %vm3854, %vm5944
        %vm5976 = vmand %vm3855, %vm5944
        %v5977 = vsel %vm5945, %v4992, %v5908
        %v5978 = vsel %vm5946, %v4991, %v5909
        %v5979 = vsel %vm5947, %v4990, %v5910
        %v5980 = vsel %vm5948, %v4989, %v5911
        %v5981 = vsel %vm5949, %v4988, %v5912
        %v5982 = vsel %vm5950, %v4987, %v5913
        %v5983 = vsel %vm5951, %v4986, %v5914
        %v5984 = vsel %vm5952, %v4985, %v5915
        %v5985 = vsel %vm5953, %v4984, %v5916
        %v5986 = vsel %vm5954, %v4983, %v5917
        %v5987 = vsel %vm5955, %v4982, %v5918
        %v5988 = vsel %vm5956, %v4981, %v5919
        %v5989 = vsel %vm5957, %v4980, %v5920
        %v5990 = vsel %vm5958, %v4979, %v5921
        %v5991 = vsel %vm5959, %v4978, %v5922
        %v5992 = vsel %vm5960, %v4977, %v5923
        %v5993 = vsel %vm5961, %v4976, %v5924
        %v5994 = vsel %vm5962, %v4975, %v5925
        %v5995 = vsel %vm5963, %v4974, %v5926
        %v5996 = vsel %vm5964, %v4973, %v5927
        %v5997 = vsel %vm5965, %v4972, %v5928
        %v5998 = vsel %vm5966, %v4971, %v5929
        %v5999 = vsel %vm5967, %v4970, %v5930
        %v6000 = vsel %vm5968, %v4969, %v5931
        %v6001 = vsel %vm5969, %v4968, %v5932
        %v6002 = vsel %vm5970, %v4967, %v5933
        %v6003 = vsel %vm5971, %v4966, %v5934
        %v6004 = vsel %vm5972, %v4965, %v5935
        %v6005 = vsel %vm5973, %v4964, %v5936
        %v6006 = vsel %vm5974, %v4963, %v5937
        %v6007 = vsel %vm5975, %v4962, %v5938
        %v6008 = vsel %vm5976, %v4993, %v5939
        %vm6009 = vcmp.ge.s32.totalorder %v520, 56
        %vm6010 = vcmp.lt.s32.totalorder %v520, 60
        %vm6011 = vmand %vm6009, %vm6010
        %v6012 = vsel %vm2641, 1, 0
        %v6013 = vsel %vm2642, 1, 0
        %v6014 = vsel %vm2643, 1, 0
        %v6015 = vsel %vm2644, 1, 0
        %v6016 = vsel %vm2645, 1, 0
        %v6017 = vsel %vm2646, 1, 0
        %v6018 = vsel %vm2647, 1, 0
        %v6019 = vsel %vm2648, 1, 0
        %v6020 = vsel %vm2649, 1, 0
        %v6021 = vsel %vm2650, 1, 0
        %v6022 = vsel %vm2651, 1, 0
        %v6023 = vsel %vm2652, 1, 0
        %v6024 = vsel %vm2653, 1, 0
        %v6025 = vsel %vm2654, 1, 0
        %v6026 = vsel %vm2655, 1, 0
        %v6027 = vsel %vm2656, 1, 0
        %v6028 = vsel %vm2657, 1, 0
        %v6029 = vsel %vm2658, 1, 0
        %v6030 = vsel %vm2659, 1, 0
        %v6031 = vsel %vm2660, 1, 0
        %v6032 = vsel %vm2661, 1, 0
        %v6033 = vsel %vm2662, 1, 0
        %v6034 = vsel %vm2663, 1, 0
        %v6035 = vsel %vm2664, 1, 0
        %v6036 = vsel %vm2665, 1, 0
        %v6037 = vsel %vm2666, 1, 0
        %v6038 = vsel %vm2667, 1, 0
        %v6039 = vsel %vm2668, 1, 0
        %v6040 = vsel %vm2669, 1, 0
        %v6041 = vsel %vm2670, 1, 0
        %v6042 = vsel %vm2671, 1, 0
        %v6043 = vsel %vm2672, 1, 0
        %vm6044 = vcmp.eq.s32.totalorder %v6012, 1
        %vm6045 = vcmp.eq.s32.totalorder %v6013, 1
        %vm6046 = vcmp.eq.s32.totalorder %v6014, 1
        %vm6047 = vcmp.eq.s32.totalorder %v6015, 1
        %vm6048 = vcmp.eq.s32.totalorder %v6016, 1
        %vm6049 = vcmp.eq.s32.totalorder %v6017, 1
        %vm6050 = vcmp.eq.s32.totalorder %v6018, 1
        %vm6051 = vcmp.eq.s32.totalorder %v6019, 1
        %vm6052 = vcmp.eq.s32.totalorder %v6020, 1
        %vm6053 = vcmp.eq.s32.totalorder %v6021, 1
        %vm6054 = vcmp.eq.s32.totalorder %v6022, 1
        %vm6055 = vcmp.eq.s32.totalorder %v6023, 1
        %vm6056 = vcmp.eq.s32.totalorder %v6024, 1
        %vm6057 = vcmp.eq.s32.totalorder %v6025, 1
        %vm6058 = vcmp.eq.s32.totalorder %v6026, 1
        %vm6059 = vcmp.eq.s32.totalorder %v6027, 1
        %vm6060 = vcmp.eq.s32.totalorder %v6028, 1
        %vm6061 = vcmp.eq.s32.totalorder %v6029, 1
        %vm6062 = vcmp.eq.s32.totalorder %v6030, 1
        %vm6063 = vcmp.eq.s32.totalorder %v6031, 1
        %vm6064 = vcmp.eq.s32.totalorder %v6032, 1
        %vm6065 = vcmp.eq.s32.totalorder %v6033, 1
        %vm6066 = vcmp.eq.s32.totalorder %v6034, 1
        %vm6067 = vcmp.eq.s32.totalorder %v6035, 1
        %vm6068 = vcmp.eq.s32.totalorder %v6036, 1
        %vm6069 = vcmp.eq.s32.totalorder %v6037, 1
        %vm6070 = vcmp.eq.s32.totalorder %v6038, 1
        %vm6071 = vcmp.eq.s32.totalorder %v6039, 1
        %vm6072 = vcmp.eq.s32.totalorder %v6040, 1
        %vm6073 = vcmp.eq.s32.totalorder %v6041, 1
        %vm6074 = vcmp.eq.s32.totalorder %v6042, 1
        %vm6075 = vcmp.eq.s32.totalorder %v6043, 1
        %v6076 = vsel %vm6011, 1, 0
        %vm6077 = vcmp.eq.s32.totalorder %v6076, 1
        %vm6078 = vmand %vm6044, %vm6077
        %vm6079 = vmand %vm6045, %vm6077
        %vm6080 = vmand %vm6046, %vm6077
        %vm6081 = vmand %vm6047, %vm6077
        %vm6082 = vmand %vm6048, %vm6077
        %vm6083 = vmand %vm6049, %vm6077
        %vm6084 = vmand %vm6050, %vm6077
        %vm6085 = vmand %vm6051, %vm6077
        %vm6086 = vmand %vm6052, %vm6077
        %vm6087 = vmand %vm6053, %vm6077
        %vm6088 = vmand %vm6054, %vm6077
        %vm6089 = vmand %vm6055, %vm6077
        %vm6090 = vmand %vm6056, %vm6077
        %vm6091 = vmand %vm6057, %vm6077
        %vm6092 = vmand %vm6058, %vm6077
        %vm6093 = vmand %vm6059, %vm6077
        %vm6094 = vmand %vm6060, %vm6077
        %vm6095 = vmand %vm6061, %vm6077
        %vm6096 = vmand %vm6062, %vm6077
        %vm6097 = vmand %vm6063, %vm6077
        %vm6098 = vmand %vm6064, %vm6077
        %vm6099 = vmand %vm6065, %vm6077
        %vm6100 = vmand %vm6066, %vm6077
        %vm6101 = vmand %vm6067, %vm6077
        %vm6102 = vmand %vm6068, %vm6077
        %vm6103 = vmand %vm6069, %vm6077
        %vm6104 = vmand %vm6070, %vm6077
        %vm6105 = vmand %vm6071, %vm6077
        %vm6106 = vmand %vm6072, %vm6077
        %vm6107 = vmand %vm6073, %vm6077
        %vm6108 = vmand %vm6074, %vm6077
        %vm6109 = vmand %vm6075, %vm6077
        %v6110 = vsel %vm6078, %v5187, %v5977
        %v6111 = vsel %vm6079, %v5186, %v5978
        %v6112 = vsel %vm6080, %v5185, %v5979
        %v6113 = vsel %vm6081, %v5184, %v5980
        %v6114 = vsel %vm6082, %v5183, %v5981
        %v6115 = vsel %vm6083, %v5182, %v5982
        %v6116 = vsel %vm6084, %v5181, %v5983
        %v6117 = vsel %vm6085, %v5180, %v5984
        %v6118 = vsel %vm6086, %v5179, %v5985
        %v6119 = vsel %vm6087, %v5178, %v5986
        %v6120 = vsel %vm6088, %v5177, %v5987
        %v6121 = vsel %vm6089, %v5176, %v5988
        %v6122 = vsel %vm6090, %v5175, %v5989
        %v6123 = vsel %vm6091, %v5174, %v5990
        %v6124 = vsel %vm6092, %v5173, %v5991
        %v6125 = vsel %vm6093, %v5172, %v5992
        %v6126 = vsel %vm6094, %v5171, %v5993
        %v6127 = vsel %vm6095, %v5170, %v5994
        %v6128 = vsel %vm6096, %v5169, %v5995
        %v6129 = vsel %vm6097, %v5168, %v5996
        %v6130 = vsel %vm6098, %v5167, %v5997
        %v6131 = vsel %vm6099, %v5166, %v5998
        %v6132 = vsel %vm6100, %v5165, %v5999
        %v6133 = vsel %vm6101, %v5164, %v6000
        %v6134 = vsel %vm6102, %v5163, %v6001
        %v6135 = vsel %vm6103, %v5162, %v6002
        %v6136 = vsel %vm6104, %v5161, %v6003
        %v6137 = vsel %vm6105, %v5160, %v6004
        %v6138 = vsel %vm6106, %v5159, %v6005
        %v6139 = vsel %vm6107, %v5158, %v6006
        %v6140 = vsel %vm6108, %v5157, %v6007
        %v6141 = vsel %vm6109, %v5188, %v6008
        %vm6142 = vcmp.ge.s32.totalorder %v520, 60
        %vm6143 = vcmp.lt.s32.totalorder %v520, 64
        %vm6144 = vmand %vm6142, %vm6143
        %v6145 = vsel %vm2673, 1, 0
        %v6146 = vsel %vm2674, 1, 0
        %v6147 = vsel %vm2675, 1, 0
        %v6148 = vsel %vm2676, 1, 0
        %v6149 = vsel %vm2677, 1, 0
        %v6150 = vsel %vm2678, 1, 0
        %v6151 = vsel %vm2679, 1, 0
        %v6152 = vsel %vm2680, 1, 0
        %v6153 = vsel %vm2681, 1, 0
        %v6154 = vsel %vm2682, 1, 0
        %v6155 = vsel %vm2683, 1, 0
        %v6156 = vsel %vm2684, 1, 0
        %v6157 = vsel %vm2685, 1, 0
        %v6158 = vsel %vm2686, 1, 0
        %v6159 = vsel %vm2687, 1, 0
        %v6160 = vsel %vm2688, 1, 0
        %v6161 = vsel %vm2689, 1, 0
        %v6162 = vsel %vm2690, 1, 0
        %v6163 = vsel %vm2691, 1, 0
        %v6164 = vsel %vm2692, 1, 0
        %v6165 = vsel %vm2693, 1, 0
        %v6166 = vsel %vm2694, 1, 0
        %v6167 = vsel %vm2695, 1, 0
        %v6168 = vsel %vm2696, 1, 0
        %v6169 = vsel %vm2697, 1, 0
        %v6170 = vsel %vm2698, 1, 0
        %v6171 = vsel %vm2699, 1, 0
        %v6172 = vsel %vm2700, 1, 0
        %v6173 = vsel %vm2701, 1, 0
        %v6174 = vsel %vm2702, 1, 0
        %v6175 = vsel %vm2703, 1, 0
        %v6176 = vsel %vm2704, 1, 0
        %vm6177 = vcmp.eq.s32.totalorder %v6145, 1
        %vm6178 = vcmp.eq.s32.totalorder %v6146, 1
        %vm6179 = vcmp.eq.s32.totalorder %v6147, 1
        %vm6180 = vcmp.eq.s32.totalorder %v6148, 1
        %vm6181 = vcmp.eq.s32.totalorder %v6149, 1
        %vm6182 = vcmp.eq.s32.totalorder %v6150, 1
        %vm6183 = vcmp.eq.s32.totalorder %v6151, 1
        %vm6184 = vcmp.eq.s32.totalorder %v6152, 1
        %vm6185 = vcmp.eq.s32.totalorder %v6153, 1
        %vm6186 = vcmp.eq.s32.totalorder %v6154, 1
        %vm6187 = vcmp.eq.s32.totalorder %v6155, 1
        %vm6188 = vcmp.eq.s32.totalorder %v6156, 1
        %vm6189 = vcmp.eq.s32.totalorder %v6157, 1
        %vm6190 = vcmp.eq.s32.totalorder %v6158, 1
        %vm6191 = vcmp.eq.s32.totalorder %v6159, 1
        %vm6192 = vcmp.eq.s32.totalorder %v6160, 1
        %vm6193 = vcmp.eq.s32.totalorder %v6161, 1
        %vm6194 = vcmp.eq.s32.totalorder %v6162, 1
        %vm6195 = vcmp.eq.s32.totalorder %v6163, 1
        %vm6196 = vcmp.eq.s32.totalorder %v6164, 1
        %vm6197 = vcmp.eq.s32.totalorder %v6165, 1
        %vm6198 = vcmp.eq.s32.totalorder %v6166, 1
        %vm6199 = vcmp.eq.s32.totalorder %v6167, 1
        %vm6200 = vcmp.eq.s32.totalorder %v6168, 1
        %vm6201 = vcmp.eq.s32.totalorder %v6169, 1
        %vm6202 = vcmp.eq.s32.totalorder %v6170, 1
        %vm6203 = vcmp.eq.s32.totalorder %v6171, 1
        %vm6204 = vcmp.eq.s32.totalorder %v6172, 1
        %vm6205 = vcmp.eq.s32.totalorder %v6173, 1
        %vm6206 = vcmp.eq.s32.totalorder %v6174, 1
        %vm6207 = vcmp.eq.s32.totalorder %v6175, 1
        %vm6208 = vcmp.eq.s32.totalorder %v6176, 1
        %v6209 = vsel %vm6144, 1, 0
        %vm6210 = vcmp.eq.s32.totalorder %v6209, 1
        %vm6211 = vmand %vm6177, %vm6210
        %vm6212 = vmand %vm6178, %vm6210
        %vm6213 = vmand %vm6179, %vm6210
        %vm6214 = vmand %vm6180, %vm6210
        %vm6215 = vmand %vm6181, %vm6210
        %vm6216 = vmand %vm6182, %vm6210
        %vm6217 = vmand %vm6183, %vm6210
        %vm6218 = vmand %vm6184, %vm6210
        %vm6219 = vmand %vm6185, %vm6210
        %vm6220 = vmand %vm6186, %vm6210
        %vm6221 = vmand %vm6187, %vm6210
        %vm6222 = vmand %vm6188, %vm6210
        %vm6223 = vmand %vm6189, %vm6210
        %vm6224 = vmand %vm6190, %vm6210
        %vm6225 = vmand %vm6191, %vm6210
        %vm6226 = vmand %vm6192, %vm6210
        %vm6227 = vmand %vm6193, %vm6210
        %vm6228 = vmand %vm6194, %vm6210
        %vm6229 = vmand %vm6195, %vm6210
        %vm6230 = vmand %vm6196, %vm6210
        %vm6231 = vmand %vm6197, %vm6210
        %vm6232 = vmand %vm6198, %vm6210
        %vm6233 = vmand %vm6199, %vm6210
        %vm6234 = vmand %vm6200, %vm6210
        %vm6235 = vmand %vm6201, %vm6210
        %vm6236 = vmand %vm6202, %vm6210
        %vm6237 = vmand %vm6203, %vm6210
        %vm6238 = vmand %vm6204, %vm6210
        %vm6239 = vmand %vm6205, %vm6210
        %vm6240 = vmand %vm6206, %vm6210
        %vm6241 = vmand %vm6207, %vm6210
        %vm6242 = vmand %vm6208, %vm6210
        %v6243 = vsel %vm6211, %v4479, %v6110
        %v6244 = vsel %vm6212, %v4478, %v6111
        %v6245 = vsel %vm6213, %v4477, %v6112
        %v6246 = vsel %vm6214, %v4476, %v6113
        %v6247 = vsel %vm6215, %v4475, %v6114
        %v6248 = vsel %vm6216, %v4474, %v6115
        %v6249 = vsel %vm6217, %v4473, %v6116
        %v6250 = vsel %vm6218, %v4472, %v6117
        %v6251 = vsel %vm6219, %v4471, %v6118
        %v6252 = vsel %vm6220, %v4470, %v6119
        %v6253 = vsel %vm6221, %v4469, %v6120
        %v6254 = vsel %vm6222, %v4468, %v6121
        %v6255 = vsel %vm6223, %v4467, %v6122
        %v6256 = vsel %vm6224, %v4466, %v6123
        %v6257 = vsel %vm6225, %v4465, %v6124
        %v6258 = vsel %vm6226, %v4464, %v6125
        %v6259 = vsel %vm6227, %v4463, %v6126
        %v6260 = vsel %vm6228, %v4462, %v6127
        %v6261 = vsel %vm6229, %v4461, %v6128
        %v6262 = vsel %vm6230, %v4460, %v6129
        %v6263 = vsel %vm6231, %v4459, %v6130
        %v6264 = vsel %vm6232, %v4458, %v6131
        %v6265 = vsel %vm6233, %v4457, %v6132
        %v6266 = vsel %vm6234, %v4456, %v6133
        %v6267 = vsel %vm6235, %v4455, %v6134
        %v6268 = vsel %vm6236, %v4454, %v6135
        %v6269 = vsel %vm6237, %v4453, %v6136
        %v6270 = vsel %vm6238, %v4452, %v6137
        %v6271 = vsel %vm6239, %v4451, %v6138
        %v6272 = vsel %vm6240, %v4450, %v6139
        %v6273 = vsel %vm6241, %v4481, %v6140
        %v6274 = vsel %vm6242, %v4480, %v6141
        %vm6275 = vcmp.ge.s32.totalorder %v520, 64
        %vm6276 = vcmp.lt.s32.totalorder %v520, 68
        %vm6277 = vmand %vm6275, %vm6276
        %v6278 = vsel %vm6277, 1, 0
        %vm6279 = vcmp.eq.s32.totalorder %v6278, 1
        %vm6280 = vmand %vm3957, %vm6279
        %vm6281 = vmand %vm3958, %vm6279
        %vm6282 = vmand %vm3959, %vm6279
        %vm6283 = vmand %vm3960, %vm6279
        %vm6284 = vmand %vm3961, %vm6279
        %vm6285 = vmand %vm3962, %vm6279
        %vm6286 = vmand %vm3963, %vm6279
        %vm6287 = vmand %vm3964, %vm6279
        %vm6288 = vmand %vm3965, %vm6279
        %vm6289 = vmand %vm3966, %vm6279
        %vm6290 = vmand %vm3967, %vm6279
        %vm6291 = vmand %vm3968, %vm6279
        %vm6292 = vmand %vm3969, %vm6279
        %vm6293 = vmand %vm3970, %vm6279
        %vm6294 = vmand %vm3971, %vm6279
        %vm6295 = vmand %vm3972, %vm6279
        %vm6296 = vmand %vm3973, %vm6279
        %vm6297 = vmand %vm3974, %vm6279
        %vm6298 = vmand %vm3975, %vm6279
        %vm6299 = vmand %vm3976, %vm6279
        %vm6300 = vmand %vm3977, %vm6279
        %vm6301 = vmand %vm3978, %vm6279
        %vm6302 = vmand %vm3979, %vm6279
        %vm6303 = vmand %vm3980, %vm6279
        %vm6304 = vmand %vm3981, %vm6279
        %vm6305 = vmand %vm3982, %vm6279
        %vm6306 = vmand %vm3983, %vm6279
        %vm6307 = vmand %vm3984, %vm6279
        %vm6308 = vmand %vm3985, %vm6279
        %vm6309 = vmand %vm3986, %vm6279
        %vm6310 = vmand %vm3987, %vm6279
        %vm6311 = vmand %vm3988, %vm6279
        %v6312 = vsel %vm6280, %v4671, %v6243
        %v6313 = vsel %vm6281, %v4670, %v6244
        %v6314 = vsel %vm6282, %v4669, %v6245
        %v6315 = vsel %vm6283, %v4668, %v6246
        %v6316 = vsel %vm6284, %v4667, %v6247
        %v6317 = vsel %vm6285, %v4666, %v6248
        %v6318 = vsel %vm6286, %v4665, %v6249
        %v6319 = vsel %vm6287, %v4664, %v6250
        %v6320 = vsel %vm6288, %v4663, %v6251
        %v6321 = vsel %vm6289, %v4662, %v6252
        %v6322 = vsel %vm6290, %v4661, %v6253
        %v6323 = vsel %vm6291, %v4660, %v6254
        %v6324 = vsel %vm6292, %v4659, %v6255
        %v6325 = vsel %vm6293, %v4658, %v6256
        %v6326 = vsel %vm6294, %v4657, %v6257
        %v6327 = vsel %vm6295, %v4656, %v6258
        %v6328 = vsel %vm6296, %v4655, %v6259
        %v6329 = vsel %vm6297, %v4654, %v6260
        %v6330 = vsel %vm6298, %v4653, %v6261
        %v6331 = vsel %vm6299, %v4652, %v6262
        %v6332 = vsel %vm6300, %v4651, %v6263
        %v6333 = vsel %vm6301, %v4650, %v6264
        %v6334 = vsel %vm6302, %v4649, %v6265
        %v6335 = vsel %vm6303, %v4648, %v6266
        %v6336 = vsel %vm6304, %v4647, %v6267
        %v6337 = vsel %vm6305, %v4646, %v6268
        %v6338 = vsel %vm6306, %v4645, %v6269
        %v6339 = vsel %vm6307, %v4644, %v6270
        %v6340 = vsel %vm6308, %v4643, %v6271
        %v6341 = vsel %vm6309, %v4642, %v6272
        %v6342 = vsel %vm6310, %v4673, %v6273
        %v6343 = vsel %vm6311, %v4672, %v6274
        %vm6344 = vcmp.ge.s32.totalorder %v520, 68
        %vm6345 = vcmp.lt.s32.totalorder %v520, 72
        %vm6346 = vmand %vm6344, %vm6345
        %v6347 = vsel %vm6346, 1, 0
        %vm6348 = vcmp.eq.s32.totalorder %v6347, 1
        %vm6349 = vmand %vm4090, %vm6348
        %vm6350 = vmand %vm4091, %vm6348
        %vm6351 = vmand %vm4092, %vm6348
        %vm6352 = vmand %vm4093, %vm6348
        %vm6353 = vmand %vm4094, %vm6348
        %vm6354 = vmand %vm4095, %vm6348
        %vm6355 = vmand %vm4096, %vm6348
        %vm6356 = vmand %vm4097, %vm6348
        %vm6357 = vmand %vm4098, %vm6348
        %vm6358 = vmand %vm4099, %vm6348
        %vm6359 = vmand %vm4100, %vm6348
        %vm6360 = vmand %vm4101, %vm6348
        %vm6361 = vmand %vm4102, %vm6348
        %vm6362 = vmand %vm4103, %vm6348
        %vm6363 = vmand %vm4104, %vm6348
        %vm6364 = vmand %vm4105, %vm6348
        %vm6365 = vmand %vm4106, %vm6348
        %vm6366 = vmand %vm4107, %vm6348
        %vm6367 = vmand %vm4108, %vm6348
        %vm6368 = vmand %vm4109, %vm6348
        %vm6369 = vmand %vm4110, %vm6348
        %vm6370 = vmand %vm4111, %vm6348
        %vm6371 = vmand %vm4112, %vm6348
        %vm6372 = vmand %vm4113, %vm6348
        %vm6373 = vmand %vm4114, %vm6348
        %vm6374 = vmand %vm4115, %vm6348
        %vm6375 = vmand %vm4116, %vm6348
        %vm6376 = vmand %vm4117, %vm6348
        %vm6377 = vmand %vm4118, %vm6348
        %vm6378 = vmand %vm4119, %vm6348
        %vm6379 = vmand %vm4120, %vm6348
        %vm6380 = vmand %vm4121, %vm6348
        %v6381 = vsel %vm6349, %v918, %v6312
        %v6382 = vsel %vm6350, %v920, %v6313
        %v6383 = vsel %vm6351, %v922, %v6314
        %v6384 = vsel %vm6352, %v924, %v6315
        %v6385 = vsel %vm6353, %v926, %v6316
        %v6386 = vsel %vm6354, %v928, %v6317
        %v6387 = vsel %vm6355, %v930, %v6318
        %v6388 = vsel %vm6356, %v932, %v6319
        %v6389 = vsel %vm6357, %v934, %v6320
        %v6390 = vsel %vm6358, %v936, %v6321
        %v6391 = vsel %vm6359, %v938, %v6322
        %v6392 = vsel %vm6360, %v940, %v6323
        %v6393 = vsel %vm6361, %v942, %v6324
        %v6394 = vsel %vm6362, %v944, %v6325
        %v6395 = vsel %vm6363, %v946, %v6326
        %v6396 = vsel %vm6364, %v948, %v6327
        %v6397 = vsel %vm6365, %v950, %v6328
        %v6398 = vsel %vm6366, %v952, %v6329
        %v6399 = vsel %vm6367, %v954, %v6330
        %v6400 = vsel %vm6368, %v956, %v6331
        %v6401 = vsel %vm6369, %v958, %v6332
        %v6402 = vsel %vm6370, %v960, %v6333
        %v6403 = vsel %vm6371, %v962, %v6334
        %v6404 = vsel %vm6372, %v964, %v6335
        %v6405 = vsel %vm6373, %v966, %v6336
        %v6406 = vsel %vm6374, %v968, %v6337
        %v6407 = vsel %vm6375, %v970, %v6338
        %v6408 = vsel %vm6376, %v972, %v6339
        %v6409 = vsel %vm6377, %v974, %v6340
        %v6410 = vsel %vm6378, %v976, %v6341
        %v6411 = vsel %vm6379, %v914, %v6342
        %v6412 = vsel %vm6380, %v916, %v6343
        %vm6413 = vcmp.ge.s32.totalorder %v520, 72
        %vm6414 = vcmp.lt.s32.totalorder %v520, 76
        %vm6415 = vmand %vm6413, %vm6414
        %v6416 = vsel %vm6415, 1, 0
        %vm6417 = vcmp.eq.s32.totalorder %v6416, 1
        %vm6418 = vmand %vm4223, %vm6417
        %vm6419 = vmand %vm4224, %vm6417
        %vm6420 = vmand %vm4225, %vm6417
        %vm6421 = vmand %vm4226, %vm6417
        %vm6422 = vmand %vm4227, %vm6417
        %vm6423 = vmand %vm4228, %vm6417
        %vm6424 = vmand %vm4229, %vm6417
        %vm6425 = vmand %vm4230, %vm6417
        %vm6426 = vmand %vm4231, %vm6417
        %vm6427 = vmand %vm4232, %vm6417
        %vm6428 = vmand %vm4233, %vm6417
        %vm6429 = vmand %vm4234, %vm6417
        %vm6430 = vmand %vm4235, %vm6417
        %vm6431 = vmand %vm4236, %vm6417
        %vm6432 = vmand %vm4237, %vm6417
        %vm6433 = vmand %vm4238, %vm6417
        %vm6434 = vmand %vm4239, %vm6417
        %vm6435 = vmand %vm4240, %vm6417
        %vm6436 = vmand %vm4241, %vm6417
        %vm6437 = vmand %vm4242, %vm6417
        %vm6438 = vmand %vm4243, %vm6417
        %vm6439 = vmand %vm4244, %vm6417
        %vm6440 = vmand %vm4245, %vm6417
        %vm6441 = vmand %vm4246, %vm6417
        %vm6442 = vmand %vm4247, %vm6417
        %vm6443 = vmand %vm4248, %vm6417
        %vm6444 = vmand %vm4249, %vm6417
        %vm6445 = vmand %vm4250, %vm6417
        %vm6446 = vmand %vm4251, %vm6417
        %vm6447 = vmand %vm4252, %vm6417
        %vm6448 = vmand %vm4253, %vm6417
        %vm6449 = vmand %vm4254, %vm6417
        %v6450 = vsel %vm6418, %v4990, %v6381
        %v6451 = vsel %vm6419, %v4989, %v6382
        %v6452 = vsel %vm6420, %v4988, %v6383
        %v6453 = vsel %vm6421, %v4987, %v6384
        %v6454 = vsel %vm6422, %v4986, %v6385
        %v6455 = vsel %vm6423, %v4985, %v6386
        %v6456 = vsel %vm6424, %v4984, %v6387
        %v6457 = vsel %vm6425, %v4983, %v6388
        %v6458 = vsel %vm6426, %v4982, %v6389
        %v6459 = vsel %vm6427, %v4981, %v6390
        %v6460 = vsel %vm6428, %v4980, %v6391
        %v6461 = vsel %vm6429, %v4979, %v6392
        %v6462 = vsel %vm6430, %v4978, %v6393
        %v6463 = vsel %vm6431, %v4977, %v6394
        %v6464 = vsel %vm6432, %v4976, %v6395
        %v6465 = vsel %vm6433, %v4975, %v6396
        %v6466 = vsel %vm6434, %v4974, %v6397
        %v6467 = vsel %vm6435, %v4973, %v6398
        %v6468 = vsel %vm6436, %v4972, %v6399
        %v6469 = vsel %vm6437, %v4971, %v6400
        %v6470 = vsel %vm6438, %v4970, %v6401
        %v6471 = vsel %vm6439, %v4969, %v6402
        %v6472 = vsel %vm6440, %v4968, %v6403
        %v6473 = vsel %vm6441, %v4967, %v6404
        %v6474 = vsel %vm6442, %v4966, %v6405
        %v6475 = vsel %vm6443, %v4965, %v6406
        %v6476 = vsel %vm6444, %v4964, %v6407
        %v6477 = vsel %vm6445, %v4963, %v6408
        %v6478 = vsel %vm6446, %v4962, %v6409
        %v6479 = vsel %vm6447, %v4993, %v6410
        %v6480 = vsel %vm6448, %v4992, %v6411
        %v6481 = vsel %vm6449, %v4991, %v6412
        %vm6482 = vcmp.ge.s32.totalorder %v520, 76
        %vm6483 = vcmp.lt.s32.totalorder %v520, 80
        %vm6484 = vmand %vm6482, %vm6483
        %v6485 = vsel %vm2801, 1, 0
        %v6486 = vsel %vm2802, 1, 0
        %v6487 = vsel %vm2803, 1, 0
        %v6488 = vsel %vm2804, 1, 0
        %v6489 = vsel %vm2805, 1, 0
        %v6490 = vsel %vm2806, 1, 0
        %v6491 = vsel %vm2807, 1, 0
        %v6492 = vsel %vm2808, 1, 0
        %v6493 = vsel %vm2809, 1, 0
        %v6494 = vsel %vm2810, 1, 0
        %v6495 = vsel %vm2811, 1, 0
        %v6496 = vsel %vm2812, 1, 0
        %v6497 = vsel %vm2813, 1, 0
        %v6498 = vsel %vm2814, 1, 0
        %v6499 = vsel %vm2815, 1, 0
        %v6500 = vsel %vm2816, 1, 0
        %v6501 = vsel %vm2817, 1, 0
        %v6502 = vsel %vm2818, 1, 0
        %v6503 = vsel %vm2819, 1, 0
        %v6504 = vsel %vm2820, 1, 0
        %v6505 = vsel %vm2821, 1, 0
        %v6506 = vsel %vm2822, 1, 0
        %v6507 = vsel %vm2823, 1, 0
        %v6508 = vsel %vm2824, 1, 0
        %v6509 = vsel %vm2825, 1, 0
        %v6510 = vsel %vm2826, 1, 0
        %v6511 = vsel %vm2827, 1, 0
        %v6512 = vsel %vm2828, 1, 0
        %v6513 = vsel %vm2829, 1, 0
        %v6514 = vsel %vm2830, 1, 0
        %v6515 = vsel %vm2831, 1, 0
        %v6516 = vsel %vm2832, 1, 0
        %vm6517 = vcmp.eq.s32.totalorder %v6485, 1
        %vm6518 = vcmp.eq.s32.totalorder %v6486, 1
        %vm6519 = vcmp.eq.s32.totalorder %v6487, 1
        %vm6520 = vcmp.eq.s32.totalorder %v6488, 1
        %vm6521 = vcmp.eq.s32.totalorder %v6489, 1
        %vm6522 = vcmp.eq.s32.totalorder %v6490, 1
        %vm6523 = vcmp.eq.s32.totalorder %v6491, 1
        %vm6524 = vcmp.eq.s32.totalorder %v6492, 1
        %vm6525 = vcmp.eq.s32.totalorder %v6493, 1
        %vm6526 = vcmp.eq.s32.totalorder %v6494, 1
        %vm6527 = vcmp.eq.s32.totalorder %v6495, 1
        %vm6528 = vcmp.eq.s32.totalorder %v6496, 1
        %vm6529 = vcmp.eq.s32.totalorder %v6497, 1
        %vm6530 = vcmp.eq.s32.totalorder %v6498, 1
        %vm6531 = vcmp.eq.s32.totalorder %v6499, 1
        %vm6532 = vcmp.eq.s32.totalorder %v6500, 1
        %vm6533 = vcmp.eq.s32.totalorder %v6501, 1
        %vm6534 = vcmp.eq.s32.totalorder %v6502, 1
        %vm6535 = vcmp.eq.s32.totalorder %v6503, 1
        %vm6536 = vcmp.eq.s32.totalorder %v6504, 1
        %vm6537 = vcmp.eq.s32.totalorder %v6505, 1
        %vm6538 = vcmp.eq.s32.totalorder %v6506, 1
        %vm6539 = vcmp.eq.s32.totalorder %v6507, 1
        %vm6540 = vcmp.eq.s32.totalorder %v6508, 1
        %vm6541 = vcmp.eq.s32.totalorder %v6509, 1
        %vm6542 = vcmp.eq.s32.totalorder %v6510, 1
        %vm6543 = vcmp.eq.s32.totalorder %v6511, 1
        %vm6544 = vcmp.eq.s32.totalorder %v6512, 1
        %vm6545 = vcmp.eq.s32.totalorder %v6513, 1
        %vm6546 = vcmp.eq.s32.totalorder %v6514, 1
        %vm6547 = vcmp.eq.s32.totalorder %v6515, 1
        %vm6548 = vcmp.eq.s32.totalorder %v6516, 1
        %v6549 = vsel %vm6484, 1, 0
        %vm6550 = vcmp.eq.s32.totalorder %v6549, 1
        %vm6551 = vmand %vm6517, %vm6550
        %vm6552 = vmand %vm6518, %vm6550
        %vm6553 = vmand %vm6519, %vm6550
        %vm6554 = vmand %vm6520, %vm6550
        %vm6555 = vmand %vm6521, %vm6550
        %vm6556 = vmand %vm6522, %vm6550
        %vm6557 = vmand %vm6523, %vm6550
        %vm6558 = vmand %vm6524, %vm6550
        %vm6559 = vmand %vm6525, %vm6550
        %vm6560 = vmand %vm6526, %vm6550
        %vm6561 = vmand %vm6527, %vm6550
        %vm6562 = vmand %vm6528, %vm6550
        %vm6563 = vmand %vm6529, %vm6550
        %vm6564 = vmand %vm6530, %vm6550
        %vm6565 = vmand %vm6531, %vm6550
        %vm6566 = vmand %vm6532, %vm6550
        %vm6567 = vmand %vm6533, %vm6550
        %vm6568 = vmand %vm6534, %vm6550
        %vm6569 = vmand %vm6535, %vm6550
        %vm6570 = vmand %vm6536, %vm6550
        %vm6571 = vmand %vm6537, %vm6550
        %vm6572 = vmand %vm6538, %vm6550
        %vm6573 = vmand %vm6539, %vm6550
        %vm6574 = vmand %vm6540, %vm6550
        %vm6575 = vmand %vm6541, %vm6550
        %vm6576 = vmand %vm6542, %vm6550
        %vm6577 = vmand %vm6543, %vm6550
        %vm6578 = vmand %vm6544, %vm6550
        %vm6579 = vmand %vm6545, %vm6550
        %vm6580 = vmand %vm6546, %vm6550
        %vm6581 = vmand %vm6547, %vm6550
        %vm6582 = vmand %vm6548, %vm6550
        %v6583 = vsel %vm6551, %v5185, %v6450
        %v6584 = vsel %vm6552, %v5184, %v6451
        %v6585 = vsel %vm6553, %v5183, %v6452
        %v6586 = vsel %vm6554, %v5182, %v6453
        %v6587 = vsel %vm6555, %v5181, %v6454
        %v6588 = vsel %vm6556, %v5180, %v6455
        %v6589 = vsel %vm6557, %v5179, %v6456
        %v6590 = vsel %vm6558, %v5178, %v6457
        %v6591 = vsel %vm6559, %v5177, %v6458
        %v6592 = vsel %vm6560, %v5176, %v6459
        %v6593 = vsel %vm6561, %v5175, %v6460
        %v6594 = vsel %vm6562, %v5174, %v6461
        %v6595 = vsel %vm6563, %v5173, %v6462
        %v6596 = vsel %vm6564, %v5172, %v6463
        %v6597 = vsel %vm6565, %v5171, %v6464
        %v6598 = vsel %vm6566, %v5170, %v6465
        %v6599 = vsel %vm6567, %v5169, %v6466
        %v6600 = vsel %vm6568, %v5168, %v6467
        %v6601 = vsel %vm6569, %v5167, %v6468
        %v6602 = vsel %vm6570, %v5166, %v6469
        %v6603 = vsel %vm6571, %v5165, %v6470
        %v6604 = vsel %vm6572, %v5164, %v6471
        %v6605 = vsel %vm6573, %v5163, %v6472
        %v6606 = vsel %vm6574, %v5162, %v6473
        %v6607 = vsel %vm6575, %v5161, %v6474
        %v6608 = vsel %vm6576, %v5160, %v6475
        %v6609 = vsel %vm6577, %v5159, %v6476
        %v6610 = vsel %vm6578, %v5158, %v6477
        %v6611 = vsel %vm6579, %v5157, %v6478
        %v6612 = vsel %vm6580, %v5188, %v6479
        %v6613 = vsel %vm6581, %v5187, %v6480
        %v6614 = vsel %vm6582, %v5186, %v6481
        %vm6615 = vcmp.ge.s32.totalorder %v520, 80
        %vm6616 = vcmp.lt.s32.totalorder %v520, 84
        %vm6617 = vmand %vm6615, %vm6616
        %v6618 = vsel %vm2833, 1, 0
        %v6619 = vsel %vm2834, 1, 0
        %v6620 = vsel %vm2835, 1, 0
        %v6621 = vsel %vm2836, 1, 0
        %v6622 = vsel %vm2837, 1, 0
        %v6623 = vsel %vm2838, 1, 0
        %v6624 = vsel %vm2839, 1, 0
        %v6625 = vsel %vm2840, 1, 0
        %v6626 = vsel %vm2841, 1, 0
        %v6627 = vsel %vm2842, 1, 0
        %v6628 = vsel %vm2843, 1, 0
        %v6629 = vsel %vm2844, 1, 0
        %v6630 = vsel %vm2845, 1, 0
        %v6631 = vsel %vm2846, 1, 0
        %v6632 = vsel %vm2847, 1, 0
        %v6633 = vsel %vm2848, 1, 0
        %v6634 = vsel %vm2849, 1, 0
        %v6635 = vsel %vm2850, 1, 0
        %v6636 = vsel %vm2851, 1, 0
        %v6637 = vsel %vm2852, 1, 0
        %v6638 = vsel %vm2853, 1, 0
        %v6639 = vsel %vm2854, 1, 0
        %v6640 = vsel %vm2855, 1, 0
        %v6641 = vsel %vm2856, 1, 0
        %v6642 = vsel %vm2857, 1, 0
        %v6643 = vsel %vm2858, 1, 0
        %v6644 = vsel %vm2859, 1, 0
        %v6645 = vsel %vm2860, 1, 0
        %v6646 = vsel %vm2861, 1, 0
        %v6647 = vsel %vm2862, 1, 0
        %v6648 = vsel %vm2863, 1, 0
        %v6649 = vsel %vm2864, 1, 0
        %vm6650 = vcmp.eq.s32.totalorder %v6618, 1
        %vm6651 = vcmp.eq.s32.totalorder %v6619, 1
        %vm6652 = vcmp.eq.s32.totalorder %v6620, 1
        %vm6653 = vcmp.eq.s32.totalorder %v6621, 1
        %vm6654 = vcmp.eq.s32.totalorder %v6622, 1
        %vm6655 = vcmp.eq.s32.totalorder %v6623, 1
        %vm6656 = vcmp.eq.s32.totalorder %v6624, 1
        %vm6657 = vcmp.eq.s32.totalorder %v6625, 1
        %vm6658 = vcmp.eq.s32.totalorder %v6626, 1
        %vm6659 = vcmp.eq.s32.totalorder %v6627, 1
        %vm6660 = vcmp.eq.s32.totalorder %v6628, 1
        %vm6661 = vcmp.eq.s32.totalorder %v6629, 1
        %vm6662 = vcmp.eq.s32.totalorder %v6630, 1
        %vm6663 = vcmp.eq.s32.totalorder %v6631, 1
        %vm6664 = vcmp.eq.s32.totalorder %v6632, 1
        %vm6665 = vcmp.eq.s32.totalorder %v6633, 1
        %vm6666 = vcmp.eq.s32.totalorder %v6634, 1
        %vm6667 = vcmp.eq.s32.totalorder %v6635, 1
        %vm6668 = vcmp.eq.s32.totalorder %v6636, 1
        %vm6669 = vcmp.eq.s32.totalorder %v6637, 1
        %vm6670 = vcmp.eq.s32.totalorder %v6638, 1
        %vm6671 = vcmp.eq.s32.totalorder %v6639, 1
        %vm6672 = vcmp.eq.s32.totalorder %v6640, 1
        %vm6673 = vcmp.eq.s32.totalorder %v6641, 1
        %vm6674 = vcmp.eq.s32.totalorder %v6642, 1
        %vm6675 = vcmp.eq.s32.totalorder %v6643, 1
        %vm6676 = vcmp.eq.s32.totalorder %v6644, 1
        %vm6677 = vcmp.eq.s32.totalorder %v6645, 1
        %vm6678 = vcmp.eq.s32.totalorder %v6646, 1
        %vm6679 = vcmp.eq.s32.totalorder %v6647, 1
        %vm6680 = vcmp.eq.s32.totalorder %v6648, 1
        %vm6681 = vcmp.eq.s32.totalorder %v6649, 1
        %v6682 = vsel %vm6617, 1, 0
        %vm6683 = vcmp.eq.s32.totalorder %v6682, 1
        %vm6684 = vmand %vm6650, %vm6683
        %vm6685 = vmand %vm6651, %vm6683
        %vm6686 = vmand %vm6652, %vm6683
        %vm6687 = vmand %vm6653, %vm6683
        %vm6688 = vmand %vm6654, %vm6683
        %vm6689 = vmand %vm6655, %vm6683
        %vm6690 = vmand %vm6656, %vm6683
        %vm6691 = vmand %vm6657, %vm6683
        %vm6692 = vmand %vm6658, %vm6683
        %vm6693 = vmand %vm6659, %vm6683
        %vm6694 = vmand %vm6660, %vm6683
        %vm6695 = vmand %vm6661, %vm6683
        %vm6696 = vmand %vm6662, %vm6683
        %vm6697 = vmand %vm6663, %vm6683
        %vm6698 = vmand %vm6664, %vm6683
        %vm6699 = vmand %vm6665, %vm6683
        %vm6700 = vmand %vm6666, %vm6683
        %vm6701 = vmand %vm6667, %vm6683
        %vm6702 = vmand %vm6668, %vm6683
        %vm6703 = vmand %vm6669, %vm6683
        %vm6704 = vmand %vm6670, %vm6683
        %vm6705 = vmand %vm6671, %vm6683
        %vm6706 = vmand %vm6672, %vm6683
        %vm6707 = vmand %vm6673, %vm6683
        %vm6708 = vmand %vm6674, %vm6683
        %vm6709 = vmand %vm6675, %vm6683
        %vm6710 = vmand %vm6676, %vm6683
        %vm6711 = vmand %vm6677, %vm6683
        %vm6712 = vmand %vm6678, %vm6683
        %vm6713 = vmand %vm6679, %vm6683
        %vm6714 = vmand %vm6680, %vm6683
        %vm6715 = vmand %vm6681, %vm6683
        %v6716 = vsel %vm6684, %v4477, %v6583
        %v6717 = vsel %vm6685, %v4476, %v6584
        %v6718 = vsel %vm6686, %v4475, %v6585
        %v6719 = vsel %vm6687, %v4474, %v6586
        %v6720 = vsel %vm6688, %v4473, %v6587
        %v6721 = vsel %vm6689, %v4472, %v6588
        %v6722 = vsel %vm6690, %v4471, %v6589
        %v6723 = vsel %vm6691, %v4470, %v6590
        %v6724 = vsel %vm6692, %v4469, %v6591
        %v6725 = vsel %vm6693, %v4468, %v6592
        %v6726 = vsel %vm6694, %v4467, %v6593
        %v6727 = vsel %vm6695, %v4466, %v6594
        %v6728 = vsel %vm6696, %v4465, %v6595
        %v6729 = vsel %vm6697, %v4464, %v6596
        %v6730 = vsel %vm6698, %v4463, %v6597
        %v6731 = vsel %vm6699, %v4462, %v6598
        %v6732 = vsel %vm6700, %v4461, %v6599
        %v6733 = vsel %vm6701, %v4460, %v6600
        %v6734 = vsel %vm6702, %v4459, %v6601
        %v6735 = vsel %vm6703, %v4458, %v6602
        %v6736 = vsel %vm6704, %v4457, %v6603
        %v6737 = vsel %vm6705, %v4456, %v6604
        %v6738 = vsel %vm6706, %v4455, %v6605
        %v6739 = vsel %vm6707, %v4454, %v6606
        %v6740 = vsel %vm6708, %v4453, %v6607
        %v6741 = vsel %vm6709, %v4452, %v6608
        %v6742 = vsel %vm6710, %v4451, %v6609
        %v6743 = vsel %vm6711, %v4450, %v6610
        %v6744 = vsel %vm6712, %v4481, %v6611
        %v6745 = vsel %vm6713, %v4480, %v6612
        %v6746 = vsel %vm6714, %v4479, %v6613
        %v6747 = vsel %vm6715, %v4478, %v6614
        %vm6748 = vcmp.ge.s32.totalorder %v520, 84
        %vm6749 = vcmp.lt.s32.totalorder %v520, 88
        %vm6750 = vmand %vm6748, %vm6749
        %v6751 = vsel %vm2865, 1, 0
        %v6752 = vsel %vm2866, 1, 0
        %v6753 = vsel %vm2867, 1, 0
        %v6754 = vsel %vm2868, 1, 0
        %v6755 = vsel %vm2869, 1, 0
        %v6756 = vsel %vm2870, 1, 0
        %v6757 = vsel %vm2871, 1, 0
        %v6758 = vsel %vm2872, 1, 0
        %v6759 = vsel %vm2873, 1, 0
        %v6760 = vsel %vm2874, 1, 0
        %v6761 = vsel %vm2875, 1, 0
        %v6762 = vsel %vm2876, 1, 0
        %v6763 = vsel %vm2877, 1, 0
        %v6764 = vsel %vm2878, 1, 0
        %v6765 = vsel %vm2879, 1, 0
        %v6766 = vsel %vm2880, 1, 0
        %v6767 = vsel %vm2881, 1, 0
        %v6768 = vsel %vm2882, 1, 0
        %v6769 = vsel %vm2883, 1, 0
        %v6770 = vsel %vm2884, 1, 0
        %v6771 = vsel %vm2885, 1, 0
        %v6772 = vsel %vm2886, 1, 0
        %v6773 = vsel %vm2887, 1, 0
        %v6774 = vsel %vm2888, 1, 0
        %v6775 = vsel %vm2889, 1, 0
        %v6776 = vsel %vm2890, 1, 0
        %v6777 = vsel %vm2891, 1, 0
        %v6778 = vsel %vm2892, 1, 0
        %v6779 = vsel %vm2893, 1, 0
        %v6780 = vsel %vm2894, 1, 0
        %v6781 = vsel %vm2895, 1, 0
        %v6782 = vsel %vm2896, 1, 0
        %vm6783 = vcmp.eq.s32.totalorder %v6751, 1
        %vm6784 = vcmp.eq.s32.totalorder %v6752, 1
        %vm6785 = vcmp.eq.s32.totalorder %v6753, 1
        %vm6786 = vcmp.eq.s32.totalorder %v6754, 1
        %vm6787 = vcmp.eq.s32.totalorder %v6755, 1
        %vm6788 = vcmp.eq.s32.totalorder %v6756, 1
        %vm6789 = vcmp.eq.s32.totalorder %v6757, 1
        %vm6790 = vcmp.eq.s32.totalorder %v6758, 1
        %vm6791 = vcmp.eq.s32.totalorder %v6759, 1
        %vm6792 = vcmp.eq.s32.totalorder %v6760, 1
        %vm6793 = vcmp.eq.s32.totalorder %v6761, 1
        %vm6794 = vcmp.eq.s32.totalorder %v6762, 1
        %vm6795 = vcmp.eq.s32.totalorder %v6763, 1
        %vm6796 = vcmp.eq.s32.totalorder %v6764, 1
        %vm6797 = vcmp.eq.s32.totalorder %v6765, 1
        %vm6798 = vcmp.eq.s32.totalorder %v6766, 1
        %vm6799 = vcmp.eq.s32.totalorder %v6767, 1
        %vm6800 = vcmp.eq.s32.totalorder %v6768, 1
        %vm6801 = vcmp.eq.s32.totalorder %v6769, 1
        %vm6802 = vcmp.eq.s32.totalorder %v6770, 1
        %vm6803 = vcmp.eq.s32.totalorder %v6771, 1
        %vm6804 = vcmp.eq.s32.totalorder %v6772, 1
        %vm6805 = vcmp.eq.s32.totalorder %v6773, 1
        %vm6806 = vcmp.eq.s32.totalorder %v6774, 1
        %vm6807 = vcmp.eq.s32.totalorder %v6775, 1
        %vm6808 = vcmp.eq.s32.totalorder %v6776, 1
        %vm6809 = vcmp.eq.s32.totalorder %v6777, 1
        %vm6810 = vcmp.eq.s32.totalorder %v6778, 1
        %vm6811 = vcmp.eq.s32.totalorder %v6779, 1
        %vm6812 = vcmp.eq.s32.totalorder %v6780, 1
        %vm6813 = vcmp.eq.s32.totalorder %v6781, 1
        %vm6814 = vcmp.eq.s32.totalorder %v6782, 1
        %v6815 = vsel %vm6750, 1, 0
        %vm6816 = vcmp.eq.s32.totalorder %v6815, 1
        %vm6817 = vmand %vm6783, %vm6816
        %vm6818 = vmand %vm6784, %vm6816
        %vm6819 = vmand %vm6785, %vm6816
        %vm6820 = vmand %vm6786, %vm6816
        %vm6821 = vmand %vm6787, %vm6816
        %vm6822 = vmand %vm6788, %vm6816
        %vm6823 = vmand %vm6789, %vm6816
        %vm6824 = vmand %vm6790, %vm6816
        %vm6825 = vmand %vm6791, %vm6816
        %vm6826 = vmand %vm6792, %vm6816
        %vm6827 = vmand %vm6793, %vm6816
        %vm6828 = vmand %vm6794, %vm6816
        %vm6829 = vmand %vm6795, %vm6816
        %vm6830 = vmand %vm6796, %vm6816
        %vm6831 = vmand %vm6797, %vm6816
        %vm6832 = vmand %vm6798, %vm6816
        %vm6833 = vmand %vm6799, %vm6816
        %vm6834 = vmand %vm6800, %vm6816
        %vm6835 = vmand %vm6801, %vm6816
        %vm6836 = vmand %vm6802, %vm6816
        %vm6837 = vmand %vm6803, %vm6816
        %vm6838 = vmand %vm6804, %vm6816
        %vm6839 = vmand %vm6805, %vm6816
        %vm6840 = vmand %vm6806, %vm6816
        %vm6841 = vmand %vm6807, %vm6816
        %vm6842 = vmand %vm6808, %vm6816
        %vm6843 = vmand %vm6809, %vm6816
        %vm6844 = vmand %vm6810, %vm6816
        %vm6845 = vmand %vm6811, %vm6816
        %vm6846 = vmand %vm6812, %vm6816
        %vm6847 = vmand %vm6813, %vm6816
        %vm6848 = vmand %vm6814, %vm6816
        %v6849 = vsel %vm6817, %v4669, %v6716
        %v6850 = vsel %vm6818, %v4668, %v6717
        %v6851 = vsel %vm6819, %v4667, %v6718
        %v6852 = vsel %vm6820, %v4666, %v6719
        %v6853 = vsel %vm6821, %v4665, %v6720
        %v6854 = vsel %vm6822, %v4664, %v6721
        %v6855 = vsel %vm6823, %v4663, %v6722
        %v6856 = vsel %vm6824, %v4662, %v6723
        %v6857 = vsel %vm6825, %v4661, %v6724
        %v6858 = vsel %vm6826, %v4660, %v6725
        %v6859 = vsel %vm6827, %v4659, %v6726
        %v6860 = vsel %vm6828, %v4658, %v6727
        %v6861 = vsel %vm6829, %v4657, %v6728
        %v6862 = vsel %vm6830, %v4656, %v6729
        %v6863 = vsel %vm6831, %v4655, %v6730
        %v6864 = vsel %vm6832, %v4654, %v6731
        %v6865 = vsel %vm6833, %v4653, %v6732
        %v6866 = vsel %vm6834, %v4652, %v6733
        %v6867 = vsel %vm6835, %v4651, %v6734
        %v6868 = vsel %vm6836, %v4650, %v6735
        %v6869 = vsel %vm6837, %v4649, %v6736
        %v6870 = vsel %vm6838, %v4648, %v6737
        %v6871 = vsel %vm6839, %v4647, %v6738
        %v6872 = vsel %vm6840, %v4646, %v6739
        %v6873 = vsel %vm6841, %v4645, %v6740
        %v6874 = vsel %vm6842, %v4644, %v6741
        %v6875 = vsel %vm6843, %v4643, %v6742
        %v6876 = vsel %vm6844, %v4642, %v6743
        %v6877 = vsel %vm6845, %v4673, %v6744
        %v6878 = vsel %vm6846, %v4672, %v6745
        %v6879 = vsel %vm6847, %v4671, %v6746
        %v6880 = vsel %vm6848, %v4670, %v6747
        %vm6881 = vcmp.ge.s32.totalorder %v520, 88
        %vm6882 = vcmp.lt.s32.totalorder %v520, 92
        %vm6883 = vmand %vm6881, %vm6882
        %v6884 = vsel %vm2897, 1, 0
        %v6885 = vsel %vm2898, 1, 0
        %v6886 = vsel %vm2899, 1, 0
        %v6887 = vsel %vm2900, 1, 0
        %v6888 = vsel %vm2901, 1, 0
        %v6889 = vsel %vm2902, 1, 0
        %v6890 = vsel %vm2903, 1, 0
        %v6891 = vsel %vm2904, 1, 0
        %v6892 = vsel %vm2905, 1, 0
        %v6893 = vsel %vm2906, 1, 0
        %v6894 = vsel %vm2907, 1, 0
        %v6895 = vsel %vm2908, 1, 0
        %v6896 = vsel %vm2909, 1, 0
        %v6897 = vsel %vm2910, 1, 0
        %v6898 = vsel %vm2911, 1, 0
        %v6899 = vsel %vm2912, 1, 0
        %v6900 = vsel %vm2913, 1, 0
        %v6901 = vsel %vm2914, 1, 0
        %v6902 = vsel %vm2915, 1, 0
        %v6903 = vsel %vm2916, 1, 0
        %v6904 = vsel %vm2917, 1, 0
        %v6905 = vsel %vm2918, 1, 0
        %v6906 = vsel %vm2919, 1, 0
        %v6907 = vsel %vm2920, 1, 0
        %v6908 = vsel %vm2921, 1, 0
        %v6909 = vsel %vm2922, 1, 0
        %v6910 = vsel %vm2923, 1, 0
        %v6911 = vsel %vm2924, 1, 0
        %v6912 = vsel %vm2925, 1, 0
        %v6913 = vsel %vm2926, 1, 0
        %v6914 = vsel %vm2927, 1, 0
        %v6915 = vsel %vm2928, 1, 0
        %vm6916 = vcmp.eq.s32.totalorder %v6884, 1
        %vm6917 = vcmp.eq.s32.totalorder %v6885, 1
        %vm6918 = vcmp.eq.s32.totalorder %v6886, 1
        %vm6919 = vcmp.eq.s32.totalorder %v6887, 1
        %vm6920 = vcmp.eq.s32.totalorder %v6888, 1
        %vm6921 = vcmp.eq.s32.totalorder %v6889, 1
        %vm6922 = vcmp.eq.s32.totalorder %v6890, 1
        %vm6923 = vcmp.eq.s32.totalorder %v6891, 1
        %vm6924 = vcmp.eq.s32.totalorder %v6892, 1
        %vm6925 = vcmp.eq.s32.totalorder %v6893, 1
        %vm6926 = vcmp.eq.s32.totalorder %v6894, 1
        %vm6927 = vcmp.eq.s32.totalorder %v6895, 1
        %vm6928 = vcmp.eq.s32.totalorder %v6896, 1
        %vm6929 = vcmp.eq.s32.totalorder %v6897, 1
        %vm6930 = vcmp.eq.s32.totalorder %v6898, 1
        %vm6931 = vcmp.eq.s32.totalorder %v6899, 1
        %vm6932 = vcmp.eq.s32.totalorder %v6900, 1
        %vm6933 = vcmp.eq.s32.totalorder %v6901, 1
        %vm6934 = vcmp.eq.s32.totalorder %v6902, 1
        %vm6935 = vcmp.eq.s32.totalorder %v6903, 1
        %vm6936 = vcmp.eq.s32.totalorder %v6904, 1
        %vm6937 = vcmp.eq.s32.totalorder %v6905, 1
        %vm6938 = vcmp.eq.s32.totalorder %v6906, 1
        %vm6939 = vcmp.eq.s32.totalorder %v6907, 1
        %vm6940 = vcmp.eq.s32.totalorder %v6908, 1
        %vm6941 = vcmp.eq.s32.totalorder %v6909, 1
        %vm6942 = vcmp.eq.s32.totalorder %v6910, 1
        %vm6943 = vcmp.eq.s32.totalorder %v6911, 1
        %vm6944 = vcmp.eq.s32.totalorder %v6912, 1
        %vm6945 = vcmp.eq.s32.totalorder %v6913, 1
        %vm6946 = vcmp.eq.s32.totalorder %v6914, 1
        %vm6947 = vcmp.eq.s32.totalorder %v6915, 1
        %v6948 = vsel %vm6883, 1, 0
        %vm6949 = vcmp.eq.s32.totalorder %v6948, 1
        %vm6950 = vmand %vm6916, %vm6949
        %vm6951 = vmand %vm6917, %vm6949
        %vm6952 = vmand %vm6918, %vm6949
        %vm6953 = vmand %vm6919, %vm6949
        %vm6954 = vmand %vm6920, %vm6949
        %vm6955 = vmand %vm6921, %vm6949
        %vm6956 = vmand %vm6922, %vm6949
        %vm6957 = vmand %vm6923, %vm6949
        %vm6958 = vmand %vm6924, %vm6949
        %vm6959 = vmand %vm6925, %vm6949
        %vm6960 = vmand %vm6926, %vm6949
        %vm6961 = vmand %vm6927, %vm6949
        %vm6962 = vmand %vm6928, %vm6949
        %vm6963 = vmand %vm6929, %vm6949
        %vm6964 = vmand %vm6930, %vm6949
        %vm6965 = vmand %vm6931, %vm6949
        %vm6966 = vmand %vm6932, %vm6949
        %vm6967 = vmand %vm6933, %vm6949
        %vm6968 = vmand %vm6934, %vm6949
        %vm6969 = vmand %vm6935, %vm6949
        %vm6970 = vmand %vm6936, %vm6949
        %vm6971 = vmand %vm6937, %vm6949
        %vm6972 = vmand %vm6938, %vm6949
        %vm6973 = vmand %vm6939, %vm6949
        %vm6974 = vmand %vm6940, %vm6949
        %vm6975 = vmand %vm6941, %vm6949
        %vm6976 = vmand %vm6942, %vm6949
        %vm6977 = vmand %vm6943, %vm6949
        %vm6978 = vmand %vm6944, %vm6949
        %vm6979 = vmand %vm6945, %vm6949
        %vm6980 = vmand %vm6946, %vm6949
        %vm6981 = vmand %vm6947, %vm6949
        %v6982 = vsel %vm6950, %v922, %v6849
        %v6983 = vsel %vm6951, %v924, %v6850
        %v6984 = vsel %vm6952, %v926, %v6851
        %v6985 = vsel %vm6953, %v928, %v6852
        %v6986 = vsel %vm6954, %v930, %v6853
        %v6987 = vsel %vm6955, %v932, %v6854
        %v6988 = vsel %vm6956, %v934, %v6855
        %v6989 = vsel %vm6957, %v936, %v6856
        %v6990 = vsel %vm6958, %v938, %v6857
        %v6991 = vsel %vm6959, %v940, %v6858
        %v6992 = vsel %vm6960, %v942, %v6859
        %v6993 = vsel %vm6961, %v944, %v6860
        %v6994 = vsel %vm6962, %v946, %v6861
        %v6995 = vsel %vm6963, %v948, %v6862
        %v6996 = vsel %vm6964, %v950, %v6863
        %v6997 = vsel %vm6965, %v952, %v6864
        %v6998 = vsel %vm6966, %v954, %v6865
        %v6999 = vsel %vm6967, %v956, %v6866
        %v7000 = vsel %vm6968, %v958, %v6867
        %v7001 = vsel %vm6969, %v960, %v6868
        %v7002 = vsel %vm6970, %v962, %v6869
        %v7003 = vsel %vm6971, %v964, %v6870
        %v7004 = vsel %vm6972, %v966, %v6871
        %v7005 = vsel %vm6973, %v968, %v6872
        %v7006 = vsel %vm6974, %v970, %v6873
        %v7007 = vsel %vm6975, %v972, %v6874
        %v7008 = vsel %vm6976, %v974, %v6875
        %v7009 = vsel %vm6977, %v976, %v6876
        %v7010 = vsel %vm6978, %v914, %v6877
        %v7011 = vsel %vm6979, %v916, %v6878
        %v7012 = vsel %vm6980, %v918, %v6879
        %v7013 = vsel %vm6981, %v920, %v6880
        %vm7014 = vcmp.ge.s32.totalorder %v520, 92
        %vm7015 = vcmp.lt.s32.totalorder %v520, 96
        %vm7016 = vmand %vm7014, %vm7015
        %v7017 = vsel %vm2929, 1, 0
        %v7018 = vsel %vm2930, 1, 0
        %v7019 = vsel %vm2931, 1, 0
        %v7020 = vsel %vm2932, 1, 0
        %v7021 = vsel %vm2933, 1, 0
        %v7022 = vsel %vm2934, 1, 0
        %v7023 = vsel %vm2935, 1, 0
        %v7024 = vsel %vm2936, 1, 0
        %v7025 = vsel %vm2937, 1, 0
        %v7026 = vsel %vm2938, 1, 0
        %v7027 = vsel %vm2939, 1, 0
        %v7028 = vsel %vm2940, 1, 0
        %v7029 = vsel %vm2941, 1, 0
        %v7030 = vsel %vm2942, 1, 0
        %v7031 = vsel %vm2943, 1, 0
        %v7032 = vsel %vm2944, 1, 0
        %v7033 = vsel %vm2945, 1, 0
        %v7034 = vsel %vm2946, 1, 0
        %v7035 = vsel %vm2947, 1, 0
        %v7036 = vsel %vm2948, 1, 0
        %v7037 = vsel %vm2949, 1, 0
        %v7038 = vsel %vm2950, 1, 0
        %v7039 = vsel %vm2951, 1, 0
        %v7040 = vsel %vm2952, 1, 0
        %v7041 = vsel %vm2953, 1, 0
        %v7042 = vsel %vm2954, 1, 0
        %v7043 = vsel %vm2955, 1, 0
        %v7044 = vsel %vm2956, 1, 0
        %v7045 = vsel %vm2957, 1, 0
        %v7046 = vsel %vm2958, 1, 0
        %v7047 = vsel %vm2959, 1, 0
        %v7048 = vsel %vm2960, 1, 0
        %vm7049 = vcmp.eq.s32.totalorder %v7017, 1
        %vm7050 = vcmp.eq.s32.totalorder %v7018, 1
        %vm7051 = vcmp.eq.s32.totalorder %v7019, 1
        %vm7052 = vcmp.eq.s32.totalorder %v7020, 1
        %vm7053 = vcmp.eq.s32.totalorder %v7021, 1
        %vm7054 = vcmp.eq.s32.totalorder %v7022, 1
        %vm7055 = vcmp.eq.s32.totalorder %v7023, 1
        %vm7056 = vcmp.eq.s32.totalorder %v7024, 1
        %vm7057 = vcmp.eq.s32.totalorder %v7025, 1
        %vm7058 = vcmp.eq.s32.totalorder %v7026, 1
        %vm7059 = vcmp.eq.s32.totalorder %v7027, 1
        %vm7060 = vcmp.eq.s32.totalorder %v7028, 1
        %vm7061 = vcmp.eq.s32.totalorder %v7029, 1
        %vm7062 = vcmp.eq.s32.totalorder %v7030, 1
        %vm7063 = vcmp.eq.s32.totalorder %v7031, 1
        %vm7064 = vcmp.eq.s32.totalorder %v7032, 1
        %vm7065 = vcmp.eq.s32.totalorder %v7033, 1
        %vm7066 = vcmp.eq.s32.totalorder %v7034, 1
        %vm7067 = vcmp.eq.s32.totalorder %v7035, 1
        %vm7068 = vcmp.eq.s32.totalorder %v7036, 1
        %vm7069 = vcmp.eq.s32.totalorder %v7037, 1
        %vm7070 = vcmp.eq.s32.totalorder %v7038, 1
        %vm7071 = vcmp.eq.s32.totalorder %v7039, 1
        %vm7072 = vcmp.eq.s32.totalorder %v7040, 1
        %vm7073 = vcmp.eq.s32.totalorder %v7041, 1
        %vm7074 = vcmp.eq.s32.totalorder %v7042, 1
        %vm7075 = vcmp.eq.s32.totalorder %v7043, 1
        %vm7076 = vcmp.eq.s32.totalorder %v7044, 1
        %vm7077 = vcmp.eq.s32.totalorder %v7045, 1
        %vm7078 = vcmp.eq.s32.totalorder %v7046, 1
        %vm7079 = vcmp.eq.s32.totalorder %v7047, 1
        %vm7080 = vcmp.eq.s32.totalorder %v7048, 1
        %v7081 = vsel %vm7016, 1, 0
        %vm7082 = vcmp.eq.s32.totalorder %v7081, 1
        %vm7083 = vmand %vm7049, %vm7082
        %vm7084 = vmand %vm7050, %vm7082
        %vm7085 = vmand %vm7051, %vm7082
        %vm7086 = vmand %vm7052, %vm7082
        %vm7087 = vmand %vm7053, %vm7082
        %vm7088 = vmand %vm7054, %vm7082
        %vm7089 = vmand %vm7055, %vm7082
        %vm7090 = vmand %vm7056, %vm7082
        %vm7091 = vmand %vm7057, %vm7082
        %vm7092 = vmand %vm7058, %vm7082
        %vm7093 = vmand %vm7059, %vm7082
        %vm7094 = vmand %vm7060, %vm7082
        %vm7095 = vmand %vm7061, %vm7082
        %vm7096 = vmand %vm7062, %vm7082
        %vm7097 = vmand %vm7063, %vm7082
        %vm7098 = vmand %vm7064, %vm7082
        %vm7099 = vmand %vm7065, %vm7082
        %vm7100 = vmand %vm7066, %vm7082
        %vm7101 = vmand %vm7067, %vm7082
        %vm7102 = vmand %vm7068, %vm7082
        %vm7103 = vmand %vm7069, %vm7082
        %vm7104 = vmand %vm7070, %vm7082
        %vm7105 = vmand %vm7071, %vm7082
        %vm7106 = vmand %vm7072, %vm7082
        %vm7107 = vmand %vm7073, %vm7082
        %vm7108 = vmand %vm7074, %vm7082
        %vm7109 = vmand %vm7075, %vm7082
        %vm7110 = vmand %vm7076, %vm7082
        %vm7111 = vmand %vm7077, %vm7082
        %vm7112 = vmand %vm7078, %vm7082
        %vm7113 = vmand %vm7079, %vm7082
        %vm7114 = vmand %vm7080, %vm7082
        %v7115 = vsel %vm7083, %v4988, %v6982
        %v7116 = vsel %vm7084, %v4987, %v6983
        %v7117 = vsel %vm7085, %v4986, %v6984
        %v7118 = vsel %vm7086, %v4985, %v6985
        %v7119 = vsel %vm7087, %v4984, %v6986
        %v7120 = vsel %vm7088, %v4983, %v6987
        %v7121 = vsel %vm7089, %v4982, %v6988
        %v7122 = vsel %vm7090, %v4981, %v6989
        %v7123 = vsel %vm7091, %v4980, %v6990
        %v7124 = vsel %vm7092, %v4979, %v6991
        %v7125 = vsel %vm7093, %v4978, %v6992
        %v7126 = vsel %vm7094, %v4977, %v6993
        %v7127 = vsel %vm7095, %v4976, %v6994
        %v7128 = vsel %vm7096, %v4975, %v6995
        %v7129 = vsel %vm7097, %v4974, %v6996
        %v7130 = vsel %vm7098, %v4973, %v6997
        %v7131 = vsel %vm7099, %v4972, %v6998
        %v7132 = vsel %vm7100, %v4971, %v6999
        %v7133 = vsel %vm7101, %v4970, %v7000
        %v7134 = vsel %vm7102, %v4969, %v7001
        %v7135 = vsel %vm7103, %v4968, %v7002
        %v7136 = vsel %vm7104, %v4967, %v7003
        %v7137 = vsel %vm7105, %v4966, %v7004
        %v7138 = vsel %vm7106, %v4965, %v7005
        %v7139 = vsel %vm7107, %v4964, %v7006
        %v7140 = vsel %vm7108, %v4963, %v7007
        %v7141 = vsel %vm7109, %v4962, %v7008
        %v7142 = vsel %vm7110, %v4993, %v7009
        %v7143 = vsel %vm7111, %v4992, %v7010
        %v7144 = vsel %vm7112, %v4991, %v7011
        %v7145 = vsel %vm7113, %v4990, %v7012
        %v7146 = vsel %vm7114, %v4989, %v7013
        %vm7147 = vcmp.ge.s32.totalorder %v520, 96
        %vm7148 = vcmp.lt.s32.totalorder %v520, 100
        %vm7149 = vmand %vm7147, %vm7148
        %v7150 = vsel %vm2961, 1, 0
        %v7151 = vsel %vm2962, 1, 0
        %v7152 = vsel %vm2963, 1, 0
        %v7153 = vsel %vm2964, 1, 0
        %v7154 = vsel %vm2965, 1, 0
        %v7155 = vsel %vm2966, 1, 0
        %v7156 = vsel %vm2967, 1, 0
        %v7157 = vsel %vm2968, 1, 0
        %v7158 = vsel %vm2969, 1, 0
        %v7159 = vsel %vm2970, 1, 0
        %v7160 = vsel %vm2971, 1, 0
        %v7161 = vsel %vm2972, 1, 0
        %v7162 = vsel %vm2973, 1, 0
        %v7163 = vsel %vm2974, 1, 0
        %v7164 = vsel %vm2975, 1, 0
        %v7165 = vsel %vm2976, 1, 0
        %v7166 = vsel %vm2977, 1, 0
        %v7167 = vsel %vm2978, 1, 0
        %v7168 = vsel %vm2979, 1, 0
        %v7169 = vsel %vm2980, 1, 0
        %v7170 = vsel %vm2981, 1, 0
        %v7171 = vsel %vm2982, 1, 0
        %v7172 = vsel %vm2983, 1, 0
        %v7173 = vsel %vm2984, 1, 0
        %v7174 = vsel %vm2985, 1, 0
        %v7175 = vsel %vm2986, 1, 0
        %v7176 = vsel %vm2987, 1, 0
        %v7177 = vsel %vm2988, 1, 0
        %v7178 = vsel %vm2989, 1, 0
        %v7179 = vsel %vm2990, 1, 0
        %v7180 = vsel %vm2991, 1, 0
        %v7181 = vsel %vm2992, 1, 0
        %vm7182 = vcmp.eq.s32.totalorder %v7150, 1
        %vm7183 = vcmp.eq.s32.totalorder %v7151, 1
        %vm7184 = vcmp.eq.s32.totalorder %v7152, 1
        %vm7185 = vcmp.eq.s32.totalorder %v7153, 1
        %vm7186 = vcmp.eq.s32.totalorder %v7154, 1
        %vm7187 = vcmp.eq.s32.totalorder %v7155, 1
        %vm7188 = vcmp.eq.s32.totalorder %v7156, 1
        %vm7189 = vcmp.eq.s32.totalorder %v7157, 1
        %vm7190 = vcmp.eq.s32.totalorder %v7158, 1
        %vm7191 = vcmp.eq.s32.totalorder %v7159, 1
        %vm7192 = vcmp.eq.s32.totalorder %v7160, 1
        %vm7193 = vcmp.eq.s32.totalorder %v7161, 1
        %vm7194 = vcmp.eq.s32.totalorder %v7162, 1
        %vm7195 = vcmp.eq.s32.totalorder %v7163, 1
        %vm7196 = vcmp.eq.s32.totalorder %v7164, 1
        %vm7197 = vcmp.eq.s32.totalorder %v7165, 1
        %vm7198 = vcmp.eq.s32.totalorder %v7166, 1
        %vm7199 = vcmp.eq.s32.totalorder %v7167, 1
        %vm7200 = vcmp.eq.s32.totalorder %v7168, 1
        %vm7201 = vcmp.eq.s32.totalorder %v7169, 1
        %vm7202 = vcmp.eq.s32.totalorder %v7170, 1
        %vm7203 = vcmp.eq.s32.totalorder %v7171, 1
        %vm7204 = vcmp.eq.s32.totalorder %v7172, 1
        %vm7205 = vcmp.eq.s32.totalorder %v7173, 1
        %vm7206 = vcmp.eq.s32.totalorder %v7174, 1
        %vm7207 = vcmp.eq.s32.totalorder %v7175, 1
        %vm7208 = vcmp.eq.s32.totalorder %v7176, 1
        %vm7209 = vcmp.eq.s32.totalorder %v7177, 1
        %vm7210 = vcmp.eq.s32.totalorder %v7178, 1
        %vm7211 = vcmp.eq.s32.totalorder %v7179, 1
        %vm7212 = vcmp.eq.s32.totalorder %v7180, 1
        %vm7213 = vcmp.eq.s32.totalorder %v7181, 1
        %v7214 = vsel %vm7149, 1, 0
        %vm7215 = vcmp.eq.s32.totalorder %v7214, 1
        %vm7216 = vmand %vm7182, %vm7215
        %vm7217 = vmand %vm7183, %vm7215
        %vm7218 = vmand %vm7184, %vm7215
        %vm7219 = vmand %vm7185, %vm7215
        %vm7220 = vmand %vm7186, %vm7215
        %vm7221 = vmand %vm7187, %vm7215
        %vm7222 = vmand %vm7188, %vm7215
        %vm7223 = vmand %vm7189, %vm7215
        %vm7224 = vmand %vm7190, %vm7215
        %vm7225 = vmand %vm7191, %vm7215
        %vm7226 = vmand %vm7192, %vm7215
        %vm7227 = vmand %vm7193, %vm7215
        %vm7228 = vmand %vm7194, %vm7215
        %vm7229 = vmand %vm7195, %vm7215
        %vm7230 = vmand %vm7196, %vm7215
        %vm7231 = vmand %vm7197, %vm7215
        %vm7232 = vmand %vm7198, %vm7215
        %vm7233 = vmand %vm7199, %vm7215
        %vm7234 = vmand %vm7200, %vm7215
        %vm7235 = vmand %vm7201, %vm7215
        %vm7236 = vmand %vm7202, %vm7215
        %vm7237 = vmand %vm7203, %vm7215
        %vm7238 = vmand %vm7204, %vm7215
        %vm7239 = vmand %vm7205, %vm7215
        %vm7240 = vmand %vm7206, %vm7215
        %vm7241 = vmand %vm7207, %vm7215
        %vm7242 = vmand %vm7208, %vm7215
        %vm7243 = vmand %vm7209, %vm7215
        %vm7244 = vmand %vm7210, %vm7215
        %vm7245 = vmand %vm7211, %vm7215
        %vm7246 = vmand %vm7212, %vm7215
        %vm7247 = vmand %vm7213, %vm7215
        %v7248 = vsel %vm7216, %v5183, %v7115
        %v7249 = vsel %vm7217, %v5182, %v7116
        %v7250 = vsel %vm7218, %v5181, %v7117
        %v7251 = vsel %vm7219, %v5180, %v7118
        %v7252 = vsel %vm7220, %v5179, %v7119
        %v7253 = vsel %vm7221, %v5178, %v7120
        %v7254 = vsel %vm7222, %v5177, %v7121
        %v7255 = vsel %vm7223, %v5176, %v7122
        %v7256 = vsel %vm7224, %v5175, %v7123
        %v7257 = vsel %vm7225, %v5174, %v7124
        %v7258 = vsel %vm7226, %v5173, %v7125
        %v7259 = vsel %vm7227, %v5172, %v7126
        %v7260 = vsel %vm7228, %v5171, %v7127
        %v7261 = vsel %vm7229, %v5170, %v7128
        %v7262 = vsel %vm7230, %v5169, %v7129
        %v7263 = vsel %vm7231, %v5168, %v7130
        %v7264 = vsel %vm7232, %v5167, %v7131
        %v7265 = vsel %vm7233, %v5166, %v7132
        %v7266 = vsel %vm7234, %v5165, %v7133
        %v7267 = vsel %vm7235, %v5164, %v7134
        %v7268 = vsel %vm7236, %v5163, %v7135
        %v7269 = vsel %vm7237, %v5162, %v7136
        %v7270 = vsel %vm7238, %v5161, %v7137
        %v7271 = vsel %vm7239, %v5160, %v7138
        %v7272 = vsel %vm7240, %v5159, %v7139
        %v7273 = vsel %vm7241, %v5158, %v7140
        %v7274 = vsel %vm7242, %v5157, %v7141
        %v7275 = vsel %vm7243, %v5188, %v7142
        %v7276 = vsel %vm7244, %v5187, %v7143
        %v7277 = vsel %vm7245, %v5186, %v7144
        %v7278 = vsel %vm7246, %v5185, %v7145
        %v7279 = vsel %vm7247, %v5184, %v7146
        %v7280 = vrot.slane %v358, 7
        %v7281 = vrot.slane %v359, 7
        %v7282 = vrot.slane %v360, 7
        %v7283 = vrot.slane %v361, 7
        %v7284 = vrot.slane %v362, 7
        %v7285 = vrot.slane %v363, 7
        %v7286 = vrot.slane %v364, 7
        %v7287 = vrot.slane %v365, 7
        %v7288 = vrot.slane %v366, 7
        %v7289 = vrot.slane %v367, 7
        %v7290 = vrot.slane %v368, 7
        %v7291 = vrot.slane %v369, 7
        %v7292 = vrot.slane %v370, 7
        %v7293 = vrot.slane %v371, 7
        %v7294 = vrot.slane %v372, 7
        %v7295 = vrot.slane %v373, 7
        %v7296 = vrot.slane %v374, 7
        %v7297 = vrot.slane %v375, 7
        %v7298 = vrot.slane %v376, 7
        %v7299 = vrot.slane %v377, 7
        %v7300 = vrot.slane %v378, 7
        %v7301 = vrot.slane %v379, 7
        %v7302 = vrot.slane %v380, 7
        %v7303 = vrot.slane %v381, 7
        %v7304 = vrot.slane %v382, 7
        %v7305 = vrot.slane %v383, 7
        %v7306 = vrot.slane %v384, 7
        %v7307 = vrot.slane %v385, 7
        %v7308 = vrot.slane %v386, 7
        %v7309 = vrot.slane %v387, 7
        %v7310 = vrot.slane %v388, 7
        %v7311 = vrot.slane %v389, 7
        %v7312 = vsel %vm3126, %v7310, %v7311
        %v7313 = vsel %vm3126, %v7309, %v7310
        %v7314 = vsel %vm3126, %v7308, %v7309
        %v7315 = vsel %vm3126, %v7307, %v7308
        %v7316 = vsel %vm3126, %v7306, %v7307
        %v7317 = vsel %vm3126, %v7305, %v7306
        %v7318 = vsel %vm3126, %v7304, %v7305
        %v7319 = vsel %vm3126, %v7303, %v7304
        %v7320 = vsel %vm3126, %v7302, %v7303
        %v7321 = vsel %vm3126, %v7301, %v7302
        %v7322 = vsel %vm3126, %v7300, %v7301
        %v7323 = vsel %vm3126, %v7299, %v7300
        %v7324 = vsel %vm3126, %v7298, %v7299
        %v7325 = vsel %vm3126, %v7297, %v7298
        %v7326 = vsel %vm3126, %v7296, %v7297
        %v7327 = vsel %vm3126, %v7295, %v7296
        %v7328 = vsel %vm3126, %v7294, %v7295
        %v7329 = vsel %vm3126, %v7293, %v7294
        %v7330 = vsel %vm3126, %v7292, %v7293
        %v7331 = vsel %vm3126, %v7291, %v7292
        %v7332 = vsel %vm3126, %v7290, %v7291
        %v7333 = vsel %vm3126, %v7289, %v7290
        %v7334 = vsel %vm3126, %v7288, %v7289
        %v7335 = vsel %vm3126, %v7287, %v7288
        %v7336 = vsel %vm3126, %v7286, %v7287
        %v7337 = vsel %vm3126, %v7285, %v7286
        %v7338 = vsel %vm3126, %v7284, %v7285
        %v7339 = vsel %vm3126, %v7283, %v7284
        %v7340 = vsel %vm3126, %v7282, %v7283
        %v7341 = vsel %vm3126, %v7281, %v7282
        %v7342 = vsel %vm3126, %v7280, %v7281
        %v7343 = vsel %vm3126, %v7311, %v7280
        %v7344 = vsel %vm1809, 1, 0
        %v7345 = vsel %vm1810, 1, 0
        %v7346 = vsel %vm1811, 1, 0
        %v7347 = vsel %vm1812, 1, 0
        %v7348 = vsel %vm1813, 1, 0
        %v7349 = vsel %vm1814, 1, 0
        %v7350 = vsel %vm1815, 1, 0
        %v7351 = vsel %vm1816, 1, 0
        %v7352 = vsel %vm1817, 1, 0
        %v7353 = vsel %vm1818, 1, 0
        %v7354 = vsel %vm1819, 1, 0
        %v7355 = vsel %vm1820, 1, 0
        %v7356 = vsel %vm1821, 1, 0
        %v7357 = vsel %vm1822, 1, 0
        %v7358 = vsel %vm1823, 1, 0
        %v7359 = vsel %vm1824, 1, 0
        %v7360 = vsel %vm1825, 1, 0
        %v7361 = vsel %vm1826, 1, 0
        %v7362 = vsel %vm1827, 1, 0
        %v7363 = vsel %vm1828, 1, 0
        %v7364 = vsel %vm1829, 1, 0
        %v7365 = vsel %vm1830, 1, 0
        %v7366 = vsel %vm1831, 1, 0
        %v7367 = vsel %vm1832, 1, 0
        %v7368 = vsel %vm1833, 1, 0
        %v7369 = vsel %vm1834, 1, 0
        %v7370 = vsel %vm1835, 1, 0
        %v7371 = vsel %vm1836, 1, 0
        %v7372 = vsel %vm1837, 1, 0
        %v7373 = vsel %vm1838, 1, 0
        %v7374 = vsel %vm1839, 1, 0
        %v7375 = vsel %vm1840, 1, 0
        %vm7376 = vcmp.eq.s32.totalorder %v7344, 1
        %vm7377 = vcmp.eq.s32.totalorder %v7345, 1
        %vm7378 = vcmp.eq.s32.totalorder %v7346, 1
        %vm7379 = vcmp.eq.s32.totalorder %v7347, 1
        %vm7380 = vcmp.eq.s32.totalorder %v7348, 1
        %vm7381 = vcmp.eq.s32.totalorder %v7349, 1
        %vm7382 = vcmp.eq.s32.totalorder %v7350, 1
        %vm7383 = vcmp.eq.s32.totalorder %v7351, 1
        %vm7384 = vcmp.eq.s32.totalorder %v7352, 1
        %vm7385 = vcmp.eq.s32.totalorder %v7353, 1
        %vm7386 = vcmp.eq.s32.totalorder %v7354, 1
        %vm7387 = vcmp.eq.s32.totalorder %v7355, 1
        %vm7388 = vcmp.eq.s32.totalorder %v7356, 1
        %vm7389 = vcmp.eq.s32.totalorder %v7357, 1
        %vm7390 = vcmp.eq.s32.totalorder %v7358, 1
        %vm7391 = vcmp.eq.s32.totalorder %v7359, 1
        %vm7392 = vcmp.eq.s32.totalorder %v7360, 1
        %vm7393 = vcmp.eq.s32.totalorder %v7361, 1
        %vm7394 = vcmp.eq.s32.totalorder %v7362, 1
        %vm7395 = vcmp.eq.s32.totalorder %v7363, 1
        %vm7396 = vcmp.eq.s32.totalorder %v7364, 1
        %vm7397 = vcmp.eq.s32.totalorder %v7365, 1
        %vm7398 = vcmp.eq.s32.totalorder %v7366, 1
        %vm7399 = vcmp.eq.s32.totalorder %v7367, 1
        %vm7400 = vcmp.eq.s32.totalorder %v7368, 1
        %vm7401 = vcmp.eq.s32.totalorder %v7369, 1
        %vm7402 = vcmp.eq.s32.totalorder %v7370, 1
        %vm7403 = vcmp.eq.s32.totalorder %v7371, 1
        %vm7404 = vcmp.eq.s32.totalorder %v7372, 1
        %vm7405 = vcmp.eq.s32.totalorder %v7373, 1
        %vm7406 = vcmp.eq.s32.totalorder %v7374, 1
        %vm7407 = vcmp.eq.s32.totalorder %v7375, 1
        %v7408 = vsel %vm7376, %v7343, -3.4028235e+38
        %v7409 = vsel %vm7377, %v7342, -3.4028235e+38
        %v7410 = vsel %vm7378, %v7341, -3.4028235e+38
        %v7411 = vsel %vm7379, %v7340, -3.4028235e+38
        %v7412 = vsel %vm7380, %v7339, -3.4028235e+38
        %v7413 = vsel %vm7381, %v7338, -3.4028235e+38
        %v7414 = vsel %vm7382, %v7337, -3.4028235e+38
        %v7415 = vsel %vm7383, %v7336, -3.4028235e+38
        %v7416 = vsel %vm7384, %v7335, -3.4028235e+38
        %v7417 = vsel %vm7385, %v7334, -3.4028235e+38
        %v7418 = vsel %vm7386, %v7333, -3.4028235e+38
        %v7419 = vsel %vm7387, %v7332, -3.4028235e+38
        %v7420 = vsel %vm7388, %v7331, -3.4028235e+38
        %v7421 = vsel %vm7389, %v7330, -3.4028235e+38
        %v7422 = vsel %vm7390, %v7329, -3.4028235e+38
        %v7423 = vsel %vm7391, %v7328, -3.4028235e+38
        %v7424 = vsel %vm7392, %v7327, -3.4028235e+38
        %v7425 = vsel %vm7393, %v7326, -3.4028235e+38
        %v7426 = vsel %vm7394, %v7325, -3.4028235e+38
        %v7427 = vsel %vm7395, %v7324, -3.4028235e+38
        %v7428 = vsel %vm7396, %v7323, -3.4028235e+38
        %v7429 = vsel %vm7397, %v7322, -3.4028235e+38
        %v7430 = vsel %vm7398, %v7321, -3.4028235e+38
        %v7431 = vsel %vm7399, %v7320, -3.4028235e+38
        %v7432 = vsel %vm7400, %v7319, -3.4028235e+38
        %v7433 = vsel %vm7401, %v7318, -3.4028235e+38
        %v7434 = vsel %vm7402, %v7317, -3.4028235e+38
        %v7435 = vsel %vm7403, %v7316, -3.4028235e+38
        %v7436 = vsel %vm7404, %v7315, -3.4028235e+38
        %v7437 = vsel %vm7405, %v7314, -3.4028235e+38
        %v7438 = vsel %vm7406, %v7313, -3.4028235e+38
        %v7439 = vsel %vm7407, %v7312, -3.4028235e+38
        %v7440 = vrot.slane %v358, 1
        %v7441 = vrot.slane %v359, 1
        %v7442 = vrot.slane %v360, 1
        %v7443 = vrot.slane %v361, 1
        %v7444 = vrot.slane %v362, 1
        %v7445 = vrot.slane %v363, 1
        %v7446 = vrot.slane %v364, 1
        %v7447 = vrot.slane %v365, 1
        %v7448 = vrot.slane %v366, 1
        %v7449 = vrot.slane %v367, 1
        %v7450 = vrot.slane %v368, 1
        %v7451 = vrot.slane %v369, 1
        %v7452 = vrot.slane %v370, 1
        %v7453 = vrot.slane %v371, 1
        %v7454 = vrot.slane %v372, 1
        %v7455 = vrot.slane %v373, 1
        %v7456 = vrot.slane %v374, 1
        %v7457 = vrot.slane %v375, 1
        %v7458 = vrot.slane %v376, 1
        %v7459 = vrot.slane %v377, 1
        %v7460 = vrot.slane %v378, 1
        %v7461 = vrot.slane %v379, 1
        %v7462 = vrot.slane %v380, 1
        %v7463 = vrot.slane %v381, 1
        %v7464 = vrot.slane %v382, 1
        %v7465 = vrot.slane %v383, 1
        %v7466 = vrot.slane %v384, 1
        %v7467 = vrot.slane %v385, 1
        %v7468 = vrot.slane %v386, 1
        %v7469 = vrot.slane %v387, 1
        %v7470 = vrot.slane %v388, 1
        %v7471 = vrot.slane %v389, 1
        %v7472 = vsel %vm3457, %v7470, %v7471
        %v7473 = vsel %vm3457, %v7469, %v7470
        %v7474 = vsel %vm3457, %v7468, %v7469
        %v7475 = vsel %vm3457, %v7467, %v7468
        %v7476 = vsel %vm3457, %v7466, %v7467
        %v7477 = vsel %vm3457, %v7465, %v7466
        %v7478 = vsel %vm3457, %v7464, %v7465
        %v7479 = vsel %vm3457, %v7463, %v7464
        %v7480 = vsel %vm3457, %v7462, %v7463
        %v7481 = vsel %vm3457, %v7461, %v7462
        %v7482 = vsel %vm3457, %v7460, %v7461
        %v7483 = vsel %vm3457, %v7459, %v7460
        %v7484 = vsel %vm3457, %v7458, %v7459
        %v7485 = vsel %vm3457, %v7457, %v7458
        %v7486 = vsel %vm3457, %v7456, %v7457
        %v7487 = vsel %vm3457, %v7455, %v7456
        %v7488 = vsel %vm3457, %v7454, %v7455
        %v7489 = vsel %vm3457, %v7453, %v7454
        %v7490 = vsel %vm3457, %v7452, %v7453
        %v7491 = vsel %vm3457, %v7451, %v7452
        %v7492 = vsel %vm3457, %v7450, %v7451
        %v7493 = vsel %vm3457, %v7449, %v7450
        %v7494 = vsel %vm3457, %v7448, %v7449
        %v7495 = vsel %vm3457, %v7447, %v7448
        %v7496 = vsel %vm3457, %v7446, %v7447
        %v7497 = vsel %vm3457, %v7445, %v7446
        %v7498 = vsel %vm3457, %v7444, %v7445
        %v7499 = vsel %vm3457, %v7443, %v7444
        %v7500 = vsel %vm3457, %v7442, %v7443
        %v7501 = vsel %vm3457, %v7441, %v7442
        %v7502 = vsel %vm3457, %v7440, %v7441
        %v7503 = vsel %vm3457, %v7471, %v7440
        %v7504 = vsel %vm2033, 1, 0
        %v7505 = vsel %vm2034, 1, 0
        %v7506 = vsel %vm2035, 1, 0
        %v7507 = vsel %vm2036, 1, 0
        %v7508 = vsel %vm2037, 1, 0
        %v7509 = vsel %vm2038, 1, 0
        %v7510 = vsel %vm2039, 1, 0
        %v7511 = vsel %vm2040, 1, 0
        %v7512 = vsel %vm2041, 1, 0
        %v7513 = vsel %vm2042, 1, 0
        %v7514 = vsel %vm2043, 1, 0
        %v7515 = vsel %vm2044, 1, 0
        %v7516 = vsel %vm2045, 1, 0
        %v7517 = vsel %vm2046, 1, 0
        %v7518 = vsel %vm2047, 1, 0
        %v7519 = vsel %vm2048, 1, 0
        %v7520 = vsel %vm2049, 1, 0
        %v7521 = vsel %vm2050, 1, 0
        %v7522 = vsel %vm2051, 1, 0
        %v7523 = vsel %vm2052, 1, 0
        %v7524 = vsel %vm2053, 1, 0
        %v7525 = vsel %vm2054, 1, 0
        %v7526 = vsel %vm2055, 1, 0
        %v7527 = vsel %vm2056, 1, 0
        %v7528 = vsel %vm2057, 1, 0
        %v7529 = vsel %vm2058, 1, 0
        %v7530 = vsel %vm2059, 1, 0
        %v7531 = vsel %vm2060, 1, 0
        %v7532 = vsel %vm2061, 1, 0
        %v7533 = vsel %vm2062, 1, 0
        %v7534 = vsel %vm2063, 1, 0
        %v7535 = vsel %vm2064, 1, 0
        %vm7536 = vcmp.eq.s32.totalorder %v7504, 1
        %vm7537 = vcmp.eq.s32.totalorder %v7505, 1
        %vm7538 = vcmp.eq.s32.totalorder %v7506, 1
        %vm7539 = vcmp.eq.s32.totalorder %v7507, 1
        %vm7540 = vcmp.eq.s32.totalorder %v7508, 1
        %vm7541 = vcmp.eq.s32.totalorder %v7509, 1
        %vm7542 = vcmp.eq.s32.totalorder %v7510, 1
        %vm7543 = vcmp.eq.s32.totalorder %v7511, 1
        %vm7544 = vcmp.eq.s32.totalorder %v7512, 1
        %vm7545 = vcmp.eq.s32.totalorder %v7513, 1
        %vm7546 = vcmp.eq.s32.totalorder %v7514, 1
        %vm7547 = vcmp.eq.s32.totalorder %v7515, 1
        %vm7548 = vcmp.eq.s32.totalorder %v7516, 1
        %vm7549 = vcmp.eq.s32.totalorder %v7517, 1
        %vm7550 = vcmp.eq.s32.totalorder %v7518, 1
        %vm7551 = vcmp.eq.s32.totalorder %v7519, 1
        %vm7552 = vcmp.eq.s32.totalorder %v7520, 1
        %vm7553 = vcmp.eq.s32.totalorder %v7521, 1
        %vm7554 = vcmp.eq.s32.totalorder %v7522, 1
        %vm7555 = vcmp.eq.s32.totalorder %v7523, 1
        %vm7556 = vcmp.eq.s32.totalorder %v7524, 1
        %vm7557 = vcmp.eq.s32.totalorder %v7525, 1
        %vm7558 = vcmp.eq.s32.totalorder %v7526, 1
        %vm7559 = vcmp.eq.s32.totalorder %v7527, 1
        %vm7560 = vcmp.eq.s32.totalorder %v7528, 1
        %vm7561 = vcmp.eq.s32.totalorder %v7529, 1
        %vm7562 = vcmp.eq.s32.totalorder %v7530, 1
        %vm7563 = vcmp.eq.s32.totalorder %v7531, 1
        %vm7564 = vcmp.eq.s32.totalorder %v7532, 1
        %vm7565 = vcmp.eq.s32.totalorder %v7533, 1
        %vm7566 = vcmp.eq.s32.totalorder %v7534, 1
        %vm7567 = vcmp.eq.s32.totalorder %v7535, 1
        %v7568 = vsel %vm7536, %v7502, -3.4028235e+38
        %v7569 = vsel %vm7537, %v7501, -3.4028235e+38
        %v7570 = vsel %vm7538, %v7500, -3.4028235e+38
        %v7571 = vsel %vm7539, %v7499, -3.4028235e+38
        %v7572 = vsel %vm7540, %v7498, -3.4028235e+38
        %v7573 = vsel %vm7541, %v7497, -3.4028235e+38
        %v7574 = vsel %vm7542, %v7496, -3.4028235e+38
        %v7575 = vsel %vm7543, %v7495, -3.4028235e+38
        %v7576 = vsel %vm7544, %v7494, -3.4028235e+38
        %v7577 = vsel %vm7545, %v7493, -3.4028235e+38
        %v7578 = vsel %vm7546, %v7492, -3.4028235e+38
        %v7579 = vsel %vm7547, %v7491, -3.4028235e+38
        %v7580 = vsel %vm7548, %v7490, -3.4028235e+38
        %v7581 = vsel %vm7549, %v7489, -3.4028235e+38
        %v7582 = vsel %vm7550, %v7488, -3.4028235e+38
        %v7583 = vsel %vm7551, %v7487, -3.4028235e+38
        %v7584 = vsel %vm7552, %v7486, -3.4028235e+38
        %v7585 = vsel %vm7553, %v7485, -3.4028235e+38
        %v7586 = vsel %vm7554, %v7484, -3.4028235e+38
        %v7587 = vsel %vm7555, %v7483, -3.4028235e+38
        %v7588 = vsel %vm7556, %v7482, -3.4028235e+38
        %v7589 = vsel %vm7557, %v7481, -3.4028235e+38
        %v7590 = vsel %vm7558, %v7480, -3.4028235e+38
        %v7591 = vsel %vm7559, %v7479, -3.4028235e+38
        %v7592 = vsel %vm7560, %v7478, -3.4028235e+38
        %v7593 = vsel %vm7561, %v7477, -3.4028235e+38
        %v7594 = vsel %vm7562, %v7476, -3.4028235e+38
        %v7595 = vsel %vm7563, %v7475, -3.4028235e+38
        %v7596 = vsel %vm7564, %v7474, -3.4028235e+38
        %v7597 = vsel %vm7565, %v7473, -3.4028235e+38
        %v7598 = vsel %vm7566, %v7472, -3.4028235e+38
        %v7599 = vsel %vm7567, %v7503, -3.4028235e+38
        %v7600 = vmax.f32 %v7408, %v7568
        %v7601 = vmax.f32 %v7409, %v7569
        %v7602 = vmax.f32 %v7410, %v7570
        %v7603 = vmax.f32 %v7411, %v7571
        %v7604 = vmax.f32 %v7412, %v7572
        %v7605 = vmax.f32 %v7413, %v7573
        %v7606 = vmax.f32 %v7414, %v7574
        %v7607 = vmax.f32 %v7415, %v7575
        %v7608 = vmax.f32 %v7416, %v7576
        %v7609 = vmax.f32 %v7417, %v7577
        %v7610 = vmax.f32 %v7418, %v7578
        %v7611 = vmax.f32 %v7419, %v7579
        %v7612 = vmax.f32 %v7420, %v7580
        %v7613 = vmax.f32 %v7421, %v7581
        %v7614 = vmax.f32 %v7422, %v7582
        %v7615 = vmax.f32 %v7423, %v7583
        %v7616 = vmax.f32 %v7424, %v7584
        %v7617 = vmax.f32 %v7425, %v7585
        %v7618 = vmax.f32 %v7426, %v7586
        %v7619 = vmax.f32 %v7427, %v7587
        %v7620 = vmax.f32 %v7428, %v7588
        %v7621 = vmax.f32 %v7429, %v7589
        %v7622 = vmax.f32 %v7430, %v7590
        %v7623 = vmax.f32 %v7431, %v7591
        %v7624 = vmax.f32 %v7432, %v7592
        %v7625 = vmax.f32 %v7433, %v7593
        %v7626 = vmax.f32 %v7434, %v7594
        %v7627 = vmax.f32 %v7435, %v7595
        %v7628 = vmax.f32 %v7436, %v7596
        %v7629 = vmax.f32 %v7437, %v7597
        %v7630 = vmax.f32 %v7438, %v7598
        %v7631 = vmax.f32 %v7439, %v7599
        %v7632 = vmax.f32 %v358, %v7600
        %v7633 = vmax.f32 %v359, %v7601
        %v7634 = vmax.f32 %v360, %v7602
        %v7635 = vmax.f32 %v361, %v7603
        %v7636 = vmax.f32 %v362, %v7604
        %v7637 = vmax.f32 %v363, %v7605
        %v7638 = vmax.f32 %v364, %v7606
        %v7639 = vmax.f32 %v365, %v7607
        %v7640 = vmax.f32 %v366, %v7608
        %v7641 = vmax.f32 %v367, %v7609
        %v7642 = vmax.f32 %v368, %v7610
        %v7643 = vmax.f32 %v369, %v7611
        %v7644 = vmax.f32 %v370, %v7612
        %v7645 = vmax.f32 %v371, %v7613
        %v7646 = vmax.f32 %v372, %v7614
        %v7647 = vmax.f32 %v373, %v7615
        %v7648 = vmax.f32 %v374, %v7616
        %v7649 = vmax.f32 %v375, %v7617
        %v7650 = vmax.f32 %v376, %v7618
        %v7651 = vmax.f32 %v377, %v7619
        %v7652 = vmax.f32 %v378, %v7620
        %v7653 = vmax.f32 %v379, %v7621
        %v7654 = vmax.f32 %v380, %v7622
        %v7655 = vmax.f32 %v381, %v7623
        %v7656 = vmax.f32 %v382, %v7624
        %v7657 = vmax.f32 %v383, %v7625
        %v7658 = vmax.f32 %v384, %v7626
        %v7659 = vmax.f32 %v385, %v7627
        %v7660 = vmax.f32 %v386, %v7628
        %v7661 = vmax.f32 %v387, %v7629
        %v7662 = vmax.f32 %v388, %v7630
        %v7663 = vmax.f32 %v389, %v7631
        %v7664 = vsel %vm1201, 1, 0
        %v7665 = vsel %vm1202, 1, 0
        %v7666 = vsel %vm1203, 1, 0
        %v7667 = vsel %vm1204, 1, 0
        %v7668 = vsel %vm1205, 1, 0
        %v7669 = vsel %vm1206, 1, 0
        %v7670 = vsel %vm1207, 1, 0
        %v7671 = vsel %vm1208, 1, 0
        %v7672 = vsel %vm1209, 1, 0
        %v7673 = vsel %vm1210, 1, 0
        %v7674 = vsel %vm1211, 1, 0
        %v7675 = vsel %vm1212, 1, 0
        %v7676 = vsel %vm1213, 1, 0
        %v7677 = vsel %vm1214, 1, 0
        %v7678 = vsel %vm1215, 1, 0
        %v7679 = vsel %vm1216, 1, 0
        %v7680 = vsel %vm1217, 1, 0
        %v7681 = vsel %vm1218, 1, 0
        %v7682 = vsel %vm1219, 1, 0
        %v7683 = vsel %vm1220, 1, 0
        %v7684 = vsel %vm1221, 1, 0
        %v7685 = vsel %vm1222, 1, 0
        %v7686 = vsel %vm1223, 1, 0
        %v7687 = vsel %vm1224, 1, 0
        %v7688 = vsel %vm1225, 1, 0
        %v7689 = vsel %vm1226, 1, 0
        %v7690 = vsel %vm1227, 1, 0
        %v7691 = vsel %vm1228, 1, 0
        %v7692 = vsel %vm1229, 1, 0
        %v7693 = vsel %vm1230, 1, 0
        %v7694 = vsel %vm1231, 1, 0
        %v7695 = vsel %vm1232, 1, 0
        %vm7696 = vcmp.eq.s32.totalorder %v7664, 1
        %vm7697 = vcmp.eq.s32.totalorder %v7665, 1
        %vm7698 = vcmp.eq.s32.totalorder %v7666, 1
        %vm7699 = vcmp.eq.s32.totalorder %v7667, 1
        %vm7700 = vcmp.eq.s32.totalorder %v7668, 1
        %vm7701 = vcmp.eq.s32.totalorder %v7669, 1
        %vm7702 = vcmp.eq.s32.totalorder %v7670, 1
        %vm7703 = vcmp.eq.s32.totalorder %v7671, 1
        %vm7704 = vcmp.eq.s32.totalorder %v7672, 1
        %vm7705 = vcmp.eq.s32.totalorder %v7673, 1
        %vm7706 = vcmp.eq.s32.totalorder %v7674, 1
        %vm7707 = vcmp.eq.s32.totalorder %v7675, 1
        %vm7708 = vcmp.eq.s32.totalorder %v7676, 1
        %vm7709 = vcmp.eq.s32.totalorder %v7677, 1
        %vm7710 = vcmp.eq.s32.totalorder %v7678, 1
        %vm7711 = vcmp.eq.s32.totalorder %v7679, 1
        %vm7712 = vcmp.eq.s32.totalorder %v7680, 1
        %vm7713 = vcmp.eq.s32.totalorder %v7681, 1
        %vm7714 = vcmp.eq.s32.totalorder %v7682, 1
        %vm7715 = vcmp.eq.s32.totalorder %v7683, 1
        %vm7716 = vcmp.eq.s32.totalorder %v7684, 1
        %vm7717 = vcmp.eq.s32.totalorder %v7685, 1
        %vm7718 = vcmp.eq.s32.totalorder %v7686, 1
        %vm7719 = vcmp.eq.s32.totalorder %v7687, 1
        %vm7720 = vcmp.eq.s32.totalorder %v7688, 1
        %vm7721 = vcmp.eq.s32.totalorder %v7689, 1
        %vm7722 = vcmp.eq.s32.totalorder %v7690, 1
        %vm7723 = vcmp.eq.s32.totalorder %v7691, 1
        %vm7724 = vcmp.eq.s32.totalorder %v7692, 1
        %vm7725 = vcmp.eq.s32.totalorder %v7693, 1
        %vm7726 = vcmp.eq.s32.totalorder %v7694, 1
        %vm7727 = vcmp.eq.s32.totalorder %v7695, 1
        %v7728 = vsel %vm7696, %v7662, -3.4028235e+38
        %v7729 = vsel %vm7697, %v7663, -3.4028235e+38
        %v7730 = vsel %vm7698, %v7632, -3.4028235e+38
        %v7731 = vsel %vm7699, %v7633, -3.4028235e+38
        %v7732 = vsel %vm7700, %v7634, -3.4028235e+38
        %v7733 = vsel %vm7701, %v7635, -3.4028235e+38
        %v7734 = vsel %vm7702, %v7636, -3.4028235e+38
        %v7735 = vsel %vm7703, %v7637, -3.4028235e+38
        %v7736 = vsel %vm7704, %v7638, -3.4028235e+38
        %v7737 = vsel %vm7705, %v7639, -3.4028235e+38
        %v7738 = vsel %vm7706, %v7640, -3.4028235e+38
        %v7739 = vsel %vm7707, %v7641, -3.4028235e+38
        %v7740 = vsel %vm7708, %v7642, -3.4028235e+38
        %v7741 = vsel %vm7709, %v7643, -3.4028235e+38
        %v7742 = vsel %vm7710, %v7644, -3.4028235e+38
        %v7743 = vsel %vm7711, %v7645, -3.4028235e+38
        %v7744 = vsel %vm7712, %v7646, -3.4028235e+38
        %v7745 = vsel %vm7713, %v7647, -3.4028235e+38
        %v7746 = vsel %vm7714, %v7648, -3.4028235e+38
        %v7747 = vsel %vm7715, %v7649, -3.4028235e+38
        %v7748 = vsel %vm7716, %v7650, -3.4028235e+38
        %v7749 = vsel %vm7717, %v7651, -3.4028235e+38
        %v7750 = vsel %vm7718, %v7652, -3.4028235e+38
        %v7751 = vsel %vm7719, %v7653, -3.4028235e+38
        %v7752 = vsel %vm7720, %v7654, -3.4028235e+38
        %v7753 = vsel %vm7721, %v7655, -3.4028235e+38
        %v7754 = vsel %vm7722, %v7656, -3.4028235e+38
        %v7755 = vsel %vm7723, %v7657, -3.4028235e+38
        %v7756 = vsel %vm7724, %v7658, -3.4028235e+38
        %v7757 = vsel %vm7725, %v7659, -3.4028235e+38
        %v7758 = vsel %vm7726, %v7660, -3.4028235e+38
        %v7759 = vsel %vm7727, %v7661, -3.4028235e+38
        %v7760 = vsel %vm1425, 1, 0
        %v7761 = vsel %vm1426, 1, 0
        %v7762 = vsel %vm1427, 1, 0
        %v7763 = vsel %vm1428, 1, 0
        %v7764 = vsel %vm1429, 1, 0
        %v7765 = vsel %vm1430, 1, 0
        %v7766 = vsel %vm1431, 1, 0
        %v7767 = vsel %vm1432, 1, 0
        %v7768 = vsel %vm1433, 1, 0
        %v7769 = vsel %vm1434, 1, 0
        %v7770 = vsel %vm1435, 1, 0
        %v7771 = vsel %vm1436, 1, 0
        %v7772 = vsel %vm1437, 1, 0
        %v7773 = vsel %vm1438, 1, 0
        %v7774 = vsel %vm1439, 1, 0
        %v7775 = vsel %vm1440, 1, 0
        %v7776 = vsel %vm1441, 1, 0
        %v7777 = vsel %vm1442, 1, 0
        %v7778 = vsel %vm1443, 1, 0
        %v7779 = vsel %vm1444, 1, 0
        %v7780 = vsel %vm1445, 1, 0
        %v7781 = vsel %vm1446, 1, 0
        %v7782 = vsel %vm1447, 1, 0
        %v7783 = vsel %vm1448, 1, 0
        %v7784 = vsel %vm1449, 1, 0
        %v7785 = vsel %vm1450, 1, 0
        %v7786 = vsel %vm1451, 1, 0
        %v7787 = vsel %vm1452, 1, 0
        %v7788 = vsel %vm1453, 1, 0
        %v7789 = vsel %vm1454, 1, 0
        %v7790 = vsel %vm1455, 1, 0
        %v7791 = vsel %vm1456, 1, 0
        %vm7792 = vcmp.eq.s32.totalorder %v7760, 1
        %vm7793 = vcmp.eq.s32.totalorder %v7761, 1
        %vm7794 = vcmp.eq.s32.totalorder %v7762, 1
        %vm7795 = vcmp.eq.s32.totalorder %v7763, 1
        %vm7796 = vcmp.eq.s32.totalorder %v7764, 1
        %vm7797 = vcmp.eq.s32.totalorder %v7765, 1
        %vm7798 = vcmp.eq.s32.totalorder %v7766, 1
        %vm7799 = vcmp.eq.s32.totalorder %v7767, 1
        %vm7800 = vcmp.eq.s32.totalorder %v7768, 1
        %vm7801 = vcmp.eq.s32.totalorder %v7769, 1
        %vm7802 = vcmp.eq.s32.totalorder %v7770, 1
        %vm7803 = vcmp.eq.s32.totalorder %v7771, 1
        %vm7804 = vcmp.eq.s32.totalorder %v7772, 1
        %vm7805 = vcmp.eq.s32.totalorder %v7773, 1
        %vm7806 = vcmp.eq.s32.totalorder %v7774, 1
        %vm7807 = vcmp.eq.s32.totalorder %v7775, 1
        %vm7808 = vcmp.eq.s32.totalorder %v7776, 1
        %vm7809 = vcmp.eq.s32.totalorder %v7777, 1
        %vm7810 = vcmp.eq.s32.totalorder %v7778, 1
        %vm7811 = vcmp.eq.s32.totalorder %v7779, 1
        %vm7812 = vcmp.eq.s32.totalorder %v7780, 1
        %vm7813 = vcmp.eq.s32.totalorder %v7781, 1
        %vm7814 = vcmp.eq.s32.totalorder %v7782, 1
        %vm7815 = vcmp.eq.s32.totalorder %v7783, 1
        %vm7816 = vcmp.eq.s32.totalorder %v7784, 1
        %vm7817 = vcmp.eq.s32.totalorder %v7785, 1
        %vm7818 = vcmp.eq.s32.totalorder %v7786, 1
        %vm7819 = vcmp.eq.s32.totalorder %v7787, 1
        %vm7820 = vcmp.eq.s32.totalorder %v7788, 1
        %vm7821 = vcmp.eq.s32.totalorder %v7789, 1
        %vm7822 = vcmp.eq.s32.totalorder %v7790, 1
        %vm7823 = vcmp.eq.s32.totalorder %v7791, 1
        %v7824 = vsel %vm7792, %v7634, -3.4028235e+38
        %v7825 = vsel %vm7793, %v7635, -3.4028235e+38
        %v7826 = vsel %vm7794, %v7636, -3.4028235e+38
        %v7827 = vsel %vm7795, %v7637, -3.4028235e+38
        %v7828 = vsel %vm7796, %v7638, -3.4028235e+38
        %v7829 = vsel %vm7797, %v7639, -3.4028235e+38
        %v7830 = vsel %vm7798, %v7640, -3.4028235e+38
        %v7831 = vsel %vm7799, %v7641, -3.4028235e+38
        %v7832 = vsel %vm7800, %v7642, -3.4028235e+38
        %v7833 = vsel %vm7801, %v7643, -3.4028235e+38
        %v7834 = vsel %vm7802, %v7644, -3.4028235e+38
        %v7835 = vsel %vm7803, %v7645, -3.4028235e+38
        %v7836 = vsel %vm7804, %v7646, -3.4028235e+38
        %v7837 = vsel %vm7805, %v7647, -3.4028235e+38
        %v7838 = vsel %vm7806, %v7648, -3.4028235e+38
        %v7839 = vsel %vm7807, %v7649, -3.4028235e+38
        %v7840 = vsel %vm7808, %v7650, -3.4028235e+38
        %v7841 = vsel %vm7809, %v7651, -3.4028235e+38
        %v7842 = vsel %vm7810, %v7652, -3.4028235e+38
        %v7843 = vsel %vm7811, %v7653, -3.4028235e+38
        %v7844 = vsel %vm7812, %v7654, -3.4028235e+38
        %v7845 = vsel %vm7813, %v7655, -3.4028235e+38
        %v7846 = vsel %vm7814, %v7656, -3.4028235e+38
        %v7847 = vsel %vm7815, %v7657, -3.4028235e+38
        %v7848 = vsel %vm7816, %v7658, -3.4028235e+38
        %v7849 = vsel %vm7817, %v7659, -3.4028235e+38
        %v7850 = vsel %vm7818, %v7660, -3.4028235e+38
        %v7851 = vsel %vm7819, %v7661, -3.4028235e+38
        %v7852 = vsel %vm7820, %v7662, -3.4028235e+38
        %v7853 = vsel %vm7821, %v7663, -3.4028235e+38
        %v7854 = vsel %vm7822, %v7632, -3.4028235e+38
        %v7855 = vsel %vm7823, %v7633, -3.4028235e+38
        %v7856 = vmax.f32 %v7728, %v7824
        %v7857 = vmax.f32 %v7729, %v7825
        %v7858 = vmax.f32 %v7730, %v7826
        %v7859 = vmax.f32 %v7731, %v7827
        %v7860 = vmax.f32 %v7732, %v7828
        %v7861 = vmax.f32 %v7733, %v7829
        %v7862 = vmax.f32 %v7734, %v7830
        %v7863 = vmax.f32 %v7735, %v7831
        %v7864 = vmax.f32 %v7736, %v7832
        %v7865 = vmax.f32 %v7737, %v7833
        %v7866 = vmax.f32 %v7738, %v7834
        %v7867 = vmax.f32 %v7739, %v7835
        %v7868 = vmax.f32 %v7740, %v7836
        %v7869 = vmax.f32 %v7741, %v7837
        %v7870 = vmax.f32 %v7742, %v7838
        %v7871 = vmax.f32 %v7743, %v7839
        %v7872 = vmax.f32 %v7744, %v7840
        %v7873 = vmax.f32 %v7745, %v7841
        %v7874 = vmax.f32 %v7746, %v7842
        %v7875 = vmax.f32 %v7747, %v7843
        %v7876 = vmax.f32 %v7748, %v7844
        %v7877 = vmax.f32 %v7749, %v7845
        %v7878 = vmax.f32 %v7750, %v7846
        %v7879 = vmax.f32 %v7751, %v7847
        %v7880 = vmax.f32 %v7752, %v7848
        %v7881 = vmax.f32 %v7753, %v7849
        %v7882 = vmax.f32 %v7754, %v7850
        %v7883 = vmax.f32 %v7755, %v7851
        %v7884 = vmax.f32 %v7756, %v7852
        %v7885 = vmax.f32 %v7757, %v7853
        %v7886 = vmax.f32 %v7758, %v7854
        %v7887 = vmax.f32 %v7759, %v7855
        %v7888 = vmax.f32 %v7632, %v7856
        %v7889 = vmax.f32 %v7633, %v7857
        %v7890 = vmax.f32 %v7634, %v7858
        %v7891 = vmax.f32 %v7635, %v7859
        %v7892 = vmax.f32 %v7636, %v7860
        %v7893 = vmax.f32 %v7637, %v7861
        %v7894 = vmax.f32 %v7638, %v7862
        %v7895 = vmax.f32 %v7639, %v7863
        %v7896 = vmax.f32 %v7640, %v7864
        %v7897 = vmax.f32 %v7641, %v7865
        %v7898 = vmax.f32 %v7642, %v7866
        %v7899 = vmax.f32 %v7643, %v7867
        %v7900 = vmax.f32 %v7644, %v7868
        %v7901 = vmax.f32 %v7645, %v7869
        %v7902 = vmax.f32 %v7646, %v7870
        %v7903 = vmax.f32 %v7647, %v7871
        %v7904 = vmax.f32 %v7648, %v7872
        %v7905 = vmax.f32 %v7649, %v7873
        %v7906 = vmax.f32 %v7650, %v7874
        %v7907 = vmax.f32 %v7651, %v7875
        %v7908 = vmax.f32 %v7652, %v7876
        %v7909 = vmax.f32 %v7653, %v7877
        %v7910 = vmax.f32 %v7654, %v7878
        %v7911 = vmax.f32 %v7655, %v7879
        %v7912 = vmax.f32 %v7656, %v7880
        %v7913 = vmax.f32 %v7657, %v7881
        %v7914 = vmax.f32 %v7658, %v7882
        %v7915 = vmax.f32 %v7659, %v7883
        %v7916 = vmax.f32 %v7660, %v7884
        %v7917 = vmax.f32 %v7661, %v7885
        %v7918 = vmax.f32 %v7662, %v7886
        %v7919 = vmax.f32 %v7663, %v7887
        %v7920 = vpack.c.bf16 %v4290, %v4289
        %v7921 = vpack.c.bf16 %v4292, %v4291
        %v7922 = vpack.c.bf16 %v4294, %v4293
        %v7923 = vpack.c.bf16 %v4296, %v4295
        %v7924 = vpack.c.bf16 %v4298, %v4297
        %v7925 = vpack.c.bf16 %v4300, %v4299
        %v7926 = vpack.c.bf16 %v4302, %v4301
        %v7927 = vpack.c.bf16 %v4304, %v4303
        %v7928 = vpack.c.bf16 %v4306, %v4305
        %v7929 = vpack.c.bf16 %v4308, %v4307
        %v7930 = vpack.c.bf16 %v4310, %v4309
        %v7931 = vpack.c.bf16 %v4312, %v4311
        %v7932 = vpack.c.bf16 %v4314, %v4313
        %v7933 = vpack.c.bf16 %v4316, %v4315
        %v7934 = vpack.c.bf16 %v4318, %v4317
        %v7935 = vpack.c.bf16 %v4320, %v4319
        %v7936 = vld [vmem:[#allocation7] sm:$0xf]
        %v7937 = vld [vmem:[#allocation7 + $0x4] sm:$0xf]
        %v7938 = vld [vmem:[#allocation7 + $0x8] sm:$0xf]
        %v7939 = vld [vmem:[#allocation7 + $0xc] sm:$0xf]
        %v7940 = vld [vmem:[#allocation7 + $0x10] sm:$0xf]
        %v7941 = vld [vmem:[#allocation7 + $0x14] sm:$0xf]
        %v7942 = vld [vmem:[#allocation7 + $0x18] sm:$0xf]
        %v7943 = vld [vmem:[#allocation7 + $0x1c] sm:$0xf]
        %v7944 = vld [vmem:[#allocation7 + $0x20] sm:$0xf]
        %v7945 = vld [vmem:[#allocation7 + $0x24] sm:$0xf]
        %v7946 = vld [vmem:[#allocation7 + $0x28] sm:$0xf]
        %v7947 = vld [vmem:[#allocation7 + $0x2c] sm:$0xf]
        %v7948 = vld [vmem:[#allocation7 + $0x30] sm:$0xf]
        %v7949 = vld [vmem:[#allocation7 + $0x34] sm:$0xf]
        %v7950 = vld [vmem:[#allocation7 + $0x38] sm:$0xf]
        %v7951 = vld [vmem:[#allocation7 + $0x3c] sm:$0xf]
        %v7952 = vpack.c.bf16 %v7249, %v7248
        %v7953 = vpack.c.bf16 %v7251, %v7250
        %v7954 = vpack.c.bf16 %v7253, %v7252
        %v7955 = vpack.c.bf16 %v7255, %v7254
        %v7956 = vpack.c.bf16 %v7257, %v7256
        %v7957 = vpack.c.bf16 %v7259, %v7258
        %v7958 = vpack.c.bf16 %v7261, %v7260
        %v7959 = vpack.c.bf16 %v7263, %v7262
        %v7960 = vpack.c.bf16 %v7265, %v7264
        %v7961 = vpack.c.bf16 %v7267, %v7266
        %v7962 = vpack.c.bf16 %v7269, %v7268
        %v7963 = vpack.c.bf16 %v7271, %v7270
        %v7964 = vpack.c.bf16 %v7273, %v7272
        %v7965 = vpack.c.bf16 %v7275, %v7274
        %v7966 = vpack.c.bf16 %v7277, %v7276
        %v7967 = vpack.c.bf16 %v7279, %v7278
        %v7968 = vld [vmem:[#allocation8] sm:$0xf]
        %v7969 = vld [vmem:[#allocation8 + $0x4] sm:$0xf]
        %v7970 = vld [vmem:[#allocation8 + $0x8] sm:$0xf]
        %v7971 = vld [vmem:[#allocation8 + $0xc] sm:$0xf]
        %v7972 = vld [vmem:[#allocation8 + $0x10] sm:$0xf]
        %v7973 = vld [vmem:[#allocation8 + $0x14] sm:$0xf]
        %v7974 = vld [vmem:[#allocation8 + $0x18] sm:$0xf]
        %v7975 = vld [vmem:[#allocation8 + $0x1c] sm:$0xf]
        %v7976 = vld [vmem:[#allocation8 + $0x20] sm:$0xf]
        %v7977 = vld [vmem:[#allocation8 + $0x24] sm:$0xf]
        %v7978 = vld [vmem:[#allocation8 + $0x28] sm:$0xf]
        %v7979 = vld [vmem:[#allocation8 + $0x2c] sm:$0xf]
        %v7980 = vld [vmem:[#allocation8 + $0x30] sm:$0xf]
        %v7981 = vld [vmem:[#allocation8 + $0x34] sm:$0xf]
        %v7982 = vld [vmem:[#allocation8 + $0x38] sm:$0xf]
        %v7983 = vld [vmem:[#allocation8 + $0x3c] sm:$0xf]
        %v8000 = vunpack.c.l.b16 %v7968
        %v8001 = vunpack.c.l.b16 %v7969
        %v8002 = vunpack.c.l.b16 %v7970
        %v8003 = vunpack.c.l.b16 %v7971
        %v8004 = vunpack.c.l.b16 %v7972
        %v8005 = vunpack.c.l.b16 %v7973
        %v8006 = vunpack.c.l.b16 %v7974
        %v8007 = vunpack.c.l.b16 %v7975
        %v8008 = vunpack.c.l.b16 %v7976
        %v8009 = vunpack.c.l.b16 %v7977
        %v8010 = vunpack.c.l.b16 %v7978
        %v8011 = vunpack.c.l.b16 %v7979
        %v8012 = vunpack.c.l.b16 %v7980
        %v8013 = vunpack.c.l.b16 %v7981
        %v8014 = vunpack.c.l.b16 %v7982
        %v8015 = vunpack.c.l.b16 %v7983
        %v8016 = vpack.c.b16 %v8001, %v8000
        %v8017 = vpack.c.b16 %v8003, %v8002
        %v8018 = vpack.c.b16 %v8005, %v8004
        %v8019 = vpack.c.b16 %v8007, %v8006
        %v8020 = vpack.c.b16 %v8009, %v8008
        %v8021 = vpack.c.b16 %v8011, %v8010
        %v8022 = vpack.c.b16 %v8013, %v8012
        %v8023 = vpack.c.b16 %v8015, %v8014
        %8032 = vmatprep.subr.bf16.mxu0 0
        %8033 = vmatpush1.bf16.msra.mxu0 %v8023
        %8034 = vmatprep.subr.bf16.mxu0 0
        %8035 = vmatpush1.bf16.msra.mxu0 %v8022
        %8036 = vmatprep.subr.bf16.mxu0 0
        %8037 = vmatpush1.bf16.msra.mxu0 %v8021
        %8038 = vmatprep.subr.bf16.mxu0 0
        %8039 = vmatpush1.bf16.msra.mxu0 %v8020
        %8040 = vmatprep.subr.bf16.mxu0 0
        %8041 = vmatpush1.bf16.msra.mxu0 %v8019
        %8042 = vmatprep.subr.bf16.mxu0 0
        %8043 = vmatpush1.bf16.msra.mxu0 %v8018
        %8044 = vmatprep.subr.bf16.mxu0 0
        %8045 = vmatpush1.bf16.msra.mxu0 %v8017
        %8046 = vmatprep.subr.bf16.mxu0 0
        %8047 = vmatpush1.bf16.msra.mxu0 %v8016
        %8048 = vmatprep.subr.bf16.mxu0 0
        %8049 = vmatpush2.bf16.msra.mxu0 0
        %8050 = vmatprep.subr.bf16.mxu0 0
        %8051 = vmatpush2.bf16.msra.mxu0 0
        %8052 = vmatprep.subr.bf16.mxu0 0
        %8053 = vmatpush2.bf16.msra.mxu0 0
        %8054 = vmatprep.subr.bf16.mxu0 0
        %8055 = vmatpush2.bf16.msra.mxu0 0
        %8056 = vmatprep.subr.bf16.mxu0 0
        %8057 = vmatpush2.bf16.msra.mxu0 0
        %8058 = vmatprep.subr.bf16.mxu0 0
        %8059 = vmatpush2.bf16.msra.mxu0 0
        %8060 = vmatprep.subr.bf16.mxu0 0
        %8061 = vmatpush2.bf16.msra.mxu0 0
        %8062 = vmatprep.subr.bf16.mxu0 0
        %8063 = vmatpush2.bf16.msra.mxu0 0
        %8064 = vmatprep.mubr.bf16.mxu0 0
        %8065 = vmatmul.mubr.bf16.gmra.mxu0 %v7952
        %v8066 = vpop.f32.mrf.mxu0
        %v8067 = vadd.f32 0.0, %v8066
        %v8068 = vpop.f32.mrf.mxu0
        %v8069 = vpop.f32.mrf.mxu0
        %v8070 = vadd.f32 0.0, %v8069
        %v8071 = vpop.f32.mrf.mxu0
        %8072 = vmatprep.mubr.bf16.mxu0 0
        %8073 = vmatmul.mubr.bf16.gmra.mxu0 %v7953
        %v8074 = vpop.f32.mrf.mxu0
        %v8075 = vadd.f32 0.0, %v8074
        %v8076 = vpop.f32.mrf.mxu0
        %v8077 = vpop.f32.mrf.mxu0
        %v8078 = vadd.f32 0.0, %v8077
        %v8079 = vpop.f32.mrf.mxu0
        %8080 = vmatprep.mubr.bf16.mxu0 0
        %8081 = vmatmul.mubr.bf16.gmra.mxu0 %v7954
        %v8082 = vpop.f32.mrf.mxu0
        %v8083 = vadd.f32 0.0, %v8082
        %v8084 = vpop.f32.mrf.mxu0
        %v8085 = vpop.f32.mrf.mxu0
        %v8086 = vadd.f32 0.0, %v8085
        %v8087 = vpop.f32.mrf.mxu0
        %8088 = vmatprep.mubr.bf16.mxu0 0
        %8089 = vmatmul.mubr.bf16.gmra.mxu0 %v7955
        %v8090 = vpop.f32.mrf.mxu0
        %v8091 = vadd.f32 0.0, %v8090
        %v8092 = vpop.f32.mrf.mxu0
        %v8093 = vpop.f32.mrf.mxu0
        %v8094 = vadd.f32 0.0, %v8093
        %v8095 = vpop.f32.mrf.mxu0
        %8096 = vmatprep.mubr.bf16.mxu0 0
        %8097 = vmatmul.mubr.bf16.gmra.mxu0 %v7956
        %v8098 = vpop.f32.mrf.mxu0
        %v8099 = vadd.f32 0.0, %v8098
        %v8100 = vpop.f32.mrf.mxu0
        %v8101 = vpop.f32.mrf.mxu0
        %v8102 = vadd.f32 0.0, %v8101
        %v8103 = vpop.f32.mrf.mxu0
        %8104 = vmatprep.mubr.bf16.mxu0 0
        %8105 = vmatmul.mubr.bf16.gmra.mxu0 %v7957
        %v8106 = vpop.f32.mrf.mxu0
        %v8107 = vadd.f32 0.0, %v8106
        %v8108 = vpop.f32.mrf.mxu0
        %v8109 = vpop.f32.mrf.mxu0
        %v8110 = vadd.f32 0.0, %v8109
        %v8111 = vpop.f32.mrf.mxu0
        %8112 = vmatprep.mubr.bf16.mxu0 0
        %8113 = vmatmul.mubr.bf16.gmra.mxu0 %v7958
        %v8114 = vpop.f32.mrf.mxu0
        %v8115 = vadd.f32 0.0, %v8114
        %v8116 = vpop.f32.mrf.mxu0
        %v8117 = vpop.f32.mrf.mxu0
        %v8118 = vadd.f32 0.0, %v8117
        %v8119 = vpop.f32.mrf.mxu0
        %8120 = vmatprep.mubr.bf16.mxu0 0
        %8121 = vmatmul.mubr.bf16.gmra.mxu0 %v7959
        %v8122 = vpop.f32.mrf.mxu0
        %v8123 = vadd.f32 0.0, %v8122
        %v8124 = vpop.f32.mrf.mxu0
        %v8125 = vpop.f32.mrf.mxu0
        %v8126 = vadd.f32 0.0, %v8125
        %v8127 = vpop.f32.mrf.mxu0
        %8128 = vmatprep.mubr.bf16.mxu0 0
        %8129 = vmatmul.mubr.bf16.gmra.mxu0 %v7960
        %v8130 = vpop.f32.mrf.mxu0
        %v8131 = vadd.f32 0.0, %v8130
        %v8132 = vpop.f32.mrf.mxu0
        %v8133 = vpop.f32.mrf.mxu0
        %v8134 = vadd.f32 0.0, %v8133
        %v8135 = vpop.f32.mrf.mxu0
        %8136 = vmatprep.mubr.bf16.mxu0 0
        %8137 = vmatmul.mubr.bf16.gmra.mxu0 %v7961
        %v8138 = vpop.f32.mrf.mxu0
        %v8139 = vadd.f32 0.0, %v8138
        %v8140 = vpop.f32.mrf.mxu0
        %v8141 = vpop.f32.mrf.mxu0
        %v8142 = vadd.f32 0.0, %v8141
        %v8143 = vpop.f32.mrf.mxu0
        %8144 = vmatprep.mubr.bf16.mxu0 0
        %8145 = vmatmul.mubr.bf16.gmra.mxu0 %v7962
        %v8146 = vpop.f32.mrf.mxu0
        %v8147 = vadd.f32 0.0, %v8146
        %v8148 = vpop.f32.mrf.mxu0
        %v8149 = vpop.f32.mrf.mxu0
        %v8150 = vadd.f32 0.0, %v8149
        %v8151 = vpop.f32.mrf.mxu0
        %8152 = vmatprep.mubr.bf16.mxu0 0
        %8153 = vmatmul.mubr.bf16.gmra.mxu0 %v7963
        %v8154 = vpop.f32.mrf.mxu0
        %v8155 = vadd.f32 0.0, %v8154
        %v8156 = vpop.f32.mrf.mxu0
        %v8157 = vpop.f32.mrf.mxu0
        %v8158 = vadd.f32 0.0, %v8157
        %v8159 = vpop.f32.mrf.mxu0
        %8160 = vmatprep.mubr.bf16.mxu0 0
        %8161 = vmatmul.mubr.bf16.gmra.mxu0 %v7964
        %v8162 = vpop.f32.mrf.mxu0
        %v8163 = vadd.f32 0.0, %v8162
        %v8164 = vpop.f32.mrf.mxu0
        %v8165 = vpop.f32.mrf.mxu0
        %v8166 = vadd.f32 0.0, %v8165
        %v8167 = vpop.f32.mrf.mxu0
        %8168 = vmatprep.mubr.bf16.mxu0 0
        %8169 = vmatmul.mubr.bf16.gmra.mxu0 %v7965
        %v8170 = vpop.f32.mrf.mxu0
        %v8171 = vadd.f32 0.0, %v8170
        %v8172 = vpop.f32.mrf.mxu0
        %v8173 = vpop.f32.mrf.mxu0
        %v8174 = vadd.f32 0.0, %v8173
        %v8175 = vpop.f32.mrf.mxu0
        %8176 = vmatprep.mubr.bf16.mxu0 0
        %8177 = vmatmul.mubr.bf16.gmra.mxu0 %v7966
        %v8178 = vpop.f32.mrf.mxu0
        %v8179 = vadd.f32 0.0, %v8178
        %v8180 = vpop.f32.mrf.mxu0
        %v8181 = vpop.f32.mrf.mxu0
        %v8182 = vadd.f32 0.0, %v8181
        %v8183 = vpop.f32.mrf.mxu0
        %8184 = vmatprep.mubr.bf16.mxu0 0
        %8185 = vmatmul.mubr.bf16.gmra.mxu0 %v7967
        %v8186 = vpop.f32.mrf.mxu0
        %v8187 = vadd.f32 0.0, %v8186
        %v8188 = vpop.f32.mrf.mxu0
        %v8189 = vpop.f32.mrf.mxu0
        %v8190 = vadd.f32 0.0, %v8189
        %v8191 = vpop.f32.mrf.mxu0
        %8192 = vdwg.mxu0
        %v8209 = vunpack.c.l.b16 %v7936
        %v8210 = vunpack.c.l.b16 %v7937
        %v8211 = vunpack.c.l.b16 %v7938
        %v8212 = vunpack.c.l.b16 %v7939
        %v8213 = vunpack.c.l.b16 %v7940
        %v8214 = vunpack.c.l.b16 %v7941
        %v8215 = vunpack.c.l.b16 %v7942
        %v8216 = vunpack.c.l.b16 %v7943
        %v8217 = vunpack.c.l.b16 %v7944
        %v8218 = vunpack.c.l.b16 %v7945
        %v8219 = vunpack.c.l.b16 %v7946
        %v8220 = vunpack.c.l.b16 %v7947
        %v8221 = vunpack.c.l.b16 %v7948
        %v8222 = vunpack.c.l.b16 %v7949
        %v8223 = vunpack.c.l.b16 %v7950
        %v8224 = vunpack.c.l.b16 %v7951
        %v8225 = vpack.c.b16 %v8210, %v8209
        %v8226 = vpack.c.b16 %v8212, %v8211
        %v8227 = vpack.c.b16 %v8214, %v8213
        %v8228 = vpack.c.b16 %v8216, %v8215
        %v8229 = vpack.c.b16 %v8218, %v8217
        %v8230 = vpack.c.b16 %v8220, %v8219
        %v8231 = vpack.c.b16 %v8222, %v8221
        %v8232 = vpack.c.b16 %v8224, %v8223
        %8241 = vmatprep.subr.bf16.mxu0 0
        %8242 = vmatpush1.bf16.msra.mxu0 %v8232
        %8243 = vmatprep.subr.bf16.mxu0 0
        %8244 = vmatpush1.bf16.msra.mxu0 %v8231
        %8245 = vmatprep.subr.bf16.mxu0 0
        %8246 = vmatpush1.bf16.msra.mxu0 %v8230
        %8247 = vmatprep.subr.bf16.mxu0 0
        %8248 = vmatpush1.bf16.msra.mxu0 %v8229
        %8249 = vmatprep.subr.bf16.mxu0 0
        %8250 = vmatpush1.bf16.msra.mxu0 %v8228
        %8251 = vmatprep.subr.bf16.mxu0 0
        %8252 = vmatpush1.bf16.msra.mxu0 %v8227
        %8253 = vmatprep.subr.bf16.mxu0 0
        %8254 = vmatpush1.bf16.msra.mxu0 %v8226
        %8255 = vmatprep.subr.bf16.mxu0 0
        %8256 = vmatpush1.bf16.msra.mxu0 %v8225
        %8257 = vmatprep.subr.bf16.mxu0 0
        %8258 = vmatpush2.bf16.msra.mxu0 0
        %8259 = vmatprep.subr.bf16.mxu0 0
        %8260 = vmatpush2.bf16.msra.mxu0 0
        %8261 = vmatprep.subr.bf16.mxu0 0
        %8262 = vmatpush2.bf16.msra.mxu0 0
        %8263 = vmatprep.subr.bf16.mxu0 0
        %8264 = vmatpush2.bf16.msra.mxu0 0
        %8265 = vmatprep.subr.bf16.mxu0 0
        %8266 = vmatpush2.bf16.msra.mxu0 0
        %8267 = vmatprep.subr.bf16.mxu0 0
        %8268 = vmatpush2.bf16.msra.mxu0 0
        %8269 = vmatprep.subr.bf16.mxu0 0
        %8270 = vmatpush2.bf16.msra.mxu0 0
        %8271 = vmatprep.subr.bf16.mxu0 0
        %8272 = vmatpush2.bf16.msra.mxu0 0
        %8273 = vmatprep.mubr.bf16.mxu0 0
        %8274 = vmatmul.mubr.bf16.gmra.mxu0 %v7920
        %v8275 = vpop.f32.mrf.mxu0
        %v8276 = vadd.f32 %v8067, %v8275
        %v8277 = vpop.f32.mrf.mxu0
        %v8278 = vpop.f32.mrf.mxu0
        %v8279 = vadd.f32 %v8070, %v8278
        %v8280 = vpop.f32.mrf.mxu0
        %8281 = vmatprep.mubr.bf16.mxu0 0
        %8282 = vmatmul.mubr.bf16.gmra.mxu0 %v7921
        %v8283 = vpop.f32.mrf.mxu0
        %v8284 = vadd.f32 %v8075, %v8283
        %v8285 = vpop.f32.mrf.mxu0
        %v8286 = vpop.f32.mrf.mxu0
        %v8287 = vadd.f32 %v8078, %v8286
        %v8288 = vpop.f32.mrf.mxu0
        %8289 = vmatprep.mubr.bf16.mxu0 0
        %8290 = vmatmul.mubr.bf16.gmra.mxu0 %v7922
        %v8291 = vpop.f32.mrf.mxu0
        %v8292 = vadd.f32 %v8083, %v8291
        %v8293 = vpop.f32.mrf.mxu0
        %v8294 = vpop.f32.mrf.mxu0
        %v8295 = vadd.f32 %v8086, %v8294
        %v8296 = vpop.f32.mrf.mxu0
        %8297 = vmatprep.mubr.bf16.mxu0 0
        %8298 = vmatmul.mubr.bf16.gmra.mxu0 %v7923
        %v8299 = vpop.f32.mrf.mxu0
        %v8300 = vadd.f32 %v8091, %v8299
        %v8301 = vpop.f32.mrf.mxu0
        %v8302 = vpop.f32.mrf.mxu0
        %v8303 = vadd.f32 %v8094, %v8302
        %v8304 = vpop.f32.mrf.mxu0
        %8305 = vmatprep.mubr.bf16.mxu0 0
        %8306 = vmatmul.mubr.bf16.gmra.mxu0 %v7924
        %v8307 = vpop.f32.mrf.mxu0
        %v8308 = vadd.f32 %v8099, %v8307
        %v8309 = vpop.f32.mrf.mxu0
        %v8310 = vpop.f32.mrf.mxu0
        %v8311 = vadd.f32 %v8102, %v8310
        %v8312 = vpop.f32.mrf.mxu0
        %8313 = vmatprep.mubr.bf16.mxu0 0
        %8314 = vmatmul.mubr.bf16.gmra.mxu0 %v7925
        %v8315 = vpop.f32.mrf.mxu0
        %v8316 = vadd.f32 %v8107, %v8315
        %v8317 = vpop.f32.mrf.mxu0
        %v8318 = vpop.f32.mrf.mxu0
        %v8319 = vadd.f32 %v8110, %v8318
        %v8320 = vpop.f32.mrf.mxu0
        %8321 = vmatprep.mubr.bf16.mxu0 0
        %8322 = vmatmul.mubr.bf16.gmra.mxu0 %v7926
        %v8323 = vpop.f32.mrf.mxu0
        %v8324 = vadd.f32 %v8115, %v8323
        %v8325 = vpop.f32.mrf.mxu0
        %v8326 = vpop.f32.mrf.mxu0
        %v8327 = vadd.f32 %v8118, %v8326
        %v8328 = vpop.f32.mrf.mxu0
        %8329 = vmatprep.mubr.bf16.mxu0 0
        %8330 = vmatmul.mubr.bf16.gmra.mxu0 %v7927
        %v8331 = vpop.f32.mrf.mxu0
        %v8332 = vadd.f32 %v8123, %v8331
        %v8333 = vpop.f32.mrf.mxu0
        %v8334 = vpop.f32.mrf.mxu0
        %v8335 = vadd.f32 %v8126, %v8334
        %v8336 = vpop.f32.mrf.mxu0
        %8337 = vmatprep.mubr.bf16.mxu0 0
        %8338 = vmatmul.mubr.bf16.gmra.mxu0 %v7928
        %v8339 = vpop.f32.mrf.mxu0
        %v8340 = vadd.f32 %v8131, %v8339
        %v8341 = vpop.f32.mrf.mxu0
        %v8342 = vpop.f32.mrf.mxu0
        %v8343 = vadd.f32 %v8134, %v8342
        %v8344 = vpop.f32.mrf.mxu0
        %8345 = vmatprep.mubr.bf16.mxu0 0
        %8346 = vmatmul.mubr.bf16.gmra.mxu0 %v7929
        %v8347 = vpop.f32.mrf.mxu0
        %v8348 = vadd.f32 %v8139, %v8347
        %v8349 = vpop.f32.mrf.mxu0
        %v8350 = vpop.f32.mrf.mxu0
        %v8351 = vadd.f32 %v8142, %v8350
        %v8352 = vpop.f32.mrf.mxu0
        %8353 = vmatprep.mubr.bf16.mxu0 0
        %8354 = vmatmul.mubr.bf16.gmra.mxu0 %v7930
        %v8355 = vpop.f32.mrf.mxu0
        %v8356 = vadd.f32 %v8147, %v8355
        %v8357 = vpop.f32.mrf.mxu0
        %v8358 = vpop.f32.mrf.mxu0
        %v8359 = vadd.f32 %v8150, %v8358
        %v8360 = vpop.f32.mrf.mxu0
        %8361 = vmatprep.mubr.bf16.mxu0 0
        %8362 = vmatmul.mubr.bf16.gmra.mxu0 %v7931
        %v8363 = vpop.f32.mrf.mxu0
        %v8364 = vadd.f32 %v8155, %v8363
        %v8365 = vpop.f32.mrf.mxu0
        %v8366 = vpop.f32.mrf.mxu0
        %v8367 = vadd.f32 %v8158, %v8366
        %v8368 = vpop.f32.mrf.mxu0
        %8369 = vmatprep.mubr.bf16.mxu0 0
        %8370 = vmatmul.mubr.bf16.gmra.mxu0 %v7932
        %v8371 = vpop.f32.mrf.mxu0
        %v8372 = vadd.f32 %v8163, %v8371
        %v8373 = vpop.f32.mrf.mxu0
        %v8374 = vpop.f32.mrf.mxu0
        %v8375 = vadd.f32 %v8166, %v8374
        %v8376 = vpop.f32.mrf.mxu0
        %8377 = vmatprep.mubr.bf16.mxu0 0
        %8378 = vmatmul.mubr.bf16.gmra.mxu0 %v7933
        %v8379 = vpop.f32.mrf.mxu0
        %v8380 = vadd.f32 %v8171, %v8379
        %v8381 = vpop.f32.mrf.mxu0
        %v8382 = vpop.f32.mrf.mxu0
        %v8383 = vadd.f32 %v8174, %v8382
        %v8384 = vpop.f32.mrf.mxu0
        %8385 = vmatprep.mubr.bf16.mxu0 0
        %8386 = vmatmul.mubr.bf16.gmra.mxu0 %v7934
        %v8387 = vpop.f32.mrf.mxu0
        %v8388 = vadd.f32 %v8179, %v8387
        %v8389 = vpop.f32.mrf.mxu0
        %v8390 = vpop.f32.mrf.mxu0
        %v8391 = vadd.f32 %v8182, %v8390
        %v8392 = vpop.f32.mrf.mxu0
        %8393 = vmatprep.mubr.bf16.mxu0 0
        %8394 = vmatmul.mubr.bf16.gmra.mxu0 %v7935
        %v8395 = vpop.f32.mrf.mxu0
        %v8396 = vadd.f32 %v8187, %v8395
        %v8397 = vpop.f32.mrf.mxu0
        %v8398 = vpop.f32.mrf.mxu0
        %v8399 = vadd.f32 %v8190, %v8398
        %v8400 = vpop.f32.mrf.mxu0
        %8401 = vdwg.mxu0
        %v8402 = vpack.c.bf16 %v7889, %v7888
        %v8403 = vpack.c.bf16 %v7891, %v7890
        %v8404 = vpack.c.bf16 %v7893, %v7892
        %v8405 = vpack.c.bf16 %v7895, %v7894
        %v8406 = vpack.c.bf16 %v7897, %v7896
        %v8407 = vpack.c.bf16 %v7899, %v7898
        %v8408 = vpack.c.bf16 %v7901, %v7900
        %v8409 = vpack.c.bf16 %v7903, %v7902
        %v8410 = vpack.c.bf16 %v7905, %v7904
        %v8411 = vpack.c.bf16 %v7907, %v7906
        %v8412 = vpack.c.bf16 %v7909, %v7908
        %v8413 = vpack.c.bf16 %v7911, %v7910
        %v8414 = vpack.c.bf16 %v7913, %v7912
        %v8415 = vpack.c.bf16 %v7915, %v7914
        %v8416 = vpack.c.bf16 %v7917, %v7916
        %v8417 = vpack.c.bf16 %v7919, %v7918
        %v8418 = vld [vmem:[#allocation10] sm:$0xf]
        %v8419 = vld [vmem:[#allocation10 + $0x4] sm:$0xf]
        %v8420 = vld [vmem:[#allocation10 + $0x8] sm:$0xf]
        %v8421 = vld [vmem:[#allocation10 + $0xc] sm:$0xf]
        %v8422 = vld [vmem:[#allocation10 + $0x10] sm:$0xf]
        %v8423 = vld [vmem:[#allocation10 + $0x14] sm:$0xf]
        %v8424 = vld [vmem:[#allocation10 + $0x18] sm:$0xf]
        %v8425 = vld [vmem:[#allocation10 + $0x1c] sm:$0xf]
        %v8426 = vld [vmem:[#allocation10 + $0x20] sm:$0xf]
        %v8427 = vld [vmem:[#allocation10 + $0x24] sm:$0xf]
        %v8428 = vld [vmem:[#allocation10 + $0x28] sm:$0xf]
        %v8429 = vld [vmem:[#allocation10 + $0x2c] sm:$0xf]
        %v8430 = vld [vmem:[#allocation10 + $0x30] sm:$0xf]
        %v8431 = vld [vmem:[#allocation10 + $0x34] sm:$0xf]
        %v8432 = vld [vmem:[#allocation10 + $0x38] sm:$0xf]
        %v8433 = vld [vmem:[#allocation10 + $0x3c] sm:$0xf]
        %v8450 = vunpack.c.l.b16 %v8418
        %v8451 = vunpack.c.l.b16 %v8419
        %v8452 = vunpack.c.l.b16 %v8420
        %v8453 = vunpack.c.l.b16 %v8421
        %v8454 = vunpack.c.l.b16 %v8422
        %v8455 = vunpack.c.l.b16 %v8423
        %v8456 = vunpack.c.l.b16 %v8424
        %v8457 = vunpack.c.l.b16 %v8425
        %v8458 = vunpack.c.l.b16 %v8426
        %v8459 = vunpack.c.l.b16 %v8427
        %v8460 = vunpack.c.l.b16 %v8428
        %v8461 = vunpack.c.l.b16 %v8429
        %v8462 = vunpack.c.l.b16 %v8430
        %v8463 = vunpack.c.l.b16 %v8431
        %v8464 = vunpack.c.l.b16 %v8432
        %v8465 = vunpack.c.l.b16 %v8433
        %v8466 = vpack.c.b16 %v8451, %v8450
        %v8467 = vpack.c.b16 %v8453, %v8452
        %v8468 = vpack.c.b16 %v8455, %v8454
        %v8469 = vpack.c.b16 %v8457, %v8456
        %v8470 = vpack.c.b16 %v8459, %v8458
        %v8471 = vpack.c.b16 %v8461, %v8460
        %v8472 = vpack.c.b16 %v8463, %v8462
        %v8473 = vpack.c.b16 %v8465, %v8464
        %8482 = vmatprep.subr.bf16.mxu0 0
        %8483 = vmatpush1.bf16.msra.mxu0 %v8473
        %8484 = vmatprep.subr.bf16.mxu0 0
        %8485 = vmatpush1.bf16.msra.mxu0 %v8472
        %8486 = vmatprep.subr.bf16.mxu0 0
        %8487 = vmatpush1.bf16.msra.mxu0 %v8471
        %8488 = vmatprep.subr.bf16.mxu0 0
        %8489 = vmatpush1.bf16.msra.mxu0 %v8470
        %8490 = vmatprep.subr.bf16.mxu0 0
        %8491 = vmatpush1.bf16.msra.mxu0 %v8469
        %8492 = vmatprep.subr.bf16.mxu0 0
        %8493 = vmatpush1.bf16.msra.mxu0 %v8468
        %8494 = vmatprep.subr.bf16.mxu0 0
        %8495 = vmatpush1.bf16.msra.mxu0 %v8467
        %8496 = vmatprep.subr.bf16.mxu0 0
        %8497 = vmatpush1.bf16.msra.mxu0 %v8466
        %8498 = vmatprep.subr.bf16.mxu0 0
        %8499 = vmatpush2.bf16.msra.mxu0 0
        %8500 = vmatprep.subr.bf16.mxu0 0
        %8501 = vmatpush2.bf16.msra.mxu0 0
        %8502 = vmatprep.subr.bf16.mxu0 0
        %8503 = vmatpush2.bf16.msra.mxu0 0
        %8504 = vmatprep.subr.bf16.mxu0 0
        %8505 = vmatpush2.bf16.msra.mxu0 0
        %8506 = vmatprep.subr.bf16.mxu0 0
        %8507 = vmatpush2.bf16.msra.mxu0 0
        %8508 = vmatprep.subr.bf16.mxu0 0
        %8509 = vmatpush2.bf16.msra.mxu0 0
        %8510 = vmatprep.subr.bf16.mxu0 0
        %8511 = vmatpush2.bf16.msra.mxu0 0
        %8512 = vmatprep.subr.bf16.mxu0 0
        %8513 = vmatpush2.bf16.msra.mxu0 0
        %8514 = vmatprep.mubr.bf16.mxu0 0
        %8515 = vmatmul.mubr.bf16.gmra.mxu0 %v8402
        %v8516 = vpop.f32.mrf.mxu0
        %v8517 = vadd.f32 0.0, %v8516
        %v8518 = vpop.f32.mrf.mxu0
        %v8519 = vpop.f32.mrf.mxu0
        %v8520 = vadd.f32 0.0, %v8519
        %v8521 = vpop.f32.mrf.mxu0
        %8522 = vmatprep.mubr.bf16.mxu0 0
        %8523 = vmatmul.mubr.bf16.gmra.mxu0 %v8403
        %v8524 = vpop.f32.mrf.mxu0
        %v8525 = vadd.f32 0.0, %v8524
        %v8526 = vpop.f32.mrf.mxu0
        %v8527 = vpop.f32.mrf.mxu0
        %v8528 = vadd.f32 0.0, %v8527
        %v8529 = vpop.f32.mrf.mxu0
        %8530 = vmatprep.mubr.bf16.mxu0 0
        %8531 = vmatmul.mubr.bf16.gmra.mxu0 %v8404
        %v8532 = vpop.f32.mrf.mxu0
        %v8533 = vadd.f32 0.0, %v8532
        %v8534 = vpop.f32.mrf.mxu0
        %v8535 = vpop.f32.mrf.mxu0
        %v8536 = vadd.f32 0.0, %v8535
        %v8537 = vpop.f32.mrf.mxu0
        %8538 = vmatprep.mubr.bf16.mxu0 0
        %8539 = vmatmul.mubr.bf16.gmra.mxu0 %v8405
        %v8540 = vpop.f32.mrf.mxu0
        %v8541 = vadd.f32 0.0, %v8540
        %v8542 = vpop.f32.mrf.mxu0
        %v8543 = vpop.f32.mrf.mxu0
        %v8544 = vadd.f32 0.0, %v8543
        %v8545 = vpop.f32.mrf.mxu0
        %8546 = vmatprep.mubr.bf16.mxu0 0
        %8547 = vmatmul.mubr.bf16.gmra.mxu0 %v8406
        %v8548 = vpop.f32.mrf.mxu0
        %v8549 = vadd.f32 0.0, %v8548
        %v8550 = vpop.f32.mrf.mxu0
        %v8551 = vpop.f32.mrf.mxu0
        %v8552 = vadd.f32 0.0, %v8551
        %v8553 = vpop.f32.mrf.mxu0
        %8554 = vmatprep.mubr.bf16.mxu0 0
        %8555 = vmatmul.mubr.bf16.gmra.mxu0 %v8407
        %v8556 = vpop.f32.mrf.mxu0
        %v8557 = vadd.f32 0.0, %v8556
        %v8558 = vpop.f32.mrf.mxu0
        %v8559 = vpop.f32.mrf.mxu0
        %v8560 = vadd.f32 0.0, %v8559
        %v8561 = vpop.f32.mrf.mxu0
        %8562 = vmatprep.mubr.bf16.mxu0 0
        %8563 = vmatmul.mubr.bf16.gmra.mxu0 %v8408
        %v8564 = vpop.f32.mrf.mxu0
        %v8565 = vadd.f32 0.0, %v8564
        %v8566 = vpop.f32.mrf.mxu0
        %v8567 = vpop.f32.mrf.mxu0
        %v8568 = vadd.f32 0.0, %v8567
        %v8569 = vpop.f32.mrf.mxu0
        %8570 = vmatprep.mubr.bf16.mxu0 0
        %8571 = vmatmul.mubr.bf16.gmra.mxu0 %v8409
        %v8572 = vpop.f32.mrf.mxu0
        %v8573 = vadd.f32 0.0, %v8572
        %v8574 = vpop.f32.mrf.mxu0
        %v8575 = vpop.f32.mrf.mxu0
        %v8576 = vadd.f32 0.0, %v8575
        %v8577 = vpop.f32.mrf.mxu0
        %8578 = vmatprep.mubr.bf16.mxu0 0
        %8579 = vmatmul.mubr.bf16.gmra.mxu0 %v8410
        %v8580 = vpop.f32.mrf.mxu0
        %v8581 = vadd.f32 0.0, %v8580
        %v8582 = vpop.f32.mrf.mxu0
        %v8583 = vpop.f32.mrf.mxu0
        %v8584 = vadd.f32 0.0, %v8583
        %v8585 = vpop.f32.mrf.mxu0
        %8586 = vmatprep.mubr.bf16.mxu0 0
        %8587 = vmatmul.mubr.bf16.gmra.mxu0 %v8411
        %v8588 = vpop.f32.mrf.mxu0
        %v8589 = vadd.f32 0.0, %v8588
        %v8590 = vpop.f32.mrf.mxu0
        %v8591 = vpop.f32.mrf.mxu0
        %v8592 = vadd.f32 0.0, %v8591
        %v8593 = vpop.f32.mrf.mxu0
        %8594 = vmatprep.mubr.bf16.mxu0 0
        %8595 = vmatmul.mubr.bf16.gmra.mxu0 %v8412
        %v8596 = vpop.f32.mrf.mxu0
        %v8597 = vadd.f32 0.0, %v8596
        %v8598 = vpop.f32.mrf.mxu0
        %v8599 = vpop.f32.mrf.mxu0
        %v8600 = vadd.f32 0.0, %v8599
        %v8601 = vpop.f32.mrf.mxu0
        %8602 = vmatprep.mubr.bf16.mxu0 0
        %8603 = vmatmul.mubr.bf16.gmra.mxu0 %v8413
        %v8604 = vpop.f32.mrf.mxu0
        %v8605 = vadd.f32 0.0, %v8604
        %v8606 = vpop.f32.mrf.mxu0
        %v8607 = vpop.f32.mrf.mxu0
        %v8608 = vadd.f32 0.0, %v8607
        %v8609 = vpop.f32.mrf.mxu0
        %8610 = vmatprep.mubr.bf16.mxu0 0
        %8611 = vmatmul.mubr.bf16.gmra.mxu0 %v8414
        %v8612 = vpop.f32.mrf.mxu0
        %v8613 = vadd.f32 0.0, %v8612
        %v8614 = vpop.f32.mrf.mxu0
        %v8615 = vpop.f32.mrf.mxu0
        %v8616 = vadd.f32 0.0, %v8615
        %v8617 = vpop.f32.mrf.mxu0
        %8618 = vmatprep.mubr.bf16.mxu0 0
        %8619 = vmatmul.mubr.bf16.gmra.mxu0 %v8415
        %v8620 = vpop.f32.mrf.mxu0
        %v8621 = vadd.f32 0.0, %v8620
        %v8622 = vpop.f32.mrf.mxu0
        %v8623 = vpop.f32.mrf.mxu0
        %v8624 = vadd.f32 0.0, %v8623
        %v8625 = vpop.f32.mrf.mxu0
        %8626 = vmatprep.mubr.bf16.mxu0 0
        %8627 = vmatmul.mubr.bf16.gmra.mxu0 %v8416
        %v8628 = vpop.f32.mrf.mxu0
        %v8629 = vadd.f32 0.0, %v8628
        %v8630 = vpop.f32.mrf.mxu0
        %v8631 = vpop.f32.mrf.mxu0
        %v8632 = vadd.f32 0.0, %v8631
        %v8633 = vpop.f32.mrf.mxu0
        %8634 = vmatprep.mubr.bf16.mxu0 0
        %8635 = vmatmul.mubr.bf16.gmra.mxu0 %v8417
        %v8636 = vpop.f32.mrf.mxu0
        %v8637 = vadd.f32 0.0, %v8636
        %v8638 = vpop.f32.mrf.mxu0
        %v8639 = vpop.f32.mrf.mxu0
        %v8640 = vadd.f32 0.0, %v8639
        %v8641 = vpop.f32.mrf.mxu0
        %8642 = vdwg.mxu0
        %v8643 = vadd.f32 %v8276, %v8517
        %v8644 = vadd.f32 %v8279, %v8520
        %v8645 = vadd.f32 %v8284, %v8525
        %v8646 = vadd.f32 %v8287, %v8528
        %v8647 = vadd.f32 %v8292, %v8533
        %v8648 = vadd.f32 %v8295, %v8536
        %v8649 = vadd.f32 %v8300, %v8541
        %v8650 = vadd.f32 %v8303, %v8544
        %v8651 = vadd.f32 %v8308, %v8549
        %v8652 = vadd.f32 %v8311, %v8552
        %v8653 = vadd.f32 %v8316, %v8557
        %v8654 = vadd.f32 %v8319, %v8560
        %v8655 = vadd.f32 %v8324, %v8565
        %v8656 = vadd.f32 %v8327, %v8568
        %v8657 = vadd.f32 %v8332, %v8573
        %v8658 = vadd.f32 %v8335, %v8576
        %v8659 = vadd.f32 %v8340, %v8581
        %v8660 = vadd.f32 %v8343, %v8584
        %v8661 = vadd.f32 %v8348, %v8589
        %v8662 = vadd.f32 %v8351, %v8592
        %v8663 = vadd.f32 %v8356, %v8597
        %v8664 = vadd.f32 %v8359, %v8600
        %v8665 = vadd.f32 %v8364, %v8605
        %v8666 = vadd.f32 %v8367, %v8608
        %v8667 = vadd.f32 %v8372, %v8613
        %v8668 = vadd.f32 %v8375, %v8616
        %v8669 = vadd.f32 %v8380, %v8621
        %v8670 = vadd.f32 %v8383, %v8624
        %v8671 = vadd.f32 %v8388, %v8629
        %v8672 = vadd.f32 %v8391, %v8632
        %v8673 = vadd.f32 %v8396, %v8637
        %v8674 = vadd.f32 %v8399, %v8640
        %v8675 = vld [vmem:[%s6] sm:$0x1]
        %v8677 = vlaneseq
        %v8678 = vshrl.u32 %v8677, 7
        %v8679 = vsub.s32 0, %v8678
        %v8680 = vrot.slane %v8675, %v8679
        %v8682 = vadd.f32 %v8643, %v8680
        %v8683 = vadd.f32 %v8644, %v8680
        %v8684 = vadd.f32 %v8645, %v8680
        %v8685 = vadd.f32 %v8646, %v8680
        %v8686 = vadd.f32 %v8647, %v8680
        %v8687 = vadd.f32 %v8648, %v8680
        %v8688 = vadd.f32 %v8649, %v8680
        %v8689 = vadd.f32 %v8650, %v8680
        %v8690 = vadd.f32 %v8651, %v8680
        %v8691 = vadd.f32 %v8652, %v8680
        %v8692 = vadd.f32 %v8653, %v8680
        %v8693 = vadd.f32 %v8654, %v8680
        %v8694 = vadd.f32 %v8655, %v8680
        %v8695 = vadd.f32 %v8656, %v8680
        %v8696 = vadd.f32 %v8657, %v8680
        %v8697 = vadd.f32 %v8658, %v8680
        %v8698 = vadd.f32 %v8659, %v8680
        %v8699 = vadd.f32 %v8660, %v8680
        %v8700 = vadd.f32 %v8661, %v8680
        %v8701 = vadd.f32 %v8662, %v8680
        %v8702 = vadd.f32 %v8663, %v8680
        %v8703 = vadd.f32 %v8664, %v8680
        %v8704 = vadd.f32 %v8665, %v8680
        %v8705 = vadd.f32 %v8666, %v8680
        %v8706 = vadd.f32 %v8667, %v8680
        %v8707 = vadd.f32 %v8668, %v8680
        %v8708 = vadd.f32 %v8669, %v8680
        %v8709 = vadd.f32 %v8670, %v8680
        %v8710 = vadd.f32 %v8671, %v8680
        %v8711 = vadd.f32 %v8672, %v8680
        %v8712 = vadd.f32 %v8673, %v8680
        %v8713 = vadd.f32 %v8674, %v8680
        %v8714 = vmax.f32 %v8682, 0.0
        %v8715 = vmax.f32 %v8683, 0.0
        %v8716 = vmax.f32 %v8684, 0.0
        %v8717 = vmax.f32 %v8685, 0.0
        %v8718 = vmax.f32 %v8686, 0.0
        %v8719 = vmax.f32 %v8687, 0.0
        %v8720 = vmax.f32 %v8688, 0.0
        %v8721 = vmax.f32 %v8689, 0.0
        %v8722 = vmax.f32 %v8690, 0.0
        %v8723 = vmax.f32 %v8691, 0.0
        %v8724 = vmax.f32 %v8692, 0.0
        %v8725 = vmax.f32 %v8693, 0.0
        %v8726 = vmax.f32 %v8694, 0.0
        %v8727 = vmax.f32 %v8695, 0.0
        %v8728 = vmax.f32 %v8696, 0.0
        %v8729 = vmax.f32 %v8697, 0.0
        %v8730 = vmax.f32 %v8698, 0.0
        %v8731 = vmax.f32 %v8699, 0.0
        %v8732 = vmax.f32 %v8700, 0.0
        %v8733 = vmax.f32 %v8701, 0.0
        %v8734 = vmax.f32 %v8702, 0.0
        %v8735 = vmax.f32 %v8703, 0.0
        %v8736 = vmax.f32 %v8704, 0.0
        %v8737 = vmax.f32 %v8705, 0.0
        %v8738 = vmax.f32 %v8706, 0.0
        %v8739 = vmax.f32 %v8707, 0.0
        %v8740 = vmax.f32 %v8708, 0.0
        %v8741 = vmax.f32 %v8709, 0.0
        %v8742 = vmax.f32 %v8710, 0.0
        %v8743 = vmax.f32 %v8711, 0.0
        %v8744 = vmax.f32 %v8712, 0.0
        %v8745 = vmax.f32 %v8713, 0.0
        %v8746 = vsel %vm2994, 1, 0
        %vm8747 = vcmp.eq.s32.totalorder %v8746, 1
        %v8748 = vsel %vm8747, %v8682, %v8714
        %v8749 = vsel %vm8747, %v8683, %v8715
        %v8750 = vsel %vm8747, %v8684, %v8716
        %v8751 = vsel %vm8747, %v8685, %v8717
        %v8752 = vsel %vm8747, %v8686, %v8718
        %v8753 = vsel %vm8747, %v8687, %v8719
        %v8754 = vsel %vm8747, %v8688, %v8720
        %v8755 = vsel %vm8747, %v8689, %v8721
        %v8756 = vsel %vm8747, %v8690, %v8722
        %v8757 = vsel %vm8747, %v8691, %v8723
        %v8758 = vsel %vm8747, %v8692, %v8724
        %v8759 = vsel %vm8747, %v8693, %v8725
        %v8760 = vsel %vm8747, %v8694, %v8726
        %v8761 = vsel %vm8747, %v8695, %v8727
        %v8762 = vsel %vm8747, %v8696, %v8728
        %v8763 = vsel %vm8747, %v8697, %v8729
        %v8764 = vsel %vm8747, %v8698, %v8730
        %v8765 = vsel %vm8747, %v8699, %v8731
        %v8766 = vsel %vm8747, %v8700, %v8732
        %v8767 = vsel %vm8747, %v8701, %v8733
        %v8768 = vsel %vm8747, %v8702, %v8734
        %v8769 = vsel %vm8747, %v8703, %v8735
        %v8770 = vsel %vm8747, %v8704, %v8736
        %v8771 = vsel %vm8747, %v8705, %v8737
        %v8772 = vsel %vm8747, %v8706, %v8738
        %v8773 = vsel %vm8747, %v8707, %v8739
        %v8774 = vsel %vm8747, %v8708, %v8740
        %v8775 = vsel %vm8747, %v8709, %v8741
        %v8776 = vsel %vm8747, %v8710, %v8742
        %v8777 = vsel %vm8747, %v8711, %v8743
        %v8778 = vsel %vm8747, %v8712, %v8744
        %v8779 = vsel %vm8747, %v8713, %v8745
        %8780 = vst [vmem:[%s354] sm:$0xff] %v8748
        %8781 = vst [vmem:[%s354 + $0x8] sm:$0xff] %v8749
        %8782 = vst [vmem:[%s354 + $0x10] sm:$0xff] %v8750
        %8783 = vst [vmem:[%s354 + $0x18] sm:$0xff] %v8751
        %8784 = vst [vmem:[%s354 + $0x20] sm:$0xff] %v8752
        %8785 = vst [vmem:[%s354 + $0x28] sm:$0xff] %v8753
        %8786 = vst [vmem:[%s354 + $0x30] sm:$0xff] %v8754
        %8787 = vst [vmem:[%s354 + $0x38] sm:$0xff] %v8755
        %8788 = vst [vmem:[%s354 + $0x40] sm:$0xff] %v8756
        %8789 = vst [vmem:[%s354 + $0x48] sm:$0xff] %v8757
        %8790 = vst [vmem:[%s354 + $0x50] sm:$0xff] %v8758
        %8791 = vst [vmem:[%s354 + $0x58] sm:$0xff] %v8759
        %8792 = vst [vmem:[%s354 + $0x60] sm:$0xff] %v8760
        %8793 = vst [vmem:[%s354 + $0x68] sm:$0xff] %v8761
        %8794 = vst [vmem:[%s354 + $0x70] sm:$0xff] %v8762
        %8795 = vst [vmem:[%s354 + $0x78] sm:$0xff] %v8763
        %8796 = vst [vmem:[%s354 + $0x80] sm:$0xff] %v8764
        %8797 = vst [vmem:[%s354 + $0x88] sm:$0xff] %v8765
        %8798 = vst [vmem:[%s354 + $0x90] sm:$0xff] %v8766
        %8799 = vst [vmem:[%s354 + $0x98] sm:$0xff] %v8767
        %8800 = vst [vmem:[%s354 + $0xa0] sm:$0xff] %v8768
        %8801 = vst [vmem:[%s354 + $0xa8] sm:$0xff] %v8769
        %8802 = vst [vmem:[%s354 + $0xb0] sm:$0xff] %v8770
        %8803 = vst [vmem:[%s354 + $0xb8] sm:$0xff] %v8771
        %8804 = vst [vmem:[%s354 + $0xc0] sm:$0xff] %v8772
        %8805 = vst [vmem:[%s354 + $0xc8] sm:$0xff] %v8773
        %8806 = vst [vmem:[%s354 + $0xd0] sm:$0xff] %v8774
        %8807 = vst [vmem:[%s354 + $0xd8] sm:$0xff] %v8775
        %8808 = vst [vmem:[%s354 + $0xe0] sm:$0xff] %v8776
        %8809 = vst [vmem:[%s354 + $0xe8] sm:$0xff] %v8777
        %8810 = vst [vmem:[%s354 + $0xf0] sm:$0xff] %v8778
        %8811 = vst [vmem:[%s354 + $0xf8] sm:$0xff] %v8779
        %s8812 = sand.u32 %s186, 1
        %s8813 = scalar_lea.sflag [#allocation4], %s8812
        %s8814 = sand.u32 %s186, 1
        %s8815 = smul.addr %s8814, 256
        %s8816 = scalar_lea.vmem [#allocation11], %s8815
        // Predicated region
        $region69: #{tpu_custom_call.1} parent=47 // pred_check
          %p8817 = pneg %p196
        $region70: #{tpu_custom_call.1} parent=47 // pred_check_branch
          %8819 = sbr.rel (%p8817) target = $region72
        $region71: #{tpu_custom_call.1} parent=47 // pred_region
          %s8820 = smul.u32 32, %s26
          %s8822 = ssub.s32 4096, 4096
          %8823 = vsyncadd %s8813, %s8822
          %s8824 = smul.addr %s8820, 128
          %s8825 = scalar_lea.hbm %s7, %s8824
          %s8826 = sshll.u32 %s8816, 4
          %s8827 = int_to_ptr.vmem [resolvable:$true] %s8826
          %8832 = dma.vmem_to_hbm [thread:$0]  %s8827, 4096, %s8825, %s8813, 128, 128, 8
        $region72: #{tpu_custom_call.1} parent=47 // pred_fallthru
          _
      $region48: #{tpu_custom_call.1} parent=5 // pred_fallthru
        _
      %p8833 = scmp.le.s32.totalorder 2, %s21
      // Predicated region
      $region73: #{tpu_custom_call.1} parent=5 // pred_check
        %p8834 = pneg %p8833
      $region74: #{tpu_custom_call.1} parent=5 // pred_check_branch
        %8836 = sbr.rel (%p8834) target = $region76
      $region75: #{tpu_custom_call.1} parent=5 // pred_region
        %s8837 = ssub.s32 %s21, 2
        // Predicated region
        $region77: #{tpu_custom_call.1} parent=75 // pred_check
          %p8838 = pneg %p202
        $region78: #{tpu_custom_call.1} parent=75 // pred_check_branch
          %8840 = sbr.rel (%p8838) target = $region80
        $region79: #{tpu_custom_call.1} parent=75 // pred_region
          %s8841 = sand.u32 %s187, 1
          %s8842 = scalar_lea.sflag [#allocation4], %s8841
          %s8843 = sand.u32 %s187, 1
          %s8844 = smul.addr %s8843, 256
          %s8845 = scalar_lea.vmem [#allocation11], %s8844
          %8846 = dma.done %s8842, 4096
        $region80: #{tpu_custom_call.1} parent=75 // pred_fallthru
          _
      $region76: #{tpu_custom_call.1} parent=5 // pred_fallthru
        _
    $region6: #{tpu_custom_call.1} parent=1 // loop_footer
      %s25 = sadd.s32 1, %s21
    $region7: #{tpu_custom_call.1} parent=1 // loop_footer_branch
      %20 = sbr.rel target = $region3
    $region8: #{tpu_custom_call.1} parent=1 // loop_exit
      _
    %8847 = vsyncpa [#allocation3], 1
    %s8848 = scalar_lea.sflag [#allocation3], 1
    %8849 = vsyncpa %s8848, 1
    %8850 = vsyncpa [#allocation6], 1
    %8851 = vsyncpa [#allocation9], 1
    %8852 = vsyncpa [#allocation4], 1
    %s8853 = scalar_lea.sflag [#allocation4], 1
    %8854 = vsyncpa %s8853, 1

</llo_original>
